<compile_context>
chip_gen: v7x
topology: tpu7x:2x2x1
jax: 0.10.0
libtpu: 0.0.40
codegen_flags: <defaults>
</compile_context>

<pallas_src>
import numpy as np
import jax
import jax.numpy as jnp
from jax.experimental import pallas as pl
from jax.experimental.pallas import tpu as pltpu

EPS = 0.8  # nn.BatchNorm2d(in_features, 0.8) -> eps = 0.8


def _conv_bn_stage_kernel(src_ref, scale_ref, shift_ref, alpha_ref, w_ref,
                          out_ref, sum_ref, sq_ref, pad_ref):
    """One image per grid step: affine+PReLU -> 3x3 conv on the MXU -> stats.

    src_ref   : (H, W, C)     input block (x, or previous stage's raw conv)
    scale_ref : (1, C)        folded per-channel scale (ones on stage 1)
    shift_ref : (1, C)        folded per-channel shift (zeros on stage 1)
    alpha_ref : (1,)  SMEM    PReLU slope (1.0 on stage 1 => identity)
    w_ref     : (9, C, C)     conv weights, tap-major [ky*3+kx, cin, cout]
    out_ref   : (H, W, C)     raw conv output (bias folded into next shift)
    sum_ref   : (1, C)        running per-channel sum of out   (accumulator)
    sq_ref    : (1, C)        running per-channel sumsq of out (accumulator)
    pad_ref   : (H+2, W+2, C) persistent scratch; 1-px border stays zero
    """
    H, W, C = out_ref.shape
    step = pl.program_id(0)

    @pl.when(step == 0)
    def _init():
        sum_ref[...] = jnp.zeros_like(sum_ref)
        sq_ref[...] = jnp.zeros_like(sq_ref)
        pad_ref[...] = jnp.zeros_like(pad_ref)  # zero border once, kept forever

    # Folded BN affine + PReLU epilogue of the previous stage (identity stage 1).
    t = src_ref[...] * scale_ref[...] + shift_ref[...]
    alpha = alpha_ref[0]
    t = jnp.where(t > 0.0, t, alpha * t)

    # Interior write into the zero-bordered scratch => implicit 'SAME' padding.
    pad_ref[1:H + 1, 1:W + 1, :] = t

    # 3x3 conv: 9 shifted slabs, channel contraction on the MXU.
    acc = jnp.zeros((H * W, C), jnp.float32)
    for k in range(9):
        dy, dx = divmod(k, 3)
        slab = pad_ref[dy:dy + H, dx:dx + W, :].reshape(H * W, C)
        acc = acc + jnp.dot(slab, w_ref[k], preferred_element_type=jnp.float32)

    out_ref[...] = acc.reshape(H, W, C)

    # One-pass BN statistics, accumulated across the batch grid.
    sum_ref[...] += jnp.sum(acc, axis=0, keepdims=True)
    sq_ref[...] += jnp.sum(acc * acc, axis=0, keepdims=True)


def _bn_residual_kernel(x_ref, z_ref, scale_ref, shift_ref, out_ref):
    """out = x + BN2(conv2 + b2), with BN2 folded into per-channel scale/shift."""
    out_ref[...] = x_ref[...] + (z_ref[...] * scale_ref[...] + shift_ref[...])


def _make_stage_call(N, H, W, C):
    img_spec = pl.BlockSpec((None, H, W, C), lambda n: (n, 0, 0, 0))
    vec_spec = pl.BlockSpec((1, C), lambda n: (0, 0))
    w_spec = pl.BlockSpec((9, C, C), lambda n: (0, 0, 0))
    smem_spec = pl.BlockSpec(memory_space=pltpu.MemorySpace.SMEM)
    return pl.pallas_call(
        _conv_bn_stage_kernel,
        grid=(N,),
        in_specs=[img_spec, vec_spec, vec_spec, smem_spec, w_spec],
        out_specs=[img_spec, vec_spec, vec_spec],
        out_shape=[
            jax.ShapeDtypeStruct((N, H, W, C), jnp.float32),  # raw conv output
            jax.ShapeDtypeStruct((1, C), jnp.float32),        # sum
            jax.ShapeDtypeStruct((1, C), jnp.float32),        # sum of squares
        ],
        scratch_shapes=[pltpu.VMEM((H + 2, W + 2, C), jnp.float32)],
        # BN stats accumulate across the batch axis -> must stay sequential.
        compiler_params=pltpu.CompilerParams(dimension_semantics=("arbitrary",)),
    )


def _make_residual_call(N, H, W, C):
    img_spec = pl.BlockSpec((None, H, W, C), lambda n: (n, 0, 0, 0))
    vec_spec = pl.BlockSpec((1, C), lambda n: (0, 0))
    return pl.pallas_call(
        _bn_residual_kernel,
        grid=(N,),
        in_specs=[img_spec, img_spec, vec_spec, vec_spec],
        out_specs=img_spec,
        out_shape=jax.ShapeDtypeStruct((N, H, W, C), jnp.float32),
        # Pure pointwise epilogue: shard across TensorCores where available.
        compiler_params=pltpu.CompilerParams(dimension_semantics=("parallel",)),
    )


def residual_block_pallas(x_nchw, params):
    """x_nchw: (N, C, H, W) float32 -> (N, C, H, W) float32."""
    x = jnp.transpose(x_nchw, (0, 2, 3, 1)).astype(jnp.float32)  # NCHW -> NHWC
    N, H, W, C = x.shape
    cnt = float(N * H * W)

    w1 = params["w1"].reshape(9, C, C)   # HWIO (3,3,Cin,Cout) -> (tap, cin, cout)
    w2 = params["w2"].reshape(9, C, C)
    b1 = params["b1"].reshape(1, C)
    b2 = params["b2"].reshape(1, C)
    g1 = params["g1"].reshape(1, C)
    g2 = params["g2"].reshape(1, C)
    be1 = params["be1"].reshape(1, C)
    be2 = params["be2"].reshape(1, C)
    alpha = params["a"].reshape(1).astype(jnp.float32)

    ones = jnp.ones((1, C), jnp.float32)
    zeros = jnp.zeros((1, C), jnp.float32)
    one_s = jnp.ones((1,), jnp.float32)

    stage = _make_stage_call(N, H, W, C)

    # ---- stage 1: conv1 (raw, no bias) + per-channel batch stats -------------
    y1, s1, q1 = stage(x, ones, zeros, one_s, w1)
    mean_r1 = s1 / cnt
    var1 = q1 / cnt - mean_r1 * mean_r1           # biased var; invariant to bias
    mean1 = mean_r1 + b1                          # conv bias folded into the mean
    scale1 = g1 * jax.lax.rsqrt(var1 + EPS)
    shift1 = be1 + (b1 - mean1) * scale1          # == be1 - mean_r1 * scale1

    # ---- stage 2: BN1 affine + PReLU + conv2 (raw) + stats --------------------
    z, s2, q2 = stage(y1, scale1, shift1, alpha, w2)
    mean_r2 = s2 / cnt
    var2 = q2 / cnt - mean_r2 * mean_r2
    mean2 = mean_r2 + b2
    scale2 = g2 * jax.lax.rsqrt(var2 + EPS)
    shift2 = be2 + (b2 - mean2) * scale2

    # ---- stage 3: residual add + BN2 affine -----------------------------------
    out = _make_residual_call(N, H, W, C)(x, z, scale2, shift2)
    return jnp.transpose(out, (0, 3, 1, 2))  # NHWC -> NCHW


def residual_block_reference(x_nchw, params):
    """Pure-JAX reference (mirrors PyTorch training-mode forward)."""
    x = jnp.transpose(x_nchw, (0, 2, 3, 1)).astype(jnp.float32)

    def conv(y, w, b):
        y = jax.lax.conv_general_dilated(
            y, w, window_strides=(1, 1), padding="SAME",
            dimension_numbers=("NHWC", "HWIO", "NHWC"))
        return y + b.reshape(1, 1, 1, -1)

    def bn(y, g, be):
        m = jnp.mean(y, axis=(0, 1, 2), keepdims=True)
        v = jnp.mean(jnp.square(y - m), axis=(0, 1, 2), keepdims=True)
        return (y - m) * jax.lax.rsqrt(v + EPS) * g.reshape(1, 1, 1, -1) + be.reshape(1, 1, 1, -1)

    y = bn(conv(x, params["w1"], params["b1"]), params["g1"], params["be1"])
    y = jnp.where(y > 0, y, params["a"][0] * y)
    y = bn(conv(y, params["w2"], params["b2"]), params["g2"], params["be2"])
    out = x + y
    return jnp.transpose(out, (0, 3, 1, 2))


def init_params(key, C):
    ks = jax.random.split(key, 8)
    return {
        # conv weights stored HWIO (3,3,Cin,Cout) == PyTorch (Cout,Cin,3,3) transposed.
        "w1": 0.1 * jax.random.normal(ks[0], (3, 3, C, C), jnp.float32),
        "b1": 0.1 * jax.random.normal(ks[1], (C,), jnp.float32),
        "g1": 1.0 + 0.1 * jax.random.normal(ks[2], (C,), jnp.float32),
        "be1": 0.1 * jax.random.normal(ks[3], (C,), jnp.float32),
        "a": jnp.full((1,), 0.25, jnp.float32),  # PReLU default slope
        "w2": 0.1 * jax.random.normal(ks[4], (3, 3, C, C), jnp.float32),
        "b2": 0.1 * jax.random.normal(ks[5], (C,), jnp.float32),
        "g2": 1.0 + 0.1 * jax.random.normal(ks[6], (C,), jnp.float32),
        "be2": 0.1 * jax.random.normal(ks[7], (C,), jnp.float32),
    }


if __name__ == "__main__":
    N, C, H, W = 2, 4, 16, 16
    key = jax.random.PRNGKey(0)
    kx, kp = jax.random.split(key)
    x = jax.random.normal(kx, (N, C, H, W), jnp.float32)   # PyTorch-style NCHW
    params = init_params(kp, C)

    out = jax.jit(residual_block_pallas)(x, params)
    out = jax.block_until_ready(out)

    ref = jax.block_until_ready(residual_block_reference(x, params))
    np.testing.assert_allclose(np.asarray(out), np.asarray(ref), rtol=1e-4, atol=1e-4)

    print("KERNEL_OK")
</pallas_src>

<mosaic_0001>
module attributes {stable_mosaic.version = 11 : i64} {
  func.func @_conv_bn_stage_kernel(%arg0: i32, %arg1: memref<1x16x16x4xf32, #tpu.memory_space<vmem>>, %arg2: memref<1x4xf32, #tpu.memory_space<vmem>>, %arg3: memref<1x4xf32, #tpu.memory_space<vmem>>, %arg4: memref<1xf32, #tpu.memory_space<smem>>, %arg5: memref<9x4x4xf32, #tpu.memory_space<vmem>>, %arg6: memref<1x16x16x4xf32, #tpu.memory_space<vmem>>, %arg7: memref<1x4xf32, #tpu.memory_space<vmem>>, %arg8: memref<1x4xf32, #tpu.memory_space<vmem>>, %arg9: memref<18x18x4xf32, #tpu.memory_space<vmem>>) attributes {dimension_semantics = [#tpu.dimension_semantics<arbitrary>], iteration_bounds = array<i64: 2>, scalar_prefetch = 0 : i64, scratch_operands = 1 : i64, tpu.core_type = #tpu.core_type<tc>, window_params = [{transform_indices = @transform_0, window_bounds = array<i64: 1, 16, 16, 4>}, {pipeline_mode = #tpu.pipeline_mode<synchronous>, transform_indices = @transform_1, window_bounds = array<i64: 1, 4>}, {pipeline_mode = #tpu.pipeline_mode<synchronous>, transform_indices = @transform_2, window_bounds = array<i64: 1, 4>}, {transform_indices = @transform_3, window_bounds = array<i64: 1>}, {pipeline_mode = #tpu.pipeline_mode<synchronous>, transform_indices = @transform_4, window_bounds = array<i64: 9, 4, 4>}, {transform_indices = @transform_5, window_bounds = array<i64: 1, 16, 16, 4>}, {pipeline_mode = #tpu.pipeline_mode<synchronous>, transform_indices = @transform_6, window_bounds = array<i64: 1, 4>}, {pipeline_mode = #tpu.pipeline_mode<synchronous>, transform_indices = @transform_7, window_bounds = array<i64: 1, 4>}]} {
    %c0_i32 = arith.constant 0 : i32
    %0 = arith.cmpi eq, %arg0, %c0_i32 : i32
    %1 = arith.extui %0 : i1 to i32
    %c0_i32_0 = arith.constant 0 : i32
    %2 = arith.cmpi ne, %1, %c0_i32_0 : i32
    scf.if %2 {
      %cst_82 = arith.constant 0.000000e+00 : f32
      %90 = vector.broadcast %cst_82 : f32 to vector<1x4xf32>
      %c0_83 = arith.constant 0 : index
      %c0_84 = arith.constant 0 : index
      %91 = vector.load %arg7[%c0_83, %c0_84] : memref<1x4xf32, #tpu.memory_space<vmem>>, vector<1x4xf32>
      tpu.vector_store %arg7[%c0_83, %c0_84], %90 {strides = array<i32>} : memref<1x4xf32, #tpu.memory_space<vmem>>, vector<1x4xf32>,
      %cst_85 = arith.constant 0.000000e+00 : f32
      %92 = vector.broadcast %cst_85 : f32 to vector<1x4xf32>
      %c0_86 = arith.constant 0 : index
      %c0_87 = arith.constant 0 : index
      %93 = vector.load %arg8[%c0_86, %c0_87] : memref<1x4xf32, #tpu.memory_space<vmem>>, vector<1x4xf32>
      tpu.vector_store %arg8[%c0_86, %c0_87], %92 {strides = array<i32>} : memref<1x4xf32, #tpu.memory_space<vmem>>, vector<1x4xf32>,
      %cst_88 = arith.constant 0.000000e+00 : f32
      %94 = vector.broadcast %cst_88 : f32 to vector<18x18x4xf32>
      %c0_89 = arith.constant 0 : index
      %c0_90 = arith.constant 0 : index
      %c0_91 = arith.constant 0 : index
      %95 = vector.load %arg9[%c0_89, %c0_90, %c0_91] : memref<18x18x4xf32, #tpu.memory_space<vmem>>, vector<18x18x4xf32>
      tpu.vector_store %arg9[%c0_89, %c0_90, %c0_91], %94 {strides = array<i32>} : memref<18x18x4xf32, #tpu.memory_space<vmem>>, vector<18x18x4xf32>,
    } else {
    }
    %c0 = arith.constant 0 : index
    %c0_1 = arith.constant 0 : index
    %c0_2 = arith.constant 0 : index
    %c0_3 = arith.constant 0 : index
    %3 = vector.load %arg1[%c0, %c0_1, %c0_2, %c0_3] : memref<1x16x16x4xf32, #tpu.memory_space<vmem>>, vector<1x16x16x4xf32>
    %4 = vector.shape_cast %3 : vector<1x16x16x4xf32> to vector<16x16x4xf32>
    %c0_4 = arith.constant 0 : index
    %c0_5 = arith.constant 0 : index
    %5 = vector.load %arg2[%c0_4, %c0_5] : memref<1x4xf32, #tpu.memory_space<vmem>>, vector<1x4xf32>
    %6 = vector.shape_cast %5 : vector<1x4xf32> to vector<1x1x4xf32>
    %7 = vector.broadcast %6 : vector<1x1x4xf32> to vector<16x16x4xf32>
    %8 = arith.mulf %4, %7 : vector<16x16x4xf32>
    %c0_6 = arith.constant 0 : index
    %c0_7 = arith.constant 0 : index
    %9 = vector.load %arg3[%c0_6, %c0_7] : memref<1x4xf32, #tpu.memory_space<vmem>>, vector<1x4xf32>
    %10 = vector.shape_cast %9 : vector<1x4xf32> to vector<1x1x4xf32>
    %11 = vector.broadcast %10 : vector<1x1x4xf32> to vector<16x16x4xf32>
    %12 = arith.addf %8, %11 : vector<16x16x4xf32>
    %c0_8 = arith.constant 0 : index
    %13 = memref.load %arg4[%c0_8] : memref<1xf32, #tpu.memory_space<smem>>
    %cst = arith.constant 0.000000e+00 : f32
    %14 = vector.broadcast %cst : f32 to vector<16x16x4xf32>
    %15 = arith.cmpf ogt, %12, %14 : vector<16x16x4xf32>
    %16 = vector.broadcast %13 : f32 to vector<16x16x4xf32>
    %17 = arith.mulf %16, %12 : vector<16x16x4xf32>
    %18 = arith.select %15, %12, %17 : vector<16x16x4xi1>, vector<16x16x4xf32>
    %c1 = arith.constant 1 : index
    %c1_9 = arith.constant 1 : index
    %c0_10 = arith.constant 0 : index
    %19 = vector.load %arg9[%c1, %c1_9, %c0_10] : memref<18x18x4xf32, #tpu.memory_space<vmem>>, vector<16x16x4xf32>
    tpu.vector_store %arg9[%c1, %c1_9, %c0_10], %18 {strides = array<i32>} : memref<18x18x4xf32, #tpu.memory_space<vmem>>, vector<16x16x4xf32>,
    %cst_11 = arith.constant 0.000000e+00 : f32
    %20 = vector.broadcast %cst_11 : f32 to vector<256x4xf32>
    %c0_12 = arith.constant 0 : index
    %c0_13 = arith.constant 0 : index
    %c0_14 = arith.constant 0 : index
    %21 = vector.load %arg9[%c0_12, %c0_13, %c0_14] : memref<18x18x4xf32, #tpu.memory_space<vmem>>, vector<16x16x4xf32>
    %22 = vector.shape_cast %21 : vector<16x16x4xf32> to vector<256x4xf32>
    %c0_15 = arith.constant 0 : index
    %c0_16 = arith.constant 0 : index
    %c0_17 = arith.constant 0 : index
    %23 = vector.load %arg5[%c0_15, %c0_16, %c0_17] : memref<9x4x4xf32, #tpu.memory_space<vmem>>, vector<1x4x4xf32>
    %24 = vector.shape_cast %23 : vector<1x4x4xf32> to vector<4x4xf32>
    %cst_18 = arith.constant dense<0.000000e+00> : vector<256x4xf32>
    %25 = tpu.matmul %22, %24, %cst_18 {dimension_numbers = #tpu.dot_dimension_numbers<[1], [0], [0], [1], [0, 0, 1, 1], [], []>} : vector<256x4xf32>, vector<4x4xf32>, vector<256x4xf32> -> vector<256x4xf32>
    %26 = arith.addf %20, %25 : vector<256x4xf32>
    %c0_19 = arith.constant 0 : index
    %c1_20 = arith.constant 1 : index
    %c0_21 = arith.constant 0 : index
    %27 = vector.load %arg9[%c0_19, %c1_20, %c0_21] : memref<18x18x4xf32, #tpu.memory_space<vmem>>, vector<16x16x4xf32>
    %28 = vector.shape_cast %27 : vector<16x16x4xf32> to vector<256x4xf32>
    %c1_22 = arith.constant 1 : index
    %c0_23 = arith.constant 0 : index
    %c0_24 = arith.constant 0 : index
    %29 = vector.load %arg5[%c1_22, %c0_23, %c0_24] : memref<9x4x4xf32, #tpu.memory_space<vmem>>, vector<1x4x4xf32>
    %30 = vector.shape_cast %29 : vector<1x4x4xf32> to vector<4x4xf32>
    %cst_25 = arith.constant dense<0.000000e+00> : vector<256x4xf32>
    %31 = tpu.matmul %28, %30, %cst_25 {dimension_numbers = #tpu.dot_dimension_numbers<[1], [0], [0], [1], [0, 0, 1, 1], [], []>} : vector<256x4xf32>, vector<4x4xf32>, vector<256x4xf32> -> vector<256x4xf32>
    %32 = arith.addf %26, %31 : vector<256x4xf32>
    %c0_26 = arith.constant 0 : index
    %c2 = arith.constant 2 : index
    %c0_27 = arith.constant 0 : index
    %33 = vector.load %arg9[%c0_26, %c2, %c0_27] : memref<18x18x4xf32, #tpu.memory_space<vmem>>, vector<16x16x4xf32>
    %34 = vector.shape_cast %33 : vector<16x16x4xf32> to vector<256x4xf32>
    %c2_28 = arith.constant 2 : index
    %c0_29 = arith.constant 0 : index
    %c0_30 = arith.constant 0 : index
    %35 = vector.load %arg5[%c2_28, %c0_29, %c0_30] : memref<9x4x4xf32, #tpu.memory_space<vmem>>, vector<1x4x4xf32>
    %36 = vector.shape_cast %35 : vector<1x4x4xf32> to vector<4x4xf32>
    %cst_31 = arith.constant dense<0.000000e+00> : vector<256x4xf32>
    %37 = tpu.matmul %34, %36, %cst_31 {dimension_numbers = #tpu.dot_dimension_numbers<[1], [0], [0], [1], [0, 0, 1, 1], [], []>} : vector<256x4xf32>, vector<4x4xf32>, vector<256x4xf32> -> vector<256x4xf32>
    %38 = arith.addf %32, %37 : vector<256x4xf32>
    %c1_32 = arith.constant 1 : index
    %c0_33 = arith.constant 0 : index
    %c0_34 = arith.constant 0 : index
    %39 = vector.load %arg9[%c1_32, %c0_33, %c0_34] : memref<18x18x4xf32, #tpu.memory_space<vmem>>, vector<16x16x4xf32>
    %40 = vector.shape_cast %39 : vector<16x16x4xf32> to vector<256x4xf32>
    %c3 = arith.constant 3 : index
    %c0_35 = arith.constant 0 : index
    %c0_36 = arith.constant 0 : index
    %41 = vector.load %arg5[%c3, %c0_35, %c0_36] : memref<9x4x4xf32, #tpu.memory_space<vmem>>, vector<1x4x4xf32>
    %42 = vector.shape_cast %41 : vector<1x4x4xf32> to vector<4x4xf32>
    %cst_37 = arith.constant dense<0.000000e+00> : vector<256x4xf32>
    %43 = tpu.matmul %40, %42, %cst_37 {dimension_numbers = #tpu.dot_dimension_numbers<[1], [0], [0], [1], [0, 0, 1, 1], [], []>} : vector<256x4xf32>, vector<4x4xf32>, vector<256x4xf32> -> vector<256x4xf32>
    %44 = arith.addf %38, %43 : vector<256x4xf32>
    %c1_38 = arith.constant 1 : index
    %c1_39 = arith.constant 1 : index
    %c0_40 = arith.constant 0 : index
    %45 = vector.load %arg9[%c1_38, %c1_39, %c0_40] : memref<18x18x4xf32, #tpu.memory_space<vmem>>, vector<16x16x4xf32>
    %46 = vector.shape_cast %45 : vector<16x16x4xf32> to vector<256x4xf32>
    %c4 = arith.constant 4 : index
    %c0_41 = arith.constant 0 : index
    %c0_42 = arith.constant 0 : index
    %47 = vector.load %arg5[%c4, %c0_41, %c0_42] : memref<9x4x4xf32, #tpu.memory_space<vmem>>, vector<1x4x4xf32>
    %48 = vector.shape_cast %47 : vector<1x4x4xf32> to vector<4x4xf32>
    %cst_43 = arith.constant dense<0.000000e+00> : vector<256x4xf32>
    %49 = tpu.matmul %46, %48, %cst_43 {dimension_numbers = #tpu.dot_dimension_numbers<[1], [0], [0], [1], [0, 0, 1, 1], [], []>} : vector<256x4xf32>, vector<4x4xf32>, vector<256x4xf32> -> vector<256x4xf32>
    %50 = arith.addf %44, %49 : vector<256x4xf32>
    %c1_44 = arith.constant 1 : index
    %c2_45 = arith.constant 2 : index
    %c0_46 = arith.constant 0 : index
    %51 = vector.load %arg9[%c1_44, %c2_45, %c0_46] : memref<18x18x4xf32, #tpu.memory_space<vmem>>, vector<16x16x4xf32>
    %52 = vector.shape_cast %51 : vector<16x16x4xf32> to vector<256x4xf32>
    %c5 = arith.constant 5 : index
    %c0_47 = arith.constant 0 : index
    %c0_48 = arith.constant 0 : index
    %53 = vector.load %arg5[%c5, %c0_47, %c0_48] : memref<9x4x4xf32, #tpu.memory_space<vmem>>, vector<1x4x4xf32>
    %54 = vector.shape_cast %53 : vector<1x4x4xf32> to vector<4x4xf32>
    %cst_49 = arith.constant dense<0.000000e+00> : vector<256x4xf32>
    %55 = tpu.matmul %52, %54, %cst_49 {dimension_numbers = #tpu.dot_dimension_numbers<[1], [0], [0], [1], [0, 0, 1, 1], [], []>} : vector<256x4xf32>, vector<4x4xf32>, vector<256x4xf32> -> vector<256x4xf32>
    %56 = arith.addf %50, %55 : vector<256x4xf32>
    %c2_50 = arith.constant 2 : index
    %c0_51 = arith.constant 0 : index
    %c0_52 = arith.constant 0 : index
    %57 = vector.load %arg9[%c2_50, %c0_51, %c0_52] : memref<18x18x4xf32, #tpu.memory_space<vmem>>, vector<16x16x4xf32>
    %58 = vector.shape_cast %57 : vector<16x16x4xf32> to vector<256x4xf32>
    %c6 = arith.constant 6 : index
    %c0_53 = arith.constant 0 : index
    %c0_54 = arith.constant 0 : index
    %59 = vector.load %arg5[%c6, %c0_53, %c0_54] : memref<9x4x4xf32, #tpu.memory_space<vmem>>, vector<1x4x4xf32>
    %60 = vector.shape_cast %59 : vector<1x4x4xf32> to vector<4x4xf32>
    %cst_55 = arith.constant dense<0.000000e+00> : vector<256x4xf32>
    %61 = tpu.matmul %58, %60, %cst_55 {dimension_numbers = #tpu.dot_dimension_numbers<[1], [0], [0], [1], [0, 0, 1, 1], [], []>} : vector<256x4xf32>, vector<4x4xf32>, vector<256x4xf32> -> vector<256x4xf32>
    %62 = arith.addf %56, %61 : vector<256x4xf32>
    %c2_56 = arith.constant 2 : index
    %c1_57 = arith.constant 1 : index
    %c0_58 = arith.constant 0 : index
    %63 = vector.load %arg9[%c2_56, %c1_57, %c0_58] : memref<18x18x4xf32, #tpu.memory_space<vmem>>, vector<16x16x4xf32>
    %64 = vector.shape_cast %63 : vector<16x16x4xf32> to vector<256x4xf32>
    %c7 = arith.constant 7 : index
    %c0_59 = arith.constant 0 : index
    %c0_60 = arith.constant 0 : index
    %65 = vector.load %arg5[%c7, %c0_59, %c0_60] : memref<9x4x4xf32, #tpu.memory_space<vmem>>, vector<1x4x4xf32>
    %66 = vector.shape_cast %65 : vector<1x4x4xf32> to vector<4x4xf32>
    %cst_61 = arith.constant dense<0.000000e+00> : vector<256x4xf32>
    %67 = tpu.matmul %64, %66, %cst_61 {dimension_numbers = #tpu.dot_dimension_numbers<[1], [0], [0], [1], [0, 0, 1, 1], [], []>} : vector<256x4xf32>, vector<4x4xf32>, vector<256x4xf32> -> vector<256x4xf32>
    %68 = arith.addf %62, %67 : vector<256x4xf32>
    %c2_62 = arith.constant 2 : index
    %c2_63 = arith.constant 2 : index
    %c0_64 = arith.constant 0 : index
    %69 = vector.load %arg9[%c2_62, %c2_63, %c0_64] : memref<18x18x4xf32, #tpu.memory_space<vmem>>, vector<16x16x4xf32>
    %70 = vector.shape_cast %69 : vector<16x16x4xf32> to vector<256x4xf32>
    %c8 = arith.constant 8 : index
    %c0_65 = arith.constant 0 : index
    %c0_66 = arith.constant 0 : index
    %71 = vector.load %arg5[%c8, %c0_65, %c0_66] : memref<9x4x4xf32, #tpu.memory_space<vmem>>, vector<1x4x4xf32>
    %72 = vector.shape_cast %71 : vector<1x4x4xf32> to vector<4x4xf32>
    %cst_67 = arith.constant dense<0.000000e+00> : vector<256x4xf32>
    %73 = tpu.matmul %70, %72, %cst_67 {dimension_numbers = #tpu.dot_dimension_numbers<[1], [0], [0], [1], [0, 0, 1, 1], [], []>} : vector<256x4xf32>, vector<4x4xf32>, vector<256x4xf32> -> vector<256x4xf32>
    %74 = arith.addf %68, %73 : vector<256x4xf32>
    %75 = vector.shape_cast %74 : vector<256x4xf32> to vector<16x16x4xf32>
    %c0_68 = arith.constant 0 : index
    %c0_69 = arith.constant 0 : index
    %c0_70 = arith.constant 0 : index
    %c0_71 = arith.constant 0 : index
    %76 = vector.load %arg6[%c0_68, %c0_69, %c0_70, %c0_71] : memref<1x16x16x4xf32, #tpu.memory_space<vmem>>, vector<1x16x16x4xf32>
    %77 = vector.shape_cast %76 : vector<1x16x16x4xf32> to vector<16x16x4xf32>
    %78 = vector.shape_cast %75 : vector<16x16x4xf32> to vector<1x16x16x4xf32>
    tpu.vector_store %arg6[%c0_68, %c0_69, %c0_70, %c0_71], %78 {strides = array<i32>} : memref<1x16x16x4xf32, #tpu.memory_space<vmem>>, vector<1x16x16x4xf32>,
    %c0_72 = arith.constant 0 : index
    %c0_73 = arith.constant 0 : index
    %79 = vector.load %arg7[%c0_72, %c0_73] : memref<1x4xf32, #tpu.memory_space<vmem>>, vector<1x4xf32>
    %cst_74 = arith.constant dense<0.000000e+00> : vector<4xf32>
    %80 = vector.multi_reduction <add>, %74, %cst_74 [0] : vector<256x4xf32> to vector<4xf32>
    %81 = vector.shape_cast %80 : vector<4xf32> to vector<1x4xf32>
    %82 = arith.addf %79, %81 : vector<1x4xf32>
    %c0_75 = arith.constant 0 : index
    %c0_76 = arith.constant 0 : index
    %83 = vector.load %arg7[%c0_75, %c0_76] : memref<1x4xf32, #tpu.memory_space<vmem>>, vector<1x4xf32>
    tpu.vector_store %arg7[%c0_75, %c0_76], %82 {strides = array<i32>} : memref<1x4xf32, #tpu.memory_space<vmem>>, vector<1x4xf32>,
    %c0_77 = arith.constant 0 : index
    %c0_78 = arith.constant 0 : index
    %84 = vector.load %arg8[%c0_77, %c0_78] : memref<1x4xf32, #tpu.memory_space<vmem>>, vector<1x4xf32>
    %85 = arith.mulf %74, %74 : vector<256x4xf32>
    %cst_79 = arith.constant dense<0.000000e+00> : vector<4xf32>
    %86 = vector.multi_reduction <add>, %85, %cst_79 [0] : vector<256x4xf32> to vector<4xf32>
    %87 = vector.shape_cast %86 : vector<4xf32> to vector<1x4xf32>
    %88 = arith.addf %84, %87 : vector<1x4xf32>
    %c0_80 = arith.constant 0 : index
    %c0_81 = arith.constant 0 : index
    %89 = vector.load %arg8[%c0_80, %c0_81] : memref<1x4xf32, #tpu.memory_space<vmem>>, vector<1x4xf32>
    tpu.vector_store %arg8[%c0_80, %c0_81], %88 {strides = array<i32>} : memref<1x4xf32, #tpu.memory_space<vmem>>, vector<1x4xf32>,
    return
  }
  func.func @transform_0(%arg0: i32) -> (i32, i32, i32, i32) {
    %c0_i32 = arith.constant 0 : i32
    %c0_i32_0 = arith.constant 0 : i32
    %c0_i32_1 = arith.constant 0 : i32
    %c0_i32_2 = arith.constant 0 : i32
    return %arg0, %c0_i32, %c0_i32_0, %c0_i32_1 : i32, i32, i32, i32
  }
  func.func @transform_1(%arg0: i32) -> (i32, i32) {
    %c0_i32 = arith.constant 0 : i32
    %c0_i32_0 = arith.constant 0 : i32
    %c0_i32_1 = arith.constant 0 : i32
    return %c0_i32, %c0_i32_0 : i32, i32
  }
  func.func @transform_2(%arg0: i32) -> (i32, i32) {
    %c0_i32 = arith.constant 0 : i32
    %c0_i32_0 = arith.constant 0 : i32
    %c0_i32_1 = arith.constant 0 : i32
    return %c0_i32, %c0_i32_0 : i32, i32
  }
  func.func @transform_3(%arg0: i32) -> i32 {
    %c0_i32 = arith.constant 0 : i32
    %c0_i32_0 = arith.constant 0 : i32
    return %c0_i32 : i32
  }
  func.func @transform_4(%arg0: i32) -> (i32, i32, i32) {
    %c0_i32 = arith.constant 0 : i32
    %c0_i32_0 = arith.constant 0 : i32
    %c0_i32_1 = arith.constant 0 : i32
    %c0_i32_2 = arith.constant 0 : i32
    return %c0_i32, %c0_i32_0, %c0_i32_1 : i32, i32, i32
  }
  func.func @transform_5(%arg0: i32) -> (i32, i32, i32, i32) {
    %c0_i32 = arith.constant 0 : i32
    %c0_i32_0 = arith.constant 0 : i32
    %c0_i32_1 = arith.constant 0 : i32
    %c0_i32_2 = arith.constant 0 : i32
    return %arg0, %c0_i32, %c0_i32_0, %c0_i32_1 : i32, i32, i32, i32
  }
  func.func @transform_6(%arg0: i32) -> (i32, i32) {
    %c0_i32 = arith.constant 0 : i32
    %c0_i32_0 = arith.constant 0 : i32
    %c0_i32_1 = arith.constant 0 : i32
    return %c0_i32, %c0_i32_0 : i32, i32
  }
  func.func @transform_7(%arg0: i32) -> (i32, i32) {
    %c0_i32 = arith.constant 0 : i32
    %c0_i32_0 = arith.constant 0 : i32
    %c0_i32_1 = arith.constant 0 : i32
    return %c0_i32, %c0_i32_0 : i32, i32
  }
}

module attributes {stable_mosaic.version = 11 : i64} {
  func.func @_bn_residual_kernel(%arg0: i32, %arg1: memref<1x16x16x4xf32, #tpu.memory_space<vmem>>, %arg2: memref<1x16x16x4xf32, #tpu.memory_space<vmem>>, %arg3: memref<1x4xf32, #tpu.memory_space<vmem>>, %arg4: memref<1x4xf32, #tpu.memory_space<vmem>>, %arg5: memref<1x16x16x4xf32, #tpu.memory_space<vmem>>) attributes {dimension_semantics = [#tpu.dimension_semantics<parallel>], iteration_bounds = array<i64: 2>, scalar_prefetch = 0 : i64, scratch_operands = 0 : i64, tpu.core_type = #tpu.core_type<tc>, window_params = [{transform_indices = @transform_0, window_bounds = array<i64: 1, 16, 16, 4>}, {transform_indices = @transform_1, window_bounds = array<i64: 1, 16, 16, 4>}, {pipeline_mode = #tpu.pipeline_mode<synchronous>, transform_indices = @transform_2, window_bounds = array<i64: 1, 4>}, {pipeline_mode = #tpu.pipeline_mode<synchronous>, transform_indices = @transform_3, window_bounds = array<i64: 1, 4>}, {transform_indices = @transform_4, window_bounds = array<i64: 1, 16, 16, 4>}]} {
    %c0 = arith.constant 0 : index
    %c0_0 = arith.constant 0 : index
    %c0_1 = arith.constant 0 : index
    %c0_2 = arith.constant 0 : index
    %0 = vector.load %arg1[%c0, %c0_0, %c0_1, %c0_2] : memref<1x16x16x4xf32, #tpu.memory_space<vmem>>, vector<1x16x16x4xf32>
    %1 = vector.shape_cast %0 : vector<1x16x16x4xf32> to vector<16x16x4xf32>
    %c0_3 = arith.constant 0 : index
    %c0_4 = arith.constant 0 : index
    %c0_5 = arith.constant 0 : index
    %c0_6 = arith.constant 0 : index
    %2 = vector.load %arg2[%c0_3, %c0_4, %c0_5, %c0_6] : memref<1x16x16x4xf32, #tpu.memory_space<vmem>>, vector<1x16x16x4xf32>
    %3 = vector.shape_cast %2 : vector<1x16x16x4xf32> to vector<16x16x4xf32>
    %c0_7 = arith.constant 0 : index
    %c0_8 = arith.constant 0 : index
    %4 = vector.load %arg3[%c0_7, %c0_8] : memref<1x4xf32, #tpu.memory_space<vmem>>, vector<1x4xf32>
    %5 = vector.shape_cast %4 : vector<1x4xf32> to vector<1x1x4xf32>
    %6 = vector.broadcast %5 : vector<1x1x4xf32> to vector<16x16x4xf32>
    %7 = arith.mulf %3, %6 : vector<16x16x4xf32>
    %c0_9 = arith.constant 0 : index
    %c0_10 = arith.constant 0 : index
    %8 = vector.load %arg4[%c0_9, %c0_10] : memref<1x4xf32, #tpu.memory_space<vmem>>, vector<1x4xf32>
    %9 = vector.shape_cast %8 : vector<1x4xf32> to vector<1x1x4xf32>
    %10 = vector.broadcast %9 : vector<1x1x4xf32> to vector<16x16x4xf32>
    %11 = arith.addf %7, %10 : vector<16x16x4xf32>
    %12 = arith.addf %1, %11 : vector<16x16x4xf32>
    %c0_11 = arith.constant 0 : index
    %c0_12 = arith.constant 0 : index
    %c0_13 = arith.constant 0 : index
    %c0_14 = arith.constant 0 : index
    %13 = vector.load %arg5[%c0_11, %c0_12, %c0_13, %c0_14] : memref<1x16x16x4xf32, #tpu.memory_space<vmem>>, vector<1x16x16x4xf32>
    %14 = vector.shape_cast %13 : vector<1x16x16x4xf32> to vector<16x16x4xf32>
    %15 = vector.shape_cast %12 : vector<16x16x4xf32> to vector<1x16x16x4xf32>
    tpu.vector_store %arg5[%c0_11, %c0_12, %c0_13, %c0_14], %15 {strides = array<i32>} : memref<1x16x16x4xf32, #tpu.memory_space<vmem>>, vector<1x16x16x4xf32>,
    return
  }
  func.func @transform_0(%arg0: i32) -> (i32, i32, i32, i32) {
    %c0_i32 = arith.constant 0 : i32
    %c0_i32_0 = arith.constant 0 : i32
    %c0_i32_1 = arith.constant 0 : i32
    %c0_i32_2 = arith.constant 0 : i32
    return %arg0, %c0_i32, %c0_i32_0, %c0_i32_1 : i32, i32, i32, i32
  }
  func.func @transform_1(%arg0: i32) -> (i32, i32, i32, i32) {
    %c0_i32 = arith.constant 0 : i32
    %c0_i32_0 = arith.constant 0 : i32
    %c0_i32_1 = arith.constant 0 : i32
    %c0_i32_2 = arith.constant 0 : i32
    return %arg0, %c0_i32, %c0_i32_0, %c0_i32_1 : i32, i32, i32, i32
  }
  func.func @transform_2(%arg0: i32) -> (i32, i32) {
    %c0_i32 = arith.constant 0 : i32
    %c0_i32_0 = arith.constant 0 : i32
    %c0_i32_1 = arith.constant 0 : i32
    return %c0_i32, %c0_i32_0 : i32, i32
  }
  func.func @transform_3(%arg0: i32) -> (i32, i32) {
    %c0_i32 = arith.constant 0 : i32
    %c0_i32_0 = arith.constant 0 : i32
    %c0_i32_1 = arith.constant 0 : i32
    return %c0_i32, %c0_i32_0 : i32, i32
  }
  func.func @transform_4(%arg0: i32) -> (i32, i32, i32, i32) {
    %c0_i32 = arith.constant 0 : i32
    %c0_i32_0 = arith.constant 0 : i32
    %c0_i32_1 = arith.constant 0 : i32
    %c0_i32_2 = arith.constant 0 : i32
    return %arg0, %c0_i32, %c0_i32_0, %c0_i32_1 : i32, i32, i32, i32
  }
}

module attributes {stable_mosaic.version = 11 : i64} {
  func.func @_conv_bn_stage_kernel(%arg0: i32, %arg1: memref<1x16x16x4xf32, #tpu.memory_space<vmem>>, %arg2: memref<1x4xf32, #tpu.memory_space<vmem>>, %arg3: memref<1x4xf32, #tpu.memory_space<vmem>>, %arg4: memref<1xf32, #tpu.memory_space<smem>>, %arg5: memref<9x4x4xf32, #tpu.memory_space<vmem>>, %arg6: memref<1x16x16x4xf32, #tpu.memory_space<vmem>>, %arg7: memref<1x4xf32, #tpu.memory_space<vmem>>, %arg8: memref<1x4xf32, #tpu.memory_space<vmem>>, %arg9: memref<18x18x4xf32, #tpu.memory_space<vmem>>) attributes {dimension_semantics = [#tpu.dimension_semantics<arbitrary>], iteration_bounds = array<i64: 2>, scalar_prefetch = 0 : i64, scratch_operands = 1 : i64, tpu.core_type = #tpu.core_type<tc>, window_params = [{transform_indices = @transform_0, window_bounds = array<i64: 1, 16, 16, 4>}, {pipeline_mode = #tpu.pipeline_mode<synchronous>, transform_indices = @transform_1, window_bounds = array<i64: 1, 4>}, {pipeline_mode = #tpu.pipeline_mode<synchronous>, transform_indices = @transform_2, window_bounds = array<i64: 1, 4>}, {transform_indices = @transform_3, window_bounds = array<i64: 1>}, {pipeline_mode = #tpu.pipeline_mode<synchronous>, transform_indices = @transform_4, window_bounds = array<i64: 9, 4, 4>}, {transform_indices = @transform_5, window_bounds = array<i64: 1, 16, 16, 4>}, {pipeline_mode = #tpu.pipeline_mode<synchronous>, transform_indices = @transform_6, window_bounds = array<i64: 1, 4>}, {pipeline_mode = #tpu.pipeline_mode<synchronous>, transform_indices = @transform_7, window_bounds = array<i64: 1, 4>}]} {
    %c0_i32 = arith.constant 0 : i32
    %0 = arith.cmpi eq, %arg0, %c0_i32 : i32
    %1 = arith.extui %0 : i1 to i32
    %c0_i32_0 = arith.constant 0 : i32
    %2 = arith.cmpi ne, %1, %c0_i32_0 : i32
    scf.if %2 {
      %cst_82 = arith.constant 0.000000e+00 : f32
      %90 = vector.broadcast %cst_82 : f32 to vector<1x4xf32>
      %c0_83 = arith.constant 0 : index
      %c0_84 = arith.constant 0 : index
      %91 = vector.load %arg7[%c0_83, %c0_84] : memref<1x4xf32, #tpu.memory_space<vmem>>, vector<1x4xf32>
      tpu.vector_store %arg7[%c0_83, %c0_84], %90 {strides = array<i32>} : memref<1x4xf32, #tpu.memory_space<vmem>>, vector<1x4xf32>,
      %cst_85 = arith.constant 0.000000e+00 : f32
      %92 = vector.broadcast %cst_85 : f32 to vector<1x4xf32>
      %c0_86 = arith.constant 0 : index
      %c0_87 = arith.constant 0 : index
      %93 = vector.load %arg8[%c0_86, %c0_87] : memref<1x4xf32, #tpu.memory_space<vmem>>, vector<1x4xf32>
      tpu.vector_store %arg8[%c0_86, %c0_87], %92 {strides = array<i32>} : memref<1x4xf32, #tpu.memory_space<vmem>>, vector<1x4xf32>,
      %cst_88 = arith.constant 0.000000e+00 : f32
      %94 = vector.broadcast %cst_88 : f32 to vector<18x18x4xf32>
      %c0_89 = arith.constant 0 : index
      %c0_90 = arith.constant 0 : index
      %c0_91 = arith.constant 0 : index
      %95 = vector.load %arg9[%c0_89, %c0_90, %c0_91] : memref<18x18x4xf32, #tpu.memory_space<vmem>>, vector<18x18x4xf32>
      tpu.vector_store %arg9[%c0_89, %c0_90, %c0_91], %94 {strides = array<i32>} : memref<18x18x4xf32, #tpu.memory_space<vmem>>, vector<18x18x4xf32>,
    } else {
    }
    %c0 = arith.constant 0 : index
    %c0_1 = arith.constant 0 : index
    %c0_2 = arith.constant 0 : index
    %c0_3 = arith.constant 0 : index
    %3 = vector.load %arg1[%c0, %c0_1, %c0_2, %c0_3] : memref<1x16x16x4xf32, #tpu.memory_space<vmem>>, vector<1x16x16x4xf32>
    %4 = vector.shape_cast %3 : vector<1x16x16x4xf32> to vector<16x16x4xf32>
    %c0_4 = arith.constant 0 : index
    %c0_5 = arith.constant 0 : index
    %5 = vector.load %arg2[%c0_4, %c0_5] : memref<1x4xf32, #tpu.memory_space<vmem>>, vector<1x4xf32>
    %6 = vector.shape_cast %5 : vector<1x4xf32> to vector<1x1x4xf32>
    %7 = vector.broadcast %6 : vector<1x1x4xf32> to vector<16x16x4xf32>
    %8 = arith.mulf %4, %7 : vector<16x16x4xf32>
    %c0_6 = arith.constant 0 : index
    %c0_7 = arith.constant 0 : index
    %9 = vector.load %arg3[%c0_6, %c0_7] : memref<1x4xf32, #tpu.memory_space<vmem>>, vector<1x4xf32>
    %10 = vector.shape_cast %9 : vector<1x4xf32> to vector<1x1x4xf32>
    %11 = vector.broadcast %10 : vector<1x1x4xf32> to vector<16x16x4xf32>
    %12 = arith.addf %8, %11 : vector<16x16x4xf32>
    %c0_8 = arith.constant 0 : index
    %13 = memref.load %arg4[%c0_8] : memref<1xf32, #tpu.memory_space<smem>>
    %cst = arith.constant 0.000000e+00 : f32
    %14 = vector.broadcast %cst : f32 to vector<16x16x4xf32>
    %15 = arith.cmpf ogt, %12, %14 : vector<16x16x4xf32>
    %16 = vector.broadcast %13 : f32 to vector<16x16x4xf32>
    %17 = arith.mulf %16, %12 : vector<16x16x4xf32>
    %18 = arith.select %15, %12, %17 : vector<16x16x4xi1>, vector<16x16x4xf32>
    %c1 = arith.constant 1 : index
    %c1_9 = arith.constant 1 : index
    %c0_10 = arith.constant 0 : index
    %19 = vector.load %arg9[%c1, %c1_9, %c0_10] : memref<18x18x4xf32, #tpu.memory_space<vmem>>, vector<16x16x4xf32>
    tpu.vector_store %arg9[%c1, %c1_9, %c0_10], %18 {strides = array<i32>} : memref<18x18x4xf32, #tpu.memory_space<vmem>>, vector<16x16x4xf32>,
    %cst_11 = arith.constant 0.000000e+00 : f32
    %20 = vector.broadcast %cst_11 : f32 to vector<256x4xf32>
    %c0_12 = arith.constant 0 : index
    %c0_13 = arith.constant 0 : index
    %c0_14 = arith.constant 0 : index
    %21 = vector.load %arg9[%c0_12, %c0_13, %c0_14] : memref<18x18x4xf32, #tpu.memory_space<vmem>>, vector<16x16x4xf32>
    %22 = vector.shape_cast %21 : vector<16x16x4xf32> to vector<256x4xf32>
    %c0_15 = arith.constant 0 : index
    %c0_16 = arith.constant 0 : index
    %c0_17 = arith.constant 0 : index
    %23 = vector.load %arg5[%c0_15, %c0_16, %c0_17] : memref<9x4x4xf32, #tpu.memory_space<vmem>>, vector<1x4x4xf32>
    %24 = vector.shape_cast %23 : vector<1x4x4xf32> to vector<4x4xf32>
    %cst_18 = arith.constant dense<0.000000e+00> : vector<256x4xf32>
    %25 = tpu.matmul %22, %24, %cst_18 {dimension_numbers = #tpu.dot_dimension_numbers<[1], [0], [0], [1], [0, 0, 1, 1], [], []>} : vector<256x4xf32>, vector<4x4xf32>, vector<256x4xf32> -> vector<256x4xf32>
    %26 = arith.addf %20, %25 : vector<256x4xf32>
    %c0_19 = arith.constant 0 : index
    %c1_20 = arith.constant 1 : index
    %c0_21 = arith.constant 0 : index
    %27 = vector.load %arg9[%c0_19, %c1_20, %c0_21] : memref<18x18x4xf32, #tpu.memory_space<vmem>>, vector<16x16x4xf32>
    %28 = vector.shape_cast %27 : vector<16x16x4xf32> to vector<256x4xf32>
    %c1_22 = arith.constant 1 : index
    %c0_23 = arith.constant 0 : index
    %c0_24 = arith.constant 0 : index
    %29 = vector.load %arg5[%c1_22, %c0_23, %c0_24] : memref<9x4x4xf32, #tpu.memory_space<vmem>>, vector<1x4x4xf32>
    %30 = vector.shape_cast %29 : vector<1x4x4xf32> to vector<4x4xf32>
    %cst_25 = arith.constant dense<0.000000e+00> : vector<256x4xf32>
    %31 = tpu.matmul %28, %30, %cst_25 {dimension_numbers = #tpu.dot_dimension_numbers<[1], [0], [0], [1], [0, 0, 1, 1], [], []>} : vector<256x4xf32>, vector<4x4xf32>, vector<256x4xf32> -> vector<256x4xf32>
    %32 = arith.addf %26, %31 : vector<256x4xf32>
    %c0_26 = arith.constant 0 : index
    %c2 = arith.constant 2 : index
    %c0_27 = arith.constant 0 : index
    %33 = vector.load %arg9[%c0_26, %c2, %c0_27] : memref<18x18x4xf32, #tpu.memory_space<vmem>>, vector<16x16x4xf32>
    %34 = vector.shape_cast %33 : vector<16x16x4xf32> to vector<256x4xf32>
    %c2_28 = arith.constant 2 : index
    %c0_29 = arith.constant 0 : index
    %c0_30 = arith.constant 0 : index
    %35 = vector.load %arg5[%c2_28, %c0_29, %c0_30] : memref<9x4x4xf32, #tpu.memory_space<vmem>>, vector<1x4x4xf32>
    %36 = vector.shape_cast %35 : vector<1x4x4xf32> to vector<4x4xf32>
    %cst_31 = arith.constant dense<0.000000e+00> : vector<256x4xf32>
    %37 = tpu.matmul %34, %36, %cst_31 {dimension_numbers = #tpu.dot_dimension_numbers<[1], [0], [0], [1], [0, 0, 1, 1], [], []>} : vector<256x4xf32>, vector<4x4xf32>, vector<256x4xf32> -> vector<256x4xf32>
    %38 = arith.addf %32, %37 : vector<256x4xf32>
    %c1_32 = arith.constant 1 : index
    %c0_33 = arith.constant 0 : index
    %c0_34 = arith.constant 0 : index
    %39 = vector.load %arg9[%c1_32, %c0_33, %c0_34] : memref<18x18x4xf32, #tpu.memory_space<vmem>>, vector<16x16x4xf32>
    %40 = vector.shape_cast %39 : vector<16x16x4xf32> to vector<256x4xf32>
    %c3 = arith.constant 3 : index
    %c0_35 = arith.constant 0 : index
    %c0_36 = arith.constant 0 : index
    %41 = vector.load %arg5[%c3, %c0_35, %c0_36] : memref<9x4x4xf32, #tpu.memory_space<vmem>>, vector<1x4x4xf32>
    %42 = vector.shape_cast %41 : vector<1x4x4xf32> to vector<4x4xf32>
    %cst_37 = arith.constant dense<0.000000e+00> : vector<256x4xf32>
    %43 = tpu.matmul %40, %42, %cst_37 {dimension_numbers = #tpu.dot_dimension_numbers<[1], [0], [0], [1], [0, 0, 1, 1], [], []>} : vector<256x4xf32>, vector<4x4xf32>, vector<256x4xf32> -> vector<256x4xf32>
    %44 = arith.addf %38, %43 : vector<256x4xf32>
    %c1_38 = arith.constant 1 : index
    %c1_39 = arith.constant 1 : index
    %c0_40 = arith.constant 0 : index
    %45 = vector.load %arg9[%c1_38, %c1_39, %c0_40] : memref<18x18x4xf32, #tpu.memory_space<vmem>>, vector<16x16x4xf32>
    %46 = vector.shape_cast %45 : vector<16x16x4xf32> to vector<256x4xf32>
    %c4 = arith.constant 4 : index
    %c0_41 = arith.constant 0 : index
    %c0_42 = arith.constant 0 : index
    %47 = vector.load %arg5[%c4, %c0_41, %c0_42] : memref<9x4x4xf32, #tpu.memory_space<vmem>>, vector<1x4x4xf32>
    %48 = vector.shape_cast %47 : vector<1x4x4xf32> to vector<4x4xf32>
    %cst_43 = arith.constant dense<0.000000e+00> : vector<256x4xf32>
    %49 = tpu.matmul %46, %48, %cst_43 {dimension_numbers = #tpu.dot_dimension_numbers<[1], [0], [0], [1], [0, 0, 1, 1], [], []>} : vector<256x4xf32>, vector<4x4xf32>, vector<256x4xf32> -> vector<256x4xf32>
    %50 = arith.addf %44, %49 : vector<256x4xf32>
    %c1_44 = arith.constant 1 : index
    %c2_45 = arith.constant 2 : index
    %c0_46 = arith.constant 0 : index
    %51 = vector.load %arg9[%c1_44, %c2_45, %c0_46] : memref<18x18x4xf32, #tpu.memory_space<vmem>>, vector<16x16x4xf32>
    %52 = vector.shape_cast %51 : vector<16x16x4xf32> to vector<256x4xf32>
    %c5 = arith.constant 5 : index
    %c0_47 = arith.constant 0 : index
    %c0_48 = arith.constant 0 : index
    %53 = vector.load %arg5[%c5, %c0_47, %c0_48] : memref<9x4x4xf32, #tpu.memory_space<vmem>>, vector<1x4x4xf32>
    %54 = vector.shape_cast %53 : vector<1x4x4xf32> to vector<4x4xf32>
    %cst_49 = arith.constant dense<0.000000e+00> : vector<256x4xf32>
    %55 = tpu.matmul %52, %54, %cst_49 {dimension_numbers = #tpu.dot_dimension_numbers<[1], [0], [0], [1], [0, 0, 1, 1], [], []>} : vector<256x4xf32>, vector<4x4xf32>, vector<256x4xf32> -> vector<256x4xf32>
    %56 = arith.addf %50, %55 : vector<256x4xf32>
    %c2_50 = arith.constant 2 : index
    %c0_51 = arith.constant 0 : index
    %c0_52 = arith.constant 0 : index
    %57 = vector.load %arg9[%c2_50, %c0_51, %c0_52] : memref<18x18x4xf32, #tpu.memory_space<vmem>>, vector<16x16x4xf32>
    %58 = vector.shape_cast %57 : vector<16x16x4xf32> to vector<256x4xf32>
    %c6 = arith.constant 6 : index
    %c0_53 = arith.constant 0 : index
    %c0_54 = arith.constant 0 : index
    %59 = vector.load %arg5[%c6, %c0_53, %c0_54] : memref<9x4x4xf32, #tpu.memory_space<vmem>>, vector<1x4x4xf32>
    %60 = vector.shape_cast %59 : vector<1x4x4xf32> to vector<4x4xf32>
    %cst_55 = arith.constant dense<0.000000e+00> : vector<256x4xf32>
    %61 = tpu.matmul %58, %60, %cst_55 {dimension_numbers = #tpu.dot_dimension_numbers<[1], [0], [0], [1], [0, 0, 1, 1], [], []>} : vector<256x4xf32>, vector<4x4xf32>, vector<256x4xf32> -> vector<256x4xf32>
    %62 = arith.addf %56, %61 : vector<256x4xf32>
    %c2_56 = arith.constant 2 : index
    %c1_57 = arith.constant 1 : index
    %c0_58 = arith.constant 0 : index
    %63 = vector.load %arg9[%c2_56, %c1_57, %c0_58] : memref<18x18x4xf32, #tpu.memory_space<vmem>>, vector<16x16x4xf32>
    %64 = vector.shape_cast %63 : vector<16x16x4xf32> to vector<256x4xf32>
    %c7 = arith.constant 7 : index
    %c0_59 = arith.constant 0 : index
    %c0_60 = arith.constant 0 : index
    %65 = vector.load %arg5[%c7, %c0_59, %c0_60] : memref<9x4x4xf32, #tpu.memory_space<vmem>>, vector<1x4x4xf32>
    %66 = vector.shape_cast %65 : vector<1x4x4xf32> to vector<4x4xf32>
    %cst_61 = arith.constant dense<0.000000e+00> : vector<256x4xf32>
    %67 = tpu.matmul %64, %66, %cst_61 {dimension_numbers = #tpu.dot_dimension_numbers<[1], [0], [0], [1], [0, 0, 1, 1], [], []>} : vector<256x4xf32>, vector<4x4xf32>, vector<256x4xf32> -> vector<256x4xf32>
    %68 = arith.addf %62, %67 : vector<256x4xf32>
    %c2_62 = arith.constant 2 : index
    %c2_63 = arith.constant 2 : index
    %c0_64 = arith.constant 0 : index
    %69 = vector.load %arg9[%c2_62, %c2_63, %c0_64] : memref<18x18x4xf32, #tpu.memory_space<vmem>>, vector<16x16x4xf32>
    %70 = vector.shape_cast %69 : vector<16x16x4xf32> to vector<256x4xf32>
    %c8 = arith.constant 8 : index
    %c0_65 = arith.constant 0 : index
    %c0_66 = arith.constant 0 : index
    %71 = vector.load %arg5[%c8, %c0_65, %c0_66] : memref<9x4x4xf32, #tpu.memory_space<vmem>>, vector<1x4x4xf32>
    %72 = vector.shape_cast %71 : vector<1x4x4xf32> to vector<4x4xf32>
    %cst_67 = arith.constant dense<0.000000e+00> : vector<256x4xf32>
    %73 = tpu.matmul %70, %72, %cst_67 {dimension_numbers = #tpu.dot_dimension_numbers<[1], [0], [0], [1], [0, 0, 1, 1], [], []>} : vector<256x4xf32>, vector<4x4xf32>, vector<256x4xf32> -> vector<256x4xf32>
    %74 = arith.addf %68, %73 : vector<256x4xf32>
    %75 = vector.shape_cast %74 : vector<256x4xf32> to vector<16x16x4xf32>
    %c0_68 = arith.constant 0 : index
    %c0_69 = arith.constant 0 : index
    %c0_70 = arith.constant 0 : index
    %c0_71 = arith.constant 0 : index
    %76 = vector.load %arg6[%c0_68, %c0_69, %c0_70, %c0_71] : memref<1x16x16x4xf32, #tpu.memory_space<vmem>>, vector<1x16x16x4xf32>
    %77 = vector.shape_cast %76 : vector<1x16x16x4xf32> to vector<16x16x4xf32>
    %78 = vector.shape_cast %75 : vector<16x16x4xf32> to vector<1x16x16x4xf32>
    tpu.vector_store %arg6[%c0_68, %c0_69, %c0_70, %c0_71], %78 {strides = array<i32>} : memref<1x16x16x4xf32, #tpu.memory_space<vmem>>, vector<1x16x16x4xf32>,
    %c0_72 = arith.constant 0 : index
    %c0_73 = arith.constant 0 : index
    %79 = vector.load %arg7[%c0_72, %c0_73] : memref<1x4xf32, #tpu.memory_space<vmem>>, vector<1x4xf32>
    %cst_74 = arith.constant dense<0.000000e+00> : vector<4xf32>
    %80 = vector.multi_reduction <add>, %74, %cst_74 [0] : vector<256x4xf32> to vector<4xf32>
    %81 = vector.shape_cast %80 : vector<4xf32> to vector<1x4xf32>
    %82 = arith.addf %79, %81 : vector<1x4xf32>
    %c0_75 = arith.constant 0 : index
    %c0_76 = arith.constant 0 : index
    %83 = vector.load %arg7[%c0_75, %c0_76] : memref<1x4xf32, #tpu.memory_space<vmem>>, vector<1x4xf32>
    tpu.vector_store %arg7[%c0_75, %c0_76], %82 {strides = array<i32>} : memref<1x4xf32, #tpu.memory_space<vmem>>, vector<1x4xf32>,
    %c0_77 = arith.constant 0 : index
    %c0_78 = arith.constant 0 : index
    %84 = vector.load %arg8[%c0_77, %c0_78] : memref<1x4xf32, #tpu.memory_space<vmem>>, vector<1x4xf32>
    %85 = arith.mulf %74, %74 : vector<256x4xf32>
    %cst_79 = arith.constant dense<0.000000e+00> : vector<4xf32>
    %86 = vector.multi_reduction <add>, %85, %cst_79 [0] : vector<256x4xf32> to vector<4xf32>
    %87 = vector.shape_cast %86 : vector<4xf32> to vector<1x4xf32>
    %88 = arith.addf %84, %87 : vector<1x4xf32>
    %c0_80 = arith.constant 0 : index
    %c0_81 = arith.constant 0 : index
    %89 = vector.load %arg8[%c0_80, %c0_81] : memref<1x4xf32, #tpu.memory_space<vmem>>, vector<1x4xf32>
    tpu.vector_store %arg8[%c0_80, %c0_81], %88 {strides = array<i32>} : memref<1x4xf32, #tpu.memory_space<vmem>>, vector<1x4xf32>,
    return
  }
  func.func @transform_0(%arg0: i32) -> (i32, i32, i32, i32) {
    %c0_i32 = arith.constant 0 : i32
    %c0_i32_0 = arith.constant 0 : i32
    %c0_i32_1 = arith.constant 0 : i32
    %c0_i32_2 = arith.constant 0 : i32
    return %arg0, %c0_i32, %c0_i32_0, %c0_i32_1 : i32, i32, i32, i32
  }
  func.func @transform_1(%arg0: i32) -> (i32, i32) {
    %c0_i32 = arith.constant 0 : i32
    %c0_i32_0 = arith.constant 0 : i32
    %c0_i32_1 = arith.constant 0 : i32
    return %c0_i32, %c0_i32_0 : i32, i32
  }
  func.func @transform_2(%arg0: i32) -> (i32, i32) {
    %c0_i32 = arith.constant 0 : i32
    %c0_i32_0 = arith.constant 0 : i32
    %c0_i32_1 = arith.constant 0 : i32
    return %c0_i32, %c0_i32_0 : i32, i32
  }
  func.func @transform_3(%arg0: i32) -> i32 {
    %c0_i32 = arith.constant 0 : i32
    %c0_i32_0 = arith.constant 0 : i32
    return %c0_i32 : i32
  }
  func.func @transform_4(%arg0: i32) -> (i32, i32, i32) {
    %c0_i32 = arith.constant 0 : i32
    %c0_i32_0 = arith.constant 0 : i32
    %c0_i32_1 = arith.constant 0 : i32
    %c0_i32_2 = arith.constant 0 : i32
    return %c0_i32, %c0_i32_0, %c0_i32_1 : i32, i32, i32
  }
  func.func @transform_5(%arg0: i32) -> (i32, i32, i32, i32) {
    %c0_i32 = arith.constant 0 : i32
    %c0_i32_0 = arith.constant 0 : i32
    %c0_i32_1 = arith.constant 0 : i32
    %c0_i32_2 = arith.constant 0 : i32
    return %arg0, %c0_i32, %c0_i32_0, %c0_i32_1 : i32, i32, i32, i32
  }
  func.func @transform_6(%arg0: i32) -> (i32, i32) {
    %c0_i32 = arith.constant 0 : i32
    %c0_i32_0 = arith.constant 0 : i32
    %c0_i32_1 = arith.constant 0 : i32
    return %c0_i32, %c0_i32_0 : i32, i32
  }
  func.func @transform_7(%arg0: i32) -> (i32, i32) {
    %c0_i32 = arith.constant 0 : i32
    %c0_i32_0 = arith.constant 0 : i32
    %c0_i32_1 = arith.constant 0 : i32
    return %c0_i32, %c0_i32_0 : i32, i32
  }
}

</mosaic_0001>

<llo_original>
// kernel: residual_block_pallas.5
$region0: #{residual_block_pallas.5}
  #allocation0 [shape = 'u32[]', space=smem, size = 0x4, offset = 0x4, fixed_abs, tag = 'smem constant byte address 0x4 - core index']
  #allocation1 [shape = 'u32[144,128]{1,0:T(1,128)}', space=vmem, size = 0x12000, scoped, tag = 'internal scratch']
  %s0 = inlined_call_operand.vmem [shape: f32[2,16,16,4], index: 0, kind: input, shape index: {}]
  %s1 = inlined_call_operand.vmem [shape: f32[2,16,16,4], index: 1, kind: input, shape index: {}]
  %s2 = inlined_call_operand.vmem [shape: f32[1,4], index: 2, kind: input, shape index: {}]
  %s3 = inlined_call_operand.vmem [shape: f32[1,4], index: 3, kind: input, shape index: {}]
  %s4 = inlined_call_operand.vmem [shape: f32[2,16,16,4], index: 4, kind: output, shape index: {}]
  %s5 = sld [smem:[#allocation0]]
  $region49: #{residual_block_pallas.5} parent=0
    _
  %s7 = ssub.s32 1, %s5
  %s8 = scalar_select 0, %s7, %s5
  loop: start=0, step=1, limit=4
  $region2: #{residual_block_pallas.5} parent=0 // loop_pre_header
    _
  $region3: #{residual_block_pallas.5} parent=0 // loop_header
    %s10 = sphi 0, %s14
    %p11 = scmp.ge.s32.totalorder %s10, 4
    %s20 = sphi 0, %s22
    %s23 = sphi 0, %s20
    %s24 = sphi 0, %s23
    %s40 = sphi 0, %s24
    %s46 = sphi 0, %s48
    %s49 = sphi 0, %s46
    %s50 = sphi 0, %s49
    %s66 = sphi 0, %s50
    %s70 = sphi 0, %s70
    %s72 = sphi 0, %s70
    %s73 = sphi 0, %s72
    %s87 = sphi 0, %s73
    %s91 = sphi 0, %s91
    %s93 = sphi 0, %s91
    %s94 = sphi 0, %s93
    %s108 = sphi 0, %s94
    %s114 = sphi 0, %s116
    %s117 = sphi 0, %s114
    %s118 = sphi 0, %s117
    %s134 = sphi 0, %s118
  $region4: #{residual_block_pallas.5} parent=0 // loop_header_branch
    %13 = sbr.rel (%p11) target = $region8
  $region5: #{residual_block_pallas.5} parent=0 // loop_body
    %s15 = ssub.s32 %s10, 1
    %s16 = ssub.s32 %s10, 2
    %s17 = sadd.s32 %s10, 1
    %s18 = ssub.s32 %s10, %s17
    %p19 = scmp.eq.s32.totalorder %s18, 0
    %s21 = sadd.s32 %s20, 1
    %s22 = scalar_select %p19, %s20, %s21
    %p25 = pneg %p19
    %p26 = scmp.eq.s32.totalorder %s10, 1
    %p27 = por %p25, %p26
    %p28 = scmp.ne.s32.totalorder %s20, %s23
    %p29 = scmp.eq.s32.totalorder %s10, 0
    %p30 = por %p28, %p29
    %p31 = scmp.ne.s32.totalorder %s20, %s23
    %p32 = scmp.eq.s32.totalorder %s15, 1
    %p33 = por %p31, %p32
    %p34 = scmp.ne.s32.totalorder %s23, %s24
    %p35 = scmp.eq.s32.totalorder %s15, 0
    %p36 = por %p34, %p35
    %p37 = scmp.ne.s32.totalorder %s23, %s24
    %p38 = scmp.eq.s32.totalorder %s16, 1
    %p39 = por %p37, %p38
    %p41 = scmp.ne.s32.totalorder %s24, %s40
    %p42 = scmp.eq.s32.totalorder %s16, 0
    %p43 = por %p41, %p42
    %s44 = ssub.s32 %s10, %s17
    %p45 = scmp.eq.s32.totalorder %s44, 0
    %s47 = sadd.s32 %s46, 1
    %s48 = scalar_select %p45, %s46, %s47
    %p51 = pneg %p45
    %p52 = scmp.eq.s32.totalorder %s10, 1
    %p53 = por %p51, %p52
    %p54 = scmp.ne.s32.totalorder %s46, %s49
    %p55 = scmp.eq.s32.totalorder %s10, 0
    %p56 = por %p54, %p55
    %p57 = scmp.ne.s32.totalorder %s46, %s49
    %p58 = scmp.eq.s32.totalorder %s15, 1
    %p59 = por %p57, %p58
    %p60 = scmp.ne.s32.totalorder %s49, %s50
    %p61 = scmp.eq.s32.totalorder %s15, 0
    %p62 = por %p60, %p61
    %p63 = scmp.ne.s32.totalorder %s49, %s50
    %p64 = scmp.eq.s32.totalorder %s16, 1
    %p65 = por %p63, %p64
    %p67 = scmp.ne.s32.totalorder %s50, %s66
    %p68 = scmp.eq.s32.totalorder %s16, 0
    %p69 = por %p67, %p68
    %s71 = sadd.s32 %s70, 1
    %p74 = scmp.eq.s32.totalorder %s10, 1
    %p75 = scmp.ne.s32.totalorder %s70, %s72
    %p76 = scmp.eq.s32.totalorder %s10, 0
    %p77 = por %p75, %p76
    %p78 = scmp.ne.s32.totalorder %s70, %s72
    %p79 = scmp.eq.s32.totalorder %s15, 1
    %p80 = por %p78, %p79
    %p81 = scmp.ne.s32.totalorder %s72, %s73
    %p82 = scmp.eq.s32.totalorder %s15, 0
    %p83 = por %p81, %p82
    %p84 = scmp.ne.s32.totalorder %s72, %s73
    %p85 = scmp.eq.s32.totalorder %s16, 1
    %p86 = por %p84, %p85
    %p88 = scmp.ne.s32.totalorder %s73, %s87
    %p89 = scmp.eq.s32.totalorder %s16, 0
    %p90 = por %p88, %p89
    %s92 = sadd.s32 %s91, 1
    %p95 = scmp.eq.s32.totalorder %s10, 1
    %p96 = scmp.ne.s32.totalorder %s91, %s93
    %p97 = scmp.eq.s32.totalorder %s10, 0
    %p98 = por %p96, %p97
    %p99 = scmp.ne.s32.totalorder %s91, %s93
    %p100 = scmp.eq.s32.totalorder %s15, 1
    %p101 = por %p99, %p100
    %p102 = scmp.ne.s32.totalorder %s93, %s94
    %p103 = scmp.eq.s32.totalorder %s15, 0
    %p104 = por %p102, %p103
    %p105 = scmp.ne.s32.totalorder %s93, %s94
    %p106 = scmp.eq.s32.totalorder %s16, 1
    %p107 = por %p105, %p106
    %p109 = scmp.ne.s32.totalorder %s94, %s108
    %p110 = scmp.eq.s32.totalorder %s16, 0
    %p111 = por %p109, %p110
    %s112 = ssub.s32 %s10, %s17
    %p113 = scmp.eq.s32.totalorder %s112, 0
    %s115 = sadd.s32 %s114, 1
    %s116 = scalar_select %p113, %s114, %s115
    %p119 = pneg %p113
    %p120 = scmp.eq.s32.totalorder %s10, 1
    %p121 = por %p119, %p120
    %p122 = scmp.ne.s32.totalorder %s114, %s117
    %p123 = scmp.eq.s32.totalorder %s10, 0
    %p124 = por %p122, %p123
    %p125 = scmp.ne.s32.totalorder %s114, %s117
    %p126 = scmp.eq.s32.totalorder %s15, 1
    %p127 = por %p125, %p126
    %p128 = scmp.ne.s32.totalorder %s117, %s118
    %p129 = scmp.eq.s32.totalorder %s15, 0
    %p130 = por %p128, %p129
    %p131 = scmp.ne.s32.totalorder %s117, %s118
    %p132 = scmp.eq.s32.totalorder %s16, 1
    %p133 = por %p131, %p132
    %p135 = scmp.ne.s32.totalorder %s118, %s134
    %p136 = scmp.eq.s32.totalorder %s16, 0
    %p137 = por %p135, %p136
    %p138 = scmp.le.s32.totalorder 1, %s10
    %p139 = scmp.lt.s32.totalorder %s10, 3
    %p140 = pnand %p138, %p139
    %p141 = pneg %p140
    // Predicated region
    $region9: #{residual_block_pallas.5} parent=5 // pred_check
      _
    $region10: #{residual_block_pallas.5} parent=5 // pred_check_branch
      %143 = sbr.rel (%p140) target = $region12
    $region11: #{residual_block_pallas.5} parent=5 // pred_region
      %s144 = ssub.s32 %s10, 1
      // Predicated region
      $region13: #{residual_block_pallas.5} parent=11 // pred_check
        %p145 = pneg %p83
      $region14: #{residual_block_pallas.5} parent=11 // pred_check_branch
        %147 = sbr.rel (%p145) target = $region16
      $region15: #{residual_block_pallas.5} parent=11 // pred_region
        _
      $region16: #{residual_block_pallas.5} parent=11 // pred_fallthru
        _
      // Predicated region
      $region17: #{residual_block_pallas.5} parent=11 // pred_check
        %p148 = pneg %p104
      $region18: #{residual_block_pallas.5} parent=11 // pred_check_branch
        %150 = sbr.rel (%p148) target = $region20
      $region19: #{residual_block_pallas.5} parent=11 // pred_region
        _
      $region20: #{residual_block_pallas.5} parent=11 // pred_fallthru
        _
    $region12: #{residual_block_pallas.5} parent=5 // pred_fallthru
      _
    %p151 = scmp.lt.s32.totalorder %s10, 2
    // Predicated region
    $region21: #{residual_block_pallas.5} parent=5 // pred_check
      %p152 = pneg %p151
    $region22: #{residual_block_pallas.5} parent=5 // pred_check_branch
      %154 = sbr.rel (%p152) target = $region24
    $region23: #{residual_block_pallas.5} parent=5 // pred_region
      // Predicated region
      $region25: #{residual_block_pallas.5} parent=23 // pred_check
        %p155 = pneg %p30
      $region26: #{residual_block_pallas.5} parent=23 // pred_check_branch
        %157 = sbr.rel (%p155) target = $region28
      $region27: #{residual_block_pallas.5} parent=23 // pred_region
        %p158 = scmp.lt.s32.totalorder %s10, 1
        %s159 = scalar_select %p158, %s10, 1
        %s160 = smul.addr %s159, 32
        %s161 = smul.addr %s160, 8
        %s162 = scalar_lea.vmem %s0, %s161
      $region28: #{residual_block_pallas.5} parent=23 // pred_fallthru
        _
      // Predicated region
      $region29: #{residual_block_pallas.5} parent=23 // pred_check
        %p163 = pneg %p56
      $region30: #{residual_block_pallas.5} parent=23 // pred_check_branch
        %165 = sbr.rel (%p163) target = $region32
      $region31: #{residual_block_pallas.5} parent=23 // pred_region
        %p166 = scmp.lt.s32.totalorder %s10, 1
        %s167 = scalar_select %p166, %s10, 1
        %s168 = smul.addr %s167, 32
        %s169 = smul.addr %s168, 8
        %s170 = scalar_lea.vmem %s1, %s169
      $region32: #{residual_block_pallas.5} parent=23 // pred_fallthru
        _
    $region24: #{residual_block_pallas.5} parent=5 // pred_fallthru
      _
    %p171 = scmp.le.s32.totalorder 1, %s10
    %p172 = scmp.lt.s32.totalorder %s10, 3
    %p173 = pnand %p171, %p172
    %p174 = pneg %p173
    // Predicated region
    $region33: #{residual_block_pallas.5} parent=5 // pred_check
      _
    $region34: #{residual_block_pallas.5} parent=5 // pred_check_branch
      %176 = sbr.rel (%p173) target = $region36
    $region35: #{residual_block_pallas.5} parent=5 // pred_region
      %s177 = ssub.s32 %s10, 1
      %p178 = scmp.lt.s32.totalorder %s15, 1
      %s179 = scalar_select %p178, %s15, 1
      %s180 = smul.addr %s179, 32
      %s181 = smul.addr %s180, 8
      %s182 = scalar_lea.vmem %s0, %s181
      %p183 = pneg %p36
      %p184 = pneg %p33
      %p185 = scmp.lt.s32.totalorder %s15, 1
      %s186 = scalar_select %p185, %s15, 1
      %s187 = smul.addr %s186, 32
      %s188 = smul.addr %s187, 8
      %s189 = scalar_lea.vmem %s1, %s188
      %p190 = pneg %p62
      %p191 = pneg %p59
      %p192 = pneg %p83
      %p193 = pneg %p80
      %p194 = pneg %p104
      %p195 = pneg %p101
      %p196 = pneg %p130
      %p197 = pneg %p127
      %p198 = scmp.lt.s32.totalorder %s15, 1
      %s199 = scalar_select %p198, %s15, 1
      %s200 = smul.addr %s199, 32
      %s201 = smul.addr %s200, 8
      %s202 = scalar_lea.vmem %s4, %s201
      %p203 = scmp.lt.s32.totalorder %s15, 1
      %s204 = scalar_select %p203, %s15, 1
      %s205 = smul.addr %s204, 32
      %s206 = smul.addr %s205, 8
      %s207 = scalar_lea.vmem %s0, %s206
      %p208 = scmp.lt.s32.totalorder %s15, 1
      %s209 = scalar_select %p208, %s15, 1
      %s210 = smul.addr %s209, 32
      %s211 = smul.addr %s210, 8
      %s212 = scalar_lea.vmem %s1, %s211
      %p213 = scmp.lt.s32.totalorder %s15, 1
      %s214 = scalar_select %p213, %s15, 1
      %s215 = smul.addr %s214, 32
      %s216 = smul.addr %s215, 8
      %s217 = scalar_lea.vmem %s4, %s216
      %v218 = vld [vmem:[%s207] sm:$0xff]
      %v219 = vld [vmem:[%s207 + $0x8] sm:$0xff]
      %v220 = vld [vmem:[%s207 + $0x10] sm:$0xff]
      %v221 = vld [vmem:[%s207 + $0x18] sm:$0xff]
      %v222 = vld [vmem:[%s207 + $0x20] sm:$0xff]
      %v223 = vld [vmem:[%s207 + $0x28] sm:$0xff]
      %v224 = vld [vmem:[%s207 + $0x30] sm:$0xff]
      %v225 = vld [vmem:[%s207 + $0x38] sm:$0xff]
      %v226 = vld [vmem:[%s207 + $0x40] sm:$0xff]
      %v227 = vld [vmem:[%s207 + $0x48] sm:$0xff]
      %v228 = vld [vmem:[%s207 + $0x50] sm:$0xff]
      %v229 = vld [vmem:[%s207 + $0x58] sm:$0xff]
      %v230 = vld [vmem:[%s207 + $0x60] sm:$0xff]
      %v231 = vld [vmem:[%s207 + $0x68] sm:$0xff]
      %v232 = vld [vmem:[%s207 + $0x70] sm:$0xff]
      %v233 = vld [vmem:[%s207 + $0x78] sm:$0xff]
      %v234 = vld [vmem:[%s207 + $0x80] sm:$0xff]
      %v235 = vld [vmem:[%s207 + $0x88] sm:$0xff]
      %v236 = vld [vmem:[%s207 + $0x90] sm:$0xff]
      %v237 = vld [vmem:[%s207 + $0x98] sm:$0xff]
      %v238 = vld [vmem:[%s207 + $0xa0] sm:$0xff]
      %v239 = vld [vmem:[%s207 + $0xa8] sm:$0xff]
      %v240 = vld [vmem:[%s207 + $0xb0] sm:$0xff]
      %v241 = vld [vmem:[%s207 + $0xb8] sm:$0xff]
      %v242 = vld [vmem:[%s207 + $0xc0] sm:$0xff]
      %v243 = vld [vmem:[%s207 + $0xc8] sm:$0xff]
      %v244 = vld [vmem:[%s207 + $0xd0] sm:$0xff]
      %v245 = vld [vmem:[%s207 + $0xd8] sm:$0xff]
      %v246 = vld [vmem:[%s207 + $0xe0] sm:$0xff]
      %v247 = vld [vmem:[%s207 + $0xe8] sm:$0xff]
      %v248 = vld [vmem:[%s207 + $0xf0] sm:$0xff]
      %v249 = vld [vmem:[%s207 + $0xf8] sm:$0xff]
      %v250 = vld [vmem:[%s212] sm:$0xff]
      %v251 = vld [vmem:[%s212 + $0x8] sm:$0xff]
      %v252 = vld [vmem:[%s212 + $0x10] sm:$0xff]
      %v253 = vld [vmem:[%s212 + $0x18] sm:$0xff]
      %v254 = vld [vmem:[%s212 + $0x20] sm:$0xff]
      %v255 = vld [vmem:[%s212 + $0x28] sm:$0xff]
      %v256 = vld [vmem:[%s212 + $0x30] sm:$0xff]
      %v257 = vld [vmem:[%s212 + $0x38] sm:$0xff]
      %v258 = vld [vmem:[%s212 + $0x40] sm:$0xff]
      %v259 = vld [vmem:[%s212 + $0x48] sm:$0xff]
      %v260 = vld [vmem:[%s212 + $0x50] sm:$0xff]
      %v261 = vld [vmem:[%s212 + $0x58] sm:$0xff]
      %v262 = vld [vmem:[%s212 + $0x60] sm:$0xff]
      %v263 = vld [vmem:[%s212 + $0x68] sm:$0xff]
      %v264 = vld [vmem:[%s212 + $0x70] sm:$0xff]
      %v265 = vld [vmem:[%s212 + $0x78] sm:$0xff]
      %v266 = vld [vmem:[%s212 + $0x80] sm:$0xff]
      %v267 = vld [vmem:[%s212 + $0x88] sm:$0xff]
      %v268 = vld [vmem:[%s212 + $0x90] sm:$0xff]
      %v269 = vld [vmem:[%s212 + $0x98] sm:$0xff]
      %v270 = vld [vmem:[%s212 + $0xa0] sm:$0xff]
      %v271 = vld [vmem:[%s212 + $0xa8] sm:$0xff]
      %v272 = vld [vmem:[%s212 + $0xb0] sm:$0xff]
      %v273 = vld [vmem:[%s212 + $0xb8] sm:$0xff]
      %v274 = vld [vmem:[%s212 + $0xc0] sm:$0xff]
      %v275 = vld [vmem:[%s212 + $0xc8] sm:$0xff]
      %v276 = vld [vmem:[%s212 + $0xd0] sm:$0xff]
      %v277 = vld [vmem:[%s212 + $0xd8] sm:$0xff]
      %v278 = vld [vmem:[%s212 + $0xe0] sm:$0xff]
      %v279 = vld [vmem:[%s212 + $0xe8] sm:$0xff]
      %v280 = vld [vmem:[%s212 + $0xf0] sm:$0xff]
      %v281 = vld [vmem:[%s212 + $0xf8] sm:$0xff]
      %v282 = vld [vmem:[%s2] sm:$0x1]
      %v284 = vlaneseq
      %v285 = vshrl.u32 %v284, 7
      %v286 = vsub.s32 0, %v285
      %v287 = vrot.slane %v282, %v286
      %v289 = vmul.f32 %v250, %v287
      %v290 = vmul.f32 %v251, %v287
      %v291 = vmul.f32 %v252, %v287
      %v292 = vmul.f32 %v253, %v287
      %v293 = vmul.f32 %v254, %v287
      %v294 = vmul.f32 %v255, %v287
      %v295 = vmul.f32 %v256, %v287
      %v296 = vmul.f32 %v257, %v287
      %v297 = vmul.f32 %v258, %v287
      %v298 = vmul.f32 %v259, %v287
      %v299 = vmul.f32 %v260, %v287
      %v300 = vmul.f32 %v261, %v287
      %v301 = vmul.f32 %v262, %v287
      %v302 = vmul.f32 %v263, %v287
      %v303 = vmul.f32 %v264, %v287
      %v304 = vmul.f32 %v265, %v287
      %v305 = vmul.f32 %v266, %v287
      %v306 = vmul.f32 %v267, %v287
      %v307 = vmul.f32 %v268, %v287
      %v308 = vmul.f32 %v269, %v287
      %v309 = vmul.f32 %v270, %v287
      %v310 = vmul.f32 %v271, %v287
      %v311 = vmul.f32 %v272, %v287
      %v312 = vmul.f32 %v273, %v287
      %v313 = vmul.f32 %v274, %v287
      %v314 = vmul.f32 %v275, %v287
      %v315 = vmul.f32 %v276, %v287
      %v316 = vmul.f32 %v277, %v287
      %v317 = vmul.f32 %v278, %v287
      %v318 = vmul.f32 %v279, %v287
      %v319 = vmul.f32 %v280, %v287
      %v320 = vmul.f32 %v281, %v287
      %v321 = vld [vmem:[%s3] sm:$0x1]
      %v323 = vlaneseq
      %v324 = vshrl.u32 %v323, 7
      %v325 = vsub.s32 0, %v324
      %v326 = vrot.slane %v321, %v325
      %v328 = vadd.f32 %v289, %v326
      %v329 = vadd.f32 %v290, %v326
      %v330 = vadd.f32 %v291, %v326
      %v331 = vadd.f32 %v292, %v326
      %v332 = vadd.f32 %v293, %v326
      %v333 = vadd.f32 %v294, %v326
      %v334 = vadd.f32 %v295, %v326
      %v335 = vadd.f32 %v296, %v326
      %v336 = vadd.f32 %v297, %v326
      %v337 = vadd.f32 %v298, %v326
      %v338 = vadd.f32 %v299, %v326
      %v339 = vadd.f32 %v300, %v326
      %v340 = vadd.f32 %v301, %v326
      %v341 = vadd.f32 %v302, %v326
      %v342 = vadd.f32 %v303, %v326
      %v343 = vadd.f32 %v304, %v326
      %v344 = vadd.f32 %v305, %v326
      %v345 = vadd.f32 %v306, %v326
      %v346 = vadd.f32 %v307, %v326
      %v347 = vadd.f32 %v308, %v326
      %v348 = vadd.f32 %v309, %v326
      %v349 = vadd.f32 %v310, %v326
      %v350 = vadd.f32 %v311, %v326
      %v351 = vadd.f32 %v312, %v326
      %v352 = vadd.f32 %v313, %v326
      %v353 = vadd.f32 %v314, %v326
      %v354 = vadd.f32 %v315, %v326
      %v355 = vadd.f32 %v316, %v326
      %v356 = vadd.f32 %v317, %v326
      %v357 = vadd.f32 %v318, %v326
      %v358 = vadd.f32 %v319, %v326
      %v359 = vadd.f32 %v320, %v326
      %v360 = vadd.f32 %v218, %v328
      %v361 = vadd.f32 %v219, %v329
      %v362 = vadd.f32 %v220, %v330
      %v363 = vadd.f32 %v221, %v331
      %v364 = vadd.f32 %v222, %v332
      %v365 = vadd.f32 %v223, %v333
      %v366 = vadd.f32 %v224, %v334
      %v367 = vadd.f32 %v225, %v335
      %v368 = vadd.f32 %v226, %v336
      %v369 = vadd.f32 %v227, %v337
      %v370 = vadd.f32 %v228, %v338
      %v371 = vadd.f32 %v229, %v339
      %v372 = vadd.f32 %v230, %v340
      %v373 = vadd.f32 %v231, %v341
      %v374 = vadd.f32 %v232, %v342
      %v375 = vadd.f32 %v233, %v343
      %v376 = vadd.f32 %v234, %v344
      %v377 = vadd.f32 %v235, %v345
      %v378 = vadd.f32 %v236, %v346
      %v379 = vadd.f32 %v237, %v347
      %v380 = vadd.f32 %v238, %v348
      %v381 = vadd.f32 %v239, %v349
      %v382 = vadd.f32 %v240, %v350
      %v383 = vadd.f32 %v241, %v351
      %v384 = vadd.f32 %v242, %v352
      %v385 = vadd.f32 %v243, %v353
      %v386 = vadd.f32 %v244, %v354
      %v387 = vadd.f32 %v245, %v355
      %v388 = vadd.f32 %v246, %v356
      %v389 = vadd.f32 %v247, %v357
      %v390 = vadd.f32 %v248, %v358
      %v391 = vadd.f32 %v249, %v359
      %vm392 = vcmask 31744
      %393 = vst.msk [vmem:[%s217] sm:$0xff] %vm392, %v360
      %394 = vst.msk [vmem:[%s217 + $0x8] sm:$0xff] %vm392, %v361
      %395 = vst.msk [vmem:[%s217 + $0x10] sm:$0xff] %vm392, %v362
      %396 = vst.msk [vmem:[%s217 + $0x18] sm:$0xff] %vm392, %v363
      %397 = vst.msk [vmem:[%s217 + $0x20] sm:$0xff] %vm392, %v364
      %398 = vst.msk [vmem:[%s217 + $0x28] sm:$0xff] %vm392, %v365
      %399 = vst.msk [vmem:[%s217 + $0x30] sm:$0xff] %vm392, %v366
      %400 = vst.msk [vmem:[%s217 + $0x38] sm:$0xff] %vm392, %v367
      %401 = vst.msk [vmem:[%s217 + $0x40] sm:$0xff] %vm392, %v368
      %402 = vst.msk [vmem:[%s217 + $0x48] sm:$0xff] %vm392, %v369
      %403 = vst.msk [vmem:[%s217 + $0x50] sm:$0xff] %vm392, %v370
      %404 = vst.msk [vmem:[%s217 + $0x58] sm:$0xff] %vm392, %v371
      %405 = vst.msk [vmem:[%s217 + $0x60] sm:$0xff] %vm392, %v372
      %406 = vst.msk [vmem:[%s217 + $0x68] sm:$0xff] %vm392, %v373
      %407 = vst.msk [vmem:[%s217 + $0x70] sm:$0xff] %vm392, %v374
      %408 = vst.msk [vmem:[%s217 + $0x78] sm:$0xff] %vm392, %v375
      %409 = vst.msk [vmem:[%s217 + $0x80] sm:$0xff] %vm392, %v376
      %410 = vst.msk [vmem:[%s217 + $0x88] sm:$0xff] %vm392, %v377
      %411 = vst.msk [vmem:[%s217 + $0x90] sm:$0xff] %vm392, %v378
      %412 = vst.msk [vmem:[%s217 + $0x98] sm:$0xff] %vm392, %v379
      %413 = vst.msk [vmem:[%s217 + $0xa0] sm:$0xff] %vm392, %v380
      %414 = vst.msk [vmem:[%s217 + $0xa8] sm:$0xff] %vm392, %v381
      %415 = vst.msk [vmem:[%s217 + $0xb0] sm:$0xff] %vm392, %v382
      %416 = vst.msk [vmem:[%s217 + $0xb8] sm:$0xff] %vm392, %v383
      %417 = vst.msk [vmem:[%s217 + $0xc0] sm:$0xff] %vm392, %v384
      %418 = vst.msk [vmem:[%s217 + $0xc8] sm:$0xff] %vm392, %v385
      %419 = vst.msk [vmem:[%s217 + $0xd0] sm:$0xff] %vm392, %v386
      %420 = vst.msk [vmem:[%s217 + $0xd8] sm:$0xff] %vm392, %v387
      %421 = vst.msk [vmem:[%s217 + $0xe0] sm:$0xff] %vm392, %v388
      %422 = vst.msk [vmem:[%s217 + $0xe8] sm:$0xff] %vm392, %v389
      %423 = vst.msk [vmem:[%s217 + $0xf0] sm:$0xff] %vm392, %v390
      %424 = vst.msk [vmem:[%s217 + $0xf8] sm:$0xff] %vm392, %v391
      %p425 = scmp.lt.s32.totalorder %s15, 1
      %s426 = scalar_select %p425, %s15, 1
      %s427 = smul.addr %s426, 32
      %s428 = smul.addr %s427, 8
      %s429 = scalar_lea.vmem %s4, %s428
      // Predicated region
      $region37: #{residual_block_pallas.5} parent=35 // pred_check
        %p430 = pneg %p127
      $region38: #{residual_block_pallas.5} parent=35 // pred_check_branch
        %432 = sbr.rel (%p430) target = $region40
      $region39: #{residual_block_pallas.5} parent=35 // pred_region
        _
      $region40: #{residual_block_pallas.5} parent=35 // pred_fallthru
        _
    $region36: #{residual_block_pallas.5} parent=5 // pred_fallthru
      _
    %p433 = scmp.le.s32.totalorder 2, %s10
    // Predicated region
    $region41: #{residual_block_pallas.5} parent=5 // pred_check
      %p434 = pneg %p433
    $region42: #{residual_block_pallas.5} parent=5 // pred_check_branch
      %436 = sbr.rel (%p434) target = $region44
    $region43: #{residual_block_pallas.5} parent=5 // pred_region
      %s437 = ssub.s32 %s10, 2
      // Predicated region
      $region45: #{residual_block_pallas.5} parent=43 // pred_check
        %p438 = pneg %p133
      $region46: #{residual_block_pallas.5} parent=43 // pred_check_branch
        %440 = sbr.rel (%p438) target = $region48
      $region47: #{residual_block_pallas.5} parent=43 // pred_region
        %p441 = scmp.lt.s32.totalorder %s16, 1
        %s442 = scalar_select %p441, %s16, 1
        %s443 = smul.addr %s442, 32
        %s444 = smul.addr %s443, 8
        %s445 = scalar_lea.vmem %s4, %s444
      $region48: #{residual_block_pallas.5} parent=43 // pred_fallthru
        _
    $region44: #{residual_block_pallas.5} parent=5 // pred_fallthru
      _
  $region6: #{residual_block_pallas.5} parent=0 // loop_footer
    %s14 = sadd.s32 1, %s10
  $region7: #{residual_block_pallas.5} parent=0 // loop_footer_branch
    %9 = sbr.rel target = $region3
  $region8: #{residual_block_pallas.5} parent=0 // loop_exit
    _

// kernel: residual_block_pallas.3
$region0: #{residual_block_pallas.3}
  #allocation0 [shape = 'u32[]', space=smem, size = 0x4, offset = 0x4, fixed_abs, tag = 'smem constant byte address 0x4 - core index']
  #allocation1 [shape = 'u32[144,128]{1,0:T(1,128)}', space=vmem, size = 0x12000, scoped, tag = 'internal scratch']
  #allocation2 [shape = 'f32[18,18,4]{2,1,0:T(8,128)}', space=vmem, size = 0x36000, scoped, tag = 'scratch operand']
  #allocation3 [shape = 'f32[1]{0:T(128)S(6)}', space=smem, size = 0x200, scoped, tag = 'scoped memory for residual_block_pallas.3']
  %s0 = inlined_call_operand.vmem [shape: f32[2,16,16,4], index: 0, kind: input, shape index: {}]
  %s1 = inlined_call_operand.vmem [shape: f32[1,4], index: 1, kind: input, shape index: {}]
  %s2 = inlined_call_operand.vmem [shape: f32[1,4], index: 2, kind: input, shape index: {}]
  %s3 = inlined_call_operand.<no memory space> [shape: f32[1], index: 3, kind: input, shape index: {}]
  %s4 = inlined_call_operand.vmem [shape: f32[9,4,4], index: 4, kind: input, shape index: {}]
  %s5 = inlined_call_operand.vmem [shape: f32[2,16,16,4], index: 5, kind: output, shape index: {0}]
  %s6 = inlined_call_operand.vmem [shape: f32[1,4], index: 6, kind: output, shape index: {1}]
  %s7 = inlined_call_operand.vmem [shape: f32[1,4], index: 7, kind: output, shape index: {2}]
  %8 = xla_tuple %s5, %s6, %s7
  %s9 = sld [smem:[#allocation0]]
  $region73: #{residual_block_pallas.3} parent=0
    _
  %s11 = ssub.s32 1, %s9
  %s12 = scalar_select 0, %s11, %s9
  %13 = sst [smem:[#allocation3]] %s3
  loop: start=0, step=1, limit=4
  $region2: #{residual_block_pallas.3} parent=0 // loop_pre_header
    _
  $region3: #{residual_block_pallas.3} parent=0 // loop_header
    %s15 = sphi 0, %s19
    %p16 = scmp.ge.s32.totalorder %s15, 4
    %s25 = sphi 0, %s27
    %s28 = sphi 0, %s25
    %s29 = sphi 0, %s28
    %s45 = sphi 0, %s29
    %s49 = sphi 0, %s49
    %s51 = sphi 0, %s49
    %s52 = sphi 0, %s51
    %s66 = sphi 0, %s52
    %s70 = sphi 0, %s70
    %s72 = sphi 0, %s70
    %s73 = sphi 0, %s72
    %s87 = sphi 0, %s73
    %s91 = sphi 0, %s91
    %s93 = sphi 0, %s91
    %s94 = sphi 0, %s93
    %s108 = sphi 0, %s94
    %s112 = sphi 0, %s112
    %s114 = sphi 0, %s112
    %s115 = sphi 0, %s114
    %s129 = sphi 0, %s115
    %s135 = sphi 0, %s137
    %s138 = sphi 0, %s135
    %s139 = sphi 0, %s138
    %s155 = sphi 0, %s139
    %s159 = sphi 0, %s159
    %s161 = sphi 0, %s159
    %s162 = sphi 0, %s161
    %s176 = sphi 0, %s162
    %s180 = sphi 0, %s180
    %s182 = sphi 0, %s180
    %s183 = sphi 0, %s182
    %s197 = sphi 0, %s183
  $region4: #{residual_block_pallas.3} parent=0 // loop_header_branch
    %18 = sbr.rel (%p16) target = $region8
  $region5: #{residual_block_pallas.3} parent=0 // loop_body
    %s20 = ssub.s32 %s15, 1
    %s21 = ssub.s32 %s15, 2
    %s22 = sadd.s32 %s15, 1
    %s23 = ssub.s32 %s15, %s22
    %p24 = scmp.eq.s32.totalorder %s23, 0
    %s26 = sadd.s32 %s25, 1
    %s27 = scalar_select %p24, %s25, %s26
    %p30 = pneg %p24
    %p31 = scmp.eq.s32.totalorder %s15, 1
    %p32 = por %p30, %p31
    %p33 = scmp.ne.s32.totalorder %s25, %s28
    %p34 = scmp.eq.s32.totalorder %s15, 0
    %p35 = por %p33, %p34
    %p36 = scmp.ne.s32.totalorder %s25, %s28
    %p37 = scmp.eq.s32.totalorder %s20, 1
    %p38 = por %p36, %p37
    %p39 = scmp.ne.s32.totalorder %s28, %s29
    %p40 = scmp.eq.s32.totalorder %s20, 0
    %p41 = por %p39, %p40
    %p42 = scmp.ne.s32.totalorder %s28, %s29
    %p43 = scmp.eq.s32.totalorder %s21, 1
    %p44 = por %p42, %p43
    %p46 = scmp.ne.s32.totalorder %s29, %s45
    %p47 = scmp.eq.s32.totalorder %s21, 0
    %p48 = por %p46, %p47
    %s50 = sadd.s32 %s49, 1
    %p53 = scmp.eq.s32.totalorder %s15, 1
    %p54 = scmp.ne.s32.totalorder %s49, %s51
    %p55 = scmp.eq.s32.totalorder %s15, 0
    %p56 = por %p54, %p55
    %p57 = scmp.ne.s32.totalorder %s49, %s51
    %p58 = scmp.eq.s32.totalorder %s20, 1
    %p59 = por %p57, %p58
    %p60 = scmp.ne.s32.totalorder %s51, %s52
    %p61 = scmp.eq.s32.totalorder %s20, 0
    %p62 = por %p60, %p61
    %p63 = scmp.ne.s32.totalorder %s51, %s52
    %p64 = scmp.eq.s32.totalorder %s21, 1
    %p65 = por %p63, %p64
    %p67 = scmp.ne.s32.totalorder %s52, %s66
    %p68 = scmp.eq.s32.totalorder %s21, 0
    %p69 = por %p67, %p68
    %s71 = sadd.s32 %s70, 1
    %p74 = scmp.eq.s32.totalorder %s15, 1
    %p75 = scmp.ne.s32.totalorder %s70, %s72
    %p76 = scmp.eq.s32.totalorder %s15, 0
    %p77 = por %p75, %p76
    %p78 = scmp.ne.s32.totalorder %s70, %s72
    %p79 = scmp.eq.s32.totalorder %s20, 1
    %p80 = por %p78, %p79
    %p81 = scmp.ne.s32.totalorder %s72, %s73
    %p82 = scmp.eq.s32.totalorder %s20, 0
    %p83 = por %p81, %p82
    %p84 = scmp.ne.s32.totalorder %s72, %s73
    %p85 = scmp.eq.s32.totalorder %s21, 1
    %p86 = por %p84, %p85
    %p88 = scmp.ne.s32.totalorder %s73, %s87
    %p89 = scmp.eq.s32.totalorder %s21, 0
    %p90 = por %p88, %p89
    %s92 = sadd.s32 %s91, 1
    %p95 = scmp.eq.s32.totalorder %s15, 1
    %p96 = scmp.ne.s32.totalorder %s91, %s93
    %p97 = scmp.eq.s32.totalorder %s15, 0
    %p98 = por %p96, %p97
    %p99 = scmp.ne.s32.totalorder %s91, %s93
    %p100 = scmp.eq.s32.totalorder %s20, 1
    %p101 = por %p99, %p100
    %p102 = scmp.ne.s32.totalorder %s93, %s94
    %p103 = scmp.eq.s32.totalorder %s20, 0
    %p104 = por %p102, %p103
    %p105 = scmp.ne.s32.totalorder %s93, %s94
    %p106 = scmp.eq.s32.totalorder %s21, 1
    %p107 = por %p105, %p106
    %p109 = scmp.ne.s32.totalorder %s94, %s108
    %p110 = scmp.eq.s32.totalorder %s21, 0
    %p111 = por %p109, %p110
    %s113 = sadd.s32 %s112, 1
    %p116 = scmp.eq.s32.totalorder %s15, 1
    %p117 = scmp.ne.s32.totalorder %s112, %s114
    %p118 = scmp.eq.s32.totalorder %s15, 0
    %p119 = por %p117, %p118
    %p120 = scmp.ne.s32.totalorder %s112, %s114
    %p121 = scmp.eq.s32.totalorder %s20, 1
    %p122 = por %p120, %p121
    %p123 = scmp.ne.s32.totalorder %s114, %s115
    %p124 = scmp.eq.s32.totalorder %s20, 0
    %p125 = por %p123, %p124
    %p126 = scmp.ne.s32.totalorder %s114, %s115
    %p127 = scmp.eq.s32.totalorder %s21, 1
    %p128 = por %p126, %p127
    %p130 = scmp.ne.s32.totalorder %s115, %s129
    %p131 = scmp.eq.s32.totalorder %s21, 0
    %p132 = por %p130, %p131
    %s133 = ssub.s32 %s15, %s22
    %p134 = scmp.eq.s32.totalorder %s133, 0
    %s136 = sadd.s32 %s135, 1
    %s137 = scalar_select %p134, %s135, %s136
    %p140 = pneg %p134
    %p141 = scmp.eq.s32.totalorder %s15, 1
    %p142 = por %p140, %p141
    %p143 = scmp.ne.s32.totalorder %s135, %s138
    %p144 = scmp.eq.s32.totalorder %s15, 0
    %p145 = por %p143, %p144
    %p146 = scmp.ne.s32.totalorder %s135, %s138
    %p147 = scmp.eq.s32.totalorder %s20, 1
    %p148 = por %p146, %p147
    %p149 = scmp.ne.s32.totalorder %s138, %s139
    %p150 = scmp.eq.s32.totalorder %s20, 0
    %p151 = por %p149, %p150
    %p152 = scmp.ne.s32.totalorder %s138, %s139
    %p153 = scmp.eq.s32.totalorder %s21, 1
    %p154 = por %p152, %p153
    %p156 = scmp.ne.s32.totalorder %s139, %s155
    %p157 = scmp.eq.s32.totalorder %s21, 0
    %p158 = por %p156, %p157
    %s160 = sadd.s32 %s159, 1
    %p163 = scmp.eq.s32.totalorder %s15, 1
    %p164 = scmp.ne.s32.totalorder %s159, %s161
    %p165 = scmp.eq.s32.totalorder %s15, 0
    %p166 = por %p164, %p165
    %p167 = scmp.ne.s32.totalorder %s159, %s161
    %p168 = scmp.eq.s32.totalorder %s20, 1
    %p169 = por %p167, %p168
    %p170 = scmp.ne.s32.totalorder %s161, %s162
    %p171 = scmp.eq.s32.totalorder %s20, 0
    %p172 = por %p170, %p171
    %p173 = scmp.ne.s32.totalorder %s161, %s162
    %p174 = scmp.eq.s32.totalorder %s21, 1
    %p175 = por %p173, %p174
    %p177 = scmp.ne.s32.totalorder %s162, %s176
    %p178 = scmp.eq.s32.totalorder %s21, 0
    %p179 = por %p177, %p178
    %s181 = sadd.s32 %s180, 1
    %p184 = scmp.eq.s32.totalorder %s15, 1
    %p185 = scmp.ne.s32.totalorder %s180, %s182
    %p186 = scmp.eq.s32.totalorder %s15, 0
    %p187 = por %p185, %p186
    %p188 = scmp.ne.s32.totalorder %s180, %s182
    %p189 = scmp.eq.s32.totalorder %s20, 1
    %p190 = por %p188, %p189
    %p191 = scmp.ne.s32.totalorder %s182, %s183
    %p192 = scmp.eq.s32.totalorder %s20, 0
    %p193 = por %p191, %p192
    %p194 = scmp.ne.s32.totalorder %s182, %s183
    %p195 = scmp.eq.s32.totalorder %s21, 1
    %p196 = por %p194, %p195
    %p198 = scmp.ne.s32.totalorder %s183, %s197
    %p199 = scmp.eq.s32.totalorder %s21, 0
    %p200 = por %p198, %p199
    %p201 = scmp.le.s32.totalorder 1, %s15
    %p202 = scmp.lt.s32.totalorder %s15, 3
    %p203 = pnand %p201, %p202
    %p204 = pneg %p203
    // Predicated region
    $region9: #{residual_block_pallas.3} parent=5 // pred_check
      _
    $region10: #{residual_block_pallas.3} parent=5 // pred_check_branch
      %206 = sbr.rel (%p203) target = $region12
    $region11: #{residual_block_pallas.3} parent=5 // pred_region
      %s207 = ssub.s32 %s15, 1
      // Predicated region
      $region13: #{residual_block_pallas.3} parent=11 // pred_check
        %p208 = pneg %p62
      $region14: #{residual_block_pallas.3} parent=11 // pred_check_branch
        %210 = sbr.rel (%p208) target = $region16
      $region15: #{residual_block_pallas.3} parent=11 // pred_region
        _
      $region16: #{residual_block_pallas.3} parent=11 // pred_fallthru
        _
      // Predicated region
      $region17: #{residual_block_pallas.3} parent=11 // pred_check
        %p211 = pneg %p83
      $region18: #{residual_block_pallas.3} parent=11 // pred_check_branch
        %213 = sbr.rel (%p211) target = $region20
      $region19: #{residual_block_pallas.3} parent=11 // pred_region
        _
      $region20: #{residual_block_pallas.3} parent=11 // pred_fallthru
        _
      // Predicated region
      $region21: #{residual_block_pallas.3} parent=11 // pred_check
        %p214 = pneg %p104
      $region22: #{residual_block_pallas.3} parent=11 // pred_check_branch
        %216 = sbr.rel (%p214) target = $region24
      $region23: #{residual_block_pallas.3} parent=11 // pred_region
        _
      $region24: #{residual_block_pallas.3} parent=11 // pred_fallthru
        _
      // Predicated region
      $region25: #{residual_block_pallas.3} parent=11 // pred_check
        %p217 = pneg %p125
      $region26: #{residual_block_pallas.3} parent=11 // pred_check_branch
        %219 = sbr.rel (%p217) target = $region28
      $region27: #{residual_block_pallas.3} parent=11 // pred_region
        _
      $region28: #{residual_block_pallas.3} parent=11 // pred_fallthru
        _
    $region12: #{residual_block_pallas.3} parent=5 // pred_fallthru
      _
    %p220 = scmp.lt.s32.totalorder %s15, 2
    // Predicated region
    $region29: #{residual_block_pallas.3} parent=5 // pred_check
      %p221 = pneg %p220
    $region30: #{residual_block_pallas.3} parent=5 // pred_check_branch
      %223 = sbr.rel (%p221) target = $region32
    $region31: #{residual_block_pallas.3} parent=5 // pred_region
      // Predicated region
      $region33: #{residual_block_pallas.3} parent=31 // pred_check
        %p224 = pneg %p35
      $region34: #{residual_block_pallas.3} parent=31 // pred_check_branch
        %226 = sbr.rel (%p224) target = $region36
      $region35: #{residual_block_pallas.3} parent=31 // pred_region
        %p227 = scmp.lt.s32.totalorder %s15, 1
        %s228 = scalar_select %p227, %s15, 1
        %s229 = smul.addr %s228, 32
        %s230 = smul.addr %s229, 8
        %s231 = scalar_lea.vmem %s0, %s230
      $region36: #{residual_block_pallas.3} parent=31 // pred_fallthru
        _
    $region32: #{residual_block_pallas.3} parent=5 // pred_fallthru
      _
    %p232 = scmp.le.s32.totalorder 1, %s15
    %p233 = scmp.lt.s32.totalorder %s15, 3
    %p234 = pnand %p232, %p233
    %p235 = pneg %p234
    // Predicated region
    $region37: #{residual_block_pallas.3} parent=5 // pred_check
      _
    $region38: #{residual_block_pallas.3} parent=5 // pred_check_branch
      %237 = sbr.rel (%p234) target = $region40
    $region39: #{residual_block_pallas.3} parent=5 // pred_region
      %s238 = ssub.s32 %s15, 1
      %p239 = scmp.lt.s32.totalorder %s20, 1
      %s240 = scalar_select %p239, %s20, 1
      %s241 = smul.addr %s240, 32
      %s242 = smul.addr %s241, 8
      %s243 = scalar_lea.vmem %s0, %s242
      %p244 = pneg %p41
      %p245 = pneg %p38
      %p246 = pneg %p62
      %p247 = pneg %p59
      %p248 = pneg %p83
      %p249 = pneg %p80
      %p250 = pneg %p104
      %p251 = pneg %p101
      %p252 = pneg %p125
      %p253 = pneg %p122
      %p254 = pneg %p151
      %p255 = pneg %p148
      %p256 = scmp.lt.s32.totalorder %s20, 1
      %s257 = scalar_select %p256, %s20, 1
      %s258 = smul.addr %s257, 32
      %s259 = smul.addr %s258, 8
      %s260 = scalar_lea.vmem %s5, %s259
      %p261 = pneg %p172
      %p262 = pneg %p169
      %p263 = pneg %p193
      %p264 = pneg %p190
      %p265 = scmp.lt.s32.totalorder %s20, 1
      %s266 = scalar_select %p265, %s20, 1
      %s267 = smul.addr %s266, 32
      %s268 = smul.addr %s267, 8
      %s269 = scalar_lea.vmem %s0, %s268
      %p270 = scmp.lt.s32.totalorder %s20, 1
      %s271 = scalar_select %p270, %s20, 1
      %s272 = smul.addr %s271, 32
      %s273 = smul.addr %s272, 8
      %s274 = scalar_lea.vmem %s5, %s273
      %p275 = scmp.eq.s32.totalorder %s20, 0
      // Predicated region
      $region41: #{residual_block_pallas.3} parent=39 // pred_check
        %p276 = pneg %p275
      $region42: #{residual_block_pallas.3} parent=39 // pred_check_branch
        %278 = sbr.rel (%p276) target = $region44
      $region43: #{residual_block_pallas.3} parent=39 // pred_region
        %vm279 = vcmask 24576
        %280 = vst.msk [vmem:[%s6] sm:$0x1] %vm279, 0.0
        %281 = vst.msk [vmem:[%s7] sm:$0x1] %vm279, 0.0
        %vm282 = vcmask 31744
        %283 = vst.msk [vmem:[#allocation2] sm:$0xff] %vm282, 0.0
        %284 = vst.msk [vmem:[#allocation2 + $0x8] sm:$0xff] %vm282, 0.0
        %vm285 = vcmask 25600
        %286 = vst.msk [vmem:[#allocation2 + $0x10] sm:$0x3] %vm285, 0.0
        %287 = vst.msk [vmem:[#allocation2 + $0x18] sm:$0xff] %vm282, 0.0
        %288 = vst.msk [vmem:[#allocation2 + $0x20] sm:$0xff] %vm282, 0.0
        %289 = vst.msk [vmem:[#allocation2 + $0x28] sm:$0x3] %vm285, 0.0
        %290 = vst.msk [vmem:[#allocation2 + $0x30] sm:$0xff] %vm282, 0.0
        %291 = vst.msk [vmem:[#allocation2 + $0x38] sm:$0xff] %vm282, 0.0
        %292 = vst.msk [vmem:[#allocation2 + $0x40] sm:$0x3] %vm285, 0.0
        %293 = vst.msk [vmem:[#allocation2 + $0x48] sm:$0xff] %vm282, 0.0
        %294 = vst.msk [vmem:[#allocation2 + $0x50] sm:$0xff] %vm282, 0.0
        %295 = vst.msk [vmem:[#allocation2 + $0x58] sm:$0x3] %vm285, 0.0
        %296 = vst.msk [vmem:[#allocation2 + $0x60] sm:$0xff] %vm282, 0.0
        %297 = vst.msk [vmem:[#allocation2 + $0x68] sm:$0xff] %vm282, 0.0
        %298 = vst.msk [vmem:[#allocation2 + $0x70] sm:$0x3] %vm285, 0.0
        %299 = vst.msk [vmem:[#allocation2 + $0x78] sm:$0xff] %vm282, 0.0
        %300 = vst.msk [vmem:[#allocation2 + $0x80] sm:$0xff] %vm282, 0.0
        %301 = vst.msk [vmem:[#allocation2 + $0x88] sm:$0x3] %vm285, 0.0
        %302 = vst.msk [vmem:[#allocation2 + $0x90] sm:$0xff] %vm282, 0.0
        %303 = vst.msk [vmem:[#allocation2 + $0x98] sm:$0xff] %vm282, 0.0
        %304 = vst.msk [vmem:[#allocation2 + $0xa0] sm:$0x3] %vm285, 0.0
        %305 = vst.msk [vmem:[#allocation2 + $0xa8] sm:$0xff] %vm282, 0.0
        %306 = vst.msk [vmem:[#allocation2 + $0xb0] sm:$0xff] %vm282, 0.0
        %307 = vst.msk [vmem:[#allocation2 + $0xb8] sm:$0x3] %vm285, 0.0
        %308 = vst.msk [vmem:[#allocation2 + $0xc0] sm:$0xff] %vm282, 0.0
        %309 = vst.msk [vmem:[#allocation2 + $0xc8] sm:$0xff] %vm282, 0.0
        %310 = vst.msk [vmem:[#allocation2 + $0xd0] sm:$0x3] %vm285, 0.0
        %311 = vst.msk [vmem:[#allocation2 + $0xd8] sm:$0xff] %vm282, 0.0
        %312 = vst.msk [vmem:[#allocation2 + $0xe0] sm:$0xff] %vm282, 0.0
        %313 = vst.msk [vmem:[#allocation2 + $0xe8] sm:$0x3] %vm285, 0.0
        %314 = vst.msk [vmem:[#allocation2 + $0xf0] sm:$0xff] %vm282, 0.0
        %315 = vst.msk [vmem:[#allocation2 + $0xf8] sm:$0xff] %vm282, 0.0
        %316 = vst.msk [vmem:[#allocation2 + $0x100] sm:$0x3] %vm285, 0.0
        %317 = vst.msk [vmem:[#allocation2 + $0x108] sm:$0xff] %vm282, 0.0
        %318 = vst.msk [vmem:[#allocation2 + $0x110] sm:$0xff] %vm282, 0.0
        %319 = vst.msk [vmem:[#allocation2 + $0x118] sm:$0x3] %vm285, 0.0
        %320 = vst.msk [vmem:[#allocation2 + $0x120] sm:$0xff] %vm282, 0.0
        %321 = vst.msk [vmem:[#allocation2 + $0x128] sm:$0xff] %vm282, 0.0
        %322 = vst.msk [vmem:[#allocation2 + $0x130] sm:$0x3] %vm285, 0.0
        %323 = vst.msk [vmem:[#allocation2 + $0x138] sm:$0xff] %vm282, 0.0
        %324 = vst.msk [vmem:[#allocation2 + $0x140] sm:$0xff] %vm282, 0.0
        %325 = vst.msk [vmem:[#allocation2 + $0x148] sm:$0x3] %vm285, 0.0
        %326 = vst.msk [vmem:[#allocation2 + $0x150] sm:$0xff] %vm282, 0.0
        %327 = vst.msk [vmem:[#allocation2 + $0x158] sm:$0xff] %vm282, 0.0
        %328 = vst.msk [vmem:[#allocation2 + $0x160] sm:$0x3] %vm285, 0.0
        %329 = vst.msk [vmem:[#allocation2 + $0x168] sm:$0xff] %vm282, 0.0
        %330 = vst.msk [vmem:[#allocation2 + $0x170] sm:$0xff] %vm282, 0.0
        %331 = vst.msk [vmem:[#allocation2 + $0x178] sm:$0x3] %vm285, 0.0
        %332 = vst.msk [vmem:[#allocation2 + $0x180] sm:$0xff] %vm282, 0.0
        %333 = vst.msk [vmem:[#allocation2 + $0x188] sm:$0xff] %vm282, 0.0
        %334 = vst.msk [vmem:[#allocation2 + $0x190] sm:$0x3] %vm285, 0.0
        %335 = vst.msk [vmem:[#allocation2 + $0x198] sm:$0xff] %vm282, 0.0
        %336 = vst.msk [vmem:[#allocation2 + $0x1a0] sm:$0xff] %vm282, 0.0
        %337 = vst.msk [vmem:[#allocation2 + $0x1a8] sm:$0x3] %vm285, 0.0
      $region44: #{residual_block_pallas.3} parent=39 // pred_fallthru
        _
      %v338 = vld [vmem:[%s269] sm:$0xff]
      %v339 = vld [vmem:[%s269 + $0x8] sm:$0xff]
      %v340 = vld [vmem:[%s269 + $0x10] sm:$0xff]
      %v341 = vld [vmem:[%s269 + $0x18] sm:$0xff]
      %v342 = vld [vmem:[%s269 + $0x20] sm:$0xff]
      %v343 = vld [vmem:[%s269 + $0x28] sm:$0xff]
      %v344 = vld [vmem:[%s269 + $0x30] sm:$0xff]
      %v345 = vld [vmem:[%s269 + $0x38] sm:$0xff]
      %v346 = vld [vmem:[%s269 + $0x40] sm:$0xff]
      %v347 = vld [vmem:[%s269 + $0x48] sm:$0xff]
      %v348 = vld [vmem:[%s269 + $0x50] sm:$0xff]
      %v349 = vld [vmem:[%s269 + $0x58] sm:$0xff]
      %v350 = vld [vmem:[%s269 + $0x60] sm:$0xff]
      %v351 = vld [vmem:[%s269 + $0x68] sm:$0xff]
      %v352 = vld [vmem:[%s269 + $0x70] sm:$0xff]
      %v353 = vld [vmem:[%s269 + $0x78] sm:$0xff]
      %v354 = vld [vmem:[%s269 + $0x80] sm:$0xff]
      %v355 = vld [vmem:[%s269 + $0x88] sm:$0xff]
      %v356 = vld [vmem:[%s269 + $0x90] sm:$0xff]
      %v357 = vld [vmem:[%s269 + $0x98] sm:$0xff]
      %v358 = vld [vmem:[%s269 + $0xa0] sm:$0xff]
      %v359 = vld [vmem:[%s269 + $0xa8] sm:$0xff]
      %v360 = vld [vmem:[%s269 + $0xb0] sm:$0xff]
      %v361 = vld [vmem:[%s269 + $0xb8] sm:$0xff]
      %v362 = vld [vmem:[%s269 + $0xc0] sm:$0xff]
      %v363 = vld [vmem:[%s269 + $0xc8] sm:$0xff]
      %v364 = vld [vmem:[%s269 + $0xd0] sm:$0xff]
      %v365 = vld [vmem:[%s269 + $0xd8] sm:$0xff]
      %v366 = vld [vmem:[%s269 + $0xe0] sm:$0xff]
      %v367 = vld [vmem:[%s269 + $0xe8] sm:$0xff]
      %v368 = vld [vmem:[%s269 + $0xf0] sm:$0xff]
      %v369 = vld [vmem:[%s269 + $0xf8] sm:$0xff]
      %v370 = vld [vmem:[%s1] sm:$0x1]
      %v372 = vlaneseq
      %v373 = vshrl.u32 %v372, 7
      %v374 = vsub.s32 0, %v373
      %v375 = vrot.slane %v370, %v374
      %v377 = vmul.f32 %v338, %v375
      %v378 = vmul.f32 %v339, %v375
      %v379 = vmul.f32 %v340, %v375
      %v380 = vmul.f32 %v341, %v375
      %v381 = vmul.f32 %v342, %v375
      %v382 = vmul.f32 %v343, %v375
      %v383 = vmul.f32 %v344, %v375
      %v384 = vmul.f32 %v345, %v375
      %v385 = vmul.f32 %v346, %v375
      %v386 = vmul.f32 %v347, %v375
      %v387 = vmul.f32 %v348, %v375
      %v388 = vmul.f32 %v349, %v375
      %v389 = vmul.f32 %v350, %v375
      %v390 = vmul.f32 %v351, %v375
      %v391 = vmul.f32 %v352, %v375
      %v392 = vmul.f32 %v353, %v375
      %v393 = vmul.f32 %v354, %v375
      %v394 = vmul.f32 %v355, %v375
      %v395 = vmul.f32 %v356, %v375
      %v396 = vmul.f32 %v357, %v375
      %v397 = vmul.f32 %v358, %v375
      %v398 = vmul.f32 %v359, %v375
      %v399 = vmul.f32 %v360, %v375
      %v400 = vmul.f32 %v361, %v375
      %v401 = vmul.f32 %v362, %v375
      %v402 = vmul.f32 %v363, %v375
      %v403 = vmul.f32 %v364, %v375
      %v404 = vmul.f32 %v365, %v375
      %v405 = vmul.f32 %v366, %v375
      %v406 = vmul.f32 %v367, %v375
      %v407 = vmul.f32 %v368, %v375
      %v408 = vmul.f32 %v369, %v375
      %v409 = vld [vmem:[%s2] sm:$0x1]
      %v411 = vlaneseq
      %v412 = vshrl.u32 %v411, 7
      %v413 = vsub.s32 0, %v412
      %v414 = vrot.slane %v409, %v413
      %v416 = vadd.f32 %v377, %v414
      %v417 = vadd.f32 %v378, %v414
      %v418 = vadd.f32 %v379, %v414
      %v419 = vadd.f32 %v380, %v414
      %v420 = vadd.f32 %v381, %v414
      %v421 = vadd.f32 %v382, %v414
      %v422 = vadd.f32 %v383, %v414
      %v423 = vadd.f32 %v384, %v414
      %v424 = vadd.f32 %v385, %v414
      %v425 = vadd.f32 %v386, %v414
      %v426 = vadd.f32 %v387, %v414
      %v427 = vadd.f32 %v388, %v414
      %v428 = vadd.f32 %v389, %v414
      %v429 = vadd.f32 %v390, %v414
      %v430 = vadd.f32 %v391, %v414
      %v431 = vadd.f32 %v392, %v414
      %v432 = vadd.f32 %v393, %v414
      %v433 = vadd.f32 %v394, %v414
      %v434 = vadd.f32 %v395, %v414
      %v435 = vadd.f32 %v396, %v414
      %v436 = vadd.f32 %v397, %v414
      %v437 = vadd.f32 %v398, %v414
      %v438 = vadd.f32 %v399, %v414
      %v439 = vadd.f32 %v400, %v414
      %v440 = vadd.f32 %v401, %v414
      %v441 = vadd.f32 %v402, %v414
      %v442 = vadd.f32 %v403, %v414
      %v443 = vadd.f32 %v404, %v414
      %v444 = vadd.f32 %v405, %v414
      %v445 = vadd.f32 %v406, %v414
      %v446 = vadd.f32 %v407, %v414
      %v447 = vadd.f32 %v408, %v414
      %s448 = sld [smem:[#allocation3]]
      %vm449 = vcmp.gt.f32.partialorder %v416, 0.0
      %vm450 = vcmp.gt.f32.partialorder %v417, 0.0
      %vm451 = vcmp.gt.f32.partialorder %v418, 0.0
      %vm452 = vcmp.gt.f32.partialorder %v419, 0.0
      %vm453 = vcmp.gt.f32.partialorder %v420, 0.0
      %vm454 = vcmp.gt.f32.partialorder %v421, 0.0
      %vm455 = vcmp.gt.f32.partialorder %v422, 0.0
      %vm456 = vcmp.gt.f32.partialorder %v423, 0.0
      %vm457 = vcmp.gt.f32.partialorder %v424, 0.0
      %vm458 = vcmp.gt.f32.partialorder %v425, 0.0
      %vm459 = vcmp.gt.f32.partialorder %v426, 0.0
      %vm460 = vcmp.gt.f32.partialorder %v427, 0.0
      %vm461 = vcmp.gt.f32.partialorder %v428, 0.0
      %vm462 = vcmp.gt.f32.partialorder %v429, 0.0
      %vm463 = vcmp.gt.f32.partialorder %v430, 0.0
      %vm464 = vcmp.gt.f32.partialorder %v431, 0.0
      %vm465 = vcmp.gt.f32.partialorder %v432, 0.0
      %vm466 = vcmp.gt.f32.partialorder %v433, 0.0
      %vm467 = vcmp.gt.f32.partialorder %v434, 0.0
      %vm468 = vcmp.gt.f32.partialorder %v435, 0.0
      %vm469 = vcmp.gt.f32.partialorder %v436, 0.0
      %vm470 = vcmp.gt.f32.partialorder %v437, 0.0
      %vm471 = vcmp.gt.f32.partialorder %v438, 0.0
      %vm472 = vcmp.gt.f32.partialorder %v439, 0.0
      %vm473 = vcmp.gt.f32.partialorder %v440, 0.0
      %vm474 = vcmp.gt.f32.partialorder %v441, 0.0
      %vm475 = vcmp.gt.f32.partialorder %v442, 0.0
      %vm476 = vcmp.gt.f32.partialorder %v443, 0.0
      %vm477 = vcmp.gt.f32.partialorder %v444, 0.0
      %vm478 = vcmp.gt.f32.partialorder %v445, 0.0
      %vm479 = vcmp.gt.f32.partialorder %v446, 0.0
      %vm480 = vcmp.gt.f32.partialorder %v447, 0.0
      %v481 = vstv %s448
      %v482 = vmul.f32 %v481, %v416
      %v483 = vmul.f32 %v481, %v417
      %v484 = vmul.f32 %v481, %v418
      %v485 = vmul.f32 %v481, %v419
      %v486 = vmul.f32 %v481, %v420
      %v487 = vmul.f32 %v481, %v421
      %v488 = vmul.f32 %v481, %v422
      %v489 = vmul.f32 %v481, %v423
      %v490 = vmul.f32 %v481, %v424
      %v491 = vmul.f32 %v481, %v425
      %v492 = vmul.f32 %v481, %v426
      %v493 = vmul.f32 %v481, %v427
      %v494 = vmul.f32 %v481, %v428
      %v495 = vmul.f32 %v481, %v429
      %v496 = vmul.f32 %v481, %v430
      %v497 = vmul.f32 %v481, %v431
      %v498 = vmul.f32 %v481, %v432
      %v499 = vmul.f32 %v481, %v433
      %v500 = vmul.f32 %v481, %v434
      %v501 = vmul.f32 %v481, %v435
      %v502 = vmul.f32 %v481, %v436
      %v503 = vmul.f32 %v481, %v437
      %v504 = vmul.f32 %v481, %v438
      %v505 = vmul.f32 %v481, %v439
      %v506 = vmul.f32 %v481, %v440
      %v507 = vmul.f32 %v481, %v441
      %v508 = vmul.f32 %v481, %v442
      %v509 = vmul.f32 %v481, %v443
      %v510 = vmul.f32 %v481, %v444
      %v511 = vmul.f32 %v481, %v445
      %v512 = vmul.f32 %v481, %v446
      %v513 = vmul.f32 %v481, %v447
      %v514 = vsel %vm449, %v416, %v482
      %v515 = vsel %vm450, %v417, %v483
      %v516 = vsel %vm451, %v418, %v484
      %v517 = vsel %vm452, %v419, %v485
      %v518 = vsel %vm453, %v420, %v486
      %v519 = vsel %vm454, %v421, %v487
      %v520 = vsel %vm455, %v422, %v488
      %v521 = vsel %vm456, %v423, %v489
      %v522 = vsel %vm457, %v424, %v490
      %v523 = vsel %vm458, %v425, %v491
      %v524 = vsel %vm459, %v426, %v492
      %v525 = vsel %vm460, %v427, %v493
      %v526 = vsel %vm461, %v428, %v494
      %v527 = vsel %vm462, %v429, %v495
      %v528 = vsel %vm463, %v430, %v496
      %v529 = vsel %vm464, %v431, %v497
      %v530 = vsel %vm465, %v432, %v498
      %v531 = vsel %vm466, %v433, %v499
      %v532 = vsel %vm467, %v434, %v500
      %v533 = vsel %vm468, %v435, %v501
      %v534 = vsel %vm469, %v436, %v502
      %v535 = vsel %vm470, %v437, %v503
      %v536 = vsel %vm471, %v438, %v504
      %v537 = vsel %vm472, %v439, %v505
      %v538 = vsel %vm473, %v440, %v506
      %v539 = vsel %vm474, %v441, %v507
      %v540 = vsel %vm475, %v442, %v508
      %v541 = vsel %vm476, %v443, %v509
      %v542 = vsel %vm477, %v444, %v510
      %v543 = vsel %vm478, %v445, %v511
      %v544 = vsel %vm479, %v446, %v512
      %v545 = vsel %vm480, %v447, %v513
      %s546 = scalar_lea.vmem [#allocation2], 24
      %vm547 = vcmask 31744
      %548 = vst.msk [vmem:[%s546 + $0x1] sm:$0xff] %vm547, %v514
      %549 = vst.msk [vmem:[%s546 + $0x9] sm:$0xff] %vm547, %v515
      %550 = vst.msk [vmem:[%s546 + $0x19] sm:$0xff] %vm547, %v516
      %551 = vst.msk [vmem:[%s546 + $0x21] sm:$0xff] %vm547, %v517
      %552 = vst.msk [vmem:[%s546 + $0x31] sm:$0xff] %vm547, %v518
      %553 = vst.msk [vmem:[%s546 + $0x39] sm:$0xff] %vm547, %v519
      %554 = vst.msk [vmem:[%s546 + $0x49] sm:$0xff] %vm547, %v520
      %555 = vst.msk [vmem:[%s546 + $0x51] sm:$0xff] %vm547, %v521
      %556 = vst.msk [vmem:[%s546 + $0x61] sm:$0xff] %vm547, %v522
      %557 = vst.msk [vmem:[%s546 + $0x69] sm:$0xff] %vm547, %v523
      %558 = vst.msk [vmem:[%s546 + $0x79] sm:$0xff] %vm547, %v524
      %559 = vst.msk [vmem:[%s546 + $0x81] sm:$0xff] %vm547, %v525
      %560 = vst.msk [vmem:[%s546 + $0x91] sm:$0xff] %vm547, %v526
      %561 = vst.msk [vmem:[%s546 + $0x99] sm:$0xff] %vm547, %v527
      %562 = vst.msk [vmem:[%s546 + $0xa9] sm:$0xff] %vm547, %v528
      %563 = vst.msk [vmem:[%s546 + $0xb1] sm:$0xff] %vm547, %v529
      %564 = vst.msk [vmem:[%s546 + $0xc1] sm:$0xff] %vm547, %v530
      %565 = vst.msk [vmem:[%s546 + $0xc9] sm:$0xff] %vm547, %v531
      %566 = vst.msk [vmem:[%s546 + $0xd9] sm:$0xff] %vm547, %v532
      %567 = vst.msk [vmem:[%s546 + $0xe1] sm:$0xff] %vm547, %v533
      %568 = vst.msk [vmem:[%s546 + $0xf1] sm:$0xff] %vm547, %v534
      %569 = vst.msk [vmem:[%s546 + $0xf9] sm:$0xff] %vm547, %v535
      %570 = vst.msk [vmem:[%s546 + $0x109] sm:$0xff] %vm547, %v536
      %571 = vst.msk [vmem:[%s546 + $0x111] sm:$0xff] %vm547, %v537
      %572 = vst.msk [vmem:[%s546 + $0x121] sm:$0xff] %vm547, %v538
      %573 = vst.msk [vmem:[%s546 + $0x129] sm:$0xff] %vm547, %v539
      %574 = vst.msk [vmem:[%s546 + $0x139] sm:$0xff] %vm547, %v540
      %575 = vst.msk [vmem:[%s546 + $0x141] sm:$0xff] %vm547, %v541
      %576 = vst.msk [vmem:[%s546 + $0x151] sm:$0xff] %vm547, %v542
      %577 = vst.msk [vmem:[%s546 + $0x159] sm:$0xff] %vm547, %v543
      %578 = vst.msk [vmem:[%s546 + $0x169] sm:$0xff] %vm547, %v544
      %579 = vst.msk [vmem:[%s546 + $0x171] sm:$0xff] %vm547, %v545
      %v580 = vld [vmem:[#allocation2] sm:$0xff]
      %v581 = vld [vmem:[#allocation2 + $0x8] sm:$0xff]
      %v582 = vld [vmem:[#allocation2 + $0x18] sm:$0xff]
      %v583 = vld [vmem:[#allocation2 + $0x20] sm:$0xff]
      %v584 = vld [vmem:[#allocation2 + $0x30] sm:$0xff]
      %v585 = vld [vmem:[#allocation2 + $0x38] sm:$0xff]
      %v586 = vld [vmem:[#allocation2 + $0x48] sm:$0xff]
      %v587 = vld [vmem:[#allocation2 + $0x50] sm:$0xff]
      %v588 = vld [vmem:[#allocation2 + $0x60] sm:$0xff]
      %v589 = vld [vmem:[#allocation2 + $0x68] sm:$0xff]
      %v590 = vld [vmem:[#allocation2 + $0x78] sm:$0xff]
      %v591 = vld [vmem:[#allocation2 + $0x80] sm:$0xff]
      %v592 = vld [vmem:[#allocation2 + $0x90] sm:$0xff]
      %v593 = vld [vmem:[#allocation2 + $0x98] sm:$0xff]
      %v594 = vld [vmem:[#allocation2 + $0xa8] sm:$0xff]
      %v595 = vld [vmem:[#allocation2 + $0xb0] sm:$0xff]
      %v596 = vld [vmem:[#allocation2 + $0xc0] sm:$0xff]
      %v597 = vld [vmem:[#allocation2 + $0xc8] sm:$0xff]
      %v598 = vld [vmem:[#allocation2 + $0xd8] sm:$0xff]
      %v599 = vld [vmem:[#allocation2 + $0xe0] sm:$0xff]
      %v600 = vld [vmem:[#allocation2 + $0xf0] sm:$0xff]
      %v601 = vld [vmem:[#allocation2 + $0xf8] sm:$0xff]
      %v602 = vld [vmem:[#allocation2 + $0x108] sm:$0xff]
      %v603 = vld [vmem:[#allocation2 + $0x110] sm:$0xff]
      %v604 = vld [vmem:[#allocation2 + $0x120] sm:$0xff]
      %v605 = vld [vmem:[#allocation2 + $0x128] sm:$0xff]
      %v606 = vld [vmem:[#allocation2 + $0x138] sm:$0xff]
      %v607 = vld [vmem:[#allocation2 + $0x140] sm:$0xff]
      %v608 = vld [vmem:[#allocation2 + $0x150] sm:$0xff]
      %v609 = vld [vmem:[#allocation2 + $0x158] sm:$0xff]
      %v610 = vld [vmem:[#allocation2 + $0x168] sm:$0xff]
      %v611 = vld [vmem:[#allocation2 + $0x170] sm:$0xff]
      %v612 = vld [vmem:[%s4] sm:$0xf]
      %v613 = vld [vmem:[#allocation2 + $0x1] sm:$0xff]
      %v614 = vld [vmem:[#allocation2 + $0x9] sm:$0xff]
      %v615 = vld [vmem:[#allocation2 + $0x19] sm:$0xff]
      %v616 = vld [vmem:[#allocation2 + $0x21] sm:$0xff]
      %v617 = vld [vmem:[#allocation2 + $0x31] sm:$0xff]
      %v618 = vld [vmem:[#allocation2 + $0x39] sm:$0xff]
      %v619 = vld [vmem:[#allocation2 + $0x49] sm:$0xff]
      %v620 = vld [vmem:[#allocation2 + $0x51] sm:$0xff]
      %v621 = vld [vmem:[#allocation2 + $0x61] sm:$0xff]
      %v622 = vld [vmem:[#allocation2 + $0x69] sm:$0xff]
      %v623 = vld [vmem:[#allocation2 + $0x79] sm:$0xff]
      %v624 = vld [vmem:[#allocation2 + $0x81] sm:$0xff]
      %v625 = vld [vmem:[#allocation2 + $0x91] sm:$0xff]
      %v626 = vld [vmem:[#allocation2 + $0x99] sm:$0xff]
      %v627 = vld [vmem:[#allocation2 + $0xa9] sm:$0xff]
      %v628 = vld [vmem:[#allocation2 + $0xb1] sm:$0xff]
      %v629 = vld [vmem:[#allocation2 + $0xc1] sm:$0xff]
      %v630 = vld [vmem:[#allocation2 + $0xc9] sm:$0xff]
      %v631 = vld [vmem:[#allocation2 + $0xd9] sm:$0xff]
      %v632 = vld [vmem:[#allocation2 + $0xe1] sm:$0xff]
      %v633 = vld [vmem:[#allocation2 + $0xf1] sm:$0xff]
      %v634 = vld [vmem:[#allocation2 + $0xf9] sm:$0xff]
      %v635 = vld [vmem:[#allocation2 + $0x109] sm:$0xff]
      %v636 = vld [vmem:[#allocation2 + $0x111] sm:$0xff]
      %v637 = vld [vmem:[#allocation2 + $0x121] sm:$0xff]
      %v638 = vld [vmem:[#allocation2 + $0x129] sm:$0xff]
      %v639 = vld [vmem:[#allocation2 + $0x139] sm:$0xff]
      %v640 = vld [vmem:[#allocation2 + $0x141] sm:$0xff]
      %v641 = vld [vmem:[#allocation2 + $0x151] sm:$0xff]
      %v642 = vld [vmem:[#allocation2 + $0x159] sm:$0xff]
      %v643 = vld [vmem:[#allocation2 + $0x169] sm:$0xff]
      %v644 = vld [vmem:[#allocation2 + $0x171] sm:$0xff]
      %s645 = scalar_lea.vmem %s4, 4
      %v646 = vld [vmem:[%s645] sm:$0xf]
      %v648 = vsel %vm547, %v613, 0
      %v651 = vsel %vm547, %v614, 0
      %v654 = vsel %vm547, %v615, 0
      %v657 = vsel %vm547, %v616, 0
      %v660 = vsel %vm547, %v617, 0
      %v663 = vsel %vm547, %v618, 0
      %v666 = vsel %vm547, %v619, 0
      %v669 = vsel %vm547, %v620, 0
      %v672 = vsel %vm547, %v621, 0
      %v675 = vsel %vm547, %v622, 0
      %v678 = vsel %vm547, %v623, 0
      %v681 = vsel %vm547, %v624, 0
      %v684 = vsel %vm547, %v625, 0
      %v687 = vsel %vm547, %v626, 0
      %v690 = vsel %vm547, %v627, 0
      %v693 = vsel %vm547, %v628, 0
      %v696 = vsel %vm547, %v629, 0
      %v699 = vsel %vm547, %v630, 0
      %v702 = vsel %vm547, %v631, 0
      %v705 = vsel %vm547, %v632, 0
      %v708 = vsel %vm547, %v633, 0
      %v711 = vsel %vm547, %v634, 0
      %v714 = vsel %vm547, %v635, 0
      %v717 = vsel %vm547, %v636, 0
      %v720 = vsel %vm547, %v637, 0
      %v723 = vsel %vm547, %v638, 0
      %v726 = vsel %vm547, %v639, 0
      %v729 = vsel %vm547, %v640, 0
      %v732 = vsel %vm547, %v641, 0
      %v735 = vsel %vm547, %v642, 0
      %v738 = vsel %vm547, %v643, 0
      %v741 = vsel %vm547, %v644, 0
      %vm743 = vcmask 1043456
      %v745 = vsel %vm743, %v646, 0
      %747 = vmatprep.subr.mxu0 0.0
      %748 = vmatpush1.msra.mxu0 %v745
      %749 = vmatprep.subr.mxu0 0.0
      %750 = vmatpush1.msra.mxu0 0.0
      %751 = vmatprep.subr.mxu0 0.0
      %752 = vmatpush1.msra.mxu0 0.0
      %753 = vmatprep.subr.mxu0 0.0
      %754 = vmatpush1.msra.mxu0 0.0
      %755 = vmatprep.subr.mxu0 0.0
      %756 = vmatpush1.msra.mxu0 0.0
      %757 = vmatprep.subr.mxu0 0.0
      %758 = vmatpush1.msra.mxu0 0.0
      %759 = vmatprep.subr.mxu0 0.0
      %760 = vmatpush1.msra.mxu0 0.0
      %761 = vmatprep.subr.mxu0 0.0
      %762 = vmatpush1.msra.mxu0 0.0
      %763 = vmatprep.subr.mxu0 0.0
      %764 = vmatpush1.msra.mxu0 0.0
      %765 = vmatprep.subr.mxu0 0.0
      %766 = vmatpush1.msra.mxu0 0.0
      %767 = vmatprep.subr.mxu0 0.0
      %768 = vmatpush1.msra.mxu0 0.0
      %769 = vmatprep.subr.mxu0 0.0
      %770 = vmatpush1.msra.mxu0 0.0
      %771 = vmatprep.subr.mxu0 0.0
      %772 = vmatpush1.msra.mxu0 0.0
      %773 = vmatprep.subr.mxu0 0.0
      %774 = vmatpush1.msra.mxu0 0.0
      %775 = vmatprep.subr.mxu0 0.0
      %776 = vmatpush1.msra.mxu0 0.0
      %777 = vmatprep.subr.mxu0 0.0
      %778 = vmatpush1.msra.mxu0 0.0
      %779 = vmatprep.subr.mxu0 0.0
      %780 = vmatpush1.msra.mxu0 0.0
      %781 = vmatprep.subr.mxu0 0.0
      %782 = vmatpush1.msra.mxu0 0.0
      %783 = vmatprep.subr.mxu0 0.0
      %784 = vmatpush1.msra.mxu0 0.0
      %785 = vmatprep.subr.mxu0 0.0
      %786 = vmatpush1.msra.mxu0 0.0
      %787 = vmatprep.subr.mxu0 0.0
      %788 = vmatpush1.msra.mxu0 0.0
      %789 = vmatprep.subr.mxu0 0.0
      %790 = vmatpush1.msra.mxu0 0.0
      %791 = vmatprep.subr.mxu0 0.0
      %792 = vmatpush1.msra.mxu0 0.0
      %793 = vmatprep.subr.mxu0 0.0
      %794 = vmatpush1.msra.mxu0 0.0
      %795 = vmatprep.subr.mxu0 0.0
      %796 = vmatpush1.msra.mxu0 0.0
      %797 = vmatprep.subr.mxu0 0.0
      %798 = vmatpush1.msra.mxu0 0.0
      %799 = vmatprep.subr.mxu0 0.0
      %800 = vmatpush1.msra.mxu0 0.0
      %801 = vmatprep.subr.mxu0 0.0
      %802 = vmatpush1.msra.mxu0 0.0
      %803 = vmatprep.subr.mxu0 0.0
      %804 = vmatpush1.msra.mxu0 0.0
      %805 = vmatprep.subr.mxu0 0.0
      %806 = vmatpush1.msra.mxu0 0.0
      %807 = vmatprep.subr.mxu0 0.0
      %808 = vmatpush1.msra.mxu0 0.0
      %809 = vmatprep.subr.mxu0 0.0
      %810 = vmatpush1.msra.mxu0 0.0
      %811 = vmatprep.mubr.f32.mxu0 0.0
      %812 = vmatmul.mubr.f32.gmra.mrb[0].mxu0 %v648
      %v813 = vpop.f32.mrb[0].mxu0
      %v814 = vadd.f32 0.0, %v813
      %v815 = vpop.f32.mrb[0].mxu0
      %816 = vmatprep.mubr.f32.mxu0 0.0
      %817 = vmatmul.mubr.f32.gmra.mrb[0].mxu0 %v651
      %v818 = vpop.f32.mrb[0].mxu0
      %v819 = vadd.f32 0.0, %v818
      %v820 = vpop.f32.mrb[0].mxu0
      %821 = vmatprep.mubr.f32.mxu0 0.0
      %822 = vmatmul.mubr.f32.gmra.mrb[0].mxu0 %v654
      %v823 = vpop.f32.mrb[0].mxu0
      %v824 = vadd.f32 0.0, %v823
      %v825 = vpop.f32.mrb[0].mxu0
      %826 = vmatprep.mubr.f32.mxu0 0.0
      %827 = vmatmul.mubr.f32.gmra.mrb[0].mxu0 %v657
      %v828 = vpop.f32.mrb[0].mxu0
      %v829 = vadd.f32 0.0, %v828
      %v830 = vpop.f32.mrb[0].mxu0
      %831 = vmatprep.mubr.f32.mxu0 0.0
      %832 = vmatmul.mubr.f32.gmra.mrb[0].mxu0 %v660
      %v833 = vpop.f32.mrb[0].mxu0
      %v834 = vadd.f32 0.0, %v833
      %v835 = vpop.f32.mrb[0].mxu0
      %836 = vmatprep.mubr.f32.mxu0 0.0
      %837 = vmatmul.mubr.f32.gmra.mrb[0].mxu0 %v663
      %v838 = vpop.f32.mrb[0].mxu0
      %v839 = vadd.f32 0.0, %v838
      %v840 = vpop.f32.mrb[0].mxu0
      %841 = vmatprep.mubr.f32.mxu0 0.0
      %842 = vmatmul.mubr.f32.gmra.mrb[0].mxu0 %v666
      %v843 = vpop.f32.mrb[0].mxu0
      %v844 = vadd.f32 0.0, %v843
      %v845 = vpop.f32.mrb[0].mxu0
      %846 = vmatprep.mubr.f32.mxu0 0.0
      %847 = vmatmul.mubr.f32.gmra.mrb[0].mxu0 %v669
      %v848 = vpop.f32.mrb[0].mxu0
      %v849 = vadd.f32 0.0, %v848
      %v850 = vpop.f32.mrb[0].mxu0
      %851 = vmatprep.mubr.f32.mxu0 0.0
      %852 = vmatmul.mubr.f32.gmra.mrb[0].mxu0 %v672
      %v853 = vpop.f32.mrb[0].mxu0
      %v854 = vadd.f32 0.0, %v853
      %v855 = vpop.f32.mrb[0].mxu0
      %856 = vmatprep.mubr.f32.mxu0 0.0
      %857 = vmatmul.mubr.f32.gmra.mrb[0].mxu0 %v675
      %v858 = vpop.f32.mrb[0].mxu0
      %v859 = vadd.f32 0.0, %v858
      %v860 = vpop.f32.mrb[0].mxu0
      %861 = vmatprep.mubr.f32.mxu0 0.0
      %862 = vmatmul.mubr.f32.gmra.mrb[0].mxu0 %v678
      %v863 = vpop.f32.mrb[0].mxu0
      %v864 = vadd.f32 0.0, %v863
      %v865 = vpop.f32.mrb[0].mxu0
      %866 = vmatprep.mubr.f32.mxu0 0.0
      %867 = vmatmul.mubr.f32.gmra.mrb[0].mxu0 %v681
      %v868 = vpop.f32.mrb[0].mxu0
      %v869 = vadd.f32 0.0, %v868
      %v870 = vpop.f32.mrb[0].mxu0
      %871 = vmatprep.mubr.f32.mxu0 0.0
      %872 = vmatmul.mubr.f32.gmra.mrb[0].mxu0 %v684
      %v873 = vpop.f32.mrb[0].mxu0
      %v874 = vadd.f32 0.0, %v873
      %v875 = vpop.f32.mrb[0].mxu0
      %876 = vmatprep.mubr.f32.mxu0 0.0
      %877 = vmatmul.mubr.f32.gmra.mrb[0].mxu0 %v687
      %v878 = vpop.f32.mrb[0].mxu0
      %v879 = vadd.f32 0.0, %v878
      %v880 = vpop.f32.mrb[0].mxu0
      %881 = vmatprep.mubr.f32.mxu0 0.0
      %882 = vmatmul.mubr.f32.gmra.mrb[0].mxu0 %v690
      %v883 = vpop.f32.mrb[0].mxu0
      %v884 = vadd.f32 0.0, %v883
      %v885 = vpop.f32.mrb[0].mxu0
      %886 = vmatprep.mubr.f32.mxu0 0.0
      %887 = vmatmul.mubr.f32.gmra.mrb[0].mxu0 %v693
      %v888 = vpop.f32.mrb[0].mxu0
      %v889 = vadd.f32 0.0, %v888
      %v890 = vpop.f32.mrb[0].mxu0
      %891 = vmatprep.mubr.f32.mxu0 0.0
      %892 = vmatmul.mubr.f32.gmra.mrb[0].mxu0 %v696
      %v893 = vpop.f32.mrb[0].mxu0
      %v894 = vadd.f32 0.0, %v893
      %v895 = vpop.f32.mrb[0].mxu0
      %896 = vmatprep.mubr.f32.mxu0 0.0
      %897 = vmatmul.mubr.f32.gmra.mrb[0].mxu0 %v699
      %v898 = vpop.f32.mrb[0].mxu0
      %v899 = vadd.f32 0.0, %v898
      %v900 = vpop.f32.mrb[0].mxu0
      %901 = vmatprep.mubr.f32.mxu0 0.0
      %902 = vmatmul.mubr.f32.gmra.mrb[0].mxu0 %v702
      %v903 = vpop.f32.mrb[0].mxu0
      %v904 = vadd.f32 0.0, %v903
      %v905 = vpop.f32.mrb[0].mxu0
      %906 = vmatprep.mubr.f32.mxu0 0.0
      %907 = vmatmul.mubr.f32.gmra.mrb[0].mxu0 %v705
      %v908 = vpop.f32.mrb[0].mxu0
      %v909 = vadd.f32 0.0, %v908
      %v910 = vpop.f32.mrb[0].mxu0
      %911 = vmatprep.mubr.f32.mxu0 0.0
      %912 = vmatmul.mubr.f32.gmra.mrb[0].mxu0 %v708
      %v913 = vpop.f32.mrb[0].mxu0
      %v914 = vadd.f32 0.0, %v913
      %v915 = vpop.f32.mrb[0].mxu0
      %916 = vmatprep.mubr.f32.mxu0 0.0
      %917 = vmatmul.mubr.f32.gmra.mrb[0].mxu0 %v711
      %v918 = vpop.f32.mrb[0].mxu0
      %v919 = vadd.f32 0.0, %v918
      %v920 = vpop.f32.mrb[0].mxu0
      %921 = vmatprep.mubr.f32.mxu0 0.0
      %922 = vmatmul.mubr.f32.gmra.mrb[0].mxu0 %v714
      %v923 = vpop.f32.mrb[0].mxu0
      %v924 = vadd.f32 0.0, %v923
      %v925 = vpop.f32.mrb[0].mxu0
      %926 = vmatprep.mubr.f32.mxu0 0.0
      %927 = vmatmul.mubr.f32.gmra.mrb[0].mxu0 %v717
      %v928 = vpop.f32.mrb[0].mxu0
      %v929 = vadd.f32 0.0, %v928
      %v930 = vpop.f32.mrb[0].mxu0
      %931 = vmatprep.mubr.f32.mxu0 0.0
      %932 = vmatmul.mubr.f32.gmra.mrb[0].mxu0 %v720
      %v933 = vpop.f32.mrb[0].mxu0
      %v934 = vadd.f32 0.0, %v933
      %v935 = vpop.f32.mrb[0].mxu0
      %936 = vmatprep.mubr.f32.mxu0 0.0
      %937 = vmatmul.mubr.f32.gmra.mrb[0].mxu0 %v723
      %v938 = vpop.f32.mrb[0].mxu0
      %v939 = vadd.f32 0.0, %v938
      %v940 = vpop.f32.mrb[0].mxu0
      %941 = vmatprep.mubr.f32.mxu0 0.0
      %942 = vmatmul.mubr.f32.gmra.mrb[0].mxu0 %v726
      %v943 = vpop.f32.mrb[0].mxu0
      %v944 = vadd.f32 0.0, %v943
      %v945 = vpop.f32.mrb[0].mxu0
      %946 = vmatprep.mubr.f32.mxu0 0.0
      %947 = vmatmul.mubr.f32.gmra.mrb[0].mxu0 %v729
      %v948 = vpop.f32.mrb[0].mxu0
      %v949 = vadd.f32 0.0, %v948
      %v950 = vpop.f32.mrb[0].mxu0
      %951 = vmatprep.mubr.f32.mxu0 0.0
      %952 = vmatmul.mubr.f32.gmra.mrb[0].mxu0 %v732
      %v953 = vpop.f32.mrb[0].mxu0
      %v954 = vadd.f32 0.0, %v953
      %v955 = vpop.f32.mrb[0].mxu0
      %956 = vmatprep.mubr.f32.mxu0 0.0
      %957 = vmatmul.mubr.f32.gmra.mrb[0].mxu0 %v735
      %v958 = vpop.f32.mrb[0].mxu0
      %v959 = vadd.f32 0.0, %v958
      %v960 = vpop.f32.mrb[0].mxu0
      %961 = vmatprep.mubr.f32.mxu0 0.0
      %962 = vmatmul.mubr.f32.gmra.mrb[0].mxu0 %v738
      %v963 = vpop.f32.mrb[0].mxu0
      %v964 = vadd.f32 0.0, %v963
      %v965 = vpop.f32.mrb[0].mxu0
      %966 = vmatprep.mubr.f32.mxu0 0.0
      %967 = vmatmul.mubr.f32.gmra.mrb[0].mxu0 %v741
      %v968 = vpop.f32.mrb[0].mxu0
      %v969 = vadd.f32 0.0, %v968
      %v970 = vpop.f32.mrb[0].mxu0
      %971 = vdwg.mxu0
      %v973 = vsel %vm547, %v580, 0
      %v976 = vsel %vm547, %v581, 0
      %v979 = vsel %vm547, %v582, 0
      %v982 = vsel %vm547, %v583, 0
      %v985 = vsel %vm547, %v584, 0
      %v988 = vsel %vm547, %v585, 0
      %v991 = vsel %vm547, %v586, 0
      %v994 = vsel %vm547, %v587, 0
      %v997 = vsel %vm547, %v588, 0
      %v1000 = vsel %vm547, %v589, 0
      %v1003 = vsel %vm547, %v590, 0
      %v1006 = vsel %vm547, %v591, 0
      %v1009 = vsel %vm547, %v592, 0
      %v1012 = vsel %vm547, %v593, 0
      %v1015 = vsel %vm547, %v594, 0
      %v1018 = vsel %vm547, %v595, 0
      %v1021 = vsel %vm547, %v596, 0
      %v1024 = vsel %vm547, %v597, 0
      %v1027 = vsel %vm547, %v598, 0
      %v1030 = vsel %vm547, %v599, 0
      %v1033 = vsel %vm547, %v600, 0
      %v1036 = vsel %vm547, %v601, 0
      %v1039 = vsel %vm547, %v602, 0
      %v1042 = vsel %vm547, %v603, 0
      %v1045 = vsel %vm547, %v604, 0
      %v1048 = vsel %vm547, %v605, 0
      %v1051 = vsel %vm547, %v606, 0
      %v1054 = vsel %vm547, %v607, 0
      %v1057 = vsel %vm547, %v608, 0
      %v1060 = vsel %vm547, %v609, 0
      %v1063 = vsel %vm547, %v610, 0
      %v1066 = vsel %vm547, %v611, 0
      %v1069 = vsel %vm743, %v612, 0
      %1071 = vmatprep.subr.mxu0 0.0
      %1072 = vmatpush1.msra.mxu0 %v1069
      %1073 = vmatprep.subr.mxu0 0.0
      %1074 = vmatpush1.msra.mxu0 0.0
      %1075 = vmatprep.subr.mxu0 0.0
      %1076 = vmatpush1.msra.mxu0 0.0
      %1077 = vmatprep.subr.mxu0 0.0
      %1078 = vmatpush1.msra.mxu0 0.0
      %1079 = vmatprep.subr.mxu0 0.0
      %1080 = vmatpush1.msra.mxu0 0.0
      %1081 = vmatprep.subr.mxu0 0.0
      %1082 = vmatpush1.msra.mxu0 0.0
      %1083 = vmatprep.subr.mxu0 0.0
      %1084 = vmatpush1.msra.mxu0 0.0
      %1085 = vmatprep.subr.mxu0 0.0
      %1086 = vmatpush1.msra.mxu0 0.0
      %1087 = vmatprep.subr.mxu0 0.0
      %1088 = vmatpush1.msra.mxu0 0.0
      %1089 = vmatprep.subr.mxu0 0.0
      %1090 = vmatpush1.msra.mxu0 0.0
      %1091 = vmatprep.subr.mxu0 0.0
      %1092 = vmatpush1.msra.mxu0 0.0
      %1093 = vmatprep.subr.mxu0 0.0
      %1094 = vmatpush1.msra.mxu0 0.0
      %1095 = vmatprep.subr.mxu0 0.0
      %1096 = vmatpush1.msra.mxu0 0.0
      %1097 = vmatprep.subr.mxu0 0.0
      %1098 = vmatpush1.msra.mxu0 0.0
      %1099 = vmatprep.subr.mxu0 0.0
      %1100 = vmatpush1.msra.mxu0 0.0
      %1101 = vmatprep.subr.mxu0 0.0
      %1102 = vmatpush1.msra.mxu0 0.0
      %1103 = vmatprep.subr.mxu0 0.0
      %1104 = vmatpush1.msra.mxu0 0.0
      %1105 = vmatprep.subr.mxu0 0.0
      %1106 = vmatpush1.msra.mxu0 0.0
      %1107 = vmatprep.subr.mxu0 0.0
      %1108 = vmatpush1.msra.mxu0 0.0
      %1109 = vmatprep.subr.mxu0 0.0
      %1110 = vmatpush1.msra.mxu0 0.0
      %1111 = vmatprep.subr.mxu0 0.0
      %1112 = vmatpush1.msra.mxu0 0.0
      %1113 = vmatprep.subr.mxu0 0.0
      %1114 = vmatpush1.msra.mxu0 0.0
      %1115 = vmatprep.subr.mxu0 0.0
      %1116 = vmatpush1.msra.mxu0 0.0
      %1117 = vmatprep.subr.mxu0 0.0
      %1118 = vmatpush1.msra.mxu0 0.0
      %1119 = vmatprep.subr.mxu0 0.0
      %1120 = vmatpush1.msra.mxu0 0.0
      %1121 = vmatprep.subr.mxu0 0.0
      %1122 = vmatpush1.msra.mxu0 0.0
      %1123 = vmatprep.subr.mxu0 0.0
      %1124 = vmatpush1.msra.mxu0 0.0
      %1125 = vmatprep.subr.mxu0 0.0
      %1126 = vmatpush1.msra.mxu0 0.0
      %1127 = vmatprep.subr.mxu0 0.0
      %1128 = vmatpush1.msra.mxu0 0.0
      %1129 = vmatprep.subr.mxu0 0.0
      %1130 = vmatpush1.msra.mxu0 0.0
      %1131 = vmatprep.subr.mxu0 0.0
      %1132 = vmatpush1.msra.mxu0 0.0
      %1133 = vmatprep.subr.mxu0 0.0
      %1134 = vmatpush1.msra.mxu0 0.0
      %1135 = vmatprep.mubr.f32.mxu0 0.0
      %1136 = vmatmul.mubr.f32.gmra.mrb[0].mxu0 %v973
      %v1137 = vpop.f32.mrb[0].mxu0
      %v1138 = vadd.f32 %v814, %v1137
      %v1139 = vpop.f32.mrb[0].mxu0
      %1140 = vmatprep.mubr.f32.mxu0 0.0
      %1141 = vmatmul.mubr.f32.gmra.mrb[0].mxu0 %v976
      %v1142 = vpop.f32.mrb[0].mxu0
      %v1143 = vadd.f32 %v819, %v1142
      %v1144 = vpop.f32.mrb[0].mxu0
      %1145 = vmatprep.mubr.f32.mxu0 0.0
      %1146 = vmatmul.mubr.f32.gmra.mrb[0].mxu0 %v979
      %v1147 = vpop.f32.mrb[0].mxu0
      %v1148 = vadd.f32 %v824, %v1147
      %v1149 = vpop.f32.mrb[0].mxu0
      %1150 = vmatprep.mubr.f32.mxu0 0.0
      %1151 = vmatmul.mubr.f32.gmra.mrb[0].mxu0 %v982
      %v1152 = vpop.f32.mrb[0].mxu0
      %v1153 = vadd.f32 %v829, %v1152
      %v1154 = vpop.f32.mrb[0].mxu0
      %1155 = vmatprep.mubr.f32.mxu0 0.0
      %1156 = vmatmul.mubr.f32.gmra.mrb[0].mxu0 %v985
      %v1157 = vpop.f32.mrb[0].mxu0
      %v1158 = vadd.f32 %v834, %v1157
      %v1159 = vpop.f32.mrb[0].mxu0
      %1160 = vmatprep.mubr.f32.mxu0 0.0
      %1161 = vmatmul.mubr.f32.gmra.mrb[0].mxu0 %v988
      %v1162 = vpop.f32.mrb[0].mxu0
      %v1163 = vadd.f32 %v839, %v1162
      %v1164 = vpop.f32.mrb[0].mxu0
      %1165 = vmatprep.mubr.f32.mxu0 0.0
      %1166 = vmatmul.mubr.f32.gmra.mrb[0].mxu0 %v991
      %v1167 = vpop.f32.mrb[0].mxu0
      %v1168 = vadd.f32 %v844, %v1167
      %v1169 = vpop.f32.mrb[0].mxu0
      %1170 = vmatprep.mubr.f32.mxu0 0.0
      %1171 = vmatmul.mubr.f32.gmra.mrb[0].mxu0 %v994
      %v1172 = vpop.f32.mrb[0].mxu0
      %v1173 = vadd.f32 %v849, %v1172
      %v1174 = vpop.f32.mrb[0].mxu0
      %1175 = vmatprep.mubr.f32.mxu0 0.0
      %1176 = vmatmul.mubr.f32.gmra.mrb[0].mxu0 %v997
      %v1177 = vpop.f32.mrb[0].mxu0
      %v1178 = vadd.f32 %v854, %v1177
      %v1179 = vpop.f32.mrb[0].mxu0
      %1180 = vmatprep.mubr.f32.mxu0 0.0
      %1181 = vmatmul.mubr.f32.gmra.mrb[0].mxu0 %v1000
      %v1182 = vpop.f32.mrb[0].mxu0
      %v1183 = vadd.f32 %v859, %v1182
      %v1184 = vpop.f32.mrb[0].mxu0
      %1185 = vmatprep.mubr.f32.mxu0 0.0
      %1186 = vmatmul.mubr.f32.gmra.mrb[0].mxu0 %v1003
      %v1187 = vpop.f32.mrb[0].mxu0
      %v1188 = vadd.f32 %v864, %v1187
      %v1189 = vpop.f32.mrb[0].mxu0
      %1190 = vmatprep.mubr.f32.mxu0 0.0
      %1191 = vmatmul.mubr.f32.gmra.mrb[0].mxu0 %v1006
      %v1192 = vpop.f32.mrb[0].mxu0
      %v1193 = vadd.f32 %v869, %v1192
      %v1194 = vpop.f32.mrb[0].mxu0
      %1195 = vmatprep.mubr.f32.mxu0 0.0
      %1196 = vmatmul.mubr.f32.gmra.mrb[0].mxu0 %v1009
      %v1197 = vpop.f32.mrb[0].mxu0
      %v1198 = vadd.f32 %v874, %v1197
      %v1199 = vpop.f32.mrb[0].mxu0
      %1200 = vmatprep.mubr.f32.mxu0 0.0
      %1201 = vmatmul.mubr.f32.gmra.mrb[0].mxu0 %v1012
      %v1202 = vpop.f32.mrb[0].mxu0
      %v1203 = vadd.f32 %v879, %v1202
      %v1204 = vpop.f32.mrb[0].mxu0
      %1205 = vmatprep.mubr.f32.mxu0 0.0
      %1206 = vmatmul.mubr.f32.gmra.mrb[0].mxu0 %v1015
      %v1207 = vpop.f32.mrb[0].mxu0
      %v1208 = vadd.f32 %v884, %v1207
      %v1209 = vpop.f32.mrb[0].mxu0
      %1210 = vmatprep.mubr.f32.mxu0 0.0
      %1211 = vmatmul.mubr.f32.gmra.mrb[0].mxu0 %v1018
      %v1212 = vpop.f32.mrb[0].mxu0
      %v1213 = vadd.f32 %v889, %v1212
      %v1214 = vpop.f32.mrb[0].mxu0
      %1215 = vmatprep.mubr.f32.mxu0 0.0
      %1216 = vmatmul.mubr.f32.gmra.mrb[0].mxu0 %v1021
      %v1217 = vpop.f32.mrb[0].mxu0
      %v1218 = vadd.f32 %v894, %v1217
      %v1219 = vpop.f32.mrb[0].mxu0
      %1220 = vmatprep.mubr.f32.mxu0 0.0
      %1221 = vmatmul.mubr.f32.gmra.mrb[0].mxu0 %v1024
      %v1222 = vpop.f32.mrb[0].mxu0
      %v1223 = vadd.f32 %v899, %v1222
      %v1224 = vpop.f32.mrb[0].mxu0
      %1225 = vmatprep.mubr.f32.mxu0 0.0
      %1226 = vmatmul.mubr.f32.gmra.mrb[0].mxu0 %v1027
      %v1227 = vpop.f32.mrb[0].mxu0
      %v1228 = vadd.f32 %v904, %v1227
      %v1229 = vpop.f32.mrb[0].mxu0
      %1230 = vmatprep.mubr.f32.mxu0 0.0
      %1231 = vmatmul.mubr.f32.gmra.mrb[0].mxu0 %v1030
      %v1232 = vpop.f32.mrb[0].mxu0
      %v1233 = vadd.f32 %v909, %v1232
      %v1234 = vpop.f32.mrb[0].mxu0
      %1235 = vmatprep.mubr.f32.mxu0 0.0
      %1236 = vmatmul.mubr.f32.gmra.mrb[0].mxu0 %v1033
      %v1237 = vpop.f32.mrb[0].mxu0
      %v1238 = vadd.f32 %v914, %v1237
      %v1239 = vpop.f32.mrb[0].mxu0
      %1240 = vmatprep.mubr.f32.mxu0 0.0
      %1241 = vmatmul.mubr.f32.gmra.mrb[0].mxu0 %v1036
      %v1242 = vpop.f32.mrb[0].mxu0
      %v1243 = vadd.f32 %v919, %v1242
      %v1244 = vpop.f32.mrb[0].mxu0
      %1245 = vmatprep.mubr.f32.mxu0 0.0
      %1246 = vmatmul.mubr.f32.gmra.mrb[0].mxu0 %v1039
      %v1247 = vpop.f32.mrb[0].mxu0
      %v1248 = vadd.f32 %v924, %v1247
      %v1249 = vpop.f32.mrb[0].mxu0
      %1250 = vmatprep.mubr.f32.mxu0 0.0
      %1251 = vmatmul.mubr.f32.gmra.mrb[0].mxu0 %v1042
      %v1252 = vpop.f32.mrb[0].mxu0
      %v1253 = vadd.f32 %v929, %v1252
      %v1254 = vpop.f32.mrb[0].mxu0
      %1255 = vmatprep.mubr.f32.mxu0 0.0
      %1256 = vmatmul.mubr.f32.gmra.mrb[0].mxu0 %v1045
      %v1257 = vpop.f32.mrb[0].mxu0
      %v1258 = vadd.f32 %v934, %v1257
      %v1259 = vpop.f32.mrb[0].mxu0
      %1260 = vmatprep.mubr.f32.mxu0 0.0
      %1261 = vmatmul.mubr.f32.gmra.mrb[0].mxu0 %v1048
      %v1262 = vpop.f32.mrb[0].mxu0
      %v1263 = vadd.f32 %v939, %v1262
      %v1264 = vpop.f32.mrb[0].mxu0
      %1265 = vmatprep.mubr.f32.mxu0 0.0
      %1266 = vmatmul.mubr.f32.gmra.mrb[0].mxu0 %v1051
      %v1267 = vpop.f32.mrb[0].mxu0
      %v1268 = vadd.f32 %v944, %v1267
      %v1269 = vpop.f32.mrb[0].mxu0
      %1270 = vmatprep.mubr.f32.mxu0 0.0
      %1271 = vmatmul.mubr.f32.gmra.mrb[0].mxu0 %v1054
      %v1272 = vpop.f32.mrb[0].mxu0
      %v1273 = vadd.f32 %v949, %v1272
      %v1274 = vpop.f32.mrb[0].mxu0
      %1275 = vmatprep.mubr.f32.mxu0 0.0
      %1276 = vmatmul.mubr.f32.gmra.mrb[0].mxu0 %v1057
      %v1277 = vpop.f32.mrb[0].mxu0
      %v1278 = vadd.f32 %v954, %v1277
      %v1279 = vpop.f32.mrb[0].mxu0
      %1280 = vmatprep.mubr.f32.mxu0 0.0
      %1281 = vmatmul.mubr.f32.gmra.mrb[0].mxu0 %v1060
      %v1282 = vpop.f32.mrb[0].mxu0
      %v1283 = vadd.f32 %v959, %v1282
      %v1284 = vpop.f32.mrb[0].mxu0
      %1285 = vmatprep.mubr.f32.mxu0 0.0
      %1286 = vmatmul.mubr.f32.gmra.mrb[0].mxu0 %v1063
      %v1287 = vpop.f32.mrb[0].mxu0
      %v1288 = vadd.f32 %v964, %v1287
      %v1289 = vpop.f32.mrb[0].mxu0
      %1290 = vmatprep.mubr.f32.mxu0 0.0
      %1291 = vmatmul.mubr.f32.gmra.mrb[0].mxu0 %v1066
      %v1292 = vpop.f32.mrb[0].mxu0
      %v1293 = vadd.f32 %v969, %v1292
      %v1294 = vpop.f32.mrb[0].mxu0
      %1295 = vdwg.mxu0
      %v1296 = vld [vmem:[#allocation2 + $0x2] sm:$0xff]
      %v1297 = vld [vmem:[#allocation2 + $0xa] sm:$0xff]
      %v1298 = vld [vmem:[#allocation2 + $0x1a] sm:$0xff]
      %v1299 = vld [vmem:[#allocation2 + $0x22] sm:$0xff]
      %v1300 = vld [vmem:[#allocation2 + $0x32] sm:$0xff]
      %v1301 = vld [vmem:[#allocation2 + $0x3a] sm:$0xff]
      %v1302 = vld [vmem:[#allocation2 + $0x4a] sm:$0xff]
      %v1303 = vld [vmem:[#allocation2 + $0x52] sm:$0xff]
      %v1304 = vld [vmem:[#allocation2 + $0x62] sm:$0xff]
      %v1305 = vld [vmem:[#allocation2 + $0x6a] sm:$0xff]
      %v1306 = vld [vmem:[#allocation2 + $0x7a] sm:$0xff]
      %v1307 = vld [vmem:[#allocation2 + $0x82] sm:$0xff]
      %v1308 = vld [vmem:[#allocation2 + $0x92] sm:$0xff]
      %v1309 = vld [vmem:[#allocation2 + $0x9a] sm:$0xff]
      %v1310 = vld [vmem:[#allocation2 + $0xaa] sm:$0xff]
      %v1311 = vld [vmem:[#allocation2 + $0xb2] sm:$0xff]
      %v1312 = vld [vmem:[#allocation2 + $0xc2] sm:$0xff]
      %v1313 = vld [vmem:[#allocation2 + $0xca] sm:$0xff]
      %v1314 = vld [vmem:[#allocation2 + $0xda] sm:$0xff]
      %v1315 = vld [vmem:[#allocation2 + $0xe2] sm:$0xff]
      %v1316 = vld [vmem:[#allocation2 + $0xf2] sm:$0xff]
      %v1317 = vld [vmem:[#allocation2 + $0xfa] sm:$0xff]
      %v1318 = vld [vmem:[#allocation2 + $0x10a] sm:$0xff]
      %v1319 = vld [vmem:[#allocation2 + $0x112] sm:$0xff]
      %v1320 = vld [vmem:[#allocation2 + $0x122] sm:$0xff]
      %v1321 = vld [vmem:[#allocation2 + $0x12a] sm:$0xff]
      %v1322 = vld [vmem:[#allocation2 + $0x13a] sm:$0xff]
      %v1323 = vld [vmem:[#allocation2 + $0x142] sm:$0xff]
      %v1324 = vld [vmem:[#allocation2 + $0x152] sm:$0xff]
      %v1325 = vld [vmem:[#allocation2 + $0x15a] sm:$0xff]
      %v1326 = vld [vmem:[#allocation2 + $0x16a] sm:$0xff]
      %v1327 = vld [vmem:[#allocation2 + $0x172] sm:$0xff]
      %s1328 = scalar_lea.vmem %s4, 8
      %v1329 = vld [vmem:[%s1328] sm:$0xf]
      %v1331 = vsel %vm547, %v1296, 0
      %v1334 = vsel %vm547, %v1297, 0
      %v1337 = vsel %vm547, %v1298, 0
      %v1340 = vsel %vm547, %v1299, 0
      %v1343 = vsel %vm547, %v1300, 0
      %v1346 = vsel %vm547, %v1301, 0
      %v1349 = vsel %vm547, %v1302, 0
      %v1352 = vsel %vm547, %v1303, 0
      %v1355 = vsel %vm547, %v1304, 0
      %v1358 = vsel %vm547, %v1305, 0
      %v1361 = vsel %vm547, %v1306, 0
      %v1364 = vsel %vm547, %v1307, 0
      %v1367 = vsel %vm547, %v1308, 0
      %v1370 = vsel %vm547, %v1309, 0
      %v1373 = vsel %vm547, %v1310, 0
      %v1376 = vsel %vm547, %v1311, 0
      %v1379 = vsel %vm547, %v1312, 0
      %v1382 = vsel %vm547, %v1313, 0
      %v1385 = vsel %vm547, %v1314, 0
      %v1388 = vsel %vm547, %v1315, 0
      %v1391 = vsel %vm547, %v1316, 0
      %v1394 = vsel %vm547, %v1317, 0
      %v1397 = vsel %vm547, %v1318, 0
      %v1400 = vsel %vm547, %v1319, 0
      %v1403 = vsel %vm547, %v1320, 0
      %v1406 = vsel %vm547, %v1321, 0
      %v1409 = vsel %vm547, %v1322, 0
      %v1412 = vsel %vm547, %v1323, 0
      %v1415 = vsel %vm547, %v1324, 0
      %v1418 = vsel %vm547, %v1325, 0
      %v1421 = vsel %vm547, %v1326, 0
      %v1424 = vsel %vm547, %v1327, 0
      %v1427 = vsel %vm743, %v1329, 0
      %1429 = vmatprep.subr.mxu0 0.0
      %1430 = vmatpush1.msra.mxu0 %v1427
      %1431 = vmatprep.subr.mxu0 0.0
      %1432 = vmatpush1.msra.mxu0 0.0
      %1433 = vmatprep.subr.mxu0 0.0
      %1434 = vmatpush1.msra.mxu0 0.0
      %1435 = vmatprep.subr.mxu0 0.0
      %1436 = vmatpush1.msra.mxu0 0.0
      %1437 = vmatprep.subr.mxu0 0.0
      %1438 = vmatpush1.msra.mxu0 0.0
      %1439 = vmatprep.subr.mxu0 0.0
      %1440 = vmatpush1.msra.mxu0 0.0
      %1441 = vmatprep.subr.mxu0 0.0
      %1442 = vmatpush1.msra.mxu0 0.0
      %1443 = vmatprep.subr.mxu0 0.0
      %1444 = vmatpush1.msra.mxu0 0.0
      %1445 = vmatprep.subr.mxu0 0.0
      %1446 = vmatpush1.msra.mxu0 0.0
      %1447 = vmatprep.subr.mxu0 0.0
      %1448 = vmatpush1.msra.mxu0 0.0
      %1449 = vmatprep.subr.mxu0 0.0
      %1450 = vmatpush1.msra.mxu0 0.0
      %1451 = vmatprep.subr.mxu0 0.0
      %1452 = vmatpush1.msra.mxu0 0.0
      %1453 = vmatprep.subr.mxu0 0.0
      %1454 = vmatpush1.msra.mxu0 0.0
      %1455 = vmatprep.subr.mxu0 0.0
      %1456 = vmatpush1.msra.mxu0 0.0
      %1457 = vmatprep.subr.mxu0 0.0
      %1458 = vmatpush1.msra.mxu0 0.0
      %1459 = vmatprep.subr.mxu0 0.0
      %1460 = vmatpush1.msra.mxu0 0.0
      %1461 = vmatprep.subr.mxu0 0.0
      %1462 = vmatpush1.msra.mxu0 0.0
      %1463 = vmatprep.subr.mxu0 0.0
      %1464 = vmatpush1.msra.mxu0 0.0
      %1465 = vmatprep.subr.mxu0 0.0
      %1466 = vmatpush1.msra.mxu0 0.0
      %1467 = vmatprep.subr.mxu0 0.0
      %1468 = vmatpush1.msra.mxu0 0.0
      %1469 = vmatprep.subr.mxu0 0.0
      %1470 = vmatpush1.msra.mxu0 0.0
      %1471 = vmatprep.subr.mxu0 0.0
      %1472 = vmatpush1.msra.mxu0 0.0
      %1473 = vmatprep.subr.mxu0 0.0
      %1474 = vmatpush1.msra.mxu0 0.0
      %1475 = vmatprep.subr.mxu0 0.0
      %1476 = vmatpush1.msra.mxu0 0.0
      %1477 = vmatprep.subr.mxu0 0.0
      %1478 = vmatpush1.msra.mxu0 0.0
      %1479 = vmatprep.subr.mxu0 0.0
      %1480 = vmatpush1.msra.mxu0 0.0
      %1481 = vmatprep.subr.mxu0 0.0
      %1482 = vmatpush1.msra.mxu0 0.0
      %1483 = vmatprep.subr.mxu0 0.0
      %1484 = vmatpush1.msra.mxu0 0.0
      %1485 = vmatprep.subr.mxu0 0.0
      %1486 = vmatpush1.msra.mxu0 0.0
      %1487 = vmatprep.subr.mxu0 0.0
      %1488 = vmatpush1.msra.mxu0 0.0
      %1489 = vmatprep.subr.mxu0 0.0
      %1490 = vmatpush1.msra.mxu0 0.0
      %1491 = vmatprep.subr.mxu0 0.0
      %1492 = vmatpush1.msra.mxu0 0.0
      %1493 = vmatprep.mubr.f32.mxu0 0.0
      %1494 = vmatmul.mubr.f32.gmra.mrb[0].mxu0 %v1331
      %v1495 = vpop.f32.mrb[0].mxu0
      %v1496 = vadd.f32 0.0, %v1495
      %v1497 = vpop.f32.mrb[0].mxu0
      %1498 = vmatprep.mubr.f32.mxu0 0.0
      %1499 = vmatmul.mubr.f32.gmra.mrb[0].mxu0 %v1334
      %v1500 = vpop.f32.mrb[0].mxu0
      %v1501 = vadd.f32 0.0, %v1500
      %v1502 = vpop.f32.mrb[0].mxu0
      %1503 = vmatprep.mubr.f32.mxu0 0.0
      %1504 = vmatmul.mubr.f32.gmra.mrb[0].mxu0 %v1337
      %v1505 = vpop.f32.mrb[0].mxu0
      %v1506 = vadd.f32 0.0, %v1505
      %v1507 = vpop.f32.mrb[0].mxu0
      %1508 = vmatprep.mubr.f32.mxu0 0.0
      %1509 = vmatmul.mubr.f32.gmra.mrb[0].mxu0 %v1340
      %v1510 = vpop.f32.mrb[0].mxu0
      %v1511 = vadd.f32 0.0, %v1510
      %v1512 = vpop.f32.mrb[0].mxu0
      %1513 = vmatprep.mubr.f32.mxu0 0.0
      %1514 = vmatmul.mubr.f32.gmra.mrb[0].mxu0 %v1343
      %v1515 = vpop.f32.mrb[0].mxu0
      %v1516 = vadd.f32 0.0, %v1515
      %v1517 = vpop.f32.mrb[0].mxu0
      %1518 = vmatprep.mubr.f32.mxu0 0.0
      %1519 = vmatmul.mubr.f32.gmra.mrb[0].mxu0 %v1346
      %v1520 = vpop.f32.mrb[0].mxu0
      %v1521 = vadd.f32 0.0, %v1520
      %v1522 = vpop.f32.mrb[0].mxu0
      %1523 = vmatprep.mubr.f32.mxu0 0.0
      %1524 = vmatmul.mubr.f32.gmra.mrb[0].mxu0 %v1349
      %v1525 = vpop.f32.mrb[0].mxu0
      %v1526 = vadd.f32 0.0, %v1525
      %v1527 = vpop.f32.mrb[0].mxu0
      %1528 = vmatprep.mubr.f32.mxu0 0.0
      %1529 = vmatmul.mubr.f32.gmra.mrb[0].mxu0 %v1352
      %v1530 = vpop.f32.mrb[0].mxu0
      %v1531 = vadd.f32 0.0, %v1530
      %v1532 = vpop.f32.mrb[0].mxu0
      %1533 = vmatprep.mubr.f32.mxu0 0.0
      %1534 = vmatmul.mubr.f32.gmra.mrb[0].mxu0 %v1355
      %v1535 = vpop.f32.mrb[0].mxu0
      %v1536 = vadd.f32 0.0, %v1535
      %v1537 = vpop.f32.mrb[0].mxu0
      %1538 = vmatprep.mubr.f32.mxu0 0.0
      %1539 = vmatmul.mubr.f32.gmra.mrb[0].mxu0 %v1358
      %v1540 = vpop.f32.mrb[0].mxu0
      %v1541 = vadd.f32 0.0, %v1540
      %v1542 = vpop.f32.mrb[0].mxu0
      %1543 = vmatprep.mubr.f32.mxu0 0.0
      %1544 = vmatmul.mubr.f32.gmra.mrb[0].mxu0 %v1361
      %v1545 = vpop.f32.mrb[0].mxu0
      %v1546 = vadd.f32 0.0, %v1545
      %v1547 = vpop.f32.mrb[0].mxu0
      %1548 = vmatprep.mubr.f32.mxu0 0.0
      %1549 = vmatmul.mubr.f32.gmra.mrb[0].mxu0 %v1364
      %v1550 = vpop.f32.mrb[0].mxu0
      %v1551 = vadd.f32 0.0, %v1550
      %v1552 = vpop.f32.mrb[0].mxu0
      %1553 = vmatprep.mubr.f32.mxu0 0.0
      %1554 = vmatmul.mubr.f32.gmra.mrb[0].mxu0 %v1367
      %v1555 = vpop.f32.mrb[0].mxu0
      %v1556 = vadd.f32 0.0, %v1555
      %v1557 = vpop.f32.mrb[0].mxu0
      %1558 = vmatprep.mubr.f32.mxu0 0.0
      %1559 = vmatmul.mubr.f32.gmra.mrb[0].mxu0 %v1370
      %v1560 = vpop.f32.mrb[0].mxu0
      %v1561 = vadd.f32 0.0, %v1560
      %v1562 = vpop.f32.mrb[0].mxu0
      %1563 = vmatprep.mubr.f32.mxu0 0.0
      %1564 = vmatmul.mubr.f32.gmra.mrb[0].mxu0 %v1373
      %v1565 = vpop.f32.mrb[0].mxu0
      %v1566 = vadd.f32 0.0, %v1565
      %v1567 = vpop.f32.mrb[0].mxu0
      %1568 = vmatprep.mubr.f32.mxu0 0.0
      %1569 = vmatmul.mubr.f32.gmra.mrb[0].mxu0 %v1376
      %v1570 = vpop.f32.mrb[0].mxu0
      %v1571 = vadd.f32 0.0, %v1570
      %v1572 = vpop.f32.mrb[0].mxu0
      %1573 = vmatprep.mubr.f32.mxu0 0.0
      %1574 = vmatmul.mubr.f32.gmra.mrb[0].mxu0 %v1379
      %v1575 = vpop.f32.mrb[0].mxu0
      %v1576 = vadd.f32 0.0, %v1575
      %v1577 = vpop.f32.mrb[0].mxu0
      %1578 = vmatprep.mubr.f32.mxu0 0.0
      %1579 = vmatmul.mubr.f32.gmra.mrb[0].mxu0 %v1382
      %v1580 = vpop.f32.mrb[0].mxu0
      %v1581 = vadd.f32 0.0, %v1580
      %v1582 = vpop.f32.mrb[0].mxu0
      %1583 = vmatprep.mubr.f32.mxu0 0.0
      %1584 = vmatmul.mubr.f32.gmra.mrb[0].mxu0 %v1385
      %v1585 = vpop.f32.mrb[0].mxu0
      %v1586 = vadd.f32 0.0, %v1585
      %v1587 = vpop.f32.mrb[0].mxu0
      %1588 = vmatprep.mubr.f32.mxu0 0.0
      %1589 = vmatmul.mubr.f32.gmra.mrb[0].mxu0 %v1388
      %v1590 = vpop.f32.mrb[0].mxu0
      %v1591 = vadd.f32 0.0, %v1590
      %v1592 = vpop.f32.mrb[0].mxu0
      %1593 = vmatprep.mubr.f32.mxu0 0.0
      %1594 = vmatmul.mubr.f32.gmra.mrb[0].mxu0 %v1391
      %v1595 = vpop.f32.mrb[0].mxu0
      %v1596 = vadd.f32 0.0, %v1595
      %v1597 = vpop.f32.mrb[0].mxu0
      %1598 = vmatprep.mubr.f32.mxu0 0.0
      %1599 = vmatmul.mubr.f32.gmra.mrb[0].mxu0 %v1394
      %v1600 = vpop.f32.mrb[0].mxu0
      %v1601 = vadd.f32 0.0, %v1600
      %v1602 = vpop.f32.mrb[0].mxu0
      %1603 = vmatprep.mubr.f32.mxu0 0.0
      %1604 = vmatmul.mubr.f32.gmra.mrb[0].mxu0 %v1397
      %v1605 = vpop.f32.mrb[0].mxu0
      %v1606 = vadd.f32 0.0, %v1605
      %v1607 = vpop.f32.mrb[0].mxu0
      %1608 = vmatprep.mubr.f32.mxu0 0.0
      %1609 = vmatmul.mubr.f32.gmra.mrb[0].mxu0 %v1400
      %v1610 = vpop.f32.mrb[0].mxu0
      %v1611 = vadd.f32 0.0, %v1610
      %v1612 = vpop.f32.mrb[0].mxu0
      %1613 = vmatprep.mubr.f32.mxu0 0.0
      %1614 = vmatmul.mubr.f32.gmra.mrb[0].mxu0 %v1403
      %v1615 = vpop.f32.mrb[0].mxu0
      %v1616 = vadd.f32 0.0, %v1615
      %v1617 = vpop.f32.mrb[0].mxu0
      %1618 = vmatprep.mubr.f32.mxu0 0.0
      %1619 = vmatmul.mubr.f32.gmra.mrb[0].mxu0 %v1406
      %v1620 = vpop.f32.mrb[0].mxu0
      %v1621 = vadd.f32 0.0, %v1620
      %v1622 = vpop.f32.mrb[0].mxu0
      %1623 = vmatprep.mubr.f32.mxu0 0.0
      %1624 = vmatmul.mubr.f32.gmra.mrb[0].mxu0 %v1409
      %v1625 = vpop.f32.mrb[0].mxu0
      %v1626 = vadd.f32 0.0, %v1625
      %v1627 = vpop.f32.mrb[0].mxu0
      %1628 = vmatprep.mubr.f32.mxu0 0.0
      %1629 = vmatmul.mubr.f32.gmra.mrb[0].mxu0 %v1412
      %v1630 = vpop.f32.mrb[0].mxu0
      %v1631 = vadd.f32 0.0, %v1630
      %v1632 = vpop.f32.mrb[0].mxu0
      %1633 = vmatprep.mubr.f32.mxu0 0.0
      %1634 = vmatmul.mubr.f32.gmra.mrb[0].mxu0 %v1415
      %v1635 = vpop.f32.mrb[0].mxu0
      %v1636 = vadd.f32 0.0, %v1635
      %v1637 = vpop.f32.mrb[0].mxu0
      %1638 = vmatprep.mubr.f32.mxu0 0.0
      %1639 = vmatmul.mubr.f32.gmra.mrb[0].mxu0 %v1418
      %v1640 = vpop.f32.mrb[0].mxu0
      %v1641 = vadd.f32 0.0, %v1640
      %v1642 = vpop.f32.mrb[0].mxu0
      %1643 = vmatprep.mubr.f32.mxu0 0.0
      %1644 = vmatmul.mubr.f32.gmra.mrb[0].mxu0 %v1421
      %v1645 = vpop.f32.mrb[0].mxu0
      %v1646 = vadd.f32 0.0, %v1645
      %v1647 = vpop.f32.mrb[0].mxu0
      %1648 = vmatprep.mubr.f32.mxu0 0.0
      %1649 = vmatmul.mubr.f32.gmra.mrb[0].mxu0 %v1424
      %v1650 = vpop.f32.mrb[0].mxu0
      %v1651 = vadd.f32 0.0, %v1650
      %v1652 = vpop.f32.mrb[0].mxu0
      %1653 = vdwg.mxu0
      %v1654 = vadd.f32 %v1138, %v1496
      %v1655 = vadd.f32 %v1143, %v1501
      %v1656 = vadd.f32 %v1148, %v1506
      %v1657 = vadd.f32 %v1153, %v1511
      %v1658 = vadd.f32 %v1158, %v1516
      %v1659 = vadd.f32 %v1163, %v1521
      %v1660 = vadd.f32 %v1168, %v1526
      %v1661 = vadd.f32 %v1173, %v1531
      %v1662 = vadd.f32 %v1178, %v1536
      %v1663 = vadd.f32 %v1183, %v1541
      %v1664 = vadd.f32 %v1188, %v1546
      %v1665 = vadd.f32 %v1193, %v1551
      %v1666 = vadd.f32 %v1198, %v1556
      %v1667 = vadd.f32 %v1203, %v1561
      %v1668 = vadd.f32 %v1208, %v1566
      %v1669 = vadd.f32 %v1213, %v1571
      %v1670 = vadd.f32 %v1218, %v1576
      %v1671 = vadd.f32 %v1223, %v1581
      %v1672 = vadd.f32 %v1228, %v1586
      %v1673 = vadd.f32 %v1233, %v1591
      %v1674 = vadd.f32 %v1238, %v1596
      %v1675 = vadd.f32 %v1243, %v1601
      %v1676 = vadd.f32 %v1248, %v1606
      %v1677 = vadd.f32 %v1253, %v1611
      %v1678 = vadd.f32 %v1258, %v1616
      %v1679 = vadd.f32 %v1263, %v1621
      %v1680 = vadd.f32 %v1268, %v1626
      %v1681 = vadd.f32 %v1273, %v1631
      %v1682 = vadd.f32 %v1278, %v1636
      %v1683 = vadd.f32 %v1283, %v1641
      %v1684 = vadd.f32 %v1288, %v1646
      %v1685 = vadd.f32 %v1293, %v1651
      %v1686 = vld [vmem:[%s546] sm:$0xff]
      %v1687 = vld [vmem:[%s546 + $0x8] sm:$0xff]
      %v1688 = vld [vmem:[%s546 + $0x18] sm:$0xff]
      %v1689 = vld [vmem:[%s546 + $0x20] sm:$0xff]
      %v1690 = vld [vmem:[%s546 + $0x30] sm:$0xff]
      %v1691 = vld [vmem:[%s546 + $0x38] sm:$0xff]
      %v1692 = vld [vmem:[%s546 + $0x48] sm:$0xff]
      %v1693 = vld [vmem:[%s546 + $0x50] sm:$0xff]
      %v1694 = vld [vmem:[%s546 + $0x60] sm:$0xff]
      %v1695 = vld [vmem:[%s546 + $0x68] sm:$0xff]
      %v1696 = vld [vmem:[%s546 + $0x78] sm:$0xff]
      %v1697 = vld [vmem:[%s546 + $0x80] sm:$0xff]
      %v1698 = vld [vmem:[%s546 + $0x90] sm:$0xff]
      %v1699 = vld [vmem:[%s546 + $0x98] sm:$0xff]
      %v1700 = vld [vmem:[%s546 + $0xa8] sm:$0xff]
      %v1701 = vld [vmem:[%s546 + $0xb0] sm:$0xff]
      %v1702 = vld [vmem:[%s546 + $0xc0] sm:$0xff]
      %v1703 = vld [vmem:[%s546 + $0xc8] sm:$0xff]
      %v1704 = vld [vmem:[%s546 + $0xd8] sm:$0xff]
      %v1705 = vld [vmem:[%s546 + $0xe0] sm:$0xff]
      %v1706 = vld [vmem:[%s546 + $0xf0] sm:$0xff]
      %v1707 = vld [vmem:[%s546 + $0xf8] sm:$0xff]
      %v1708 = vld [vmem:[%s546 + $0x108] sm:$0xff]
      %v1709 = vld [vmem:[%s546 + $0x110] sm:$0xff]
      %v1710 = vld [vmem:[%s546 + $0x120] sm:$0xff]
      %v1711 = vld [vmem:[%s546 + $0x128] sm:$0xff]
      %v1712 = vld [vmem:[%s546 + $0x138] sm:$0xff]
      %v1713 = vld [vmem:[%s546 + $0x140] sm:$0xff]
      %v1714 = vld [vmem:[%s546 + $0x150] sm:$0xff]
      %v1715 = vld [vmem:[%s546 + $0x158] sm:$0xff]
      %v1716 = vld [vmem:[%s546 + $0x168] sm:$0xff]
      %v1717 = vld [vmem:[%s546 + $0x170] sm:$0xff]
      %s1718 = scalar_lea.vmem %s4, 12
      %v1719 = vld [vmem:[%s1718] sm:$0xf]
      %v1721 = vsel %vm547, %v1686, 0
      %v1724 = vsel %vm547, %v1687, 0
      %v1727 = vsel %vm547, %v1688, 0
      %v1730 = vsel %vm547, %v1689, 0
      %v1733 = vsel %vm547, %v1690, 0
      %v1736 = vsel %vm547, %v1691, 0
      %v1739 = vsel %vm547, %v1692, 0
      %v1742 = vsel %vm547, %v1693, 0
      %v1745 = vsel %vm547, %v1694, 0
      %v1748 = vsel %vm547, %v1695, 0
      %v1751 = vsel %vm547, %v1696, 0
      %v1754 = vsel %vm547, %v1697, 0
      %v1757 = vsel %vm547, %v1698, 0
      %v1760 = vsel %vm547, %v1699, 0
      %v1763 = vsel %vm547, %v1700, 0
      %v1766 = vsel %vm547, %v1701, 0
      %v1769 = vsel %vm547, %v1702, 0
      %v1772 = vsel %vm547, %v1703, 0
      %v1775 = vsel %vm547, %v1704, 0
      %v1778 = vsel %vm547, %v1705, 0
      %v1781 = vsel %vm547, %v1706, 0
      %v1784 = vsel %vm547, %v1707, 0
      %v1787 = vsel %vm547, %v1708, 0
      %v1790 = vsel %vm547, %v1709, 0
      %v1793 = vsel %vm547, %v1710, 0
      %v1796 = vsel %vm547, %v1711, 0
      %v1799 = vsel %vm547, %v1712, 0
      %v1802 = vsel %vm547, %v1713, 0
      %v1805 = vsel %vm547, %v1714, 0
      %v1808 = vsel %vm547, %v1715, 0
      %v1811 = vsel %vm547, %v1716, 0
      %v1814 = vsel %vm547, %v1717, 0
      %v1817 = vsel %vm743, %v1719, 0
      %1819 = vmatprep.subr.mxu0 0.0
      %1820 = vmatpush1.msra.mxu0 %v1817
      %1821 = vmatprep.subr.mxu0 0.0
      %1822 = vmatpush1.msra.mxu0 0.0
      %1823 = vmatprep.subr.mxu0 0.0
      %1824 = vmatpush1.msra.mxu0 0.0
      %1825 = vmatprep.subr.mxu0 0.0
      %1826 = vmatpush1.msra.mxu0 0.0
      %1827 = vmatprep.subr.mxu0 0.0
      %1828 = vmatpush1.msra.mxu0 0.0
      %1829 = vmatprep.subr.mxu0 0.0
      %1830 = vmatpush1.msra.mxu0 0.0
      %1831 = vmatprep.subr.mxu0 0.0
      %1832 = vmatpush1.msra.mxu0 0.0
      %1833 = vmatprep.subr.mxu0 0.0
      %1834 = vmatpush1.msra.mxu0 0.0
      %1835 = vmatprep.subr.mxu0 0.0
      %1836 = vmatpush1.msra.mxu0 0.0
      %1837 = vmatprep.subr.mxu0 0.0
      %1838 = vmatpush1.msra.mxu0 0.0
      %1839 = vmatprep.subr.mxu0 0.0
      %1840 = vmatpush1.msra.mxu0 0.0
      %1841 = vmatprep.subr.mxu0 0.0
      %1842 = vmatpush1.msra.mxu0 0.0
      %1843 = vmatprep.subr.mxu0 0.0
      %1844 = vmatpush1.msra.mxu0 0.0
      %1845 = vmatprep.subr.mxu0 0.0
      %1846 = vmatpush1.msra.mxu0 0.0
      %1847 = vmatprep.subr.mxu0 0.0
      %1848 = vmatpush1.msra.mxu0 0.0
      %1849 = vmatprep.subr.mxu0 0.0
      %1850 = vmatpush1.msra.mxu0 0.0
      %1851 = vmatprep.subr.mxu0 0.0
      %1852 = vmatpush1.msra.mxu0 0.0
      %1853 = vmatprep.subr.mxu0 0.0
      %1854 = vmatpush1.msra.mxu0 0.0
      %1855 = vmatprep.subr.mxu0 0.0
      %1856 = vmatpush1.msra.mxu0 0.0
      %1857 = vmatprep.subr.mxu0 0.0
      %1858 = vmatpush1.msra.mxu0 0.0
      %1859 = vmatprep.subr.mxu0 0.0
      %1860 = vmatpush1.msra.mxu0 0.0
      %1861 = vmatprep.subr.mxu0 0.0
      %1862 = vmatpush1.msra.mxu0 0.0
      %1863 = vmatprep.subr.mxu0 0.0
      %1864 = vmatpush1.msra.mxu0 0.0
      %1865 = vmatprep.subr.mxu0 0.0
      %1866 = vmatpush1.msra.mxu0 0.0
      %1867 = vmatprep.subr.mxu0 0.0
      %1868 = vmatpush1.msra.mxu0 0.0
      %1869 = vmatprep.subr.mxu0 0.0
      %1870 = vmatpush1.msra.mxu0 0.0
      %1871 = vmatprep.subr.mxu0 0.0
      %1872 = vmatpush1.msra.mxu0 0.0
      %1873 = vmatprep.subr.mxu0 0.0
      %1874 = vmatpush1.msra.mxu0 0.0
      %1875 = vmatprep.subr.mxu0 0.0
      %1876 = vmatpush1.msra.mxu0 0.0
      %1877 = vmatprep.subr.mxu0 0.0
      %1878 = vmatpush1.msra.mxu0 0.0
      %1879 = vmatprep.subr.mxu0 0.0
      %1880 = vmatpush1.msra.mxu0 0.0
      %1881 = vmatprep.subr.mxu0 0.0
      %1882 = vmatpush1.msra.mxu0 0.0
      %1883 = vmatprep.mubr.f32.mxu0 0.0
      %1884 = vmatmul.mubr.f32.gmra.mrb[0].mxu0 %v1721
      %v1885 = vpop.f32.mrb[0].mxu0
      %v1886 = vadd.f32 0.0, %v1885
      %v1887 = vpop.f32.mrb[0].mxu0
      %1888 = vmatprep.mubr.f32.mxu0 0.0
      %1889 = vmatmul.mubr.f32.gmra.mrb[0].mxu0 %v1724
      %v1890 = vpop.f32.mrb[0].mxu0
      %v1891 = vadd.f32 0.0, %v1890
      %v1892 = vpop.f32.mrb[0].mxu0
      %1893 = vmatprep.mubr.f32.mxu0 0.0
      %1894 = vmatmul.mubr.f32.gmra.mrb[0].mxu0 %v1727
      %v1895 = vpop.f32.mrb[0].mxu0
      %v1896 = vadd.f32 0.0, %v1895
      %v1897 = vpop.f32.mrb[0].mxu0
      %1898 = vmatprep.mubr.f32.mxu0 0.0
      %1899 = vmatmul.mubr.f32.gmra.mrb[0].mxu0 %v1730
      %v1900 = vpop.f32.mrb[0].mxu0
      %v1901 = vadd.f32 0.0, %v1900
      %v1902 = vpop.f32.mrb[0].mxu0
      %1903 = vmatprep.mubr.f32.mxu0 0.0
      %1904 = vmatmul.mubr.f32.gmra.mrb[0].mxu0 %v1733
      %v1905 = vpop.f32.mrb[0].mxu0
      %v1906 = vadd.f32 0.0, %v1905
      %v1907 = vpop.f32.mrb[0].mxu0
      %1908 = vmatprep.mubr.f32.mxu0 0.0
      %1909 = vmatmul.mubr.f32.gmra.mrb[0].mxu0 %v1736
      %v1910 = vpop.f32.mrb[0].mxu0
      %v1911 = vadd.f32 0.0, %v1910
      %v1912 = vpop.f32.mrb[0].mxu0
      %1913 = vmatprep.mubr.f32.mxu0 0.0
      %1914 = vmatmul.mubr.f32.gmra.mrb[0].mxu0 %v1739
      %v1915 = vpop.f32.mrb[0].mxu0
      %v1916 = vadd.f32 0.0, %v1915
      %v1917 = vpop.f32.mrb[0].mxu0
      %1918 = vmatprep.mubr.f32.mxu0 0.0
      %1919 = vmatmul.mubr.f32.gmra.mrb[0].mxu0 %v1742
      %v1920 = vpop.f32.mrb[0].mxu0
      %v1921 = vadd.f32 0.0, %v1920
      %v1922 = vpop.f32.mrb[0].mxu0
      %1923 = vmatprep.mubr.f32.mxu0 0.0
      %1924 = vmatmul.mubr.f32.gmra.mrb[0].mxu0 %v1745
      %v1925 = vpop.f32.mrb[0].mxu0
      %v1926 = vadd.f32 0.0, %v1925
      %v1927 = vpop.f32.mrb[0].mxu0
      %1928 = vmatprep.mubr.f32.mxu0 0.0
      %1929 = vmatmul.mubr.f32.gmra.mrb[0].mxu0 %v1748
      %v1930 = vpop.f32.mrb[0].mxu0
      %v1931 = vadd.f32 0.0, %v1930
      %v1932 = vpop.f32.mrb[0].mxu0
      %1933 = vmatprep.mubr.f32.mxu0 0.0
      %1934 = vmatmul.mubr.f32.gmra.mrb[0].mxu0 %v1751
      %v1935 = vpop.f32.mrb[0].mxu0
      %v1936 = vadd.f32 0.0, %v1935
      %v1937 = vpop.f32.mrb[0].mxu0
      %1938 = vmatprep.mubr.f32.mxu0 0.0
      %1939 = vmatmul.mubr.f32.gmra.mrb[0].mxu0 %v1754
      %v1940 = vpop.f32.mrb[0].mxu0
      %v1941 = vadd.f32 0.0, %v1940
      %v1942 = vpop.f32.mrb[0].mxu0
      %1943 = vmatprep.mubr.f32.mxu0 0.0
      %1944 = vmatmul.mubr.f32.gmra.mrb[0].mxu0 %v1757
      %v1945 = vpop.f32.mrb[0].mxu0
      %v1946 = vadd.f32 0.0, %v1945
      %v1947 = vpop.f32.mrb[0].mxu0
      %1948 = vmatprep.mubr.f32.mxu0 0.0
      %1949 = vmatmul.mubr.f32.gmra.mrb[0].mxu0 %v1760
      %v1950 = vpop.f32.mrb[0].mxu0
      %v1951 = vadd.f32 0.0, %v1950
      %v1952 = vpop.f32.mrb[0].mxu0
      %1953 = vmatprep.mubr.f32.mxu0 0.0
      %1954 = vmatmul.mubr.f32.gmra.mrb[0].mxu0 %v1763
      %v1955 = vpop.f32.mrb[0].mxu0
      %v1956 = vadd.f32 0.0, %v1955
      %v1957 = vpop.f32.mrb[0].mxu0
      %1958 = vmatprep.mubr.f32.mxu0 0.0
      %1959 = vmatmul.mubr.f32.gmra.mrb[0].mxu0 %v1766
      %v1960 = vpop.f32.mrb[0].mxu0
      %v1961 = vadd.f32 0.0, %v1960
      %v1962 = vpop.f32.mrb[0].mxu0
      %1963 = vmatprep.mubr.f32.mxu0 0.0
      %1964 = vmatmul.mubr.f32.gmra.mrb[0].mxu0 %v1769
      %v1965 = vpop.f32.mrb[0].mxu0
      %v1966 = vadd.f32 0.0, %v1965
      %v1967 = vpop.f32.mrb[0].mxu0
      %1968 = vmatprep.mubr.f32.mxu0 0.0
      %1969 = vmatmul.mubr.f32.gmra.mrb[0].mxu0 %v1772
      %v1970 = vpop.f32.mrb[0].mxu0
      %v1971 = vadd.f32 0.0, %v1970
      %v1972 = vpop.f32.mrb[0].mxu0
      %1973 = vmatprep.mubr.f32.mxu0 0.0
      %1974 = vmatmul.mubr.f32.gmra.mrb[0].mxu0 %v1775
      %v1975 = vpop.f32.mrb[0].mxu0
      %v1976 = vadd.f32 0.0, %v1975
      %v1977 = vpop.f32.mrb[0].mxu0
      %1978 = vmatprep.mubr.f32.mxu0 0.0
      %1979 = vmatmul.mubr.f32.gmra.mrb[0].mxu0 %v1778
      %v1980 = vpop.f32.mrb[0].mxu0
      %v1981 = vadd.f32 0.0, %v1980
      %v1982 = vpop.f32.mrb[0].mxu0
      %1983 = vmatprep.mubr.f32.mxu0 0.0
      %1984 = vmatmul.mubr.f32.gmra.mrb[0].mxu0 %v1781
      %v1985 = vpop.f32.mrb[0].mxu0
      %v1986 = vadd.f32 0.0, %v1985
      %v1987 = vpop.f32.mrb[0].mxu0
      %1988 = vmatprep.mubr.f32.mxu0 0.0
      %1989 = vmatmul.mubr.f32.gmra.mrb[0].mxu0 %v1784
      %v1990 = vpop.f32.mrb[0].mxu0
      %v1991 = vadd.f32 0.0, %v1990
      %v1992 = vpop.f32.mrb[0].mxu0
      %1993 = vmatprep.mubr.f32.mxu0 0.0
      %1994 = vmatmul.mubr.f32.gmra.mrb[0].mxu0 %v1787
      %v1995 = vpop.f32.mrb[0].mxu0
      %v1996 = vadd.f32 0.0, %v1995
      %v1997 = vpop.f32.mrb[0].mxu0
      %1998 = vmatprep.mubr.f32.mxu0 0.0
      %1999 = vmatmul.mubr.f32.gmra.mrb[0].mxu0 %v1790
      %v2000 = vpop.f32.mrb[0].mxu0
      %v2001 = vadd.f32 0.0, %v2000
      %v2002 = vpop.f32.mrb[0].mxu0
      %2003 = vmatprep.mubr.f32.mxu0 0.0
      %2004 = vmatmul.mubr.f32.gmra.mrb[0].mxu0 %v1793
      %v2005 = vpop.f32.mrb[0].mxu0
      %v2006 = vadd.f32 0.0, %v2005
      %v2007 = vpop.f32.mrb[0].mxu0
      %2008 = vmatprep.mubr.f32.mxu0 0.0
      %2009 = vmatmul.mubr.f32.gmra.mrb[0].mxu0 %v1796
      %v2010 = vpop.f32.mrb[0].mxu0
      %v2011 = vadd.f32 0.0, %v2010
      %v2012 = vpop.f32.mrb[0].mxu0
      %2013 = vmatprep.mubr.f32.mxu0 0.0
      %2014 = vmatmul.mubr.f32.gmra.mrb[0].mxu0 %v1799
      %v2015 = vpop.f32.mrb[0].mxu0
      %v2016 = vadd.f32 0.0, %v2015
      %v2017 = vpop.f32.mrb[0].mxu0
      %2018 = vmatprep.mubr.f32.mxu0 0.0
      %2019 = vmatmul.mubr.f32.gmra.mrb[0].mxu0 %v1802
      %v2020 = vpop.f32.mrb[0].mxu0
      %v2021 = vadd.f32 0.0, %v2020
      %v2022 = vpop.f32.mrb[0].mxu0
      %2023 = vmatprep.mubr.f32.mxu0 0.0
      %2024 = vmatmul.mubr.f32.gmra.mrb[0].mxu0 %v1805
      %v2025 = vpop.f32.mrb[0].mxu0
      %v2026 = vadd.f32 0.0, %v2025
      %v2027 = vpop.f32.mrb[0].mxu0
      %2028 = vmatprep.mubr.f32.mxu0 0.0
      %2029 = vmatmul.mubr.f32.gmra.mrb[0].mxu0 %v1808
      %v2030 = vpop.f32.mrb[0].mxu0
      %v2031 = vadd.f32 0.0, %v2030
      %v2032 = vpop.f32.mrb[0].mxu0
      %2033 = vmatprep.mubr.f32.mxu0 0.0
      %2034 = vmatmul.mubr.f32.gmra.mrb[0].mxu0 %v1811
      %v2035 = vpop.f32.mrb[0].mxu0
      %v2036 = vadd.f32 0.0, %v2035
      %v2037 = vpop.f32.mrb[0].mxu0
      %2038 = vmatprep.mubr.f32.mxu0 0.0
      %2039 = vmatmul.mubr.f32.gmra.mrb[0].mxu0 %v1814
      %v2040 = vpop.f32.mrb[0].mxu0
      %v2041 = vadd.f32 0.0, %v2040
      %v2042 = vpop.f32.mrb[0].mxu0
      %2043 = vdwg.mxu0
      %v2044 = vadd.f32 %v1654, %v1886
      %v2045 = vadd.f32 %v1655, %v1891
      %v2046 = vadd.f32 %v1656, %v1896
      %v2047 = vadd.f32 %v1657, %v1901
      %v2048 = vadd.f32 %v1658, %v1906
      %v2049 = vadd.f32 %v1659, %v1911
      %v2050 = vadd.f32 %v1660, %v1916
      %v2051 = vadd.f32 %v1661, %v1921
      %v2052 = vadd.f32 %v1662, %v1926
      %v2053 = vadd.f32 %v1663, %v1931
      %v2054 = vadd.f32 %v1664, %v1936
      %v2055 = vadd.f32 %v1665, %v1941
      %v2056 = vadd.f32 %v1666, %v1946
      %v2057 = vadd.f32 %v1667, %v1951
      %v2058 = vadd.f32 %v1668, %v1956
      %v2059 = vadd.f32 %v1669, %v1961
      %v2060 = vadd.f32 %v1670, %v1966
      %v2061 = vadd.f32 %v1671, %v1971
      %v2062 = vadd.f32 %v1672, %v1976
      %v2063 = vadd.f32 %v1673, %v1981
      %v2064 = vadd.f32 %v1674, %v1986
      %v2065 = vadd.f32 %v1675, %v1991
      %v2066 = vadd.f32 %v1676, %v1996
      %v2067 = vadd.f32 %v1677, %v2001
      %v2068 = vadd.f32 %v1678, %v2006
      %v2069 = vadd.f32 %v1679, %v2011
      %v2070 = vadd.f32 %v1680, %v2016
      %v2071 = vadd.f32 %v1681, %v2021
      %v2072 = vadd.f32 %v1682, %v2026
      %v2073 = vadd.f32 %v1683, %v2031
      %v2074 = vadd.f32 %v1684, %v2036
      %v2075 = vadd.f32 %v1685, %v2041
      %v2076 = vld [vmem:[%s546 + $0x1] sm:$0xff]
      %v2077 = vld [vmem:[%s546 + $0x9] sm:$0xff]
      %v2078 = vld [vmem:[%s546 + $0x19] sm:$0xff]
      %v2079 = vld [vmem:[%s546 + $0x21] sm:$0xff]
      %v2080 = vld [vmem:[%s546 + $0x31] sm:$0xff]
      %v2081 = vld [vmem:[%s546 + $0x39] sm:$0xff]
      %v2082 = vld [vmem:[%s546 + $0x49] sm:$0xff]
      %v2083 = vld [vmem:[%s546 + $0x51] sm:$0xff]
      %v2084 = vld [vmem:[%s546 + $0x61] sm:$0xff]
      %v2085 = vld [vmem:[%s546 + $0x69] sm:$0xff]
      %v2086 = vld [vmem:[%s546 + $0x79] sm:$0xff]
      %v2087 = vld [vmem:[%s546 + $0x81] sm:$0xff]
      %v2088 = vld [vmem:[%s546 + $0x91] sm:$0xff]
      %v2089 = vld [vmem:[%s546 + $0x99] sm:$0xff]
      %v2090 = vld [vmem:[%s546 + $0xa9] sm:$0xff]
      %v2091 = vld [vmem:[%s546 + $0xb1] sm:$0xff]
      %v2092 = vld [vmem:[%s546 + $0xc1] sm:$0xff]
      %v2093 = vld [vmem:[%s546 + $0xc9] sm:$0xff]
      %v2094 = vld [vmem:[%s546 + $0xd9] sm:$0xff]
      %v2095 = vld [vmem:[%s546 + $0xe1] sm:$0xff]
      %v2096 = vld [vmem:[%s546 + $0xf1] sm:$0xff]
      %v2097 = vld [vmem:[%s546 + $0xf9] sm:$0xff]
      %v2098 = vld [vmem:[%s546 + $0x109] sm:$0xff]
      %v2099 = vld [vmem:[%s546 + $0x111] sm:$0xff]
      %v2100 = vld [vmem:[%s546 + $0x121] sm:$0xff]
      %v2101 = vld [vmem:[%s546 + $0x129] sm:$0xff]
      %v2102 = vld [vmem:[%s546 + $0x139] sm:$0xff]
      %v2103 = vld [vmem:[%s546 + $0x141] sm:$0xff]
      %v2104 = vld [vmem:[%s546 + $0x151] sm:$0xff]
      %v2105 = vld [vmem:[%s546 + $0x159] sm:$0xff]
      %v2106 = vld [vmem:[%s546 + $0x169] sm:$0xff]
      %v2107 = vld [vmem:[%s546 + $0x171] sm:$0xff]
      %s2108 = scalar_lea.vmem %s4, 16
      %v2109 = vld [vmem:[%s2108] sm:$0xf]
      %v2111 = vsel %vm547, %v2076, 0
      %v2114 = vsel %vm547, %v2077, 0
      %v2117 = vsel %vm547, %v2078, 0
      %v2120 = vsel %vm547, %v2079, 0
      %v2123 = vsel %vm547, %v2080, 0
      %v2126 = vsel %vm547, %v2081, 0
      %v2129 = vsel %vm547, %v2082, 0
      %v2132 = vsel %vm547, %v2083, 0
      %v2135 = vsel %vm547, %v2084, 0
      %v2138 = vsel %vm547, %v2085, 0
      %v2141 = vsel %vm547, %v2086, 0
      %v2144 = vsel %vm547, %v2087, 0
      %v2147 = vsel %vm547, %v2088, 0
      %v2150 = vsel %vm547, %v2089, 0
      %v2153 = vsel %vm547, %v2090, 0
      %v2156 = vsel %vm547, %v2091, 0
      %v2159 = vsel %vm547, %v2092, 0
      %v2162 = vsel %vm547, %v2093, 0
      %v2165 = vsel %vm547, %v2094, 0
      %v2168 = vsel %vm547, %v2095, 0
      %v2171 = vsel %vm547, %v2096, 0
      %v2174 = vsel %vm547, %v2097, 0
      %v2177 = vsel %vm547, %v2098, 0
      %v2180 = vsel %vm547, %v2099, 0
      %v2183 = vsel %vm547, %v2100, 0
      %v2186 = vsel %vm547, %v2101, 0
      %v2189 = vsel %vm547, %v2102, 0
      %v2192 = vsel %vm547, %v2103, 0
      %v2195 = vsel %vm547, %v2104, 0
      %v2198 = vsel %vm547, %v2105, 0
      %v2201 = vsel %vm547, %v2106, 0
      %v2204 = vsel %vm547, %v2107, 0
      %v2207 = vsel %vm743, %v2109, 0
      %2209 = vmatprep.subr.mxu0 0.0
      %2210 = vmatpush1.msra.mxu0 %v2207
      %2211 = vmatprep.subr.mxu0 0.0
      %2212 = vmatpush1.msra.mxu0 0.0
      %2213 = vmatprep.subr.mxu0 0.0
      %2214 = vmatpush1.msra.mxu0 0.0
      %2215 = vmatprep.subr.mxu0 0.0
      %2216 = vmatpush1.msra.mxu0 0.0
      %2217 = vmatprep.subr.mxu0 0.0
      %2218 = vmatpush1.msra.mxu0 0.0
      %2219 = vmatprep.subr.mxu0 0.0
      %2220 = vmatpush1.msra.mxu0 0.0
      %2221 = vmatprep.subr.mxu0 0.0
      %2222 = vmatpush1.msra.mxu0 0.0
      %2223 = vmatprep.subr.mxu0 0.0
      %2224 = vmatpush1.msra.mxu0 0.0
      %2225 = vmatprep.subr.mxu0 0.0
      %2226 = vmatpush1.msra.mxu0 0.0
      %2227 = vmatprep.subr.mxu0 0.0
      %2228 = vmatpush1.msra.mxu0 0.0
      %2229 = vmatprep.subr.mxu0 0.0
      %2230 = vmatpush1.msra.mxu0 0.0
      %2231 = vmatprep.subr.mxu0 0.0
      %2232 = vmatpush1.msra.mxu0 0.0
      %2233 = vmatprep.subr.mxu0 0.0
      %2234 = vmatpush1.msra.mxu0 0.0
      %2235 = vmatprep.subr.mxu0 0.0
      %2236 = vmatpush1.msra.mxu0 0.0
      %2237 = vmatprep.subr.mxu0 0.0
      %2238 = vmatpush1.msra.mxu0 0.0
      %2239 = vmatprep.subr.mxu0 0.0
      %2240 = vmatpush1.msra.mxu0 0.0
      %2241 = vmatprep.subr.mxu0 0.0
      %2242 = vmatpush1.msra.mxu0 0.0
      %2243 = vmatprep.subr.mxu0 0.0
      %2244 = vmatpush1.msra.mxu0 0.0
      %2245 = vmatprep.subr.mxu0 0.0
      %2246 = vmatpush1.msra.mxu0 0.0
      %2247 = vmatprep.subr.mxu0 0.0
      %2248 = vmatpush1.msra.mxu0 0.0
      %2249 = vmatprep.subr.mxu0 0.0
      %2250 = vmatpush1.msra.mxu0 0.0
      %2251 = vmatprep.subr.mxu0 0.0
      %2252 = vmatpush1.msra.mxu0 0.0
      %2253 = vmatprep.subr.mxu0 0.0
      %2254 = vmatpush1.msra.mxu0 0.0
      %2255 = vmatprep.subr.mxu0 0.0
      %2256 = vmatpush1.msra.mxu0 0.0
      %2257 = vmatprep.subr.mxu0 0.0
      %2258 = vmatpush1.msra.mxu0 0.0
      %2259 = vmatprep.subr.mxu0 0.0
      %2260 = vmatpush1.msra.mxu0 0.0
      %2261 = vmatprep.subr.mxu0 0.0
      %2262 = vmatpush1.msra.mxu0 0.0
      %2263 = vmatprep.subr.mxu0 0.0
      %2264 = vmatpush1.msra.mxu0 0.0
      %2265 = vmatprep.subr.mxu0 0.0
      %2266 = vmatpush1.msra.mxu0 0.0
      %2267 = vmatprep.subr.mxu0 0.0
      %2268 = vmatpush1.msra.mxu0 0.0
      %2269 = vmatprep.subr.mxu0 0.0
      %2270 = vmatpush1.msra.mxu0 0.0
      %2271 = vmatprep.subr.mxu0 0.0
      %2272 = vmatpush1.msra.mxu0 0.0
      %2273 = vmatprep.mubr.f32.mxu0 0.0
      %2274 = vmatmul.mubr.f32.gmra.mrb[0].mxu0 %v2111
      %v2275 = vpop.f32.mrb[0].mxu0
      %v2276 = vadd.f32 0.0, %v2275
      %v2277 = vpop.f32.mrb[0].mxu0
      %2278 = vmatprep.mubr.f32.mxu0 0.0
      %2279 = vmatmul.mubr.f32.gmra.mrb[0].mxu0 %v2114
      %v2280 = vpop.f32.mrb[0].mxu0
      %v2281 = vadd.f32 0.0, %v2280
      %v2282 = vpop.f32.mrb[0].mxu0
      %2283 = vmatprep.mubr.f32.mxu0 0.0
      %2284 = vmatmul.mubr.f32.gmra.mrb[0].mxu0 %v2117
      %v2285 = vpop.f32.mrb[0].mxu0
      %v2286 = vadd.f32 0.0, %v2285
      %v2287 = vpop.f32.mrb[0].mxu0
      %2288 = vmatprep.mubr.f32.mxu0 0.0
      %2289 = vmatmul.mubr.f32.gmra.mrb[0].mxu0 %v2120
      %v2290 = vpop.f32.mrb[0].mxu0
      %v2291 = vadd.f32 0.0, %v2290
      %v2292 = vpop.f32.mrb[0].mxu0
      %2293 = vmatprep.mubr.f32.mxu0 0.0
      %2294 = vmatmul.mubr.f32.gmra.mrb[0].mxu0 %v2123
      %v2295 = vpop.f32.mrb[0].mxu0
      %v2296 = vadd.f32 0.0, %v2295
      %v2297 = vpop.f32.mrb[0].mxu0
      %2298 = vmatprep.mubr.f32.mxu0 0.0
      %2299 = vmatmul.mubr.f32.gmra.mrb[0].mxu0 %v2126
      %v2300 = vpop.f32.mrb[0].mxu0
      %v2301 = vadd.f32 0.0, %v2300
      %v2302 = vpop.f32.mrb[0].mxu0
      %2303 = vmatprep.mubr.f32.mxu0 0.0
      %2304 = vmatmul.mubr.f32.gmra.mrb[0].mxu0 %v2129
      %v2305 = vpop.f32.mrb[0].mxu0
      %v2306 = vadd.f32 0.0, %v2305
      %v2307 = vpop.f32.mrb[0].mxu0
      %2308 = vmatprep.mubr.f32.mxu0 0.0
      %2309 = vmatmul.mubr.f32.gmra.mrb[0].mxu0 %v2132
      %v2310 = vpop.f32.mrb[0].mxu0
      %v2311 = vadd.f32 0.0, %v2310
      %v2312 = vpop.f32.mrb[0].mxu0
      %2313 = vmatprep.mubr.f32.mxu0 0.0
      %2314 = vmatmul.mubr.f32.gmra.mrb[0].mxu0 %v2135
      %v2315 = vpop.f32.mrb[0].mxu0
      %v2316 = vadd.f32 0.0, %v2315
      %v2317 = vpop.f32.mrb[0].mxu0
      %2318 = vmatprep.mubr.f32.mxu0 0.0
      %2319 = vmatmul.mubr.f32.gmra.mrb[0].mxu0 %v2138
      %v2320 = vpop.f32.mrb[0].mxu0
      %v2321 = vadd.f32 0.0, %v2320
      %v2322 = vpop.f32.mrb[0].mxu0
      %2323 = vmatprep.mubr.f32.mxu0 0.0
      %2324 = vmatmul.mubr.f32.gmra.mrb[0].mxu0 %v2141
      %v2325 = vpop.f32.mrb[0].mxu0
      %v2326 = vadd.f32 0.0, %v2325
      %v2327 = vpop.f32.mrb[0].mxu0
      %2328 = vmatprep.mubr.f32.mxu0 0.0
      %2329 = vmatmul.mubr.f32.gmra.mrb[0].mxu0 %v2144
      %v2330 = vpop.f32.mrb[0].mxu0
      %v2331 = vadd.f32 0.0, %v2330
      %v2332 = vpop.f32.mrb[0].mxu0
      %2333 = vmatprep.mubr.f32.mxu0 0.0
      %2334 = vmatmul.mubr.f32.gmra.mrb[0].mxu0 %v2147
      %v2335 = vpop.f32.mrb[0].mxu0
      %v2336 = vadd.f32 0.0, %v2335
      %v2337 = vpop.f32.mrb[0].mxu0
      %2338 = vmatprep.mubr.f32.mxu0 0.0
      %2339 = vmatmul.mubr.f32.gmra.mrb[0].mxu0 %v2150
      %v2340 = vpop.f32.mrb[0].mxu0
      %v2341 = vadd.f32 0.0, %v2340
      %v2342 = vpop.f32.mrb[0].mxu0
      %2343 = vmatprep.mubr.f32.mxu0 0.0
      %2344 = vmatmul.mubr.f32.gmra.mrb[0].mxu0 %v2153
      %v2345 = vpop.f32.mrb[0].mxu0
      %v2346 = vadd.f32 0.0, %v2345
      %v2347 = vpop.f32.mrb[0].mxu0
      %2348 = vmatprep.mubr.f32.mxu0 0.0
      %2349 = vmatmul.mubr.f32.gmra.mrb[0].mxu0 %v2156
      %v2350 = vpop.f32.mrb[0].mxu0
      %v2351 = vadd.f32 0.0, %v2350
      %v2352 = vpop.f32.mrb[0].mxu0
      %2353 = vmatprep.mubr.f32.mxu0 0.0
      %2354 = vmatmul.mubr.f32.gmra.mrb[0].mxu0 %v2159
      %v2355 = vpop.f32.mrb[0].mxu0
      %v2356 = vadd.f32 0.0, %v2355
      %v2357 = vpop.f32.mrb[0].mxu0
      %2358 = vmatprep.mubr.f32.mxu0 0.0
      %2359 = vmatmul.mubr.f32.gmra.mrb[0].mxu0 %v2162
      %v2360 = vpop.f32.mrb[0].mxu0
      %v2361 = vadd.f32 0.0, %v2360
      %v2362 = vpop.f32.mrb[0].mxu0
      %2363 = vmatprep.mubr.f32.mxu0 0.0
      %2364 = vmatmul.mubr.f32.gmra.mrb[0].mxu0 %v2165
      %v2365 = vpop.f32.mrb[0].mxu0
      %v2366 = vadd.f32 0.0, %v2365
      %v2367 = vpop.f32.mrb[0].mxu0
      %2368 = vmatprep.mubr.f32.mxu0 0.0
      %2369 = vmatmul.mubr.f32.gmra.mrb[0].mxu0 %v2168
      %v2370 = vpop.f32.mrb[0].mxu0
      %v2371 = vadd.f32 0.0, %v2370
      %v2372 = vpop.f32.mrb[0].mxu0
      %2373 = vmatprep.mubr.f32.mxu0 0.0
      %2374 = vmatmul.mubr.f32.gmra.mrb[0].mxu0 %v2171
      %v2375 = vpop.f32.mrb[0].mxu0
      %v2376 = vadd.f32 0.0, %v2375
      %v2377 = vpop.f32.mrb[0].mxu0
      %2378 = vmatprep.mubr.f32.mxu0 0.0
      %2379 = vmatmul.mubr.f32.gmra.mrb[0].mxu0 %v2174
      %v2380 = vpop.f32.mrb[0].mxu0
      %v2381 = vadd.f32 0.0, %v2380
      %v2382 = vpop.f32.mrb[0].mxu0
      %2383 = vmatprep.mubr.f32.mxu0 0.0
      %2384 = vmatmul.mubr.f32.gmra.mrb[0].mxu0 %v2177
      %v2385 = vpop.f32.mrb[0].mxu0
      %v2386 = vadd.f32 0.0, %v2385
      %v2387 = vpop.f32.mrb[0].mxu0
      %2388 = vmatprep.mubr.f32.mxu0 0.0
      %2389 = vmatmul.mubr.f32.gmra.mrb[0].mxu0 %v2180
      %v2390 = vpop.f32.mrb[0].mxu0
      %v2391 = vadd.f32 0.0, %v2390
      %v2392 = vpop.f32.mrb[0].mxu0
      %2393 = vmatprep.mubr.f32.mxu0 0.0
      %2394 = vmatmul.mubr.f32.gmra.mrb[0].mxu0 %v2183
      %v2395 = vpop.f32.mrb[0].mxu0
      %v2396 = vadd.f32 0.0, %v2395
      %v2397 = vpop.f32.mrb[0].mxu0
      %2398 = vmatprep.mubr.f32.mxu0 0.0
      %2399 = vmatmul.mubr.f32.gmra.mrb[0].mxu0 %v2186
      %v2400 = vpop.f32.mrb[0].mxu0
      %v2401 = vadd.f32 0.0, %v2400
      %v2402 = vpop.f32.mrb[0].mxu0
      %2403 = vmatprep.mubr.f32.mxu0 0.0
      %2404 = vmatmul.mubr.f32.gmra.mrb[0].mxu0 %v2189
      %v2405 = vpop.f32.mrb[0].mxu0
      %v2406 = vadd.f32 0.0, %v2405
      %v2407 = vpop.f32.mrb[0].mxu0
      %2408 = vmatprep.mubr.f32.mxu0 0.0
      %2409 = vmatmul.mubr.f32.gmra.mrb[0].mxu0 %v2192
      %v2410 = vpop.f32.mrb[0].mxu0
      %v2411 = vadd.f32 0.0, %v2410
      %v2412 = vpop.f32.mrb[0].mxu0
      %2413 = vmatprep.mubr.f32.mxu0 0.0
      %2414 = vmatmul.mubr.f32.gmra.mrb[0].mxu0 %v2195
      %v2415 = vpop.f32.mrb[0].mxu0
      %v2416 = vadd.f32 0.0, %v2415
      %v2417 = vpop.f32.mrb[0].mxu0
      %2418 = vmatprep.mubr.f32.mxu0 0.0
      %2419 = vmatmul.mubr.f32.gmra.mrb[0].mxu0 %v2198
      %v2420 = vpop.f32.mrb[0].mxu0
      %v2421 = vadd.f32 0.0, %v2420
      %v2422 = vpop.f32.mrb[0].mxu0
      %2423 = vmatprep.mubr.f32.mxu0 0.0
      %2424 = vmatmul.mubr.f32.gmra.mrb[0].mxu0 %v2201
      %v2425 = vpop.f32.mrb[0].mxu0
      %v2426 = vadd.f32 0.0, %v2425
      %v2427 = vpop.f32.mrb[0].mxu0
      %2428 = vmatprep.mubr.f32.mxu0 0.0
      %2429 = vmatmul.mubr.f32.gmra.mrb[0].mxu0 %v2204
      %v2430 = vpop.f32.mrb[0].mxu0
      %v2431 = vadd.f32 0.0, %v2430
      %v2432 = vpop.f32.mrb[0].mxu0
      %2433 = vdwg.mxu0
      %v2434 = vadd.f32 %v2044, %v2276
      %v2435 = vadd.f32 %v2045, %v2281
      %v2436 = vadd.f32 %v2046, %v2286
      %v2437 = vadd.f32 %v2047, %v2291
      %v2438 = vadd.f32 %v2048, %v2296
      %v2439 = vadd.f32 %v2049, %v2301
      %v2440 = vadd.f32 %v2050, %v2306
      %v2441 = vadd.f32 %v2051, %v2311
      %v2442 = vadd.f32 %v2052, %v2316
      %v2443 = vadd.f32 %v2053, %v2321
      %v2444 = vadd.f32 %v2054, %v2326
      %v2445 = vadd.f32 %v2055, %v2331
      %v2446 = vadd.f32 %v2056, %v2336
      %v2447 = vadd.f32 %v2057, %v2341
      %v2448 = vadd.f32 %v2058, %v2346
      %v2449 = vadd.f32 %v2059, %v2351
      %v2450 = vadd.f32 %v2060, %v2356
      %v2451 = vadd.f32 %v2061, %v2361
      %v2452 = vadd.f32 %v2062, %v2366
      %v2453 = vadd.f32 %v2063, %v2371
      %v2454 = vadd.f32 %v2064, %v2376
      %v2455 = vadd.f32 %v2065, %v2381
      %v2456 = vadd.f32 %v2066, %v2386
      %v2457 = vadd.f32 %v2067, %v2391
      %v2458 = vadd.f32 %v2068, %v2396
      %v2459 = vadd.f32 %v2069, %v2401
      %v2460 = vadd.f32 %v2070, %v2406
      %v2461 = vadd.f32 %v2071, %v2411
      %v2462 = vadd.f32 %v2072, %v2416
      %v2463 = vadd.f32 %v2073, %v2421
      %v2464 = vadd.f32 %v2074, %v2426
      %v2465 = vadd.f32 %v2075, %v2431
      %v2466 = vld [vmem:[%s546 + $0x2] sm:$0xff]
      %v2467 = vld [vmem:[%s546 + $0xa] sm:$0xff]
      %v2468 = vld [vmem:[%s546 + $0x1a] sm:$0xff]
      %v2469 = vld [vmem:[%s546 + $0x22] sm:$0xff]
      %v2470 = vld [vmem:[%s546 + $0x32] sm:$0xff]
      %v2471 = vld [vmem:[%s546 + $0x3a] sm:$0xff]
      %v2472 = vld [vmem:[%s546 + $0x4a] sm:$0xff]
      %v2473 = vld [vmem:[%s546 + $0x52] sm:$0xff]
      %v2474 = vld [vmem:[%s546 + $0x62] sm:$0xff]
      %v2475 = vld [vmem:[%s546 + $0x6a] sm:$0xff]
      %v2476 = vld [vmem:[%s546 + $0x7a] sm:$0xff]
      %v2477 = vld [vmem:[%s546 + $0x82] sm:$0xff]
      %v2478 = vld [vmem:[%s546 + $0x92] sm:$0xff]
      %v2479 = vld [vmem:[%s546 + $0x9a] sm:$0xff]
      %v2480 = vld [vmem:[%s546 + $0xaa] sm:$0xff]
      %v2481 = vld [vmem:[%s546 + $0xb2] sm:$0xff]
      %v2482 = vld [vmem:[%s546 + $0xc2] sm:$0xff]
      %v2483 = vld [vmem:[%s546 + $0xca] sm:$0xff]
      %v2484 = vld [vmem:[%s546 + $0xda] sm:$0xff]
      %v2485 = vld [vmem:[%s546 + $0xe2] sm:$0xff]
      %v2486 = vld [vmem:[%s546 + $0xf2] sm:$0xff]
      %v2487 = vld [vmem:[%s546 + $0xfa] sm:$0xff]
      %v2488 = vld [vmem:[%s546 + $0x10a] sm:$0xff]
      %v2489 = vld [vmem:[%s546 + $0x112] sm:$0xff]
      %v2490 = vld [vmem:[%s546 + $0x122] sm:$0xff]
      %v2491 = vld [vmem:[%s546 + $0x12a] sm:$0xff]
      %v2492 = vld [vmem:[%s546 + $0x13a] sm:$0xff]
      %v2493 = vld [vmem:[%s546 + $0x142] sm:$0xff]
      %v2494 = vld [vmem:[%s546 + $0x152] sm:$0xff]
      %v2495 = vld [vmem:[%s546 + $0x15a] sm:$0xff]
      %v2496 = vld [vmem:[%s546 + $0x16a] sm:$0xff]
      %v2497 = vld [vmem:[%s546 + $0x172] sm:$0xff]
      %s2498 = scalar_lea.vmem %s4, 20
      %v2499 = vld [vmem:[%s2498] sm:$0xf]
      %v2501 = vsel %vm547, %v2466, 0
      %v2504 = vsel %vm547, %v2467, 0
      %v2507 = vsel %vm547, %v2468, 0
      %v2510 = vsel %vm547, %v2469, 0
      %v2513 = vsel %vm547, %v2470, 0
      %v2516 = vsel %vm547, %v2471, 0
      %v2519 = vsel %vm547, %v2472, 0
      %v2522 = vsel %vm547, %v2473, 0
      %v2525 = vsel %vm547, %v2474, 0
      %v2528 = vsel %vm547, %v2475, 0
      %v2531 = vsel %vm547, %v2476, 0
      %v2534 = vsel %vm547, %v2477, 0
      %v2537 = vsel %vm547, %v2478, 0
      %v2540 = vsel %vm547, %v2479, 0
      %v2543 = vsel %vm547, %v2480, 0
      %v2546 = vsel %vm547, %v2481, 0
      %v2549 = vsel %vm547, %v2482, 0
      %v2552 = vsel %vm547, %v2483, 0
      %v2555 = vsel %vm547, %v2484, 0
      %v2558 = vsel %vm547, %v2485, 0
      %v2561 = vsel %vm547, %v2486, 0
      %v2564 = vsel %vm547, %v2487, 0
      %v2567 = vsel %vm547, %v2488, 0
      %v2570 = vsel %vm547, %v2489, 0
      %v2573 = vsel %vm547, %v2490, 0
      %v2576 = vsel %vm547, %v2491, 0
      %v2579 = vsel %vm547, %v2492, 0
      %v2582 = vsel %vm547, %v2493, 0
      %v2585 = vsel %vm547, %v2494, 0
      %v2588 = vsel %vm547, %v2495, 0
      %v2591 = vsel %vm547, %v2496, 0
      %v2594 = vsel %vm547, %v2497, 0
      %v2597 = vsel %vm743, %v2499, 0
      %2599 = vmatprep.subr.mxu0 0.0
      %2600 = vmatpush1.msra.mxu0 %v2597
      %2601 = vmatprep.subr.mxu0 0.0
      %2602 = vmatpush1.msra.mxu0 0.0
      %2603 = vmatprep.subr.mxu0 0.0
      %2604 = vmatpush1.msra.mxu0 0.0
      %2605 = vmatprep.subr.mxu0 0.0
      %2606 = vmatpush1.msra.mxu0 0.0
      %2607 = vmatprep.subr.mxu0 0.0
      %2608 = vmatpush1.msra.mxu0 0.0
      %2609 = vmatprep.subr.mxu0 0.0
      %2610 = vmatpush1.msra.mxu0 0.0
      %2611 = vmatprep.subr.mxu0 0.0
      %2612 = vmatpush1.msra.mxu0 0.0
      %2613 = vmatprep.subr.mxu0 0.0
      %2614 = vmatpush1.msra.mxu0 0.0
      %2615 = vmatprep.subr.mxu0 0.0
      %2616 = vmatpush1.msra.mxu0 0.0
      %2617 = vmatprep.subr.mxu0 0.0
      %2618 = vmatpush1.msra.mxu0 0.0
      %2619 = vmatprep.subr.mxu0 0.0
      %2620 = vmatpush1.msra.mxu0 0.0
      %2621 = vmatprep.subr.mxu0 0.0
      %2622 = vmatpush1.msra.mxu0 0.0
      %2623 = vmatprep.subr.mxu0 0.0
      %2624 = vmatpush1.msra.mxu0 0.0
      %2625 = vmatprep.subr.mxu0 0.0
      %2626 = vmatpush1.msra.mxu0 0.0
      %2627 = vmatprep.subr.mxu0 0.0
      %2628 = vmatpush1.msra.mxu0 0.0
      %2629 = vmatprep.subr.mxu0 0.0
      %2630 = vmatpush1.msra.mxu0 0.0
      %2631 = vmatprep.subr.mxu0 0.0
      %2632 = vmatpush1.msra.mxu0 0.0
      %2633 = vmatprep.subr.mxu0 0.0
      %2634 = vmatpush1.msra.mxu0 0.0
      %2635 = vmatprep.subr.mxu0 0.0
      %2636 = vmatpush1.msra.mxu0 0.0
      %2637 = vmatprep.subr.mxu0 0.0
      %2638 = vmatpush1.msra.mxu0 0.0
      %2639 = vmatprep.subr.mxu0 0.0
      %2640 = vmatpush1.msra.mxu0 0.0
      %2641 = vmatprep.subr.mxu0 0.0
      %2642 = vmatpush1.msra.mxu0 0.0
      %2643 = vmatprep.subr.mxu0 0.0
      %2644 = vmatpush1.msra.mxu0 0.0
      %2645 = vmatprep.subr.mxu0 0.0
      %2646 = vmatpush1.msra.mxu0 0.0
      %2647 = vmatprep.subr.mxu0 0.0
      %2648 = vmatpush1.msra.mxu0 0.0
      %2649 = vmatprep.subr.mxu0 0.0
      %2650 = vmatpush1.msra.mxu0 0.0
      %2651 = vmatprep.subr.mxu0 0.0
      %2652 = vmatpush1.msra.mxu0 0.0
      %2653 = vmatprep.subr.mxu0 0.0
      %2654 = vmatpush1.msra.mxu0 0.0
      %2655 = vmatprep.subr.mxu0 0.0
      %2656 = vmatpush1.msra.mxu0 0.0
      %2657 = vmatprep.subr.mxu0 0.0
      %2658 = vmatpush1.msra.mxu0 0.0
      %2659 = vmatprep.subr.mxu0 0.0
      %2660 = vmatpush1.msra.mxu0 0.0
      %2661 = vmatprep.subr.mxu0 0.0
      %2662 = vmatpush1.msra.mxu0 0.0
      %2663 = vmatprep.mubr.f32.mxu0 0.0
      %2664 = vmatmul.mubr.f32.gmra.mrb[0].mxu0 %v2501
      %v2665 = vpop.f32.mrb[0].mxu0
      %v2666 = vadd.f32 0.0, %v2665
      %v2667 = vpop.f32.mrb[0].mxu0
      %2668 = vmatprep.mubr.f32.mxu0 0.0
      %2669 = vmatmul.mubr.f32.gmra.mrb[0].mxu0 %v2504
      %v2670 = vpop.f32.mrb[0].mxu0
      %v2671 = vadd.f32 0.0, %v2670
      %v2672 = vpop.f32.mrb[0].mxu0
      %2673 = vmatprep.mubr.f32.mxu0 0.0
      %2674 = vmatmul.mubr.f32.gmra.mrb[0].mxu0 %v2507
      %v2675 = vpop.f32.mrb[0].mxu0
      %v2676 = vadd.f32 0.0, %v2675
      %v2677 = vpop.f32.mrb[0].mxu0
      %2678 = vmatprep.mubr.f32.mxu0 0.0
      %2679 = vmatmul.mubr.f32.gmra.mrb[0].mxu0 %v2510
      %v2680 = vpop.f32.mrb[0].mxu0
      %v2681 = vadd.f32 0.0, %v2680
      %v2682 = vpop.f32.mrb[0].mxu0
      %2683 = vmatprep.mubr.f32.mxu0 0.0
      %2684 = vmatmul.mubr.f32.gmra.mrb[0].mxu0 %v2513
      %v2685 = vpop.f32.mrb[0].mxu0
      %v2686 = vadd.f32 0.0, %v2685
      %v2687 = vpop.f32.mrb[0].mxu0
      %2688 = vmatprep.mubr.f32.mxu0 0.0
      %2689 = vmatmul.mubr.f32.gmra.mrb[0].mxu0 %v2516
      %v2690 = vpop.f32.mrb[0].mxu0
      %v2691 = vadd.f32 0.0, %v2690
      %v2692 = vpop.f32.mrb[0].mxu0
      %2693 = vmatprep.mubr.f32.mxu0 0.0
      %2694 = vmatmul.mubr.f32.gmra.mrb[0].mxu0 %v2519
      %v2695 = vpop.f32.mrb[0].mxu0
      %v2696 = vadd.f32 0.0, %v2695
      %v2697 = vpop.f32.mrb[0].mxu0
      %2698 = vmatprep.mubr.f32.mxu0 0.0
      %2699 = vmatmul.mubr.f32.gmra.mrb[0].mxu0 %v2522
      %v2700 = vpop.f32.mrb[0].mxu0
      %v2701 = vadd.f32 0.0, %v2700
      %v2702 = vpop.f32.mrb[0].mxu0
      %2703 = vmatprep.mubr.f32.mxu0 0.0
      %2704 = vmatmul.mubr.f32.gmra.mrb[0].mxu0 %v2525
      %v2705 = vpop.f32.mrb[0].mxu0
      %v2706 = vadd.f32 0.0, %v2705
      %v2707 = vpop.f32.mrb[0].mxu0
      %2708 = vmatprep.mubr.f32.mxu0 0.0
      %2709 = vmatmul.mubr.f32.gmra.mrb[0].mxu0 %v2528
      %v2710 = vpop.f32.mrb[0].mxu0
      %v2711 = vadd.f32 0.0, %v2710
      %v2712 = vpop.f32.mrb[0].mxu0
      %2713 = vmatprep.mubr.f32.mxu0 0.0
      %2714 = vmatmul.mubr.f32.gmra.mrb[0].mxu0 %v2531
      %v2715 = vpop.f32.mrb[0].mxu0
      %v2716 = vadd.f32 0.0, %v2715
      %v2717 = vpop.f32.mrb[0].mxu0
      %2718 = vmatprep.mubr.f32.mxu0 0.0
      %2719 = vmatmul.mubr.f32.gmra.mrb[0].mxu0 %v2534
      %v2720 = vpop.f32.mrb[0].mxu0
      %v2721 = vadd.f32 0.0, %v2720
      %v2722 = vpop.f32.mrb[0].mxu0
      %2723 = vmatprep.mubr.f32.mxu0 0.0
      %2724 = vmatmul.mubr.f32.gmra.mrb[0].mxu0 %v2537
      %v2725 = vpop.f32.mrb[0].mxu0
      %v2726 = vadd.f32 0.0, %v2725
      %v2727 = vpop.f32.mrb[0].mxu0
      %2728 = vmatprep.mubr.f32.mxu0 0.0
      %2729 = vmatmul.mubr.f32.gmra.mrb[0].mxu0 %v2540
      %v2730 = vpop.f32.mrb[0].mxu0
      %v2731 = vadd.f32 0.0, %v2730
      %v2732 = vpop.f32.mrb[0].mxu0
      %2733 = vmatprep.mubr.f32.mxu0 0.0
      %2734 = vmatmul.mubr.f32.gmra.mrb[0].mxu0 %v2543
      %v2735 = vpop.f32.mrb[0].mxu0
      %v2736 = vadd.f32 0.0, %v2735
      %v2737 = vpop.f32.mrb[0].mxu0
      %2738 = vmatprep.mubr.f32.mxu0 0.0
      %2739 = vmatmul.mubr.f32.gmra.mrb[0].mxu0 %v2546
      %v2740 = vpop.f32.mrb[0].mxu0
      %v2741 = vadd.f32 0.0, %v2740
      %v2742 = vpop.f32.mrb[0].mxu0
      %2743 = vmatprep.mubr.f32.mxu0 0.0
      %2744 = vmatmul.mubr.f32.gmra.mrb[0].mxu0 %v2549
      %v2745 = vpop.f32.mrb[0].mxu0
      %v2746 = vadd.f32 0.0, %v2745
      %v2747 = vpop.f32.mrb[0].mxu0
      %2748 = vmatprep.mubr.f32.mxu0 0.0
      %2749 = vmatmul.mubr.f32.gmra.mrb[0].mxu0 %v2552
      %v2750 = vpop.f32.mrb[0].mxu0
      %v2751 = vadd.f32 0.0, %v2750
      %v2752 = vpop.f32.mrb[0].mxu0
      %2753 = vmatprep.mubr.f32.mxu0 0.0
      %2754 = vmatmul.mubr.f32.gmra.mrb[0].mxu0 %v2555
      %v2755 = vpop.f32.mrb[0].mxu0
      %v2756 = vadd.f32 0.0, %v2755
      %v2757 = vpop.f32.mrb[0].mxu0
      %2758 = vmatprep.mubr.f32.mxu0 0.0
      %2759 = vmatmul.mubr.f32.gmra.mrb[0].mxu0 %v2558
      %v2760 = vpop.f32.mrb[0].mxu0
      %v2761 = vadd.f32 0.0, %v2760
      %v2762 = vpop.f32.mrb[0].mxu0
      %2763 = vmatprep.mubr.f32.mxu0 0.0
      %2764 = vmatmul.mubr.f32.gmra.mrb[0].mxu0 %v2561
      %v2765 = vpop.f32.mrb[0].mxu0
      %v2766 = vadd.f32 0.0, %v2765
      %v2767 = vpop.f32.mrb[0].mxu0
      %2768 = vmatprep.mubr.f32.mxu0 0.0
      %2769 = vmatmul.mubr.f32.gmra.mrb[0].mxu0 %v2564
      %v2770 = vpop.f32.mrb[0].mxu0
      %v2771 = vadd.f32 0.0, %v2770
      %v2772 = vpop.f32.mrb[0].mxu0
      %2773 = vmatprep.mubr.f32.mxu0 0.0
      %2774 = vmatmul.mubr.f32.gmra.mrb[0].mxu0 %v2567
      %v2775 = vpop.f32.mrb[0].mxu0
      %v2776 = vadd.f32 0.0, %v2775
      %v2777 = vpop.f32.mrb[0].mxu0
      %2778 = vmatprep.mubr.f32.mxu0 0.0
      %2779 = vmatmul.mubr.f32.gmra.mrb[0].mxu0 %v2570
      %v2780 = vpop.f32.mrb[0].mxu0
      %v2781 = vadd.f32 0.0, %v2780
      %v2782 = vpop.f32.mrb[0].mxu0
      %2783 = vmatprep.mubr.f32.mxu0 0.0
      %2784 = vmatmul.mubr.f32.gmra.mrb[0].mxu0 %v2573
      %v2785 = vpop.f32.mrb[0].mxu0
      %v2786 = vadd.f32 0.0, %v2785
      %v2787 = vpop.f32.mrb[0].mxu0
      %2788 = vmatprep.mubr.f32.mxu0 0.0
      %2789 = vmatmul.mubr.f32.gmra.mrb[0].mxu0 %v2576
      %v2790 = vpop.f32.mrb[0].mxu0
      %v2791 = vadd.f32 0.0, %v2790
      %v2792 = vpop.f32.mrb[0].mxu0
      %2793 = vmatprep.mubr.f32.mxu0 0.0
      %2794 = vmatmul.mubr.f32.gmra.mrb[0].mxu0 %v2579
      %v2795 = vpop.f32.mrb[0].mxu0
      %v2796 = vadd.f32 0.0, %v2795
      %v2797 = vpop.f32.mrb[0].mxu0
      %2798 = vmatprep.mubr.f32.mxu0 0.0
      %2799 = vmatmul.mubr.f32.gmra.mrb[0].mxu0 %v2582
      %v2800 = vpop.f32.mrb[0].mxu0
      %v2801 = vadd.f32 0.0, %v2800
      %v2802 = vpop.f32.mrb[0].mxu0
      %2803 = vmatprep.mubr.f32.mxu0 0.0
      %2804 = vmatmul.mubr.f32.gmra.mrb[0].mxu0 %v2585
      %v2805 = vpop.f32.mrb[0].mxu0
      %v2806 = vadd.f32 0.0, %v2805
      %v2807 = vpop.f32.mrb[0].mxu0
      %2808 = vmatprep.mubr.f32.mxu0 0.0
      %2809 = vmatmul.mubr.f32.gmra.mrb[0].mxu0 %v2588
      %v2810 = vpop.f32.mrb[0].mxu0
      %v2811 = vadd.f32 0.0, %v2810
      %v2812 = vpop.f32.mrb[0].mxu0
      %2813 = vmatprep.mubr.f32.mxu0 0.0
      %2814 = vmatmul.mubr.f32.gmra.mrb[0].mxu0 %v2591
      %v2815 = vpop.f32.mrb[0].mxu0
      %v2816 = vadd.f32 0.0, %v2815
      %v2817 = vpop.f32.mrb[0].mxu0
      %2818 = vmatprep.mubr.f32.mxu0 0.0
      %2819 = vmatmul.mubr.f32.gmra.mrb[0].mxu0 %v2594
      %v2820 = vpop.f32.mrb[0].mxu0
      %v2821 = vadd.f32 0.0, %v2820
      %v2822 = vpop.f32.mrb[0].mxu0
      %2823 = vdwg.mxu0
      %v2824 = vadd.f32 %v2434, %v2666
      %v2825 = vadd.f32 %v2435, %v2671
      %v2826 = vadd.f32 %v2436, %v2676
      %v2827 = vadd.f32 %v2437, %v2681
      %v2828 = vadd.f32 %v2438, %v2686
      %v2829 = vadd.f32 %v2439, %v2691
      %v2830 = vadd.f32 %v2440, %v2696
      %v2831 = vadd.f32 %v2441, %v2701
      %v2832 = vadd.f32 %v2442, %v2706
      %v2833 = vadd.f32 %v2443, %v2711
      %v2834 = vadd.f32 %v2444, %v2716
      %v2835 = vadd.f32 %v2445, %v2721
      %v2836 = vadd.f32 %v2446, %v2726
      %v2837 = vadd.f32 %v2447, %v2731
      %v2838 = vadd.f32 %v2448, %v2736
      %v2839 = vadd.f32 %v2449, %v2741
      %v2840 = vadd.f32 %v2450, %v2746
      %v2841 = vadd.f32 %v2451, %v2751
      %v2842 = vadd.f32 %v2452, %v2756
      %v2843 = vadd.f32 %v2453, %v2761
      %v2844 = vadd.f32 %v2454, %v2766
      %v2845 = vadd.f32 %v2455, %v2771
      %v2846 = vadd.f32 %v2456, %v2776
      %v2847 = vadd.f32 %v2457, %v2781
      %v2848 = vadd.f32 %v2458, %v2786
      %v2849 = vadd.f32 %v2459, %v2791
      %v2850 = vadd.f32 %v2460, %v2796
      %v2851 = vadd.f32 %v2461, %v2801
      %v2852 = vadd.f32 %v2462, %v2806
      %v2853 = vadd.f32 %v2463, %v2811
      %v2854 = vadd.f32 %v2464, %v2816
      %v2855 = vadd.f32 %v2465, %v2821
      %s2856 = scalar_lea.vmem [#allocation2], 48
      %v2857 = vld [vmem:[%s2856] sm:$0xff]
      %v2858 = vld [vmem:[%s2856 + $0x8] sm:$0xff]
      %v2859 = vld [vmem:[%s2856 + $0x18] sm:$0xff]
      %v2860 = vld [vmem:[%s2856 + $0x20] sm:$0xff]
      %v2861 = vld [vmem:[%s2856 + $0x30] sm:$0xff]
      %v2862 = vld [vmem:[%s2856 + $0x38] sm:$0xff]
      %v2863 = vld [vmem:[%s2856 + $0x48] sm:$0xff]
      %v2864 = vld [vmem:[%s2856 + $0x50] sm:$0xff]
      %v2865 = vld [vmem:[%s2856 + $0x60] sm:$0xff]
      %v2866 = vld [vmem:[%s2856 + $0x68] sm:$0xff]
      %v2867 = vld [vmem:[%s2856 + $0x78] sm:$0xff]
      %v2868 = vld [vmem:[%s2856 + $0x80] sm:$0xff]
      %v2869 = vld [vmem:[%s2856 + $0x90] sm:$0xff]
      %v2870 = vld [vmem:[%s2856 + $0x98] sm:$0xff]
      %v2871 = vld [vmem:[%s2856 + $0xa8] sm:$0xff]
      %v2872 = vld [vmem:[%s2856 + $0xb0] sm:$0xff]
      %v2873 = vld [vmem:[%s2856 + $0xc0] sm:$0xff]
      %v2874 = vld [vmem:[%s2856 + $0xc8] sm:$0xff]
      %v2875 = vld [vmem:[%s2856 + $0xd8] sm:$0xff]
      %v2876 = vld [vmem:[%s2856 + $0xe0] sm:$0xff]
      %v2877 = vld [vmem:[%s2856 + $0xf0] sm:$0xff]
      %v2878 = vld [vmem:[%s2856 + $0xf8] sm:$0xff]
      %v2879 = vld [vmem:[%s2856 + $0x108] sm:$0xff]
      %v2880 = vld [vmem:[%s2856 + $0x110] sm:$0xff]
      %v2881 = vld [vmem:[%s2856 + $0x120] sm:$0xff]
      %v2882 = vld [vmem:[%s2856 + $0x128] sm:$0xff]
      %v2883 = vld [vmem:[%s2856 + $0x138] sm:$0xff]
      %v2884 = vld [vmem:[%s2856 + $0x140] sm:$0xff]
      %v2885 = vld [vmem:[%s2856 + $0x150] sm:$0xff]
      %v2886 = vld [vmem:[%s2856 + $0x158] sm:$0xff]
      %v2887 = vld [vmem:[%s2856 + $0x168] sm:$0xff]
      %v2888 = vld [vmem:[%s2856 + $0x170] sm:$0xff]
      %s2889 = scalar_lea.vmem %s4, 24
      %v2890 = vld [vmem:[%s2889] sm:$0xf]
      %v2892 = vsel %vm547, %v2857, 0
      %v2895 = vsel %vm547, %v2858, 0
      %v2898 = vsel %vm547, %v2859, 0
      %v2901 = vsel %vm547, %v2860, 0
      %v2904 = vsel %vm547, %v2861, 0
      %v2907 = vsel %vm547, %v2862, 0
      %v2910 = vsel %vm547, %v2863, 0
      %v2913 = vsel %vm547, %v2864, 0
      %v2916 = vsel %vm547, %v2865, 0
      %v2919 = vsel %vm547, %v2866, 0
      %v2922 = vsel %vm547, %v2867, 0
      %v2925 = vsel %vm547, %v2868, 0
      %v2928 = vsel %vm547, %v2869, 0
      %v2931 = vsel %vm547, %v2870, 0
      %v2934 = vsel %vm547, %v2871, 0
      %v2937 = vsel %vm547, %v2872, 0
      %v2940 = vsel %vm547, %v2873, 0
      %v2943 = vsel %vm547, %v2874, 0
      %v2946 = vsel %vm547, %v2875, 0
      %v2949 = vsel %vm547, %v2876, 0
      %v2952 = vsel %vm547, %v2877, 0
      %v2955 = vsel %vm547, %v2878, 0
      %v2958 = vsel %vm547, %v2879, 0
      %v2961 = vsel %vm547, %v2880, 0
      %v2964 = vsel %vm547, %v2881, 0
      %v2967 = vsel %vm547, %v2882, 0
      %v2970 = vsel %vm547, %v2883, 0
      %v2973 = vsel %vm547, %v2884, 0
      %v2976 = vsel %vm547, %v2885, 0
      %v2979 = vsel %vm547, %v2886, 0
      %v2982 = vsel %vm547, %v2887, 0
      %v2985 = vsel %vm547, %v2888, 0
      %v2988 = vsel %vm743, %v2890, 0
      %2990 = vmatprep.subr.mxu0 0.0
      %2991 = vmatpush1.msra.mxu0 %v2988
      %2992 = vmatprep.subr.mxu0 0.0
      %2993 = vmatpush1.msra.mxu0 0.0
      %2994 = vmatprep.subr.mxu0 0.0
      %2995 = vmatpush1.msra.mxu0 0.0
      %2996 = vmatprep.subr.mxu0 0.0
      %2997 = vmatpush1.msra.mxu0 0.0
      %2998 = vmatprep.subr.mxu0 0.0
      %2999 = vmatpush1.msra.mxu0 0.0
      %3000 = vmatprep.subr.mxu0 0.0
      %3001 = vmatpush1.msra.mxu0 0.0
      %3002 = vmatprep.subr.mxu0 0.0
      %3003 = vmatpush1.msra.mxu0 0.0
      %3004 = vmatprep.subr.mxu0 0.0
      %3005 = vmatpush1.msra.mxu0 0.0
      %3006 = vmatprep.subr.mxu0 0.0
      %3007 = vmatpush1.msra.mxu0 0.0
      %3008 = vmatprep.subr.mxu0 0.0
      %3009 = vmatpush1.msra.mxu0 0.0
      %3010 = vmatprep.subr.mxu0 0.0
      %3011 = vmatpush1.msra.mxu0 0.0
      %3012 = vmatprep.subr.mxu0 0.0
      %3013 = vmatpush1.msra.mxu0 0.0
      %3014 = vmatprep.subr.mxu0 0.0
      %3015 = vmatpush1.msra.mxu0 0.0
      %3016 = vmatprep.subr.mxu0 0.0
      %3017 = vmatpush1.msra.mxu0 0.0
      %3018 = vmatprep.subr.mxu0 0.0
      %3019 = vmatpush1.msra.mxu0 0.0
      %3020 = vmatprep.subr.mxu0 0.0
      %3021 = vmatpush1.msra.mxu0 0.0
      %3022 = vmatprep.subr.mxu0 0.0
      %3023 = vmatpush1.msra.mxu0 0.0
      %3024 = vmatprep.subr.mxu0 0.0
      %3025 = vmatpush1.msra.mxu0 0.0
      %3026 = vmatprep.subr.mxu0 0.0
      %3027 = vmatpush1.msra.mxu0 0.0
      %3028 = vmatprep.subr.mxu0 0.0
      %3029 = vmatpush1.msra.mxu0 0.0
      %3030 = vmatprep.subr.mxu0 0.0
      %3031 = vmatpush1.msra.mxu0 0.0
      %3032 = vmatprep.subr.mxu0 0.0
      %3033 = vmatpush1.msra.mxu0 0.0
      %3034 = vmatprep.subr.mxu0 0.0
      %3035 = vmatpush1.msra.mxu0 0.0
      %3036 = vmatprep.subr.mxu0 0.0
      %3037 = vmatpush1.msra.mxu0 0.0
      %3038 = vmatprep.subr.mxu0 0.0
      %3039 = vmatpush1.msra.mxu0 0.0
      %3040 = vmatprep.subr.mxu0 0.0
      %3041 = vmatpush1.msra.mxu0 0.0
      %3042 = vmatprep.subr.mxu0 0.0
      %3043 = vmatpush1.msra.mxu0 0.0
      %3044 = vmatprep.subr.mxu0 0.0
      %3045 = vmatpush1.msra.mxu0 0.0
      %3046 = vmatprep.subr.mxu0 0.0
      %3047 = vmatpush1.msra.mxu0 0.0
      %3048 = vmatprep.subr.mxu0 0.0
      %3049 = vmatpush1.msra.mxu0 0.0
      %3050 = vmatprep.subr.mxu0 0.0
      %3051 = vmatpush1.msra.mxu0 0.0
      %3052 = vmatprep.subr.mxu0 0.0
      %3053 = vmatpush1.msra.mxu0 0.0
      %3054 = vmatprep.mubr.f32.mxu0 0.0
      %3055 = vmatmul.mubr.f32.gmra.mrb[0].mxu0 %v2892
      %v3056 = vpop.f32.mrb[0].mxu0
      %v3057 = vadd.f32 0.0, %v3056
      %v3058 = vpop.f32.mrb[0].mxu0
      %3059 = vmatprep.mubr.f32.mxu0 0.0
      %3060 = vmatmul.mubr.f32.gmra.mrb[0].mxu0 %v2895
      %v3061 = vpop.f32.mrb[0].mxu0
      %v3062 = vadd.f32 0.0, %v3061
      %v3063 = vpop.f32.mrb[0].mxu0
      %3064 = vmatprep.mubr.f32.mxu0 0.0
      %3065 = vmatmul.mubr.f32.gmra.mrb[0].mxu0 %v2898
      %v3066 = vpop.f32.mrb[0].mxu0
      %v3067 = vadd.f32 0.0, %v3066
      %v3068 = vpop.f32.mrb[0].mxu0
      %3069 = vmatprep.mubr.f32.mxu0 0.0
      %3070 = vmatmul.mubr.f32.gmra.mrb[0].mxu0 %v2901
      %v3071 = vpop.f32.mrb[0].mxu0
      %v3072 = vadd.f32 0.0, %v3071
      %v3073 = vpop.f32.mrb[0].mxu0
      %3074 = vmatprep.mubr.f32.mxu0 0.0
      %3075 = vmatmul.mubr.f32.gmra.mrb[0].mxu0 %v2904
      %v3076 = vpop.f32.mrb[0].mxu0
      %v3077 = vadd.f32 0.0, %v3076
      %v3078 = vpop.f32.mrb[0].mxu0
      %3079 = vmatprep.mubr.f32.mxu0 0.0
      %3080 = vmatmul.mubr.f32.gmra.mrb[0].mxu0 %v2907
      %v3081 = vpop.f32.mrb[0].mxu0
      %v3082 = vadd.f32 0.0, %v3081
      %v3083 = vpop.f32.mrb[0].mxu0
      %3084 = vmatprep.mubr.f32.mxu0 0.0
      %3085 = vmatmul.mubr.f32.gmra.mrb[0].mxu0 %v2910
      %v3086 = vpop.f32.mrb[0].mxu0
      %v3087 = vadd.f32 0.0, %v3086
      %v3088 = vpop.f32.mrb[0].mxu0
      %3089 = vmatprep.mubr.f32.mxu0 0.0
      %3090 = vmatmul.mubr.f32.gmra.mrb[0].mxu0 %v2913
      %v3091 = vpop.f32.mrb[0].mxu0
      %v3092 = vadd.f32 0.0, %v3091
      %v3093 = vpop.f32.mrb[0].mxu0
      %3094 = vmatprep.mubr.f32.mxu0 0.0
      %3095 = vmatmul.mubr.f32.gmra.mrb[0].mxu0 %v2916
      %v3096 = vpop.f32.mrb[0].mxu0
      %v3097 = vadd.f32 0.0, %v3096
      %v3098 = vpop.f32.mrb[0].mxu0
      %3099 = vmatprep.mubr.f32.mxu0 0.0
      %3100 = vmatmul.mubr.f32.gmra.mrb[0].mxu0 %v2919
      %v3101 = vpop.f32.mrb[0].mxu0
      %v3102 = vadd.f32 0.0, %v3101
      %v3103 = vpop.f32.mrb[0].mxu0
      %3104 = vmatprep.mubr.f32.mxu0 0.0
      %3105 = vmatmul.mubr.f32.gmra.mrb[0].mxu0 %v2922
      %v3106 = vpop.f32.mrb[0].mxu0
      %v3107 = vadd.f32 0.0, %v3106
      %v3108 = vpop.f32.mrb[0].mxu0
      %3109 = vmatprep.mubr.f32.mxu0 0.0
      %3110 = vmatmul.mubr.f32.gmra.mrb[0].mxu0 %v2925
      %v3111 = vpop.f32.mrb[0].mxu0
      %v3112 = vadd.f32 0.0, %v3111
      %v3113 = vpop.f32.mrb[0].mxu0
      %3114 = vmatprep.mubr.f32.mxu0 0.0
      %3115 = vmatmul.mubr.f32.gmra.mrb[0].mxu0 %v2928
      %v3116 = vpop.f32.mrb[0].mxu0
      %v3117 = vadd.f32 0.0, %v3116
      %v3118 = vpop.f32.mrb[0].mxu0
      %3119 = vmatprep.mubr.f32.mxu0 0.0
      %3120 = vmatmul.mubr.f32.gmra.mrb[0].mxu0 %v2931
      %v3121 = vpop.f32.mrb[0].mxu0
      %v3122 = vadd.f32 0.0, %v3121
      %v3123 = vpop.f32.mrb[0].mxu0
      %3124 = vmatprep.mubr.f32.mxu0 0.0
      %3125 = vmatmul.mubr.f32.gmra.mrb[0].mxu0 %v2934
      %v3126 = vpop.f32.mrb[0].mxu0
      %v3127 = vadd.f32 0.0, %v3126
      %v3128 = vpop.f32.mrb[0].mxu0
      %3129 = vmatprep.mubr.f32.mxu0 0.0
      %3130 = vmatmul.mubr.f32.gmra.mrb[0].mxu0 %v2937
      %v3131 = vpop.f32.mrb[0].mxu0
      %v3132 = vadd.f32 0.0, %v3131
      %v3133 = vpop.f32.mrb[0].mxu0
      %3134 = vmatprep.mubr.f32.mxu0 0.0
      %3135 = vmatmul.mubr.f32.gmra.mrb[0].mxu0 %v2940
      %v3136 = vpop.f32.mrb[0].mxu0
      %v3137 = vadd.f32 0.0, %v3136
      %v3138 = vpop.f32.mrb[0].mxu0
      %3139 = vmatprep.mubr.f32.mxu0 0.0
      %3140 = vmatmul.mubr.f32.gmra.mrb[0].mxu0 %v2943
      %v3141 = vpop.f32.mrb[0].mxu0
      %v3142 = vadd.f32 0.0, %v3141
      %v3143 = vpop.f32.mrb[0].mxu0
      %3144 = vmatprep.mubr.f32.mxu0 0.0
      %3145 = vmatmul.mubr.f32.gmra.mrb[0].mxu0 %v2946
      %v3146 = vpop.f32.mrb[0].mxu0
      %v3147 = vadd.f32 0.0, %v3146
      %v3148 = vpop.f32.mrb[0].mxu0
      %3149 = vmatprep.mubr.f32.mxu0 0.0
      %3150 = vmatmul.mubr.f32.gmra.mrb[0].mxu0 %v2949
      %v3151 = vpop.f32.mrb[0].mxu0
      %v3152 = vadd.f32 0.0, %v3151
      %v3153 = vpop.f32.mrb[0].mxu0
      %3154 = vmatprep.mubr.f32.mxu0 0.0
      %3155 = vmatmul.mubr.f32.gmra.mrb[0].mxu0 %v2952
      %v3156 = vpop.f32.mrb[0].mxu0
      %v3157 = vadd.f32 0.0, %v3156
      %v3158 = vpop.f32.mrb[0].mxu0
      %3159 = vmatprep.mubr.f32.mxu0 0.0
      %3160 = vmatmul.mubr.f32.gmra.mrb[0].mxu0 %v2955
      %v3161 = vpop.f32.mrb[0].mxu0
      %v3162 = vadd.f32 0.0, %v3161
      %v3163 = vpop.f32.mrb[0].mxu0
      %3164 = vmatprep.mubr.f32.mxu0 0.0
      %3165 = vmatmul.mubr.f32.gmra.mrb[0].mxu0 %v2958
      %v3166 = vpop.f32.mrb[0].mxu0
      %v3167 = vadd.f32 0.0, %v3166
      %v3168 = vpop.f32.mrb[0].mxu0
      %3169 = vmatprep.mubr.f32.mxu0 0.0
      %3170 = vmatmul.mubr.f32.gmra.mrb[0].mxu0 %v2961
      %v3171 = vpop.f32.mrb[0].mxu0
      %v3172 = vadd.f32 0.0, %v3171
      %v3173 = vpop.f32.mrb[0].mxu0
      %3174 = vmatprep.mubr.f32.mxu0 0.0
      %3175 = vmatmul.mubr.f32.gmra.mrb[0].mxu0 %v2964
      %v3176 = vpop.f32.mrb[0].mxu0
      %v3177 = vadd.f32 0.0, %v3176
      %v3178 = vpop.f32.mrb[0].mxu0
      %3179 = vmatprep.mubr.f32.mxu0 0.0
      %3180 = vmatmul.mubr.f32.gmra.mrb[0].mxu0 %v2967
      %v3181 = vpop.f32.mrb[0].mxu0
      %v3182 = vadd.f32 0.0, %v3181
      %v3183 = vpop.f32.mrb[0].mxu0
      %3184 = vmatprep.mubr.f32.mxu0 0.0
      %3185 = vmatmul.mubr.f32.gmra.mrb[0].mxu0 %v2970
      %v3186 = vpop.f32.mrb[0].mxu0
      %v3187 = vadd.f32 0.0, %v3186
      %v3188 = vpop.f32.mrb[0].mxu0
      %3189 = vmatprep.mubr.f32.mxu0 0.0
      %3190 = vmatmul.mubr.f32.gmra.mrb[0].mxu0 %v2973
      %v3191 = vpop.f32.mrb[0].mxu0
      %v3192 = vadd.f32 0.0, %v3191
      %v3193 = vpop.f32.mrb[0].mxu0
      %3194 = vmatprep.mubr.f32.mxu0 0.0
      %3195 = vmatmul.mubr.f32.gmra.mrb[0].mxu0 %v2976
      %v3196 = vpop.f32.mrb[0].mxu0
      %v3197 = vadd.f32 0.0, %v3196
      %v3198 = vpop.f32.mrb[0].mxu0
      %3199 = vmatprep.mubr.f32.mxu0 0.0
      %3200 = vmatmul.mubr.f32.gmra.mrb[0].mxu0 %v2979
      %v3201 = vpop.f32.mrb[0].mxu0
      %v3202 = vadd.f32 0.0, %v3201
      %v3203 = vpop.f32.mrb[0].mxu0
      %3204 = vmatprep.mubr.f32.mxu0 0.0
      %3205 = vmatmul.mubr.f32.gmra.mrb[0].mxu0 %v2982
      %v3206 = vpop.f32.mrb[0].mxu0
      %v3207 = vadd.f32 0.0, %v3206
      %v3208 = vpop.f32.mrb[0].mxu0
      %3209 = vmatprep.mubr.f32.mxu0 0.0
      %3210 = vmatmul.mubr.f32.gmra.mrb[0].mxu0 %v2985
      %v3211 = vpop.f32.mrb[0].mxu0
      %v3212 = vadd.f32 0.0, %v3211
      %v3213 = vpop.f32.mrb[0].mxu0
      %3214 = vdwg.mxu0
      %v3215 = vadd.f32 %v2824, %v3057
      %v3216 = vadd.f32 %v2825, %v3062
      %v3217 = vadd.f32 %v2826, %v3067
      %v3218 = vadd.f32 %v2827, %v3072
      %v3219 = vadd.f32 %v2828, %v3077
      %v3220 = vadd.f32 %v2829, %v3082
      %v3221 = vadd.f32 %v2830, %v3087
      %v3222 = vadd.f32 %v2831, %v3092
      %v3223 = vadd.f32 %v2832, %v3097
      %v3224 = vadd.f32 %v2833, %v3102
      %v3225 = vadd.f32 %v2834, %v3107
      %v3226 = vadd.f32 %v2835, %v3112
      %v3227 = vadd.f32 %v2836, %v3117
      %v3228 = vadd.f32 %v2837, %v3122
      %v3229 = vadd.f32 %v2838, %v3127
      %v3230 = vadd.f32 %v2839, %v3132
      %v3231 = vadd.f32 %v2840, %v3137
      %v3232 = vadd.f32 %v2841, %v3142
      %v3233 = vadd.f32 %v2842, %v3147
      %v3234 = vadd.f32 %v2843, %v3152
      %v3235 = vadd.f32 %v2844, %v3157
      %v3236 = vadd.f32 %v2845, %v3162
      %v3237 = vadd.f32 %v2846, %v3167
      %v3238 = vadd.f32 %v2847, %v3172
      %v3239 = vadd.f32 %v2848, %v3177
      %v3240 = vadd.f32 %v2849, %v3182
      %v3241 = vadd.f32 %v2850, %v3187
      %v3242 = vadd.f32 %v2851, %v3192
      %v3243 = vadd.f32 %v2852, %v3197
      %v3244 = vadd.f32 %v2853, %v3202
      %v3245 = vadd.f32 %v2854, %v3207
      %v3246 = vadd.f32 %v2855, %v3212
      %v3247 = vld [vmem:[%s2856 + $0x1] sm:$0xff]
      %v3248 = vld [vmem:[%s2856 + $0x9] sm:$0xff]
      %v3249 = vld [vmem:[%s2856 + $0x19] sm:$0xff]
      %v3250 = vld [vmem:[%s2856 + $0x21] sm:$0xff]
      %v3251 = vld [vmem:[%s2856 + $0x31] sm:$0xff]
      %v3252 = vld [vmem:[%s2856 + $0x39] sm:$0xff]
      %v3253 = vld [vmem:[%s2856 + $0x49] sm:$0xff]
      %v3254 = vld [vmem:[%s2856 + $0x51] sm:$0xff]
      %v3255 = vld [vmem:[%s2856 + $0x61] sm:$0xff]
      %v3256 = vld [vmem:[%s2856 + $0x69] sm:$0xff]
      %v3257 = vld [vmem:[%s2856 + $0x79] sm:$0xff]
      %v3258 = vld [vmem:[%s2856 + $0x81] sm:$0xff]
      %v3259 = vld [vmem:[%s2856 + $0x91] sm:$0xff]
      %v3260 = vld [vmem:[%s2856 + $0x99] sm:$0xff]
      %v3261 = vld [vmem:[%s2856 + $0xa9] sm:$0xff]
      %v3262 = vld [vmem:[%s2856 + $0xb1] sm:$0xff]
      %v3263 = vld [vmem:[%s2856 + $0xc1] sm:$0xff]
      %v3264 = vld [vmem:[%s2856 + $0xc9] sm:$0xff]
      %v3265 = vld [vmem:[%s2856 + $0xd9] sm:$0xff]
      %v3266 = vld [vmem:[%s2856 + $0xe1] sm:$0xff]
      %v3267 = vld [vmem:[%s2856 + $0xf1] sm:$0xff]
      %v3268 = vld [vmem:[%s2856 + $0xf9] sm:$0xff]
      %v3269 = vld [vmem:[%s2856 + $0x109] sm:$0xff]
      %v3270 = vld [vmem:[%s2856 + $0x111] sm:$0xff]
      %v3271 = vld [vmem:[%s2856 + $0x121] sm:$0xff]
      %v3272 = vld [vmem:[%s2856 + $0x129] sm:$0xff]
      %v3273 = vld [vmem:[%s2856 + $0x139] sm:$0xff]
      %v3274 = vld [vmem:[%s2856 + $0x141] sm:$0xff]
      %v3275 = vld [vmem:[%s2856 + $0x151] sm:$0xff]
      %v3276 = vld [vmem:[%s2856 + $0x159] sm:$0xff]
      %v3277 = vld [vmem:[%s2856 + $0x169] sm:$0xff]
      %v3278 = vld [vmem:[%s2856 + $0x171] sm:$0xff]
      %s3279 = scalar_lea.vmem %s4, 28
      %v3280 = vld [vmem:[%s3279] sm:$0xf]
      %v3282 = vsel %vm547, %v3247, 0
      %v3285 = vsel %vm547, %v3248, 0
      %v3288 = vsel %vm547, %v3249, 0
      %v3291 = vsel %vm547, %v3250, 0
      %v3294 = vsel %vm547, %v3251, 0
      %v3297 = vsel %vm547, %v3252, 0
      %v3300 = vsel %vm547, %v3253, 0
      %v3303 = vsel %vm547, %v3254, 0
      %v3306 = vsel %vm547, %v3255, 0
      %v3309 = vsel %vm547, %v3256, 0
      %v3312 = vsel %vm547, %v3257, 0
      %v3315 = vsel %vm547, %v3258, 0
      %v3318 = vsel %vm547, %v3259, 0
      %v3321 = vsel %vm547, %v3260, 0
      %v3324 = vsel %vm547, %v3261, 0
      %v3327 = vsel %vm547, %v3262, 0
      %v3330 = vsel %vm547, %v3263, 0
      %v3333 = vsel %vm547, %v3264, 0
      %v3336 = vsel %vm547, %v3265, 0
      %v3339 = vsel %vm547, %v3266, 0
      %v3342 = vsel %vm547, %v3267, 0
      %v3345 = vsel %vm547, %v3268, 0
      %v3348 = vsel %vm547, %v3269, 0
      %v3351 = vsel %vm547, %v3270, 0
      %v3354 = vsel %vm547, %v3271, 0
      %v3357 = vsel %vm547, %v3272, 0
      %v3360 = vsel %vm547, %v3273, 0
      %v3363 = vsel %vm547, %v3274, 0
      %v3366 = vsel %vm547, %v3275, 0
      %v3369 = vsel %vm547, %v3276, 0
      %v3372 = vsel %vm547, %v3277, 0
      %v3375 = vsel %vm547, %v3278, 0
      %v3378 = vsel %vm743, %v3280, 0
      %3380 = vmatprep.subr.mxu0 0.0
      %3381 = vmatpush1.msra.mxu0 %v3378
      %3382 = vmatprep.subr.mxu0 0.0
      %3383 = vmatpush1.msra.mxu0 0.0
      %3384 = vmatprep.subr.mxu0 0.0
      %3385 = vmatpush1.msra.mxu0 0.0
      %3386 = vmatprep.subr.mxu0 0.0
      %3387 = vmatpush1.msra.mxu0 0.0
      %3388 = vmatprep.subr.mxu0 0.0
      %3389 = vmatpush1.msra.mxu0 0.0
      %3390 = vmatprep.subr.mxu0 0.0
      %3391 = vmatpush1.msra.mxu0 0.0
      %3392 = vmatprep.subr.mxu0 0.0
      %3393 = vmatpush1.msra.mxu0 0.0
      %3394 = vmatprep.subr.mxu0 0.0
      %3395 = vmatpush1.msra.mxu0 0.0
      %3396 = vmatprep.subr.mxu0 0.0
      %3397 = vmatpush1.msra.mxu0 0.0
      %3398 = vmatprep.subr.mxu0 0.0
      %3399 = vmatpush1.msra.mxu0 0.0
      %3400 = vmatprep.subr.mxu0 0.0
      %3401 = vmatpush1.msra.mxu0 0.0
      %3402 = vmatprep.subr.mxu0 0.0
      %3403 = vmatpush1.msra.mxu0 0.0
      %3404 = vmatprep.subr.mxu0 0.0
      %3405 = vmatpush1.msra.mxu0 0.0
      %3406 = vmatprep.subr.mxu0 0.0
      %3407 = vmatpush1.msra.mxu0 0.0
      %3408 = vmatprep.subr.mxu0 0.0
      %3409 = vmatpush1.msra.mxu0 0.0
      %3410 = vmatprep.subr.mxu0 0.0
      %3411 = vmatpush1.msra.mxu0 0.0
      %3412 = vmatprep.subr.mxu0 0.0
      %3413 = vmatpush1.msra.mxu0 0.0
      %3414 = vmatprep.subr.mxu0 0.0
      %3415 = vmatpush1.msra.mxu0 0.0
      %3416 = vmatprep.subr.mxu0 0.0
      %3417 = vmatpush1.msra.mxu0 0.0
      %3418 = vmatprep.subr.mxu0 0.0
      %3419 = vmatpush1.msra.mxu0 0.0
      %3420 = vmatprep.subr.mxu0 0.0
      %3421 = vmatpush1.msra.mxu0 0.0
      %3422 = vmatprep.subr.mxu0 0.0
      %3423 = vmatpush1.msra.mxu0 0.0
      %3424 = vmatprep.subr.mxu0 0.0
      %3425 = vmatpush1.msra.mxu0 0.0
      %3426 = vmatprep.subr.mxu0 0.0
      %3427 = vmatpush1.msra.mxu0 0.0
      %3428 = vmatprep.subr.mxu0 0.0
      %3429 = vmatpush1.msra.mxu0 0.0
      %3430 = vmatprep.subr.mxu0 0.0
      %3431 = vmatpush1.msra.mxu0 0.0
      %3432 = vmatprep.subr.mxu0 0.0
      %3433 = vmatpush1.msra.mxu0 0.0
      %3434 = vmatprep.subr.mxu0 0.0
      %3435 = vmatpush1.msra.mxu0 0.0
      %3436 = vmatprep.subr.mxu0 0.0
      %3437 = vmatpush1.msra.mxu0 0.0
      %3438 = vmatprep.subr.mxu0 0.0
      %3439 = vmatpush1.msra.mxu0 0.0
      %3440 = vmatprep.subr.mxu0 0.0
      %3441 = vmatpush1.msra.mxu0 0.0
      %3442 = vmatprep.subr.mxu0 0.0
      %3443 = vmatpush1.msra.mxu0 0.0
      %3444 = vmatprep.mubr.f32.mxu0 0.0
      %3445 = vmatmul.mubr.f32.gmra.mrb[0].mxu0 %v3282
      %v3446 = vpop.f32.mrb[0].mxu0
      %v3447 = vadd.f32 0.0, %v3446
      %v3448 = vpop.f32.mrb[0].mxu0
      %3449 = vmatprep.mubr.f32.mxu0 0.0
      %3450 = vmatmul.mubr.f32.gmra.mrb[0].mxu0 %v3285
      %v3451 = vpop.f32.mrb[0].mxu0
      %v3452 = vadd.f32 0.0, %v3451
      %v3453 = vpop.f32.mrb[0].mxu0
      %3454 = vmatprep.mubr.f32.mxu0 0.0
      %3455 = vmatmul.mubr.f32.gmra.mrb[0].mxu0 %v3288
      %v3456 = vpop.f32.mrb[0].mxu0
      %v3457 = vadd.f32 0.0, %v3456
      %v3458 = vpop.f32.mrb[0].mxu0
      %3459 = vmatprep.mubr.f32.mxu0 0.0
      %3460 = vmatmul.mubr.f32.gmra.mrb[0].mxu0 %v3291
      %v3461 = vpop.f32.mrb[0].mxu0
      %v3462 = vadd.f32 0.0, %v3461
      %v3463 = vpop.f32.mrb[0].mxu0
      %3464 = vmatprep.mubr.f32.mxu0 0.0
      %3465 = vmatmul.mubr.f32.gmra.mrb[0].mxu0 %v3294
      %v3466 = vpop.f32.mrb[0].mxu0
      %v3467 = vadd.f32 0.0, %v3466
      %v3468 = vpop.f32.mrb[0].mxu0
      %3469 = vmatprep.mubr.f32.mxu0 0.0
      %3470 = vmatmul.mubr.f32.gmra.mrb[0].mxu0 %v3297
      %v3471 = vpop.f32.mrb[0].mxu0
      %v3472 = vadd.f32 0.0, %v3471
      %v3473 = vpop.f32.mrb[0].mxu0
      %3474 = vmatprep.mubr.f32.mxu0 0.0
      %3475 = vmatmul.mubr.f32.gmra.mrb[0].mxu0 %v3300
      %v3476 = vpop.f32.mrb[0].mxu0
      %v3477 = vadd.f32 0.0, %v3476
      %v3478 = vpop.f32.mrb[0].mxu0
      %3479 = vmatprep.mubr.f32.mxu0 0.0
      %3480 = vmatmul.mubr.f32.gmra.mrb[0].mxu0 %v3303
      %v3481 = vpop.f32.mrb[0].mxu0
      %v3482 = vadd.f32 0.0, %v3481
      %v3483 = vpop.f32.mrb[0].mxu0
      %3484 = vmatprep.mubr.f32.mxu0 0.0
      %3485 = vmatmul.mubr.f32.gmra.mrb[0].mxu0 %v3306
      %v3486 = vpop.f32.mrb[0].mxu0
      %v3487 = vadd.f32 0.0, %v3486
      %v3488 = vpop.f32.mrb[0].mxu0
      %3489 = vmatprep.mubr.f32.mxu0 0.0
      %3490 = vmatmul.mubr.f32.gmra.mrb[0].mxu0 %v3309
      %v3491 = vpop.f32.mrb[0].mxu0
      %v3492 = vadd.f32 0.0, %v3491
      %v3493 = vpop.f32.mrb[0].mxu0
      %3494 = vmatprep.mubr.f32.mxu0 0.0
      %3495 = vmatmul.mubr.f32.gmra.mrb[0].mxu0 %v3312
      %v3496 = vpop.f32.mrb[0].mxu0
      %v3497 = vadd.f32 0.0, %v3496
      %v3498 = vpop.f32.mrb[0].mxu0
      %3499 = vmatprep.mubr.f32.mxu0 0.0
      %3500 = vmatmul.mubr.f32.gmra.mrb[0].mxu0 %v3315
      %v3501 = vpop.f32.mrb[0].mxu0
      %v3502 = vadd.f32 0.0, %v3501
      %v3503 = vpop.f32.mrb[0].mxu0
      %3504 = vmatprep.mubr.f32.mxu0 0.0
      %3505 = vmatmul.mubr.f32.gmra.mrb[0].mxu0 %v3318
      %v3506 = vpop.f32.mrb[0].mxu0
      %v3507 = vadd.f32 0.0, %v3506
      %v3508 = vpop.f32.mrb[0].mxu0
      %3509 = vmatprep.mubr.f32.mxu0 0.0
      %3510 = vmatmul.mubr.f32.gmra.mrb[0].mxu0 %v3321
      %v3511 = vpop.f32.mrb[0].mxu0
      %v3512 = vadd.f32 0.0, %v3511
      %v3513 = vpop.f32.mrb[0].mxu0
      %3514 = vmatprep.mubr.f32.mxu0 0.0
      %3515 = vmatmul.mubr.f32.gmra.mrb[0].mxu0 %v3324
      %v3516 = vpop.f32.mrb[0].mxu0
      %v3517 = vadd.f32 0.0, %v3516
      %v3518 = vpop.f32.mrb[0].mxu0
      %3519 = vmatprep.mubr.f32.mxu0 0.0
      %3520 = vmatmul.mubr.f32.gmra.mrb[0].mxu0 %v3327
      %v3521 = vpop.f32.mrb[0].mxu0
      %v3522 = vadd.f32 0.0, %v3521
      %v3523 = vpop.f32.mrb[0].mxu0
      %3524 = vmatprep.mubr.f32.mxu0 0.0
      %3525 = vmatmul.mubr.f32.gmra.mrb[0].mxu0 %v3330
      %v3526 = vpop.f32.mrb[0].mxu0
      %v3527 = vadd.f32 0.0, %v3526
      %v3528 = vpop.f32.mrb[0].mxu0
      %3529 = vmatprep.mubr.f32.mxu0 0.0
      %3530 = vmatmul.mubr.f32.gmra.mrb[0].mxu0 %v3333
      %v3531 = vpop.f32.mrb[0].mxu0
      %v3532 = vadd.f32 0.0, %v3531
      %v3533 = vpop.f32.mrb[0].mxu0
      %3534 = vmatprep.mubr.f32.mxu0 0.0
      %3535 = vmatmul.mubr.f32.gmra.mrb[0].mxu0 %v3336
      %v3536 = vpop.f32.mrb[0].mxu0
      %v3537 = vadd.f32 0.0, %v3536
      %v3538 = vpop.f32.mrb[0].mxu0
      %3539 = vmatprep.mubr.f32.mxu0 0.0
      %3540 = vmatmul.mubr.f32.gmra.mrb[0].mxu0 %v3339
      %v3541 = vpop.f32.mrb[0].mxu0
      %v3542 = vadd.f32 0.0, %v3541
      %v3543 = vpop.f32.mrb[0].mxu0
      %3544 = vmatprep.mubr.f32.mxu0 0.0
      %3545 = vmatmul.mubr.f32.gmra.mrb[0].mxu0 %v3342
      %v3546 = vpop.f32.mrb[0].mxu0
      %v3547 = vadd.f32 0.0, %v3546
      %v3548 = vpop.f32.mrb[0].mxu0
      %3549 = vmatprep.mubr.f32.mxu0 0.0
      %3550 = vmatmul.mubr.f32.gmra.mrb[0].mxu0 %v3345
      %v3551 = vpop.f32.mrb[0].mxu0
      %v3552 = vadd.f32 0.0, %v3551
      %v3553 = vpop.f32.mrb[0].mxu0
      %3554 = vmatprep.mubr.f32.mxu0 0.0
      %3555 = vmatmul.mubr.f32.gmra.mrb[0].mxu0 %v3348
      %v3556 = vpop.f32.mrb[0].mxu0
      %v3557 = vadd.f32 0.0, %v3556
      %v3558 = vpop.f32.mrb[0].mxu0
      %3559 = vmatprep.mubr.f32.mxu0 0.0
      %3560 = vmatmul.mubr.f32.gmra.mrb[0].mxu0 %v3351
      %v3561 = vpop.f32.mrb[0].mxu0
      %v3562 = vadd.f32 0.0, %v3561
      %v3563 = vpop.f32.mrb[0].mxu0
      %3564 = vmatprep.mubr.f32.mxu0 0.0
      %3565 = vmatmul.mubr.f32.gmra.mrb[0].mxu0 %v3354
      %v3566 = vpop.f32.mrb[0].mxu0
      %v3567 = vadd.f32 0.0, %v3566
      %v3568 = vpop.f32.mrb[0].mxu0
      %3569 = vmatprep.mubr.f32.mxu0 0.0
      %3570 = vmatmul.mubr.f32.gmra.mrb[0].mxu0 %v3357
      %v3571 = vpop.f32.mrb[0].mxu0
      %v3572 = vadd.f32 0.0, %v3571
      %v3573 = vpop.f32.mrb[0].mxu0
      %3574 = vmatprep.mubr.f32.mxu0 0.0
      %3575 = vmatmul.mubr.f32.gmra.mrb[0].mxu0 %v3360
      %v3576 = vpop.f32.mrb[0].mxu0
      %v3577 = vadd.f32 0.0, %v3576
      %v3578 = vpop.f32.mrb[0].mxu0
      %3579 = vmatprep.mubr.f32.mxu0 0.0
      %3580 = vmatmul.mubr.f32.gmra.mrb[0].mxu0 %v3363
      %v3581 = vpop.f32.mrb[0].mxu0
      %v3582 = vadd.f32 0.0, %v3581
      %v3583 = vpop.f32.mrb[0].mxu0
      %3584 = vmatprep.mubr.f32.mxu0 0.0
      %3585 = vmatmul.mubr.f32.gmra.mrb[0].mxu0 %v3366
      %v3586 = vpop.f32.mrb[0].mxu0
      %v3587 = vadd.f32 0.0, %v3586
      %v3588 = vpop.f32.mrb[0].mxu0
      %3589 = vmatprep.mubr.f32.mxu0 0.0
      %3590 = vmatmul.mubr.f32.gmra.mrb[0].mxu0 %v3369
      %v3591 = vpop.f32.mrb[0].mxu0
      %v3592 = vadd.f32 0.0, %v3591
      %v3593 = vpop.f32.mrb[0].mxu0
      %3594 = vmatprep.mubr.f32.mxu0 0.0
      %3595 = vmatmul.mubr.f32.gmra.mrb[0].mxu0 %v3372
      %v3596 = vpop.f32.mrb[0].mxu0
      %v3597 = vadd.f32 0.0, %v3596
      %v3598 = vpop.f32.mrb[0].mxu0
      %3599 = vmatprep.mubr.f32.mxu0 0.0
      %3600 = vmatmul.mubr.f32.gmra.mrb[0].mxu0 %v3375
      %v3601 = vpop.f32.mrb[0].mxu0
      %v3602 = vadd.f32 0.0, %v3601
      %v3603 = vpop.f32.mrb[0].mxu0
      %3604 = vdwg.mxu0
      %v3605 = vadd.f32 %v3215, %v3447
      %v3606 = vadd.f32 %v3216, %v3452
      %v3607 = vadd.f32 %v3217, %v3457
      %v3608 = vadd.f32 %v3218, %v3462
      %v3609 = vadd.f32 %v3219, %v3467
      %v3610 = vadd.f32 %v3220, %v3472
      %v3611 = vadd.f32 %v3221, %v3477
      %v3612 = vadd.f32 %v3222, %v3482
      %v3613 = vadd.f32 %v3223, %v3487
      %v3614 = vadd.f32 %v3224, %v3492
      %v3615 = vadd.f32 %v3225, %v3497
      %v3616 = vadd.f32 %v3226, %v3502
      %v3617 = vadd.f32 %v3227, %v3507
      %v3618 = vadd.f32 %v3228, %v3512
      %v3619 = vadd.f32 %v3229, %v3517
      %v3620 = vadd.f32 %v3230, %v3522
      %v3621 = vadd.f32 %v3231, %v3527
      %v3622 = vadd.f32 %v3232, %v3532
      %v3623 = vadd.f32 %v3233, %v3537
      %v3624 = vadd.f32 %v3234, %v3542
      %v3625 = vadd.f32 %v3235, %v3547
      %v3626 = vadd.f32 %v3236, %v3552
      %v3627 = vadd.f32 %v3237, %v3557
      %v3628 = vadd.f32 %v3238, %v3562
      %v3629 = vadd.f32 %v3239, %v3567
      %v3630 = vadd.f32 %v3240, %v3572
      %v3631 = vadd.f32 %v3241, %v3577
      %v3632 = vadd.f32 %v3242, %v3582
      %v3633 = vadd.f32 %v3243, %v3587
      %v3634 = vadd.f32 %v3244, %v3592
      %v3635 = vadd.f32 %v3245, %v3597
      %v3636 = vadd.f32 %v3246, %v3602
      %v3637 = vld [vmem:[%s2856 + $0x2] sm:$0xff]
      %v3638 = vld [vmem:[%s2856 + $0xa] sm:$0xff]
      %v3639 = vld [vmem:[%s2856 + $0x1a] sm:$0xff]
      %v3640 = vld [vmem:[%s2856 + $0x22] sm:$0xff]
      %v3641 = vld [vmem:[%s2856 + $0x32] sm:$0xff]
      %v3642 = vld [vmem:[%s2856 + $0x3a] sm:$0xff]
      %v3643 = vld [vmem:[%s2856 + $0x4a] sm:$0xff]
      %v3644 = vld [vmem:[%s2856 + $0x52] sm:$0xff]
      %v3645 = vld [vmem:[%s2856 + $0x62] sm:$0xff]
      %v3646 = vld [vmem:[%s2856 + $0x6a] sm:$0xff]
      %v3647 = vld [vmem:[%s2856 + $0x7a] sm:$0xff]
      %v3648 = vld [vmem:[%s2856 + $0x82] sm:$0xff]
      %v3649 = vld [vmem:[%s2856 + $0x92] sm:$0xff]
      %v3650 = vld [vmem:[%s2856 + $0x9a] sm:$0xff]
      %v3651 = vld [vmem:[%s2856 + $0xaa] sm:$0xff]
      %v3652 = vld [vmem:[%s2856 + $0xb2] sm:$0xff]
      %v3653 = vld [vmem:[%s2856 + $0xc2] sm:$0xff]
      %v3654 = vld [vmem:[%s2856 + $0xca] sm:$0xff]
      %v3655 = vld [vmem:[%s2856 + $0xda] sm:$0xff]
      %v3656 = vld [vmem:[%s2856 + $0xe2] sm:$0xff]
      %v3657 = vld [vmem:[%s2856 + $0xf2] sm:$0xff]
      %v3658 = vld [vmem:[%s2856 + $0xfa] sm:$0xff]
      %v3659 = vld [vmem:[%s2856 + $0x10a] sm:$0xff]
      %v3660 = vld [vmem:[%s2856 + $0x112] sm:$0xff]
      %v3661 = vld [vmem:[%s2856 + $0x122] sm:$0xff]
      %v3662 = vld [vmem:[%s2856 + $0x12a] sm:$0xff]
      %v3663 = vld [vmem:[%s2856 + $0x13a] sm:$0xff]
      %v3664 = vld [vmem:[%s2856 + $0x142] sm:$0xff]
      %v3665 = vld [vmem:[%s2856 + $0x152] sm:$0xff]
      %v3666 = vld [vmem:[%s2856 + $0x15a] sm:$0xff]
      %v3667 = vld [vmem:[%s2856 + $0x16a] sm:$0xff]
      %v3668 = vld [vmem:[%s2856 + $0x172] sm:$0xff]
      %s3669 = scalar_lea.vmem %s4, 32
      %v3670 = vld [vmem:[%s3669] sm:$0xf]
      %v3672 = vsel %vm547, %v3637, 0
      %v3675 = vsel %vm547, %v3638, 0
      %v3678 = vsel %vm547, %v3639, 0
      %v3681 = vsel %vm547, %v3640, 0
      %v3684 = vsel %vm547, %v3641, 0
      %v3687 = vsel %vm547, %v3642, 0
      %v3690 = vsel %vm547, %v3643, 0
      %v3693 = vsel %vm547, %v3644, 0
      %v3696 = vsel %vm547, %v3645, 0
      %v3699 = vsel %vm547, %v3646, 0
      %v3702 = vsel %vm547, %v3647, 0
      %v3705 = vsel %vm547, %v3648, 0
      %v3708 = vsel %vm547, %v3649, 0
      %v3711 = vsel %vm547, %v3650, 0
      %v3714 = vsel %vm547, %v3651, 0
      %v3717 = vsel %vm547, %v3652, 0
      %v3720 = vsel %vm547, %v3653, 0
      %v3723 = vsel %vm547, %v3654, 0
      %v3726 = vsel %vm547, %v3655, 0
      %v3729 = vsel %vm547, %v3656, 0
      %v3732 = vsel %vm547, %v3657, 0
      %v3735 = vsel %vm547, %v3658, 0
      %v3738 = vsel %vm547, %v3659, 0
      %v3741 = vsel %vm547, %v3660, 0
      %v3744 = vsel %vm547, %v3661, 0
      %v3747 = vsel %vm547, %v3662, 0
      %v3750 = vsel %vm547, %v3663, 0
      %v3753 = vsel %vm547, %v3664, 0
      %v3756 = vsel %vm547, %v3665, 0
      %v3759 = vsel %vm547, %v3666, 0
      %v3762 = vsel %vm547, %v3667, 0
      %v3765 = vsel %vm547, %v3668, 0
      %v3768 = vsel %vm743, %v3670, 0
      %3770 = vmatprep.subr.mxu0 0.0
      %3771 = vmatpush1.msra.mxu0 %v3768
      %3772 = vmatprep.subr.mxu0 0.0
      %3773 = vmatpush1.msra.mxu0 0.0
      %3774 = vmatprep.subr.mxu0 0.0
      %3775 = vmatpush1.msra.mxu0 0.0
      %3776 = vmatprep.subr.mxu0 0.0
      %3777 = vmatpush1.msra.mxu0 0.0
      %3778 = vmatprep.subr.mxu0 0.0
      %3779 = vmatpush1.msra.mxu0 0.0
      %3780 = vmatprep.subr.mxu0 0.0
      %3781 = vmatpush1.msra.mxu0 0.0
      %3782 = vmatprep.subr.mxu0 0.0
      %3783 = vmatpush1.msra.mxu0 0.0
      %3784 = vmatprep.subr.mxu0 0.0
      %3785 = vmatpush1.msra.mxu0 0.0
      %3786 = vmatprep.subr.mxu0 0.0
      %3787 = vmatpush1.msra.mxu0 0.0
      %3788 = vmatprep.subr.mxu0 0.0
      %3789 = vmatpush1.msra.mxu0 0.0
      %3790 = vmatprep.subr.mxu0 0.0
      %3791 = vmatpush1.msra.mxu0 0.0
      %3792 = vmatprep.subr.mxu0 0.0
      %3793 = vmatpush1.msra.mxu0 0.0
      %3794 = vmatprep.subr.mxu0 0.0
      %3795 = vmatpush1.msra.mxu0 0.0
      %3796 = vmatprep.subr.mxu0 0.0
      %3797 = vmatpush1.msra.mxu0 0.0
      %3798 = vmatprep.subr.mxu0 0.0
      %3799 = vmatpush1.msra.mxu0 0.0
      %3800 = vmatprep.subr.mxu0 0.0
      %3801 = vmatpush1.msra.mxu0 0.0
      %3802 = vmatprep.subr.mxu0 0.0
      %3803 = vmatpush1.msra.mxu0 0.0
      %3804 = vmatprep.subr.mxu0 0.0
      %3805 = vmatpush1.msra.mxu0 0.0
      %3806 = vmatprep.subr.mxu0 0.0
      %3807 = vmatpush1.msra.mxu0 0.0
      %3808 = vmatprep.subr.mxu0 0.0
      %3809 = vmatpush1.msra.mxu0 0.0
      %3810 = vmatprep.subr.mxu0 0.0
      %3811 = vmatpush1.msra.mxu0 0.0
      %3812 = vmatprep.subr.mxu0 0.0
      %3813 = vmatpush1.msra.mxu0 0.0
      %3814 = vmatprep.subr.mxu0 0.0
      %3815 = vmatpush1.msra.mxu0 0.0
      %3816 = vmatprep.subr.mxu0 0.0
      %3817 = vmatpush1.msra.mxu0 0.0
      %3818 = vmatprep.subr.mxu0 0.0
      %3819 = vmatpush1.msra.mxu0 0.0
      %3820 = vmatprep.subr.mxu0 0.0
      %3821 = vmatpush1.msra.mxu0 0.0
      %3822 = vmatprep.subr.mxu0 0.0
      %3823 = vmatpush1.msra.mxu0 0.0
      %3824 = vmatprep.subr.mxu0 0.0
      %3825 = vmatpush1.msra.mxu0 0.0
      %3826 = vmatprep.subr.mxu0 0.0
      %3827 = vmatpush1.msra.mxu0 0.0
      %3828 = vmatprep.subr.mxu0 0.0
      %3829 = vmatpush1.msra.mxu0 0.0
      %3830 = vmatprep.subr.mxu0 0.0
      %3831 = vmatpush1.msra.mxu0 0.0
      %3832 = vmatprep.subr.mxu0 0.0
      %3833 = vmatpush1.msra.mxu0 0.0
      %3834 = vmatprep.mubr.f32.mxu0 0.0
      %3835 = vmatmul.mubr.f32.gmra.mrb[0].mxu0 %v3672
      %v3836 = vpop.f32.mrb[0].mxu0
      %v3837 = vadd.f32 0.0, %v3836
      %v3838 = vpop.f32.mrb[0].mxu0
      %3839 = vmatprep.mubr.f32.mxu0 0.0
      %3840 = vmatmul.mubr.f32.gmra.mrb[0].mxu0 %v3675
      %v3841 = vpop.f32.mrb[0].mxu0
      %v3842 = vadd.f32 0.0, %v3841
      %v3843 = vpop.f32.mrb[0].mxu0
      %3844 = vmatprep.mubr.f32.mxu0 0.0
      %3845 = vmatmul.mubr.f32.gmra.mrb[0].mxu0 %v3678
      %v3846 = vpop.f32.mrb[0].mxu0
      %v3847 = vadd.f32 0.0, %v3846
      %v3848 = vpop.f32.mrb[0].mxu0
      %3849 = vmatprep.mubr.f32.mxu0 0.0
      %3850 = vmatmul.mubr.f32.gmra.mrb[0].mxu0 %v3681
      %v3851 = vpop.f32.mrb[0].mxu0
      %v3852 = vadd.f32 0.0, %v3851
      %v3853 = vpop.f32.mrb[0].mxu0
      %3854 = vmatprep.mubr.f32.mxu0 0.0
      %3855 = vmatmul.mubr.f32.gmra.mrb[0].mxu0 %v3684
      %v3856 = vpop.f32.mrb[0].mxu0
      %v3857 = vadd.f32 0.0, %v3856
      %v3858 = vpop.f32.mrb[0].mxu0
      %3859 = vmatprep.mubr.f32.mxu0 0.0
      %3860 = vmatmul.mubr.f32.gmra.mrb[0].mxu0 %v3687
      %v3861 = vpop.f32.mrb[0].mxu0
      %v3862 = vadd.f32 0.0, %v3861
      %v3863 = vpop.f32.mrb[0].mxu0
      %3864 = vmatprep.mubr.f32.mxu0 0.0
      %3865 = vmatmul.mubr.f32.gmra.mrb[0].mxu0 %v3690
      %v3866 = vpop.f32.mrb[0].mxu0
      %v3867 = vadd.f32 0.0, %v3866
      %v3868 = vpop.f32.mrb[0].mxu0
      %3869 = vmatprep.mubr.f32.mxu0 0.0
      %3870 = vmatmul.mubr.f32.gmra.mrb[0].mxu0 %v3693
      %v3871 = vpop.f32.mrb[0].mxu0
      %v3872 = vadd.f32 0.0, %v3871
      %v3873 = vpop.f32.mrb[0].mxu0
      %3874 = vmatprep.mubr.f32.mxu0 0.0
      %3875 = vmatmul.mubr.f32.gmra.mrb[0].mxu0 %v3696
      %v3876 = vpop.f32.mrb[0].mxu0
      %v3877 = vadd.f32 0.0, %v3876
      %v3878 = vpop.f32.mrb[0].mxu0
      %3879 = vmatprep.mubr.f32.mxu0 0.0
      %3880 = vmatmul.mubr.f32.gmra.mrb[0].mxu0 %v3699
      %v3881 = vpop.f32.mrb[0].mxu0
      %v3882 = vadd.f32 0.0, %v3881
      %v3883 = vpop.f32.mrb[0].mxu0
      %3884 = vmatprep.mubr.f32.mxu0 0.0
      %3885 = vmatmul.mubr.f32.gmra.mrb[0].mxu0 %v3702
      %v3886 = vpop.f32.mrb[0].mxu0
      %v3887 = vadd.f32 0.0, %v3886
      %v3888 = vpop.f32.mrb[0].mxu0
      %3889 = vmatprep.mubr.f32.mxu0 0.0
      %3890 = vmatmul.mubr.f32.gmra.mrb[0].mxu0 %v3705
      %v3891 = vpop.f32.mrb[0].mxu0
      %v3892 = vadd.f32 0.0, %v3891
      %v3893 = vpop.f32.mrb[0].mxu0
      %3894 = vmatprep.mubr.f32.mxu0 0.0
      %3895 = vmatmul.mubr.f32.gmra.mrb[0].mxu0 %v3708
      %v3896 = vpop.f32.mrb[0].mxu0
      %v3897 = vadd.f32 0.0, %v3896
      %v3898 = vpop.f32.mrb[0].mxu0
      %3899 = vmatprep.mubr.f32.mxu0 0.0
      %3900 = vmatmul.mubr.f32.gmra.mrb[0].mxu0 %v3711
      %v3901 = vpop.f32.mrb[0].mxu0
      %v3902 = vadd.f32 0.0, %v3901
      %v3903 = vpop.f32.mrb[0].mxu0
      %3904 = vmatprep.mubr.f32.mxu0 0.0
      %3905 = vmatmul.mubr.f32.gmra.mrb[0].mxu0 %v3714
      %v3906 = vpop.f32.mrb[0].mxu0
      %v3907 = vadd.f32 0.0, %v3906
      %v3908 = vpop.f32.mrb[0].mxu0
      %3909 = vmatprep.mubr.f32.mxu0 0.0
      %3910 = vmatmul.mubr.f32.gmra.mrb[0].mxu0 %v3717
      %v3911 = vpop.f32.mrb[0].mxu0
      %v3912 = vadd.f32 0.0, %v3911
      %v3913 = vpop.f32.mrb[0].mxu0
      %3914 = vmatprep.mubr.f32.mxu0 0.0
      %3915 = vmatmul.mubr.f32.gmra.mrb[0].mxu0 %v3720
      %v3916 = vpop.f32.mrb[0].mxu0
      %v3917 = vadd.f32 0.0, %v3916
      %v3918 = vpop.f32.mrb[0].mxu0
      %3919 = vmatprep.mubr.f32.mxu0 0.0
      %3920 = vmatmul.mubr.f32.gmra.mrb[0].mxu0 %v3723
      %v3921 = vpop.f32.mrb[0].mxu0
      %v3922 = vadd.f32 0.0, %v3921
      %v3923 = vpop.f32.mrb[0].mxu0
      %3924 = vmatprep.mubr.f32.mxu0 0.0
      %3925 = vmatmul.mubr.f32.gmra.mrb[0].mxu0 %v3726
      %v3926 = vpop.f32.mrb[0].mxu0
      %v3927 = vadd.f32 0.0, %v3926
      %v3928 = vpop.f32.mrb[0].mxu0
      %3929 = vmatprep.mubr.f32.mxu0 0.0
      %3930 = vmatmul.mubr.f32.gmra.mrb[0].mxu0 %v3729
      %v3931 = vpop.f32.mrb[0].mxu0
      %v3932 = vadd.f32 0.0, %v3931
      %v3933 = vpop.f32.mrb[0].mxu0
      %3934 = vmatprep.mubr.f32.mxu0 0.0
      %3935 = vmatmul.mubr.f32.gmra.mrb[0].mxu0 %v3732
      %v3936 = vpop.f32.mrb[0].mxu0
      %v3937 = vadd.f32 0.0, %v3936
      %v3938 = vpop.f32.mrb[0].mxu0
      %3939 = vmatprep.mubr.f32.mxu0 0.0
      %3940 = vmatmul.mubr.f32.gmra.mrb[0].mxu0 %v3735
      %v3941 = vpop.f32.mrb[0].mxu0
      %v3942 = vadd.f32 0.0, %v3941
      %v3943 = vpop.f32.mrb[0].mxu0
      %3944 = vmatprep.mubr.f32.mxu0 0.0
      %3945 = vmatmul.mubr.f32.gmra.mrb[0].mxu0 %v3738
      %v3946 = vpop.f32.mrb[0].mxu0
      %v3947 = vadd.f32 0.0, %v3946
      %v3948 = vpop.f32.mrb[0].mxu0
      %3949 = vmatprep.mubr.f32.mxu0 0.0
      %3950 = vmatmul.mubr.f32.gmra.mrb[0].mxu0 %v3741
      %v3951 = vpop.f32.mrb[0].mxu0
      %v3952 = vadd.f32 0.0, %v3951
      %v3953 = vpop.f32.mrb[0].mxu0
      %3954 = vmatprep.mubr.f32.mxu0 0.0
      %3955 = vmatmul.mubr.f32.gmra.mrb[0].mxu0 %v3744
      %v3956 = vpop.f32.mrb[0].mxu0
      %v3957 = vadd.f32 0.0, %v3956
      %v3958 = vpop.f32.mrb[0].mxu0
      %3959 = vmatprep.mubr.f32.mxu0 0.0
      %3960 = vmatmul.mubr.f32.gmra.mrb[0].mxu0 %v3747
      %v3961 = vpop.f32.mrb[0].mxu0
      %v3962 = vadd.f32 0.0, %v3961
      %v3963 = vpop.f32.mrb[0].mxu0
      %3964 = vmatprep.mubr.f32.mxu0 0.0
      %3965 = vmatmul.mubr.f32.gmra.mrb[0].mxu0 %v3750
      %v3966 = vpop.f32.mrb[0].mxu0
      %v3967 = vadd.f32 0.0, %v3966
      %v3968 = vpop.f32.mrb[0].mxu0
      %3969 = vmatprep.mubr.f32.mxu0 0.0
      %3970 = vmatmul.mubr.f32.gmra.mrb[0].mxu0 %v3753
      %v3971 = vpop.f32.mrb[0].mxu0
      %v3972 = vadd.f32 0.0, %v3971
      %v3973 = vpop.f32.mrb[0].mxu0
      %3974 = vmatprep.mubr.f32.mxu0 0.0
      %3975 = vmatmul.mubr.f32.gmra.mrb[0].mxu0 %v3756
      %v3976 = vpop.f32.mrb[0].mxu0
      %v3977 = vadd.f32 0.0, %v3976
      %v3978 = vpop.f32.mrb[0].mxu0
      %3979 = vmatprep.mubr.f32.mxu0 0.0
      %3980 = vmatmul.mubr.f32.gmra.mrb[0].mxu0 %v3759
      %v3981 = vpop.f32.mrb[0].mxu0
      %v3982 = vadd.f32 0.0, %v3981
      %v3983 = vpop.f32.mrb[0].mxu0
      %3984 = vmatprep.mubr.f32.mxu0 0.0
      %3985 = vmatmul.mubr.f32.gmra.mrb[0].mxu0 %v3762
      %v3986 = vpop.f32.mrb[0].mxu0
      %v3987 = vadd.f32 0.0, %v3986
      %v3988 = vpop.f32.mrb[0].mxu0
      %3989 = vmatprep.mubr.f32.mxu0 0.0
      %3990 = vmatmul.mubr.f32.gmra.mrb[0].mxu0 %v3765
      %v3991 = vpop.f32.mrb[0].mxu0
      %v3992 = vadd.f32 0.0, %v3991
      %v3993 = vpop.f32.mrb[0].mxu0
      %3994 = vdwg.mxu0
      %v3995 = vadd.f32 %v3605, %v3837
      %v3996 = vadd.f32 %v3606, %v3842
      %v3997 = vadd.f32 %v3607, %v3847
      %v3998 = vadd.f32 %v3608, %v3852
      %v3999 = vadd.f32 %v3609, %v3857
      %v4000 = vadd.f32 %v3610, %v3862
      %v4001 = vadd.f32 %v3611, %v3867
      %v4002 = vadd.f32 %v3612, %v3872
      %v4003 = vadd.f32 %v3613, %v3877
      %v4004 = vadd.f32 %v3614, %v3882
      %v4005 = vadd.f32 %v3615, %v3887
      %v4006 = vadd.f32 %v3616, %v3892
      %v4007 = vadd.f32 %v3617, %v3897
      %v4008 = vadd.f32 %v3618, %v3902
      %v4009 = vadd.f32 %v3619, %v3907
      %v4010 = vadd.f32 %v3620, %v3912
      %v4011 = vadd.f32 %v3621, %v3917
      %v4012 = vadd.f32 %v3622, %v3922
      %v4013 = vadd.f32 %v3623, %v3927
      %v4014 = vadd.f32 %v3624, %v3932
      %v4015 = vadd.f32 %v3625, %v3937
      %v4016 = vadd.f32 %v3626, %v3942
      %v4017 = vadd.f32 %v3627, %v3947
      %v4018 = vadd.f32 %v3628, %v3952
      %v4019 = vadd.f32 %v3629, %v3957
      %v4020 = vadd.f32 %v3630, %v3962
      %v4021 = vadd.f32 %v3631, %v3967
      %v4022 = vadd.f32 %v3632, %v3972
      %v4023 = vadd.f32 %v3633, %v3977
      %v4024 = vadd.f32 %v3634, %v3982
      %v4025 = vadd.f32 %v3635, %v3987
      %v4026 = vadd.f32 %v3636, %v3992
      %4027 = vst.msk [vmem:[%s274] sm:$0xff] %vm547, %v3995
      %4028 = vst.msk [vmem:[%s274 + $0x8] sm:$0xff] %vm547, %v3996
      %4029 = vst.msk [vmem:[%s274 + $0x10] sm:$0xff] %vm547, %v3997
      %4030 = vst.msk [vmem:[%s274 + $0x18] sm:$0xff] %vm547, %v3998
      %4031 = vst.msk [vmem:[%s274 + $0x20] sm:$0xff] %vm547, %v3999
      %4032 = vst.msk [vmem:[%s274 + $0x28] sm:$0xff] %vm547, %v4000
      %4033 = vst.msk [vmem:[%s274 + $0x30] sm:$0xff] %vm547, %v4001
      %4034 = vst.msk [vmem:[%s274 + $0x38] sm:$0xff] %vm547, %v4002
      %4035 = vst.msk [vmem:[%s274 + $0x40] sm:$0xff] %vm547, %v4003
      %4036 = vst.msk [vmem:[%s274 + $0x48] sm:$0xff] %vm547, %v4004
      %4037 = vst.msk [vmem:[%s274 + $0x50] sm:$0xff] %vm547, %v4005
      %4038 = vst.msk [vmem:[%s274 + $0x58] sm:$0xff] %vm547, %v4006
      %4039 = vst.msk [vmem:[%s274 + $0x60] sm:$0xff] %vm547, %v4007
      %4040 = vst.msk [vmem:[%s274 + $0x68] sm:$0xff] %vm547, %v4008
      %4041 = vst.msk [vmem:[%s274 + $0x70] sm:$0xff] %vm547, %v4009
      %4042 = vst.msk [vmem:[%s274 + $0x78] sm:$0xff] %vm547, %v4010
      %4043 = vst.msk [vmem:[%s274 + $0x80] sm:$0xff] %vm547, %v4011
      %4044 = vst.msk [vmem:[%s274 + $0x88] sm:$0xff] %vm547, %v4012
      %4045 = vst.msk [vmem:[%s274 + $0x90] sm:$0xff] %vm547, %v4013
      %4046 = vst.msk [vmem:[%s274 + $0x98] sm:$0xff] %vm547, %v4014
      %4047 = vst.msk [vmem:[%s274 + $0xa0] sm:$0xff] %vm547, %v4015
      %4048 = vst.msk [vmem:[%s274 + $0xa8] sm:$0xff] %vm547, %v4016
      %4049 = vst.msk [vmem:[%s274 + $0xb0] sm:$0xff] %vm547, %v4017
      %4050 = vst.msk [vmem:[%s274 + $0xb8] sm:$0xff] %vm547, %v4018
      %4051 = vst.msk [vmem:[%s274 + $0xc0] sm:$0xff] %vm547, %v4019
      %4052 = vst.msk [vmem:[%s274 + $0xc8] sm:$0xff] %vm547, %v4020
      %4053 = vst.msk [vmem:[%s274 + $0xd0] sm:$0xff] %vm547, %v4021
      %4054 = vst.msk [vmem:[%s274 + $0xd8] sm:$0xff] %vm547, %v4022
      %4055 = vst.msk [vmem:[%s274 + $0xe0] sm:$0xff] %vm547, %v4023
      %4056 = vst.msk [vmem:[%s274 + $0xe8] sm:$0xff] %vm547, %v4024
      %4057 = vst.msk [vmem:[%s274 + $0xf0] sm:$0xff] %vm547, %v4025
      %4058 = vst.msk [vmem:[%s274 + $0xf8] sm:$0xff] %vm547, %v4026
      %v4059 = vld [vmem:[%s6] sm:$0x1]
      %v4060 = vsel %vm547, %v3995, 0.0
      %v4061 = vsel %vm547, %v3996, 0.0
      %v4062 = vadd.f32 %v4060, %v4061
      %v4063 = vsel %vm547, %v3997, 0.0
      %v4064 = vadd.f32 %v4062, %v4063
      %v4065 = vsel %vm547, %v3998, 0.0
      %v4066 = vadd.f32 %v4064, %v4065
      %v4067 = vsel %vm547, %v3999, 0.0
      %v4068 = vadd.f32 %v4066, %v4067
      %v4069 = vsel %vm547, %v4000, 0.0
      %v4070 = vadd.f32 %v4068, %v4069
      %v4071 = vsel %vm547, %v4001, 0.0
      %v4072 = vadd.f32 %v4070, %v4071
      %v4073 = vsel %vm547, %v4002, 0.0
      %v4074 = vadd.f32 %v4072, %v4073
      %v4075 = vsel %vm547, %v4003, 0.0
      %v4076 = vadd.f32 %v4074, %v4075
      %v4077 = vsel %vm547, %v4004, 0.0
      %v4078 = vadd.f32 %v4076, %v4077
      %v4079 = vsel %vm547, %v4005, 0.0
      %v4080 = vadd.f32 %v4078, %v4079
      %v4081 = vsel %vm547, %v4006, 0.0
      %v4082 = vadd.f32 %v4080, %v4081
      %v4083 = vsel %vm547, %v4007, 0.0
      %v4084 = vadd.f32 %v4082, %v4083
      %v4085 = vsel %vm547, %v4008, 0.0
      %v4086 = vadd.f32 %v4084, %v4085
      %v4087 = vsel %vm547, %v4009, 0.0
      %v4088 = vadd.f32 %v4086, %v4087
      %v4089 = vsel %vm547, %v4010, 0.0
      %v4090 = vadd.f32 %v4088, %v4089
      %v4091 = vsel %vm547, %v4011, 0.0
      %v4092 = vadd.f32 %v4090, %v4091
      %v4093 = vsel %vm547, %v4012, 0.0
      %v4094 = vadd.f32 %v4092, %v4093
      %v4095 = vsel %vm547, %v4013, 0.0
      %v4096 = vadd.f32 %v4094, %v4095
      %v4097 = vsel %vm547, %v4014, 0.0
      %v4098 = vadd.f32 %v4096, %v4097
      %v4099 = vsel %vm547, %v4015, 0.0
      %v4100 = vadd.f32 %v4098, %v4099
      %v4101 = vsel %vm547, %v4016, 0.0
      %v4102 = vadd.f32 %v4100, %v4101
      %v4103 = vsel %vm547, %v4017, 0.0
      %v4104 = vadd.f32 %v4102, %v4103
      %v4105 = vsel %vm547, %v4018, 0.0
      %v4106 = vadd.f32 %v4104, %v4105
      %v4107 = vsel %vm547, %v4019, 0.0
      %v4108 = vadd.f32 %v4106, %v4107
      %v4109 = vsel %vm547, %v4020, 0.0
      %v4110 = vadd.f32 %v4108, %v4109
      %v4111 = vsel %vm547, %v4021, 0.0
      %v4112 = vadd.f32 %v4110, %v4111
      %v4113 = vsel %vm547, %v4022, 0.0
      %v4114 = vadd.f32 %v4112, %v4113
      %v4115 = vsel %vm547, %v4023, 0.0
      %v4116 = vadd.f32 %v4114, %v4115
      %v4117 = vsel %vm547, %v4024, 0.0
      %v4118 = vadd.f32 %v4116, %v4117
      %v4119 = vsel %vm547, %v4025, 0.0
      %v4120 = vadd.f32 %v4118, %v4119
      %v4121 = vsel %vm547, %v4026, 0.0
      %v4122 = vadd.f32 %v4120, %v4121
      %v4123 = vrot.slane %v4122, 4
      %v4124 = vadd.f32 %v4122, %v4123
      %v4125 = vrot.slane %v4124, 2
      %v4126 = vadd.f32 %v4124, %v4125
      %v4127 = vrot.slane %v4126, 1
      %v4128 = vadd.f32 %v4126, %v4127
      %v4129 = vadd.f32 %v4059, %v4128
      %vm4130 = vcmask 24576
      %4131 = vst.msk [vmem:[%s6] sm:$0x1] %vm4130, %v4129
      %v4132 = vld [vmem:[%s7] sm:$0x1]
      %v4133 = vmul.f32 %v3995, %v3995
      %v4134 = vmul.f32 %v3996, %v3996
      %v4135 = vmul.f32 %v3997, %v3997
      %v4136 = vmul.f32 %v3998, %v3998
      %v4137 = vmul.f32 %v3999, %v3999
      %v4138 = vmul.f32 %v4000, %v4000
      %v4139 = vmul.f32 %v4001, %v4001
      %v4140 = vmul.f32 %v4002, %v4002
      %v4141 = vmul.f32 %v4003, %v4003
      %v4142 = vmul.f32 %v4004, %v4004
      %v4143 = vmul.f32 %v4005, %v4005
      %v4144 = vmul.f32 %v4006, %v4006
      %v4145 = vmul.f32 %v4007, %v4007
      %v4146 = vmul.f32 %v4008, %v4008
      %v4147 = vmul.f32 %v4009, %v4009
      %v4148 = vmul.f32 %v4010, %v4010
      %v4149 = vmul.f32 %v4011, %v4011
      %v4150 = vmul.f32 %v4012, %v4012
      %v4151 = vmul.f32 %v4013, %v4013
      %v4152 = vmul.f32 %v4014, %v4014
      %v4153 = vmul.f32 %v4015, %v4015
      %v4154 = vmul.f32 %v4016, %v4016
      %v4155 = vmul.f32 %v4017, %v4017
      %v4156 = vmul.f32 %v4018, %v4018
      %v4157 = vmul.f32 %v4019, %v4019
      %v4158 = vmul.f32 %v4020, %v4020
      %v4159 = vmul.f32 %v4021, %v4021
      %v4160 = vmul.f32 %v4022, %v4022
      %v4161 = vmul.f32 %v4023, %v4023
      %v4162 = vmul.f32 %v4024, %v4024
      %v4163 = vmul.f32 %v4025, %v4025
      %v4164 = vmul.f32 %v4026, %v4026
      %v4165 = vsel %vm547, %v4133, 0.0
      %v4166 = vsel %vm547, %v4134, 0.0
      %v4167 = vadd.f32 %v4165, %v4166
      %v4168 = vsel %vm547, %v4135, 0.0
      %v4169 = vadd.f32 %v4167, %v4168
      %v4170 = vsel %vm547, %v4136, 0.0
      %v4171 = vadd.f32 %v4169, %v4170
      %v4172 = vsel %vm547, %v4137, 0.0
      %v4173 = vadd.f32 %v4171, %v4172
      %v4174 = vsel %vm547, %v4138, 0.0
      %v4175 = vadd.f32 %v4173, %v4174
      %v4176 = vsel %vm547, %v4139, 0.0
      %v4177 = vadd.f32 %v4175, %v4176
      %v4178 = vsel %vm547, %v4140, 0.0
      %v4179 = vadd.f32 %v4177, %v4178
      %v4180 = vsel %vm547, %v4141, 0.0
      %v4181 = vadd.f32 %v4179, %v4180
      %v4182 = vsel %vm547, %v4142, 0.0
      %v4183 = vadd.f32 %v4181, %v4182
      %v4184 = vsel %vm547, %v4143, 0.0
      %v4185 = vadd.f32 %v4183, %v4184
      %v4186 = vsel %vm547, %v4144, 0.0
      %v4187 = vadd.f32 %v4185, %v4186
      %v4188 = vsel %vm547, %v4145, 0.0
      %v4189 = vadd.f32 %v4187, %v4188
      %v4190 = vsel %vm547, %v4146, 0.0
      %v4191 = vadd.f32 %v4189, %v4190
      %v4192 = vsel %vm547, %v4147, 0.0
      %v4193 = vadd.f32 %v4191, %v4192
      %v4194 = vsel %vm547, %v4148, 0.0
      %v4195 = vadd.f32 %v4193, %v4194
      %v4196 = vsel %vm547, %v4149, 0.0
      %v4197 = vadd.f32 %v4195, %v4196
      %v4198 = vsel %vm547, %v4150, 0.0
      %v4199 = vadd.f32 %v4197, %v4198
      %v4200 = vsel %vm547, %v4151, 0.0
      %v4201 = vadd.f32 %v4199, %v4200
      %v4202 = vsel %vm547, %v4152, 0.0
      %v4203 = vadd.f32 %v4201, %v4202
      %v4204 = vsel %vm547, %v4153, 0.0
      %v4205 = vadd.f32 %v4203, %v4204
      %v4206 = vsel %vm547, %v4154, 0.0
      %v4207 = vadd.f32 %v4205, %v4206
      %v4208 = vsel %vm547, %v4155, 0.0
      %v4209 = vadd.f32 %v4207, %v4208
      %v4210 = vsel %vm547, %v4156, 0.0
      %v4211 = vadd.f32 %v4209, %v4210
      %v4212 = vsel %vm547, %v4157, 0.0
      %v4213 = vadd.f32 %v4211, %v4212
      %v4214 = vsel %vm547, %v4158, 0.0
      %v4215 = vadd.f32 %v4213, %v4214
      %v4216 = vsel %vm547, %v4159, 0.0
      %v4217 = vadd.f32 %v4215, %v4216
      %v4218 = vsel %vm547, %v4160, 0.0
      %v4219 = vadd.f32 %v4217, %v4218
      %v4220 = vsel %vm547, %v4161, 0.0
      %v4221 = vadd.f32 %v4219, %v4220
      %v4222 = vsel %vm547, %v4162, 0.0
      %v4223 = vadd.f32 %v4221, %v4222
      %v4224 = vsel %vm547, %v4163, 0.0
      %v4225 = vadd.f32 %v4223, %v4224
      %v4226 = vsel %vm547, %v4164, 0.0
      %v4227 = vadd.f32 %v4225, %v4226
      %v4228 = vrot.slane %v4227, 4
      %v4229 = vadd.f32 %v4227, %v4228
      %v4230 = vrot.slane %v4229, 2
      %v4231 = vadd.f32 %v4229, %v4230
      %v4232 = vrot.slane %v4231, 1
      %v4233 = vadd.f32 %v4231, %v4232
      %v4234 = vadd.f32 %v4132, %v4233
      %4235 = vst.msk [vmem:[%s7] sm:$0x1] %vm4130, %v4234
      %p4236 = scmp.lt.s32.totalorder %s20, 1
      %s4237 = scalar_select %p4236, %s20, 1
      %s4238 = smul.addr %s4237, 32
      %s4239 = smul.addr %s4238, 8
      %s4240 = scalar_lea.vmem %s5, %s4239
      // Predicated region
      $region45: #{residual_block_pallas.3} parent=39 // pred_check
        %p4241 = pneg %p148
      $region46: #{residual_block_pallas.3} parent=39 // pred_check_branch
        %4243 = sbr.rel (%p4241) target = $region48
      $region47: #{residual_block_pallas.3} parent=39 // pred_region
        _
      $region48: #{residual_block_pallas.3} parent=39 // pred_fallthru
        _
      // Predicated region
      $region49: #{residual_block_pallas.3} parent=39 // pred_check
        %p4244 = pneg %p169
      $region50: #{residual_block_pallas.3} parent=39 // pred_check_branch
        %4246 = sbr.rel (%p4244) target = $region52
      $region51: #{residual_block_pallas.3} parent=39 // pred_region
        _
      $region52: #{residual_block_pallas.3} parent=39 // pred_fallthru
        _
      // Predicated region
      $region53: #{residual_block_pallas.3} parent=39 // pred_check
        %p4247 = pneg %p190
      $region54: #{residual_block_pallas.3} parent=39 // pred_check_branch
        %4249 = sbr.rel (%p4247) target = $region56
      $region55: #{residual_block_pallas.3} parent=39 // pred_region
        _
      $region56: #{residual_block_pallas.3} parent=39 // pred_fallthru
        _
      // Predicated region
      $region57: #{residual_block_pallas.3} parent=39 // pred_check
        %p4250 = pneg %p169
      $region58: #{residual_block_pallas.3} parent=39 // pred_check_branch
        %4252 = sbr.rel (%p4250) target = $region60
      $region59: #{residual_block_pallas.3} parent=39 // pred_region
        _
      $region60: #{residual_block_pallas.3} parent=39 // pred_fallthru
        _
      // Predicated region
      $region61: #{residual_block_pallas.3} parent=39 // pred_check
        %p4253 = pneg %p190
      $region62: #{residual_block_pallas.3} parent=39 // pred_check_branch
        %4255 = sbr.rel (%p4253) target = $region64
      $region63: #{residual_block_pallas.3} parent=39 // pred_region
        _
      $region64: #{residual_block_pallas.3} parent=39 // pred_fallthru
        _
    $region40: #{residual_block_pallas.3} parent=5 // pred_fallthru
      _
    %p4256 = scmp.le.s32.totalorder 2, %s15
    // Predicated region
    $region65: #{residual_block_pallas.3} parent=5 // pred_check
      %p4257 = pneg %p4256
    $region66: #{residual_block_pallas.3} parent=5 // pred_check_branch
      %4259 = sbr.rel (%p4257) target = $region68
    $region67: #{residual_block_pallas.3} parent=5 // pred_region
      %s4260 = ssub.s32 %s15, 2
      // Predicated region
      $region69: #{residual_block_pallas.3} parent=67 // pred_check
        %p4261 = pneg %p154
      $region70: #{residual_block_pallas.3} parent=67 // pred_check_branch
        %4263 = sbr.rel (%p4261) target = $region72
      $region71: #{residual_block_pallas.3} parent=67 // pred_region
        %p4264 = scmp.lt.s32.totalorder %s21, 1
        %s4265 = scalar_select %p4264, %s21, 1
        %s4266 = smul.addr %s4265, 32
        %s4267 = smul.addr %s4266, 8
        %s4268 = scalar_lea.vmem %s5, %s4267
      $region72: #{residual_block_pallas.3} parent=67 // pred_fallthru
        _
    $region68: #{residual_block_pallas.3} parent=5 // pred_fallthru
      _
  $region6: #{residual_block_pallas.3} parent=0 // loop_footer
    %s19 = sadd.s32 1, %s15
  $region7: #{residual_block_pallas.3} parent=0 // loop_footer_branch
    %14 = sbr.rel target = $region3
  $region8: #{residual_block_pallas.3} parent=0 // loop_exit
    _

// kernel: residual_block_pallas.4
$region0: #{residual_block_pallas.4}
  #allocation0 [shape = 'u32[]', space=smem, size = 0x4, offset = 0x4, fixed_abs, tag = 'smem constant byte address 0x4 - core index']
  #allocation1 [shape = 'u32[144,128]{1,0:T(1,128)}', space=vmem, size = 0x12000, scoped, tag = 'internal scratch']
  #allocation2 [shape = 'f32[18,18,4]{2,1,0:T(8,128)}', space=vmem, size = 0x36000, scoped, tag = 'scratch operand']
  #allocation3 [shape = 'f32[1]{0:T(128)S(6)}', space=smem, size = 0x200, scoped, tag = 'scoped memory for residual_block_pallas.4']
  %s0 = inlined_call_operand.vmem [shape: f32[2,16,16,4], index: 0, kind: input, shape index: {}]
  %s1 = inlined_call_operand.vmem [shape: f32[1,4], index: 1, kind: input, shape index: {}]
  %s2 = inlined_call_operand.vmem [shape: f32[1,4], index: 2, kind: input, shape index: {}]
  %s3 = inlined_call_operand.<no memory space> [shape: f32[1], index: 3, kind: input, shape index: {}]
  %s4 = inlined_call_operand.vmem [shape: f32[9,4,4], index: 4, kind: input, shape index: {}]
  %s5 = inlined_call_operand.vmem [shape: f32[2,16,16,4], index: 5, kind: output, shape index: {0}]
  %s6 = inlined_call_operand.vmem [shape: f32[1,4], index: 6, kind: output, shape index: {1}]
  %s7 = inlined_call_operand.vmem [shape: f32[1,4], index: 7, kind: output, shape index: {2}]
  %8 = xla_tuple %s5, %s6, %s7
  %s9 = sld [smem:[#allocation0]]
  $region73: #{residual_block_pallas.4} parent=0
    _
  %s11 = ssub.s32 1, %s9
  %s12 = scalar_select 0, %s11, %s9
  %13 = sst [smem:[#allocation3]] %s3
  loop: start=0, step=1, limit=4
  $region2: #{residual_block_pallas.4} parent=0 // loop_pre_header
    _
  $region3: #{residual_block_pallas.4} parent=0 // loop_header
    %s15 = sphi 0, %s19
    %p16 = scmp.ge.s32.totalorder %s15, 4
    %s25 = sphi 0, %s27
    %s28 = sphi 0, %s25
    %s29 = sphi 0, %s28
    %s45 = sphi 0, %s29
    %s49 = sphi 0, %s49
    %s51 = sphi 0, %s49
    %s52 = sphi 0, %s51
    %s66 = sphi 0, %s52
    %s70 = sphi 0, %s70
    %s72 = sphi 0, %s70
    %s73 = sphi 0, %s72
    %s87 = sphi 0, %s73
    %s91 = sphi 0, %s91
    %s93 = sphi 0, %s91
    %s94 = sphi 0, %s93
    %s108 = sphi 0, %s94
    %s112 = sphi 0, %s112
    %s114 = sphi 0, %s112
    %s115 = sphi 0, %s114
    %s129 = sphi 0, %s115
    %s135 = sphi 0, %s137
    %s138 = sphi 0, %s135
    %s139 = sphi 0, %s138
    %s155 = sphi 0, %s139
    %s159 = sphi 0, %s159
    %s161 = sphi 0, %s159
    %s162 = sphi 0, %s161
    %s176 = sphi 0, %s162
    %s180 = sphi 0, %s180
    %s182 = sphi 0, %s180
    %s183 = sphi 0, %s182
    %s197 = sphi 0, %s183
  $region4: #{residual_block_pallas.4} parent=0 // loop_header_branch
    %18 = sbr.rel (%p16) target = $region8
  $region5: #{residual_block_pallas.4} parent=0 // loop_body
    %s20 = ssub.s32 %s15, 1
    %s21 = ssub.s32 %s15, 2
    %s22 = sadd.s32 %s15, 1
    %s23 = ssub.s32 %s15, %s22
    %p24 = scmp.eq.s32.totalorder %s23, 0
    %s26 = sadd.s32 %s25, 1
    %s27 = scalar_select %p24, %s25, %s26
    %p30 = pneg %p24
    %p31 = scmp.eq.s32.totalorder %s15, 1
    %p32 = por %p30, %p31
    %p33 = scmp.ne.s32.totalorder %s25, %s28
    %p34 = scmp.eq.s32.totalorder %s15, 0
    %p35 = por %p33, %p34
    %p36 = scmp.ne.s32.totalorder %s25, %s28
    %p37 = scmp.eq.s32.totalorder %s20, 1
    %p38 = por %p36, %p37
    %p39 = scmp.ne.s32.totalorder %s28, %s29
    %p40 = scmp.eq.s32.totalorder %s20, 0
    %p41 = por %p39, %p40
    %p42 = scmp.ne.s32.totalorder %s28, %s29
    %p43 = scmp.eq.s32.totalorder %s21, 1
    %p44 = por %p42, %p43
    %p46 = scmp.ne.s32.totalorder %s29, %s45
    %p47 = scmp.eq.s32.totalorder %s21, 0
    %p48 = por %p46, %p47
    %s50 = sadd.s32 %s49, 1
    %p53 = scmp.eq.s32.totalorder %s15, 1
    %p54 = scmp.ne.s32.totalorder %s49, %s51
    %p55 = scmp.eq.s32.totalorder %s15, 0
    %p56 = por %p54, %p55
    %p57 = scmp.ne.s32.totalorder %s49, %s51
    %p58 = scmp.eq.s32.totalorder %s20, 1
    %p59 = por %p57, %p58
    %p60 = scmp.ne.s32.totalorder %s51, %s52
    %p61 = scmp.eq.s32.totalorder %s20, 0
    %p62 = por %p60, %p61
    %p63 = scmp.ne.s32.totalorder %s51, %s52
    %p64 = scmp.eq.s32.totalorder %s21, 1
    %p65 = por %p63, %p64
    %p67 = scmp.ne.s32.totalorder %s52, %s66
    %p68 = scmp.eq.s32.totalorder %s21, 0
    %p69 = por %p67, %p68
    %s71 = sadd.s32 %s70, 1
    %p74 = scmp.eq.s32.totalorder %s15, 1
    %p75 = scmp.ne.s32.totalorder %s70, %s72
    %p76 = scmp.eq.s32.totalorder %s15, 0
    %p77 = por %p75, %p76
    %p78 = scmp.ne.s32.totalorder %s70, %s72
    %p79 = scmp.eq.s32.totalorder %s20, 1
    %p80 = por %p78, %p79
    %p81 = scmp.ne.s32.totalorder %s72, %s73
    %p82 = scmp.eq.s32.totalorder %s20, 0
    %p83 = por %p81, %p82
    %p84 = scmp.ne.s32.totalorder %s72, %s73
    %p85 = scmp.eq.s32.totalorder %s21, 1
    %p86 = por %p84, %p85
    %p88 = scmp.ne.s32.totalorder %s73, %s87
    %p89 = scmp.eq.s32.totalorder %s21, 0
    %p90 = por %p88, %p89
    %s92 = sadd.s32 %s91, 1
    %p95 = scmp.eq.s32.totalorder %s15, 1
    %p96 = scmp.ne.s32.totalorder %s91, %s93
    %p97 = scmp.eq.s32.totalorder %s15, 0
    %p98 = por %p96, %p97
    %p99 = scmp.ne.s32.totalorder %s91, %s93
    %p100 = scmp.eq.s32.totalorder %s20, 1
    %p101 = por %p99, %p100
    %p102 = scmp.ne.s32.totalorder %s93, %s94
    %p103 = scmp.eq.s32.totalorder %s20, 0
    %p104 = por %p102, %p103
    %p105 = scmp.ne.s32.totalorder %s93, %s94
    %p106 = scmp.eq.s32.totalorder %s21, 1
    %p107 = por %p105, %p106
    %p109 = scmp.ne.s32.totalorder %s94, %s108
    %p110 = scmp.eq.s32.totalorder %s21, 0
    %p111 = por %p109, %p110
    %s113 = sadd.s32 %s112, 1
    %p116 = scmp.eq.s32.totalorder %s15, 1
    %p117 = scmp.ne.s32.totalorder %s112, %s114
    %p118 = scmp.eq.s32.totalorder %s15, 0
    %p119 = por %p117, %p118
    %p120 = scmp.ne.s32.totalorder %s112, %s114
    %p121 = scmp.eq.s32.totalorder %s20, 1
    %p122 = por %p120, %p121
    %p123 = scmp.ne.s32.totalorder %s114, %s115
    %p124 = scmp.eq.s32.totalorder %s20, 0
    %p125 = por %p123, %p124
    %p126 = scmp.ne.s32.totalorder %s114, %s115
    %p127 = scmp.eq.s32.totalorder %s21, 1
    %p128 = por %p126, %p127
    %p130 = scmp.ne.s32.totalorder %s115, %s129
    %p131 = scmp.eq.s32.totalorder %s21, 0
    %p132 = por %p130, %p131
    %s133 = ssub.s32 %s15, %s22
    %p134 = scmp.eq.s32.totalorder %s133, 0
    %s136 = sadd.s32 %s135, 1
    %s137 = scalar_select %p134, %s135, %s136
    %p140 = pneg %p134
    %p141 = scmp.eq.s32.totalorder %s15, 1
    %p142 = por %p140, %p141
    %p143 = scmp.ne.s32.totalorder %s135, %s138
    %p144 = scmp.eq.s32.totalorder %s15, 0
    %p145 = por %p143, %p144
    %p146 = scmp.ne.s32.totalorder %s135, %s138
    %p147 = scmp.eq.s32.totalorder %s20, 1
    %p148 = por %p146, %p147
    %p149 = scmp.ne.s32.totalorder %s138, %s139
    %p150 = scmp.eq.s32.totalorder %s20, 0
    %p151 = por %p149, %p150
    %p152 = scmp.ne.s32.totalorder %s138, %s139
    %p153 = scmp.eq.s32.totalorder %s21, 1
    %p154 = por %p152, %p153
    %p156 = scmp.ne.s32.totalorder %s139, %s155
    %p157 = scmp.eq.s32.totalorder %s21, 0
    %p158 = por %p156, %p157
    %s160 = sadd.s32 %s159, 1
    %p163 = scmp.eq.s32.totalorder %s15, 1
    %p164 = scmp.ne.s32.totalorder %s159, %s161
    %p165 = scmp.eq.s32.totalorder %s15, 0
    %p166 = por %p164, %p165
    %p167 = scmp.ne.s32.totalorder %s159, %s161
    %p168 = scmp.eq.s32.totalorder %s20, 1
    %p169 = por %p167, %p168
    %p170 = scmp.ne.s32.totalorder %s161, %s162
    %p171 = scmp.eq.s32.totalorder %s20, 0
    %p172 = por %p170, %p171
    %p173 = scmp.ne.s32.totalorder %s161, %s162
    %p174 = scmp.eq.s32.totalorder %s21, 1
    %p175 = por %p173, %p174
    %p177 = scmp.ne.s32.totalorder %s162, %s176
    %p178 = scmp.eq.s32.totalorder %s21, 0
    %p179 = por %p177, %p178
    %s181 = sadd.s32 %s180, 1
    %p184 = scmp.eq.s32.totalorder %s15, 1
    %p185 = scmp.ne.s32.totalorder %s180, %s182
    %p186 = scmp.eq.s32.totalorder %s15, 0
    %p187 = por %p185, %p186
    %p188 = scmp.ne.s32.totalorder %s180, %s182
    %p189 = scmp.eq.s32.totalorder %s20, 1
    %p190 = por %p188, %p189
    %p191 = scmp.ne.s32.totalorder %s182, %s183
    %p192 = scmp.eq.s32.totalorder %s20, 0
    %p193 = por %p191, %p192
    %p194 = scmp.ne.s32.totalorder %s182, %s183
    %p195 = scmp.eq.s32.totalorder %s21, 1
    %p196 = por %p194, %p195
    %p198 = scmp.ne.s32.totalorder %s183, %s197
    %p199 = scmp.eq.s32.totalorder %s21, 0
    %p200 = por %p198, %p199
    %p201 = scmp.le.s32.totalorder 1, %s15
    %p202 = scmp.lt.s32.totalorder %s15, 3
    %p203 = pnand %p201, %p202
    %p204 = pneg %p203
    // Predicated region
    $region9: #{residual_block_pallas.4} parent=5 // pred_check
      _
    $region10: #{residual_block_pallas.4} parent=5 // pred_check_branch
      %206 = sbr.rel (%p203) target = $region12
    $region11: #{residual_block_pallas.4} parent=5 // pred_region
      %s207 = ssub.s32 %s15, 1
      // Predicated region
      $region13: #{residual_block_pallas.4} parent=11 // pred_check
        %p208 = pneg %p62
      $region14: #{residual_block_pallas.4} parent=11 // pred_check_branch
        %210 = sbr.rel (%p208) target = $region16
      $region15: #{residual_block_pallas.4} parent=11 // pred_region
        _
      $region16: #{residual_block_pallas.4} parent=11 // pred_fallthru
        _
      // Predicated region
      $region17: #{residual_block_pallas.4} parent=11 // pred_check
        %p211 = pneg %p83
      $region18: #{residual_block_pallas.4} parent=11 // pred_check_branch
        %213 = sbr.rel (%p211) target = $region20
      $region19: #{residual_block_pallas.4} parent=11 // pred_region
        _
      $region20: #{residual_block_pallas.4} parent=11 // pred_fallthru
        _
      // Predicated region
      $region21: #{residual_block_pallas.4} parent=11 // pred_check
        %p214 = pneg %p104
      $region22: #{residual_block_pallas.4} parent=11 // pred_check_branch
        %216 = sbr.rel (%p214) target = $region24
      $region23: #{residual_block_pallas.4} parent=11 // pred_region
        _
      $region24: #{residual_block_pallas.4} parent=11 // pred_fallthru
        _
      // Predicated region
      $region25: #{residual_block_pallas.4} parent=11 // pred_check
        %p217 = pneg %p125
      $region26: #{residual_block_pallas.4} parent=11 // pred_check_branch
        %219 = sbr.rel (%p217) target = $region28
      $region27: #{residual_block_pallas.4} parent=11 // pred_region
        _
      $region28: #{residual_block_pallas.4} parent=11 // pred_fallthru
        _
    $region12: #{residual_block_pallas.4} parent=5 // pred_fallthru
      _
    %p220 = scmp.lt.s32.totalorder %s15, 2
    // Predicated region
    $region29: #{residual_block_pallas.4} parent=5 // pred_check
      %p221 = pneg %p220
    $region30: #{residual_block_pallas.4} parent=5 // pred_check_branch
      %223 = sbr.rel (%p221) target = $region32
    $region31: #{residual_block_pallas.4} parent=5 // pred_region
      // Predicated region
      $region33: #{residual_block_pallas.4} parent=31 // pred_check
        %p224 = pneg %p35
      $region34: #{residual_block_pallas.4} parent=31 // pred_check_branch
        %226 = sbr.rel (%p224) target = $region36
      $region35: #{residual_block_pallas.4} parent=31 // pred_region
        %p227 = scmp.lt.s32.totalorder %s15, 1
        %s228 = scalar_select %p227, %s15, 1
        %s229 = smul.addr %s228, 32
        %s230 = smul.addr %s229, 8
        %s231 = scalar_lea.vmem %s0, %s230
      $region36: #{residual_block_pallas.4} parent=31 // pred_fallthru
        _
    $region32: #{residual_block_pallas.4} parent=5 // pred_fallthru
      _
    %p232 = scmp.le.s32.totalorder 1, %s15
    %p233 = scmp.lt.s32.totalorder %s15, 3
    %p234 = pnand %p232, %p233
    %p235 = pneg %p234
    // Predicated region
    $region37: #{residual_block_pallas.4} parent=5 // pred_check
      _
    $region38: #{residual_block_pallas.4} parent=5 // pred_check_branch
      %237 = sbr.rel (%p234) target = $region40
    $region39: #{residual_block_pallas.4} parent=5 // pred_region
      %s238 = ssub.s32 %s15, 1
      %p239 = scmp.lt.s32.totalorder %s20, 1
      %s240 = scalar_select %p239, %s20, 1
      %s241 = smul.addr %s240, 32
      %s242 = smul.addr %s241, 8
      %s243 = scalar_lea.vmem %s0, %s242
      %p244 = pneg %p41
      %p245 = pneg %p38
      %p246 = pneg %p62
      %p247 = pneg %p59
      %p248 = pneg %p83
      %p249 = pneg %p80
      %p250 = pneg %p104
      %p251 = pneg %p101
      %p252 = pneg %p125
      %p253 = pneg %p122
      %p254 = pneg %p151
      %p255 = pneg %p148
      %p256 = scmp.lt.s32.totalorder %s20, 1
      %s257 = scalar_select %p256, %s20, 1
      %s258 = smul.addr %s257, 32
      %s259 = smul.addr %s258, 8
      %s260 = scalar_lea.vmem %s5, %s259
      %p261 = pneg %p172
      %p262 = pneg %p169
      %p263 = pneg %p193
      %p264 = pneg %p190
      %p265 = scmp.lt.s32.totalorder %s20, 1
      %s266 = scalar_select %p265, %s20, 1
      %s267 = smul.addr %s266, 32
      %s268 = smul.addr %s267, 8
      %s269 = scalar_lea.vmem %s0, %s268
      %p270 = scmp.lt.s32.totalorder %s20, 1
      %s271 = scalar_select %p270, %s20, 1
      %s272 = smul.addr %s271, 32
      %s273 = smul.addr %s272, 8
      %s274 = scalar_lea.vmem %s5, %s273
      %p275 = scmp.eq.s32.totalorder %s20, 0
      // Predicated region
      $region41: #{residual_block_pallas.4} parent=39 // pred_check
        %p276 = pneg %p275
      $region42: #{residual_block_pallas.4} parent=39 // pred_check_branch
        %278 = sbr.rel (%p276) target = $region44
      $region43: #{residual_block_pallas.4} parent=39 // pred_region
        %vm279 = vcmask 24576
        %280 = vst.msk [vmem:[%s6] sm:$0x1] %vm279, 0.0
        %281 = vst.msk [vmem:[%s7] sm:$0x1] %vm279, 0.0
        %vm282 = vcmask 31744
        %283 = vst.msk [vmem:[#allocation2] sm:$0xff] %vm282, 0.0
        %284 = vst.msk [vmem:[#allocation2 + $0x8] sm:$0xff] %vm282, 0.0
        %vm285 = vcmask 25600
        %286 = vst.msk [vmem:[#allocation2 + $0x10] sm:$0x3] %vm285, 0.0
        %287 = vst.msk [vmem:[#allocation2 + $0x18] sm:$0xff] %vm282, 0.0
        %288 = vst.msk [vmem:[#allocation2 + $0x20] sm:$0xff] %vm282, 0.0
        %289 = vst.msk [vmem:[#allocation2 + $0x28] sm:$0x3] %vm285, 0.0
        %290 = vst.msk [vmem:[#allocation2 + $0x30] sm:$0xff] %vm282, 0.0
        %291 = vst.msk [vmem:[#allocation2 + $0x38] sm:$0xff] %vm282, 0.0
        %292 = vst.msk [vmem:[#allocation2 + $0x40] sm:$0x3] %vm285, 0.0
        %293 = vst.msk [vmem:[#allocation2 + $0x48] sm:$0xff] %vm282, 0.0
        %294 = vst.msk [vmem:[#allocation2 + $0x50] sm:$0xff] %vm282, 0.0
        %295 = vst.msk [vmem:[#allocation2 + $0x58] sm:$0x3] %vm285, 0.0
        %296 = vst.msk [vmem:[#allocation2 + $0x60] sm:$0xff] %vm282, 0.0
        %297 = vst.msk [vmem:[#allocation2 + $0x68] sm:$0xff] %vm282, 0.0
        %298 = vst.msk [vmem:[#allocation2 + $0x70] sm:$0x3] %vm285, 0.0
        %299 = vst.msk [vmem:[#allocation2 + $0x78] sm:$0xff] %vm282, 0.0
        %300 = vst.msk [vmem:[#allocation2 + $0x80] sm:$0xff] %vm282, 0.0
        %301 = vst.msk [vmem:[#allocation2 + $0x88] sm:$0x3] %vm285, 0.0
        %302 = vst.msk [vmem:[#allocation2 + $0x90] sm:$0xff] %vm282, 0.0
        %303 = vst.msk [vmem:[#allocation2 + $0x98] sm:$0xff] %vm282, 0.0
        %304 = vst.msk [vmem:[#allocation2 + $0xa0] sm:$0x3] %vm285, 0.0
        %305 = vst.msk [vmem:[#allocation2 + $0xa8] sm:$0xff] %vm282, 0.0
        %306 = vst.msk [vmem:[#allocation2 + $0xb0] sm:$0xff] %vm282, 0.0
        %307 = vst.msk [vmem:[#allocation2 + $0xb8] sm:$0x3] %vm285, 0.0
        %308 = vst.msk [vmem:[#allocation2 + $0xc0] sm:$0xff] %vm282, 0.0
        %309 = vst.msk [vmem:[#allocation2 + $0xc8] sm:$0xff] %vm282, 0.0
        %310 = vst.msk [vmem:[#allocation2 + $0xd0] sm:$0x3] %vm285, 0.0
        %311 = vst.msk [vmem:[#allocation2 + $0xd8] sm:$0xff] %vm282, 0.0
        %312 = vst.msk [vmem:[#allocation2 + $0xe0] sm:$0xff] %vm282, 0.0
        %313 = vst.msk [vmem:[#allocation2 + $0xe8] sm:$0x3] %vm285, 0.0
        %314 = vst.msk [vmem:[#allocation2 + $0xf0] sm:$0xff] %vm282, 0.0
        %315 = vst.msk [vmem:[#allocation2 + $0xf8] sm:$0xff] %vm282, 0.0
        %316 = vst.msk [vmem:[#allocation2 + $0x100] sm:$0x3] %vm285, 0.0
        %317 = vst.msk [vmem:[#allocation2 + $0x108] sm:$0xff] %vm282, 0.0
        %318 = vst.msk [vmem:[#allocation2 + $0x110] sm:$0xff] %vm282, 0.0
        %319 = vst.msk [vmem:[#allocation2 + $0x118] sm:$0x3] %vm285, 0.0
        %320 = vst.msk [vmem:[#allocation2 + $0x120] sm:$0xff] %vm282, 0.0
        %321 = vst.msk [vmem:[#allocation2 + $0x128] sm:$0xff] %vm282, 0.0
        %322 = vst.msk [vmem:[#allocation2 + $0x130] sm:$0x3] %vm285, 0.0
        %323 = vst.msk [vmem:[#allocation2 + $0x138] sm:$0xff] %vm282, 0.0
        %324 = vst.msk [vmem:[#allocation2 + $0x140] sm:$0xff] %vm282, 0.0
        %325 = vst.msk [vmem:[#allocation2 + $0x148] sm:$0x3] %vm285, 0.0
        %326 = vst.msk [vmem:[#allocation2 + $0x150] sm:$0xff] %vm282, 0.0
        %327 = vst.msk [vmem:[#allocation2 + $0x158] sm:$0xff] %vm282, 0.0
        %328 = vst.msk [vmem:[#allocation2 + $0x160] sm:$0x3] %vm285, 0.0
        %329 = vst.msk [vmem:[#allocation2 + $0x168] sm:$0xff] %vm282, 0.0
        %330 = vst.msk [vmem:[#allocation2 + $0x170] sm:$0xff] %vm282, 0.0
        %331 = vst.msk [vmem:[#allocation2 + $0x178] sm:$0x3] %vm285, 0.0
        %332 = vst.msk [vmem:[#allocation2 + $0x180] sm:$0xff] %vm282, 0.0
        %333 = vst.msk [vmem:[#allocation2 + $0x188] sm:$0xff] %vm282, 0.0
        %334 = vst.msk [vmem:[#allocation2 + $0x190] sm:$0x3] %vm285, 0.0
        %335 = vst.msk [vmem:[#allocation2 + $0x198] sm:$0xff] %vm282, 0.0
        %336 = vst.msk [vmem:[#allocation2 + $0x1a0] sm:$0xff] %vm282, 0.0
        %337 = vst.msk [vmem:[#allocation2 + $0x1a8] sm:$0x3] %vm285, 0.0
      $region44: #{residual_block_pallas.4} parent=39 // pred_fallthru
        _
      %v338 = vld [vmem:[%s269] sm:$0xff]
      %v339 = vld [vmem:[%s269 + $0x8] sm:$0xff]
      %v340 = vld [vmem:[%s269 + $0x10] sm:$0xff]
      %v341 = vld [vmem:[%s269 + $0x18] sm:$0xff]
      %v342 = vld [vmem:[%s269 + $0x20] sm:$0xff]
      %v343 = vld [vmem:[%s269 + $0x28] sm:$0xff]
      %v344 = vld [vmem:[%s269 + $0x30] sm:$0xff]
      %v345 = vld [vmem:[%s269 + $0x38] sm:$0xff]
      %v346 = vld [vmem:[%s269 + $0x40] sm:$0xff]
      %v347 = vld [vmem:[%s269 + $0x48] sm:$0xff]
      %v348 = vld [vmem:[%s269 + $0x50] sm:$0xff]
      %v349 = vld [vmem:[%s269 + $0x58] sm:$0xff]
      %v350 = vld [vmem:[%s269 + $0x60] sm:$0xff]
      %v351 = vld [vmem:[%s269 + $0x68] sm:$0xff]
      %v352 = vld [vmem:[%s269 + $0x70] sm:$0xff]
      %v353 = vld [vmem:[%s269 + $0x78] sm:$0xff]
      %v354 = vld [vmem:[%s269 + $0x80] sm:$0xff]
      %v355 = vld [vmem:[%s269 + $0x88] sm:$0xff]
      %v356 = vld [vmem:[%s269 + $0x90] sm:$0xff]
      %v357 = vld [vmem:[%s269 + $0x98] sm:$0xff]
      %v358 = vld [vmem:[%s269 + $0xa0] sm:$0xff]
      %v359 = vld [vmem:[%s269 + $0xa8] sm:$0xff]
      %v360 = vld [vmem:[%s269 + $0xb0] sm:$0xff]
      %v361 = vld [vmem:[%s269 + $0xb8] sm:$0xff]
      %v362 = vld [vmem:[%s269 + $0xc0] sm:$0xff]
      %v363 = vld [vmem:[%s269 + $0xc8] sm:$0xff]
      %v364 = vld [vmem:[%s269 + $0xd0] sm:$0xff]
      %v365 = vld [vmem:[%s269 + $0xd8] sm:$0xff]
      %v366 = vld [vmem:[%s269 + $0xe0] sm:$0xff]
      %v367 = vld [vmem:[%s269 + $0xe8] sm:$0xff]
      %v368 = vld [vmem:[%s269 + $0xf0] sm:$0xff]
      %v369 = vld [vmem:[%s269 + $0xf8] sm:$0xff]
      %v370 = vld [vmem:[%s1] sm:$0x1]
      %v372 = vlaneseq
      %v373 = vshrl.u32 %v372, 7
      %v374 = vsub.s32 0, %v373
      %v375 = vrot.slane %v370, %v374
      %v377 = vmul.f32 %v338, %v375
      %v378 = vmul.f32 %v339, %v375
      %v379 = vmul.f32 %v340, %v375
      %v380 = vmul.f32 %v341, %v375
      %v381 = vmul.f32 %v342, %v375
      %v382 = vmul.f32 %v343, %v375
      %v383 = vmul.f32 %v344, %v375
      %v384 = vmul.f32 %v345, %v375
      %v385 = vmul.f32 %v346, %v375
      %v386 = vmul.f32 %v347, %v375
      %v387 = vmul.f32 %v348, %v375
      %v388 = vmul.f32 %v349, %v375
      %v389 = vmul.f32 %v350, %v375
      %v390 = vmul.f32 %v351, %v375
      %v391 = vmul.f32 %v352, %v375
      %v392 = vmul.f32 %v353, %v375
      %v393 = vmul.f32 %v354, %v375
      %v394 = vmul.f32 %v355, %v375
      %v395 = vmul.f32 %v356, %v375
      %v396 = vmul.f32 %v357, %v375
      %v397 = vmul.f32 %v358, %v375
      %v398 = vmul.f32 %v359, %v375
      %v399 = vmul.f32 %v360, %v375
      %v400 = vmul.f32 %v361, %v375
      %v401 = vmul.f32 %v362, %v375
      %v402 = vmul.f32 %v363, %v375
      %v403 = vmul.f32 %v364, %v375
      %v404 = vmul.f32 %v365, %v375
      %v405 = vmul.f32 %v366, %v375
      %v406 = vmul.f32 %v367, %v375
      %v407 = vmul.f32 %v368, %v375
      %v408 = vmul.f32 %v369, %v375
      %v409 = vld [vmem:[%s2] sm:$0x1]
      %v411 = vlaneseq
      %v412 = vshrl.u32 %v411, 7
      %v413 = vsub.s32 0, %v412
      %v414 = vrot.slane %v409, %v413
      %v416 = vadd.f32 %v377, %v414
      %v417 = vadd.f32 %v378, %v414
      %v418 = vadd.f32 %v379, %v414
      %v419 = vadd.f32 %v380, %v414
      %v420 = vadd.f32 %v381, %v414
      %v421 = vadd.f32 %v382, %v414
      %v422 = vadd.f32 %v383, %v414
      %v423 = vadd.f32 %v384, %v414
      %v424 = vadd.f32 %v385, %v414
      %v425 = vadd.f32 %v386, %v414
      %v426 = vadd.f32 %v387, %v414
      %v427 = vadd.f32 %v388, %v414
      %v428 = vadd.f32 %v389, %v414
      %v429 = vadd.f32 %v390, %v414
      %v430 = vadd.f32 %v391, %v414
      %v431 = vadd.f32 %v392, %v414
      %v432 = vadd.f32 %v393, %v414
      %v433 = vadd.f32 %v394, %v414
      %v434 = vadd.f32 %v395, %v414
      %v435 = vadd.f32 %v396, %v414
      %v436 = vadd.f32 %v397, %v414
      %v437 = vadd.f32 %v398, %v414
      %v438 = vadd.f32 %v399, %v414
      %v439 = vadd.f32 %v400, %v414
      %v440 = vadd.f32 %v401, %v414
      %v441 = vadd.f32 %v402, %v414
      %v442 = vadd.f32 %v403, %v414
      %v443 = vadd.f32 %v404, %v414
      %v444 = vadd.f32 %v405, %v414
      %v445 = vadd.f32 %v406, %v414
      %v446 = vadd.f32 %v407, %v414
      %v447 = vadd.f32 %v408, %v414
      %s448 = sld [smem:[#allocation3]]
      %vm449 = vcmp.gt.f32.partialorder %v416, 0.0
      %vm450 = vcmp.gt.f32.partialorder %v417, 0.0
      %vm451 = vcmp.gt.f32.partialorder %v418, 0.0
      %vm452 = vcmp.gt.f32.partialorder %v419, 0.0
      %vm453 = vcmp.gt.f32.partialorder %v420, 0.0
      %vm454 = vcmp.gt.f32.partialorder %v421, 0.0
      %vm455 = vcmp.gt.f32.partialorder %v422, 0.0
      %vm456 = vcmp.gt.f32.partialorder %v423, 0.0
      %vm457 = vcmp.gt.f32.partialorder %v424, 0.0
      %vm458 = vcmp.gt.f32.partialorder %v425, 0.0
      %vm459 = vcmp.gt.f32.partialorder %v426, 0.0
      %vm460 = vcmp.gt.f32.partialorder %v427, 0.0
      %vm461 = vcmp.gt.f32.partialorder %v428, 0.0
      %vm462 = vcmp.gt.f32.partialorder %v429, 0.0
      %vm463 = vcmp.gt.f32.partialorder %v430, 0.0
      %vm464 = vcmp.gt.f32.partialorder %v431, 0.0
      %vm465 = vcmp.gt.f32.partialorder %v432, 0.0
      %vm466 = vcmp.gt.f32.partialorder %v433, 0.0
      %vm467 = vcmp.gt.f32.partialorder %v434, 0.0
      %vm468 = vcmp.gt.f32.partialorder %v435, 0.0
      %vm469 = vcmp.gt.f32.partialorder %v436, 0.0
      %vm470 = vcmp.gt.f32.partialorder %v437, 0.0
      %vm471 = vcmp.gt.f32.partialorder %v438, 0.0
      %vm472 = vcmp.gt.f32.partialorder %v439, 0.0
      %vm473 = vcmp.gt.f32.partialorder %v440, 0.0
      %vm474 = vcmp.gt.f32.partialorder %v441, 0.0
      %vm475 = vcmp.gt.f32.partialorder %v442, 0.0
      %vm476 = vcmp.gt.f32.partialorder %v443, 0.0
      %vm477 = vcmp.gt.f32.partialorder %v444, 0.0
      %vm478 = vcmp.gt.f32.partialorder %v445, 0.0
      %vm479 = vcmp.gt.f32.partialorder %v446, 0.0
      %vm480 = vcmp.gt.f32.partialorder %v447, 0.0
      %v481 = vstv %s448
      %v482 = vmul.f32 %v481, %v416
      %v483 = vmul.f32 %v481, %v417
      %v484 = vmul.f32 %v481, %v418
      %v485 = vmul.f32 %v481, %v419
      %v486 = vmul.f32 %v481, %v420
      %v487 = vmul.f32 %v481, %v421
      %v488 = vmul.f32 %v481, %v422
      %v489 = vmul.f32 %v481, %v423
      %v490 = vmul.f32 %v481, %v424
      %v491 = vmul.f32 %v481, %v425
      %v492 = vmul.f32 %v481, %v426
      %v493 = vmul.f32 %v481, %v427
      %v494 = vmul.f32 %v481, %v428
      %v495 = vmul.f32 %v481, %v429
      %v496 = vmul.f32 %v481, %v430
      %v497 = vmul.f32 %v481, %v431
      %v498 = vmul.f32 %v481, %v432
      %v499 = vmul.f32 %v481, %v433
      %v500 = vmul.f32 %v481, %v434
      %v501 = vmul.f32 %v481, %v435
      %v502 = vmul.f32 %v481, %v436
      %v503 = vmul.f32 %v481, %v437
      %v504 = vmul.f32 %v481, %v438
      %v505 = vmul.f32 %v481, %v439
      %v506 = vmul.f32 %v481, %v440
      %v507 = vmul.f32 %v481, %v441
      %v508 = vmul.f32 %v481, %v442
      %v509 = vmul.f32 %v481, %v443
      %v510 = vmul.f32 %v481, %v444
      %v511 = vmul.f32 %v481, %v445
      %v512 = vmul.f32 %v481, %v446
      %v513 = vmul.f32 %v481, %v447
      %v514 = vsel %vm449, %v416, %v482
      %v515 = vsel %vm450, %v417, %v483
      %v516 = vsel %vm451, %v418, %v484
      %v517 = vsel %vm452, %v419, %v485
      %v518 = vsel %vm453, %v420, %v486
      %v519 = vsel %vm454, %v421, %v487
      %v520 = vsel %vm455, %v422, %v488
      %v521 = vsel %vm456, %v423, %v489
      %v522 = vsel %vm457, %v424, %v490
      %v523 = vsel %vm458, %v425, %v491
      %v524 = vsel %vm459, %v426, %v492
      %v525 = vsel %vm460, %v427, %v493
      %v526 = vsel %vm461, %v428, %v494
      %v527 = vsel %vm462, %v429, %v495
      %v528 = vsel %vm463, %v430, %v496
      %v529 = vsel %vm464, %v431, %v497
      %v530 = vsel %vm465, %v432, %v498
      %v531 = vsel %vm466, %v433, %v499
      %v532 = vsel %vm467, %v434, %v500
      %v533 = vsel %vm468, %v435, %v501
      %v534 = vsel %vm469, %v436, %v502
      %v535 = vsel %vm470, %v437, %v503
      %v536 = vsel %vm471, %v438, %v504
      %v537 = vsel %vm472, %v439, %v505
      %v538 = vsel %vm473, %v440, %v506
      %v539 = vsel %vm474, %v441, %v507
      %v540 = vsel %vm475, %v442, %v508
      %v541 = vsel %vm476, %v443, %v509
      %v542 = vsel %vm477, %v444, %v510
      %v543 = vsel %vm478, %v445, %v511
      %v544 = vsel %vm479, %v446, %v512
      %v545 = vsel %vm480, %v447, %v513
      %s546 = scalar_lea.vmem [#allocation2], 24
      %vm547 = vcmask 31744
      %548 = vst.msk [vmem:[%s546 + $0x1] sm:$0xff] %vm547, %v514
      %549 = vst.msk [vmem:[%s546 + $0x9] sm:$0xff] %vm547, %v515
      %550 = vst.msk [vmem:[%s546 + $0x19] sm:$0xff] %vm547, %v516
      %551 = vst.msk [vmem:[%s546 + $0x21] sm:$0xff] %vm547, %v517
      %552 = vst.msk [vmem:[%s546 + $0x31] sm:$0xff] %vm547, %v518
      %553 = vst.msk [vmem:[%s546 + $0x39] sm:$0xff] %vm547, %v519
      %554 = vst.msk [vmem:[%s546 + $0x49] sm:$0xff] %vm547, %v520
      %555 = vst.msk [vmem:[%s546 + $0x51] sm:$0xff] %vm547, %v521
      %556 = vst.msk [vmem:[%s546 + $0x61] sm:$0xff] %vm547, %v522
      %557 = vst.msk [vmem:[%s546 + $0x69] sm:$0xff] %vm547, %v523
      %558 = vst.msk [vmem:[%s546 + $0x79] sm:$0xff] %vm547, %v524
      %559 = vst.msk [vmem:[%s546 + $0x81] sm:$0xff] %vm547, %v525
      %560 = vst.msk [vmem:[%s546 + $0x91] sm:$0xff] %vm547, %v526
      %561 = vst.msk [vmem:[%s546 + $0x99] sm:$0xff] %vm547, %v527
      %562 = vst.msk [vmem:[%s546 + $0xa9] sm:$0xff] %vm547, %v528
      %563 = vst.msk [vmem:[%s546 + $0xb1] sm:$0xff] %vm547, %v529
      %564 = vst.msk [vmem:[%s546 + $0xc1] sm:$0xff] %vm547, %v530
      %565 = vst.msk [vmem:[%s546 + $0xc9] sm:$0xff] %vm547, %v531
      %566 = vst.msk [vmem:[%s546 + $0xd9] sm:$0xff] %vm547, %v532
      %567 = vst.msk [vmem:[%s546 + $0xe1] sm:$0xff] %vm547, %v533
      %568 = vst.msk [vmem:[%s546 + $0xf1] sm:$0xff] %vm547, %v534
      %569 = vst.msk [vmem:[%s546 + $0xf9] sm:$0xff] %vm547, %v535
      %570 = vst.msk [vmem:[%s546 + $0x109] sm:$0xff] %vm547, %v536
      %571 = vst.msk [vmem:[%s546 + $0x111] sm:$0xff] %vm547, %v537
      %572 = vst.msk [vmem:[%s546 + $0x121] sm:$0xff] %vm547, %v538
      %573 = vst.msk [vmem:[%s546 + $0x129] sm:$0xff] %vm547, %v539
      %574 = vst.msk [vmem:[%s546 + $0x139] sm:$0xff] %vm547, %v540
      %575 = vst.msk [vmem:[%s546 + $0x141] sm:$0xff] %vm547, %v541
      %576 = vst.msk [vmem:[%s546 + $0x151] sm:$0xff] %vm547, %v542
      %577 = vst.msk [vmem:[%s546 + $0x159] sm:$0xff] %vm547, %v543
      %578 = vst.msk [vmem:[%s546 + $0x169] sm:$0xff] %vm547, %v544
      %579 = vst.msk [vmem:[%s546 + $0x171] sm:$0xff] %vm547, %v545
      %v580 = vld [vmem:[#allocation2] sm:$0xff]
      %v581 = vld [vmem:[#allocation2 + $0x8] sm:$0xff]
      %v582 = vld [vmem:[#allocation2 + $0x18] sm:$0xff]
      %v583 = vld [vmem:[#allocation2 + $0x20] sm:$0xff]
      %v584 = vld [vmem:[#allocation2 + $0x30] sm:$0xff]
      %v585 = vld [vmem:[#allocation2 + $0x38] sm:$0xff]
      %v586 = vld [vmem:[#allocation2 + $0x48] sm:$0xff]
      %v587 = vld [vmem:[#allocation2 + $0x50] sm:$0xff]
      %v588 = vld [vmem:[#allocation2 + $0x60] sm:$0xff]
      %v589 = vld [vmem:[#allocation2 + $0x68] sm:$0xff]
      %v590 = vld [vmem:[#allocation2 + $0x78] sm:$0xff]
      %v591 = vld [vmem:[#allocation2 + $0x80] sm:$0xff]
      %v592 = vld [vmem:[#allocation2 + $0x90] sm:$0xff]
      %v593 = vld [vmem:[#allocation2 + $0x98] sm:$0xff]
      %v594 = vld [vmem:[#allocation2 + $0xa8] sm:$0xff]
      %v595 = vld [vmem:[#allocation2 + $0xb0] sm:$0xff]
      %v596 = vld [vmem:[#allocation2 + $0xc0] sm:$0xff]
      %v597 = vld [vmem:[#allocation2 + $0xc8] sm:$0xff]
      %v598 = vld [vmem:[#allocation2 + $0xd8] sm:$0xff]
      %v599 = vld [vmem:[#allocation2 + $0xe0] sm:$0xff]
      %v600 = vld [vmem:[#allocation2 + $0xf0] sm:$0xff]
      %v601 = vld [vmem:[#allocation2 + $0xf8] sm:$0xff]
      %v602 = vld [vmem:[#allocation2 + $0x108] sm:$0xff]
      %v603 = vld [vmem:[#allocation2 + $0x110] sm:$0xff]
      %v604 = vld [vmem:[#allocation2 + $0x120] sm:$0xff]
      %v605 = vld [vmem:[#allocation2 + $0x128] sm:$0xff]
      %v606 = vld [vmem:[#allocation2 + $0x138] sm:$0xff]
      %v607 = vld [vmem:[#allocation2 + $0x140] sm:$0xff]
      %v608 = vld [vmem:[#allocation2 + $0x150] sm:$0xff]
      %v609 = vld [vmem:[#allocation2 + $0x158] sm:$0xff]
      %v610 = vld [vmem:[#allocation2 + $0x168] sm:$0xff]
      %v611 = vld [vmem:[#allocation2 + $0x170] sm:$0xff]
      %v612 = vld [vmem:[%s4] sm:$0xf]
      %v613 = vld [vmem:[#allocation2 + $0x1] sm:$0xff]
      %v614 = vld [vmem:[#allocation2 + $0x9] sm:$0xff]
      %v615 = vld [vmem:[#allocation2 + $0x19] sm:$0xff]
      %v616 = vld [vmem:[#allocation2 + $0x21] sm:$0xff]
      %v617 = vld [vmem:[#allocation2 + $0x31] sm:$0xff]
      %v618 = vld [vmem:[#allocation2 + $0x39] sm:$0xff]
      %v619 = vld [vmem:[#allocation2 + $0x49] sm:$0xff]
      %v620 = vld [vmem:[#allocation2 + $0x51] sm:$0xff]
      %v621 = vld [vmem:[#allocation2 + $0x61] sm:$0xff]
      %v622 = vld [vmem:[#allocation2 + $0x69] sm:$0xff]
      %v623 = vld [vmem:[#allocation2 + $0x79] sm:$0xff]
      %v624 = vld [vmem:[#allocation2 + $0x81] sm:$0xff]
      %v625 = vld [vmem:[#allocation2 + $0x91] sm:$0xff]
      %v626 = vld [vmem:[#allocation2 + $0x99] sm:$0xff]
      %v627 = vld [vmem:[#allocation2 + $0xa9] sm:$0xff]
      %v628 = vld [vmem:[#allocation2 + $0xb1] sm:$0xff]
      %v629 = vld [vmem:[#allocation2 + $0xc1] sm:$0xff]
      %v630 = vld [vmem:[#allocation2 + $0xc9] sm:$0xff]
      %v631 = vld [vmem:[#allocation2 + $0xd9] sm:$0xff]
      %v632 = vld [vmem:[#allocation2 + $0xe1] sm:$0xff]
      %v633 = vld [vmem:[#allocation2 + $0xf1] sm:$0xff]
      %v634 = vld [vmem:[#allocation2 + $0xf9] sm:$0xff]
      %v635 = vld [vmem:[#allocation2 + $0x109] sm:$0xff]
      %v636 = vld [vmem:[#allocation2 + $0x111] sm:$0xff]
      %v637 = vld [vmem:[#allocation2 + $0x121] sm:$0xff]
      %v638 = vld [vmem:[#allocation2 + $0x129] sm:$0xff]
      %v639 = vld [vmem:[#allocation2 + $0x139] sm:$0xff]
      %v640 = vld [vmem:[#allocation2 + $0x141] sm:$0xff]
      %v641 = vld [vmem:[#allocation2 + $0x151] sm:$0xff]
      %v642 = vld [vmem:[#allocation2 + $0x159] sm:$0xff]
      %v643 = vld [vmem:[#allocation2 + $0x169] sm:$0xff]
      %v644 = vld [vmem:[#allocation2 + $0x171] sm:$0xff]
      %s645 = scalar_lea.vmem %s4, 4
      %v646 = vld [vmem:[%s645] sm:$0xf]
      %v648 = vsel %vm547, %v613, 0
      %v651 = vsel %vm547, %v614, 0
      %v654 = vsel %vm547, %v615, 0
      %v657 = vsel %vm547, %v616, 0
      %v660 = vsel %vm547, %v617, 0
      %v663 = vsel %vm547, %v618, 0
      %v666 = vsel %vm547, %v619, 0
      %v669 = vsel %vm547, %v620, 0
      %v672 = vsel %vm547, %v621, 0
      %v675 = vsel %vm547, %v622, 0
      %v678 = vsel %vm547, %v623, 0
      %v681 = vsel %vm547, %v624, 0
      %v684 = vsel %vm547, %v625, 0
      %v687 = vsel %vm547, %v626, 0
      %v690 = vsel %vm547, %v627, 0
      %v693 = vsel %vm547, %v628, 0
      %v696 = vsel %vm547, %v629, 0
      %v699 = vsel %vm547, %v630, 0
      %v702 = vsel %vm547, %v631, 0
      %v705 = vsel %vm547, %v632, 0
      %v708 = vsel %vm547, %v633, 0
      %v711 = vsel %vm547, %v634, 0
      %v714 = vsel %vm547, %v635, 0
      %v717 = vsel %vm547, %v636, 0
      %v720 = vsel %vm547, %v637, 0
      %v723 = vsel %vm547, %v638, 0
      %v726 = vsel %vm547, %v639, 0
      %v729 = vsel %vm547, %v640, 0
      %v732 = vsel %vm547, %v641, 0
      %v735 = vsel %vm547, %v642, 0
      %v738 = vsel %vm547, %v643, 0
      %v741 = vsel %vm547, %v644, 0
      %vm743 = vcmask 1043456
      %v745 = vsel %vm743, %v646, 0
      %747 = vmatprep.subr.mxu0 0.0
      %748 = vmatpush1.msra.mxu0 %v745
      %749 = vmatprep.subr.mxu0 0.0
      %750 = vmatpush1.msra.mxu0 0.0
      %751 = vmatprep.subr.mxu0 0.0
      %752 = vmatpush1.msra.mxu0 0.0
      %753 = vmatprep.subr.mxu0 0.0
      %754 = vmatpush1.msra.mxu0 0.0
      %755 = vmatprep.subr.mxu0 0.0
      %756 = vmatpush1.msra.mxu0 0.0
      %757 = vmatprep.subr.mxu0 0.0
      %758 = vmatpush1.msra.mxu0 0.0
      %759 = vmatprep.subr.mxu0 0.0
      %760 = vmatpush1.msra.mxu0 0.0
      %761 = vmatprep.subr.mxu0 0.0
      %762 = vmatpush1.msra.mxu0 0.0
      %763 = vmatprep.subr.mxu0 0.0
      %764 = vmatpush1.msra.mxu0 0.0
      %765 = vmatprep.subr.mxu0 0.0
      %766 = vmatpush1.msra.mxu0 0.0
      %767 = vmatprep.subr.mxu0 0.0
      %768 = vmatpush1.msra.mxu0 0.0
      %769 = vmatprep.subr.mxu0 0.0
      %770 = vmatpush1.msra.mxu0 0.0
      %771 = vmatprep.subr.mxu0 0.0
      %772 = vmatpush1.msra.mxu0 0.0
      %773 = vmatprep.subr.mxu0 0.0
      %774 = vmatpush1.msra.mxu0 0.0
      %775 = vmatprep.subr.mxu0 0.0
      %776 = vmatpush1.msra.mxu0 0.0
      %777 = vmatprep.subr.mxu0 0.0
      %778 = vmatpush1.msra.mxu0 0.0
      %779 = vmatprep.subr.mxu0 0.0
      %780 = vmatpush1.msra.mxu0 0.0
      %781 = vmatprep.subr.mxu0 0.0
      %782 = vmatpush1.msra.mxu0 0.0
      %783 = vmatprep.subr.mxu0 0.0
      %784 = vmatpush1.msra.mxu0 0.0
      %785 = vmatprep.subr.mxu0 0.0
      %786 = vmatpush1.msra.mxu0 0.0
      %787 = vmatprep.subr.mxu0 0.0
      %788 = vmatpush1.msra.mxu0 0.0
      %789 = vmatprep.subr.mxu0 0.0
      %790 = vmatpush1.msra.mxu0 0.0
      %791 = vmatprep.subr.mxu0 0.0
      %792 = vmatpush1.msra.mxu0 0.0
      %793 = vmatprep.subr.mxu0 0.0
      %794 = vmatpush1.msra.mxu0 0.0
      %795 = vmatprep.subr.mxu0 0.0
      %796 = vmatpush1.msra.mxu0 0.0
      %797 = vmatprep.subr.mxu0 0.0
      %798 = vmatpush1.msra.mxu0 0.0
      %799 = vmatprep.subr.mxu0 0.0
      %800 = vmatpush1.msra.mxu0 0.0
      %801 = vmatprep.subr.mxu0 0.0
      %802 = vmatpush1.msra.mxu0 0.0
      %803 = vmatprep.subr.mxu0 0.0
      %804 = vmatpush1.msra.mxu0 0.0
      %805 = vmatprep.subr.mxu0 0.0
      %806 = vmatpush1.msra.mxu0 0.0
      %807 = vmatprep.subr.mxu0 0.0
      %808 = vmatpush1.msra.mxu0 0.0
      %809 = vmatprep.subr.mxu0 0.0
      %810 = vmatpush1.msra.mxu0 0.0
      %811 = vmatprep.mubr.f32.mxu0 0.0
      %812 = vmatmul.mubr.f32.gmra.mrb[0].mxu0 %v648
      %v813 = vpop.f32.mrb[0].mxu0
      %v814 = vadd.f32 0.0, %v813
      %v815 = vpop.f32.mrb[0].mxu0
      %816 = vmatprep.mubr.f32.mxu0 0.0
      %817 = vmatmul.mubr.f32.gmra.mrb[0].mxu0 %v651
      %v818 = vpop.f32.mrb[0].mxu0
      %v819 = vadd.f32 0.0, %v818
      %v820 = vpop.f32.mrb[0].mxu0
      %821 = vmatprep.mubr.f32.mxu0 0.0
      %822 = vmatmul.mubr.f32.gmra.mrb[0].mxu0 %v654
      %v823 = vpop.f32.mrb[0].mxu0
      %v824 = vadd.f32 0.0, %v823
      %v825 = vpop.f32.mrb[0].mxu0
      %826 = vmatprep.mubr.f32.mxu0 0.0
      %827 = vmatmul.mubr.f32.gmra.mrb[0].mxu0 %v657
      %v828 = vpop.f32.mrb[0].mxu0
      %v829 = vadd.f32 0.0, %v828
      %v830 = vpop.f32.mrb[0].mxu0
      %831 = vmatprep.mubr.f32.mxu0 0.0
      %832 = vmatmul.mubr.f32.gmra.mrb[0].mxu0 %v660
      %v833 = vpop.f32.mrb[0].mxu0
      %v834 = vadd.f32 0.0, %v833
      %v835 = vpop.f32.mrb[0].mxu0
      %836 = vmatprep.mubr.f32.mxu0 0.0
      %837 = vmatmul.mubr.f32.gmra.mrb[0].mxu0 %v663
      %v838 = vpop.f32.mrb[0].mxu0
      %v839 = vadd.f32 0.0, %v838
      %v840 = vpop.f32.mrb[0].mxu0
      %841 = vmatprep.mubr.f32.mxu0 0.0
      %842 = vmatmul.mubr.f32.gmra.mrb[0].mxu0 %v666
      %v843 = vpop.f32.mrb[0].mxu0
      %v844 = vadd.f32 0.0, %v843
      %v845 = vpop.f32.mrb[0].mxu0
      %846 = vmatprep.mubr.f32.mxu0 0.0
      %847 = vmatmul.mubr.f32.gmra.mrb[0].mxu0 %v669
      %v848 = vpop.f32.mrb[0].mxu0
      %v849 = vadd.f32 0.0, %v848
      %v850 = vpop.f32.mrb[0].mxu0
      %851 = vmatprep.mubr.f32.mxu0 0.0
      %852 = vmatmul.mubr.f32.gmra.mrb[0].mxu0 %v672
      %v853 = vpop.f32.mrb[0].mxu0
      %v854 = vadd.f32 0.0, %v853
      %v855 = vpop.f32.mrb[0].mxu0
      %856 = vmatprep.mubr.f32.mxu0 0.0
      %857 = vmatmul.mubr.f32.gmra.mrb[0].mxu0 %v675
      %v858 = vpop.f32.mrb[0].mxu0
      %v859 = vadd.f32 0.0, %v858
      %v860 = vpop.f32.mrb[0].mxu0
      %861 = vmatprep.mubr.f32.mxu0 0.0
      %862 = vmatmul.mubr.f32.gmra.mrb[0].mxu0 %v678
      %v863 = vpop.f32.mrb[0].mxu0
      %v864 = vadd.f32 0.0, %v863
      %v865 = vpop.f32.mrb[0].mxu0
      %866 = vmatprep.mubr.f32.mxu0 0.0
      %867 = vmatmul.mubr.f32.gmra.mrb[0].mxu0 %v681
      %v868 = vpop.f32.mrb[0].mxu0
      %v869 = vadd.f32 0.0, %v868
      %v870 = vpop.f32.mrb[0].mxu0
      %871 = vmatprep.mubr.f32.mxu0 0.0
      %872 = vmatmul.mubr.f32.gmra.mrb[0].mxu0 %v684
      %v873 = vpop.f32.mrb[0].mxu0
      %v874 = vadd.f32 0.0, %v873
      %v875 = vpop.f32.mrb[0].mxu0
      %876 = vmatprep.mubr.f32.mxu0 0.0
      %877 = vmatmul.mubr.f32.gmra.mrb[0].mxu0 %v687
      %v878 = vpop.f32.mrb[0].mxu0
      %v879 = vadd.f32 0.0, %v878
      %v880 = vpop.f32.mrb[0].mxu0
      %881 = vmatprep.mubr.f32.mxu0 0.0
      %882 = vmatmul.mubr.f32.gmra.mrb[0].mxu0 %v690
      %v883 = vpop.f32.mrb[0].mxu0
      %v884 = vadd.f32 0.0, %v883
      %v885 = vpop.f32.mrb[0].mxu0
      %886 = vmatprep.mubr.f32.mxu0 0.0
      %887 = vmatmul.mubr.f32.gmra.mrb[0].mxu0 %v693
      %v888 = vpop.f32.mrb[0].mxu0
      %v889 = vadd.f32 0.0, %v888
      %v890 = vpop.f32.mrb[0].mxu0
      %891 = vmatprep.mubr.f32.mxu0 0.0
      %892 = vmatmul.mubr.f32.gmra.mrb[0].mxu0 %v696
      %v893 = vpop.f32.mrb[0].mxu0
      %v894 = vadd.f32 0.0, %v893
      %v895 = vpop.f32.mrb[0].mxu0
      %896 = vmatprep.mubr.f32.mxu0 0.0
      %897 = vmatmul.mubr.f32.gmra.mrb[0].mxu0 %v699
      %v898 = vpop.f32.mrb[0].mxu0
      %v899 = vadd.f32 0.0, %v898
      %v900 = vpop.f32.mrb[0].mxu0
      %901 = vmatprep.mubr.f32.mxu0 0.0
      %902 = vmatmul.mubr.f32.gmra.mrb[0].mxu0 %v702
      %v903 = vpop.f32.mrb[0].mxu0
      %v904 = vadd.f32 0.0, %v903
      %v905 = vpop.f32.mrb[0].mxu0
      %906 = vmatprep.mubr.f32.mxu0 0.0
      %907 = vmatmul.mubr.f32.gmra.mrb[0].mxu0 %v705
      %v908 = vpop.f32.mrb[0].mxu0
      %v909 = vadd.f32 0.0, %v908
      %v910 = vpop.f32.mrb[0].mxu0
      %911 = vmatprep.mubr.f32.mxu0 0.0
      %912 = vmatmul.mubr.f32.gmra.mrb[0].mxu0 %v708
      %v913 = vpop.f32.mrb[0].mxu0
      %v914 = vadd.f32 0.0, %v913
      %v915 = vpop.f32.mrb[0].mxu0
      %916 = vmatprep.mubr.f32.mxu0 0.0
      %917 = vmatmul.mubr.f32.gmra.mrb[0].mxu0 %v711
      %v918 = vpop.f32.mrb[0].mxu0
      %v919 = vadd.f32 0.0, %v918
      %v920 = vpop.f32.mrb[0].mxu0
      %921 = vmatprep.mubr.f32.mxu0 0.0
      %922 = vmatmul.mubr.f32.gmra.mrb[0].mxu0 %v714
      %v923 = vpop.f32.mrb[0].mxu0
      %v924 = vadd.f32 0.0, %v923
      %v925 = vpop.f32.mrb[0].mxu0
      %926 = vmatprep.mubr.f32.mxu0 0.0
      %927 = vmatmul.mubr.f32.gmra.mrb[0].mxu0 %v717
      %v928 = vpop.f32.mrb[0].mxu0
      %v929 = vadd.f32 0.0, %v928
      %v930 = vpop.f32.mrb[0].mxu0
      %931 = vmatprep.mubr.f32.mxu0 0.0
      %932 = vmatmul.mubr.f32.gmra.mrb[0].mxu0 %v720
      %v933 = vpop.f32.mrb[0].mxu0
      %v934 = vadd.f32 0.0, %v933
      %v935 = vpop.f32.mrb[0].mxu0
      %936 = vmatprep.mubr.f32.mxu0 0.0
      %937 = vmatmul.mubr.f32.gmra.mrb[0].mxu0 %v723
      %v938 = vpop.f32.mrb[0].mxu0
      %v939 = vadd.f32 0.0, %v938
      %v940 = vpop.f32.mrb[0].mxu0
      %941 = vmatprep.mubr.f32.mxu0 0.0
      %942 = vmatmul.mubr.f32.gmra.mrb[0].mxu0 %v726
      %v943 = vpop.f32.mrb[0].mxu0
      %v944 = vadd.f32 0.0, %v943
      %v945 = vpop.f32.mrb[0].mxu0
      %946 = vmatprep.mubr.f32.mxu0 0.0
      %947 = vmatmul.mubr.f32.gmra.mrb[0].mxu0 %v729
      %v948 = vpop.f32.mrb[0].mxu0
      %v949 = vadd.f32 0.0, %v948
      %v950 = vpop.f32.mrb[0].mxu0
      %951 = vmatprep.mubr.f32.mxu0 0.0
      %952 = vmatmul.mubr.f32.gmra.mrb[0].mxu0 %v732
      %v953 = vpop.f32.mrb[0].mxu0
      %v954 = vadd.f32 0.0, %v953
      %v955 = vpop.f32.mrb[0].mxu0
      %956 = vmatprep.mubr.f32.mxu0 0.0
      %957 = vmatmul.mubr.f32.gmra.mrb[0].mxu0 %v735
      %v958 = vpop.f32.mrb[0].mxu0
      %v959 = vadd.f32 0.0, %v958
      %v960 = vpop.f32.mrb[0].mxu0
      %961 = vmatprep.mubr.f32.mxu0 0.0
      %962 = vmatmul.mubr.f32.gmra.mrb[0].mxu0 %v738
      %v963 = vpop.f32.mrb[0].mxu0
      %v964 = vadd.f32 0.0, %v963
      %v965 = vpop.f32.mrb[0].mxu0
      %966 = vmatprep.mubr.f32.mxu0 0.0
      %967 = vmatmul.mubr.f32.gmra.mrb[0].mxu0 %v741
      %v968 = vpop.f32.mrb[0].mxu0
      %v969 = vadd.f32 0.0, %v968
      %v970 = vpop.f32.mrb[0].mxu0
      %971 = vdwg.mxu0
      %v973 = vsel %vm547, %v580, 0
      %v976 = vsel %vm547, %v581, 0
      %v979 = vsel %vm547, %v582, 0
      %v982 = vsel %vm547, %v583, 0
      %v985 = vsel %vm547, %v584, 0
      %v988 = vsel %vm547, %v585, 0
      %v991 = vsel %vm547, %v586, 0
      %v994 = vsel %vm547, %v587, 0
      %v997 = vsel %vm547, %v588, 0
      %v1000 = vsel %vm547, %v589, 0
      %v1003 = vsel %vm547, %v590, 0
      %v1006 = vsel %vm547, %v591, 0
      %v1009 = vsel %vm547, %v592, 0
      %v1012 = vsel %vm547, %v593, 0
      %v1015 = vsel %vm547, %v594, 0
      %v1018 = vsel %vm547, %v595, 0
      %v1021 = vsel %vm547, %v596, 0
      %v1024 = vsel %vm547, %v597, 0
      %v1027 = vsel %vm547, %v598, 0
      %v1030 = vsel %vm547, %v599, 0
      %v1033 = vsel %vm547, %v600, 0
      %v1036 = vsel %vm547, %v601, 0
      %v1039 = vsel %vm547, %v602, 0
      %v1042 = vsel %vm547, %v603, 0
      %v1045 = vsel %vm547, %v604, 0
      %v1048 = vsel %vm547, %v605, 0
      %v1051 = vsel %vm547, %v606, 0
      %v1054 = vsel %vm547, %v607, 0
      %v1057 = vsel %vm547, %v608, 0
      %v1060 = vsel %vm547, %v609, 0
      %v1063 = vsel %vm547, %v610, 0
      %v1066 = vsel %vm547, %v611, 0
      %v1069 = vsel %vm743, %v612, 0
      %1071 = vmatprep.subr.mxu0 0.0
      %1072 = vmatpush1.msra.mxu0 %v1069
      %1073 = vmatprep.subr.mxu0 0.0
      %1074 = vmatpush1.msra.mxu0 0.0
      %1075 = vmatprep.subr.mxu0 0.0
      %1076 = vmatpush1.msra.mxu0 0.0
      %1077 = vmatprep.subr.mxu0 0.0
      %1078 = vmatpush1.msra.mxu0 0.0
      %1079 = vmatprep.subr.mxu0 0.0
      %1080 = vmatpush1.msra.mxu0 0.0
      %1081 = vmatprep.subr.mxu0 0.0
      %1082 = vmatpush1.msra.mxu0 0.0
      %1083 = vmatprep.subr.mxu0 0.0
      %1084 = vmatpush1.msra.mxu0 0.0
      %1085 = vmatprep.subr.mxu0 0.0
      %1086 = vmatpush1.msra.mxu0 0.0
      %1087 = vmatprep.subr.mxu0 0.0
      %1088 = vmatpush1.msra.mxu0 0.0
      %1089 = vmatprep.subr.mxu0 0.0
      %1090 = vmatpush1.msra.mxu0 0.0
      %1091 = vmatprep.subr.mxu0 0.0
      %1092 = vmatpush1.msra.mxu0 0.0
      %1093 = vmatprep.subr.mxu0 0.0
      %1094 = vmatpush1.msra.mxu0 0.0
      %1095 = vmatprep.subr.mxu0 0.0
      %1096 = vmatpush1.msra.mxu0 0.0
      %1097 = vmatprep.subr.mxu0 0.0
      %1098 = vmatpush1.msra.mxu0 0.0
      %1099 = vmatprep.subr.mxu0 0.0
      %1100 = vmatpush1.msra.mxu0 0.0
      %1101 = vmatprep.subr.mxu0 0.0
      %1102 = vmatpush1.msra.mxu0 0.0
      %1103 = vmatprep.subr.mxu0 0.0
      %1104 = vmatpush1.msra.mxu0 0.0
      %1105 = vmatprep.subr.mxu0 0.0
      %1106 = vmatpush1.msra.mxu0 0.0
      %1107 = vmatprep.subr.mxu0 0.0
      %1108 = vmatpush1.msra.mxu0 0.0
      %1109 = vmatprep.subr.mxu0 0.0
      %1110 = vmatpush1.msra.mxu0 0.0
      %1111 = vmatprep.subr.mxu0 0.0
      %1112 = vmatpush1.msra.mxu0 0.0
      %1113 = vmatprep.subr.mxu0 0.0
      %1114 = vmatpush1.msra.mxu0 0.0
      %1115 = vmatprep.subr.mxu0 0.0
      %1116 = vmatpush1.msra.mxu0 0.0
      %1117 = vmatprep.subr.mxu0 0.0
      %1118 = vmatpush1.msra.mxu0 0.0
      %1119 = vmatprep.subr.mxu0 0.0
      %1120 = vmatpush1.msra.mxu0 0.0
      %1121 = vmatprep.subr.mxu0 0.0
      %1122 = vmatpush1.msra.mxu0 0.0
      %1123 = vmatprep.subr.mxu0 0.0
      %1124 = vmatpush1.msra.mxu0 0.0
      %1125 = vmatprep.subr.mxu0 0.0
      %1126 = vmatpush1.msra.mxu0 0.0
      %1127 = vmatprep.subr.mxu0 0.0
      %1128 = vmatpush1.msra.mxu0 0.0
      %1129 = vmatprep.subr.mxu0 0.0
      %1130 = vmatpush1.msra.mxu0 0.0
      %1131 = vmatprep.subr.mxu0 0.0
      %1132 = vmatpush1.msra.mxu0 0.0
      %1133 = vmatprep.subr.mxu0 0.0
      %1134 = vmatpush1.msra.mxu0 0.0
      %1135 = vmatprep.mubr.f32.mxu0 0.0
      %1136 = vmatmul.mubr.f32.gmra.mrb[0].mxu0 %v973
      %v1137 = vpop.f32.mrb[0].mxu0
      %v1138 = vadd.f32 %v814, %v1137
      %v1139 = vpop.f32.mrb[0].mxu0
      %1140 = vmatprep.mubr.f32.mxu0 0.0
      %1141 = vmatmul.mubr.f32.gmra.mrb[0].mxu0 %v976
      %v1142 = vpop.f32.mrb[0].mxu0
      %v1143 = vadd.f32 %v819, %v1142
      %v1144 = vpop.f32.mrb[0].mxu0
      %1145 = vmatprep.mubr.f32.mxu0 0.0
      %1146 = vmatmul.mubr.f32.gmra.mrb[0].mxu0 %v979
      %v1147 = vpop.f32.mrb[0].mxu0
      %v1148 = vadd.f32 %v824, %v1147
      %v1149 = vpop.f32.mrb[0].mxu0
      %1150 = vmatprep.mubr.f32.mxu0 0.0
      %1151 = vmatmul.mubr.f32.gmra.mrb[0].mxu0 %v982
      %v1152 = vpop.f32.mrb[0].mxu0
      %v1153 = vadd.f32 %v829, %v1152
      %v1154 = vpop.f32.mrb[0].mxu0
      %1155 = vmatprep.mubr.f32.mxu0 0.0
      %1156 = vmatmul.mubr.f32.gmra.mrb[0].mxu0 %v985
      %v1157 = vpop.f32.mrb[0].mxu0
      %v1158 = vadd.f32 %v834, %v1157
      %v1159 = vpop.f32.mrb[0].mxu0
      %1160 = vmatprep.mubr.f32.mxu0 0.0
      %1161 = vmatmul.mubr.f32.gmra.mrb[0].mxu0 %v988
      %v1162 = vpop.f32.mrb[0].mxu0
      %v1163 = vadd.f32 %v839, %v1162
      %v1164 = vpop.f32.mrb[0].mxu0
      %1165 = vmatprep.mubr.f32.mxu0 0.0
      %1166 = vmatmul.mubr.f32.gmra.mrb[0].mxu0 %v991
      %v1167 = vpop.f32.mrb[0].mxu0
      %v1168 = vadd.f32 %v844, %v1167
      %v1169 = vpop.f32.mrb[0].mxu0
      %1170 = vmatprep.mubr.f32.mxu0 0.0
      %1171 = vmatmul.mubr.f32.gmra.mrb[0].mxu0 %v994
      %v1172 = vpop.f32.mrb[0].mxu0
      %v1173 = vadd.f32 %v849, %v1172
      %v1174 = vpop.f32.mrb[0].mxu0
      %1175 = vmatprep.mubr.f32.mxu0 0.0
      %1176 = vmatmul.mubr.f32.gmra.mrb[0].mxu0 %v997
      %v1177 = vpop.f32.mrb[0].mxu0
      %v1178 = vadd.f32 %v854, %v1177
      %v1179 = vpop.f32.mrb[0].mxu0
      %1180 = vmatprep.mubr.f32.mxu0 0.0
      %1181 = vmatmul.mubr.f32.gmra.mrb[0].mxu0 %v1000
      %v1182 = vpop.f32.mrb[0].mxu0
      %v1183 = vadd.f32 %v859, %v1182
      %v1184 = vpop.f32.mrb[0].mxu0
      %1185 = vmatprep.mubr.f32.mxu0 0.0
      %1186 = vmatmul.mubr.f32.gmra.mrb[0].mxu0 %v1003
      %v1187 = vpop.f32.mrb[0].mxu0
      %v1188 = vadd.f32 %v864, %v1187
      %v1189 = vpop.f32.mrb[0].mxu0
      %1190 = vmatprep.mubr.f32.mxu0 0.0
      %1191 = vmatmul.mubr.f32.gmra.mrb[0].mxu0 %v1006
      %v1192 = vpop.f32.mrb[0].mxu0
      %v1193 = vadd.f32 %v869, %v1192
      %v1194 = vpop.f32.mrb[0].mxu0
      %1195 = vmatprep.mubr.f32.mxu0 0.0
      %1196 = vmatmul.mubr.f32.gmra.mrb[0].mxu0 %v1009
      %v1197 = vpop.f32.mrb[0].mxu0
      %v1198 = vadd.f32 %v874, %v1197
      %v1199 = vpop.f32.mrb[0].mxu0
      %1200 = vmatprep.mubr.f32.mxu0 0.0
      %1201 = vmatmul.mubr.f32.gmra.mrb[0].mxu0 %v1012
      %v1202 = vpop.f32.mrb[0].mxu0
      %v1203 = vadd.f32 %v879, %v1202
      %v1204 = vpop.f32.mrb[0].mxu0
      %1205 = vmatprep.mubr.f32.mxu0 0.0
      %1206 = vmatmul.mubr.f32.gmra.mrb[0].mxu0 %v1015
      %v1207 = vpop.f32.mrb[0].mxu0
      %v1208 = vadd.f32 %v884, %v1207
      %v1209 = vpop.f32.mrb[0].mxu0
      %1210 = vmatprep.mubr.f32.mxu0 0.0
      %1211 = vmatmul.mubr.f32.gmra.mrb[0].mxu0 %v1018
      %v1212 = vpop.f32.mrb[0].mxu0
      %v1213 = vadd.f32 %v889, %v1212
      %v1214 = vpop.f32.mrb[0].mxu0
      %1215 = vmatprep.mubr.f32.mxu0 0.0
      %1216 = vmatmul.mubr.f32.gmra.mrb[0].mxu0 %v1021
      %v1217 = vpop.f32.mrb[0].mxu0
      %v1218 = vadd.f32 %v894, %v1217
      %v1219 = vpop.f32.mrb[0].mxu0
      %1220 = vmatprep.mubr.f32.mxu0 0.0
      %1221 = vmatmul.mubr.f32.gmra.mrb[0].mxu0 %v1024
      %v1222 = vpop.f32.mrb[0].mxu0
      %v1223 = vadd.f32 %v899, %v1222
      %v1224 = vpop.f32.mrb[0].mxu0
      %1225 = vmatprep.mubr.f32.mxu0 0.0
      %1226 = vmatmul.mubr.f32.gmra.mrb[0].mxu0 %v1027
      %v1227 = vpop.f32.mrb[0].mxu0
      %v1228 = vadd.f32 %v904, %v1227
      %v1229 = vpop.f32.mrb[0].mxu0
      %1230 = vmatprep.mubr.f32.mxu0 0.0
      %1231 = vmatmul.mubr.f32.gmra.mrb[0].mxu0 %v1030
      %v1232 = vpop.f32.mrb[0].mxu0
      %v1233 = vadd.f32 %v909, %v1232
      %v1234 = vpop.f32.mrb[0].mxu0
      %1235 = vmatprep.mubr.f32.mxu0 0.0
      %1236 = vmatmul.mubr.f32.gmra.mrb[0].mxu0 %v1033
      %v1237 = vpop.f32.mrb[0].mxu0
      %v1238 = vadd.f32 %v914, %v1237
      %v1239 = vpop.f32.mrb[0].mxu0
      %1240 = vmatprep.mubr.f32.mxu0 0.0
      %1241 = vmatmul.mubr.f32.gmra.mrb[0].mxu0 %v1036
      %v1242 = vpop.f32.mrb[0].mxu0
      %v1243 = vadd.f32 %v919, %v1242
      %v1244 = vpop.f32.mrb[0].mxu0
      %1245 = vmatprep.mubr.f32.mxu0 0.0
      %1246 = vmatmul.mubr.f32.gmra.mrb[0].mxu0 %v1039
      %v1247 = vpop.f32.mrb[0].mxu0
      %v1248 = vadd.f32 %v924, %v1247
      %v1249 = vpop.f32.mrb[0].mxu0
      %1250 = vmatprep.mubr.f32.mxu0 0.0
      %1251 = vmatmul.mubr.f32.gmra.mrb[0].mxu0 %v1042
      %v1252 = vpop.f32.mrb[0].mxu0
      %v1253 = vadd.f32 %v929, %v1252
      %v1254 = vpop.f32.mrb[0].mxu0
      %1255 = vmatprep.mubr.f32.mxu0 0.0
      %1256 = vmatmul.mubr.f32.gmra.mrb[0].mxu0 %v1045
      %v1257 = vpop.f32.mrb[0].mxu0
      %v1258 = vadd.f32 %v934, %v1257
      %v1259 = vpop.f32.mrb[0].mxu0
      %1260 = vmatprep.mubr.f32.mxu0 0.0
      %1261 = vmatmul.mubr.f32.gmra.mrb[0].mxu0 %v1048
      %v1262 = vpop.f32.mrb[0].mxu0
      %v1263 = vadd.f32 %v939, %v1262
      %v1264 = vpop.f32.mrb[0].mxu0
      %1265 = vmatprep.mubr.f32.mxu0 0.0
      %1266 = vmatmul.mubr.f32.gmra.mrb[0].mxu0 %v1051
      %v1267 = vpop.f32.mrb[0].mxu0
      %v1268 = vadd.f32 %v944, %v1267
      %v1269 = vpop.f32.mrb[0].mxu0
      %1270 = vmatprep.mubr.f32.mxu0 0.0
      %1271 = vmatmul.mubr.f32.gmra.mrb[0].mxu0 %v1054
      %v1272 = vpop.f32.mrb[0].mxu0
      %v1273 = vadd.f32 %v949, %v1272
      %v1274 = vpop.f32.mrb[0].mxu0
      %1275 = vmatprep.mubr.f32.mxu0 0.0
      %1276 = vmatmul.mubr.f32.gmra.mrb[0].mxu0 %v1057
      %v1277 = vpop.f32.mrb[0].mxu0
      %v1278 = vadd.f32 %v954, %v1277
      %v1279 = vpop.f32.mrb[0].mxu0
      %1280 = vmatprep.mubr.f32.mxu0 0.0
      %1281 = vmatmul.mubr.f32.gmra.mrb[0].mxu0 %v1060
      %v1282 = vpop.f32.mrb[0].mxu0
      %v1283 = vadd.f32 %v959, %v1282
      %v1284 = vpop.f32.mrb[0].mxu0
      %1285 = vmatprep.mubr.f32.mxu0 0.0
      %1286 = vmatmul.mubr.f32.gmra.mrb[0].mxu0 %v1063
      %v1287 = vpop.f32.mrb[0].mxu0
      %v1288 = vadd.f32 %v964, %v1287
      %v1289 = vpop.f32.mrb[0].mxu0
      %1290 = vmatprep.mubr.f32.mxu0 0.0
      %1291 = vmatmul.mubr.f32.gmra.mrb[0].mxu0 %v1066
      %v1292 = vpop.f32.mrb[0].mxu0
      %v1293 = vadd.f32 %v969, %v1292
      %v1294 = vpop.f32.mrb[0].mxu0
      %1295 = vdwg.mxu0
      %v1296 = vld [vmem:[#allocation2 + $0x2] sm:$0xff]
      %v1297 = vld [vmem:[#allocation2 + $0xa] sm:$0xff]
      %v1298 = vld [vmem:[#allocation2 + $0x1a] sm:$0xff]
      %v1299 = vld [vmem:[#allocation2 + $0x22] sm:$0xff]
      %v1300 = vld [vmem:[#allocation2 + $0x32] sm:$0xff]
      %v1301 = vld [vmem:[#allocation2 + $0x3a] sm:$0xff]
      %v1302 = vld [vmem:[#allocation2 + $0x4a] sm:$0xff]
      %v1303 = vld [vmem:[#allocation2 + $0x52] sm:$0xff]
      %v1304 = vld [vmem:[#allocation2 + $0x62] sm:$0xff]
      %v1305 = vld [vmem:[#allocation2 + $0x6a] sm:$0xff]
      %v1306 = vld [vmem:[#allocation2 + $0x7a] sm:$0xff]
      %v1307 = vld [vmem:[#allocation2 + $0x82] sm:$0xff]
      %v1308 = vld [vmem:[#allocation2 + $0x92] sm:$0xff]
      %v1309 = vld [vmem:[#allocation2 + $0x9a] sm:$0xff]
      %v1310 = vld [vmem:[#allocation2 + $0xaa] sm:$0xff]
      %v1311 = vld [vmem:[#allocation2 + $0xb2] sm:$0xff]
      %v1312 = vld [vmem:[#allocation2 + $0xc2] sm:$0xff]
      %v1313 = vld [vmem:[#allocation2 + $0xca] sm:$0xff]
      %v1314 = vld [vmem:[#allocation2 + $0xda] sm:$0xff]
      %v1315 = vld [vmem:[#allocation2 + $0xe2] sm:$0xff]
      %v1316 = vld [vmem:[#allocation2 + $0xf2] sm:$0xff]
      %v1317 = vld [vmem:[#allocation2 + $0xfa] sm:$0xff]
      %v1318 = vld [vmem:[#allocation2 + $0x10a] sm:$0xff]
      %v1319 = vld [vmem:[#allocation2 + $0x112] sm:$0xff]
      %v1320 = vld [vmem:[#allocation2 + $0x122] sm:$0xff]
      %v1321 = vld [vmem:[#allocation2 + $0x12a] sm:$0xff]
      %v1322 = vld [vmem:[#allocation2 + $0x13a] sm:$0xff]
      %v1323 = vld [vmem:[#allocation2 + $0x142] sm:$0xff]
      %v1324 = vld [vmem:[#allocation2 + $0x152] sm:$0xff]
      %v1325 = vld [vmem:[#allocation2 + $0x15a] sm:$0xff]
      %v1326 = vld [vmem:[#allocation2 + $0x16a] sm:$0xff]
      %v1327 = vld [vmem:[#allocation2 + $0x172] sm:$0xff]
      %s1328 = scalar_lea.vmem %s4, 8
      %v1329 = vld [vmem:[%s1328] sm:$0xf]
      %v1331 = vsel %vm547, %v1296, 0
      %v1334 = vsel %vm547, %v1297, 0
      %v1337 = vsel %vm547, %v1298, 0
      %v1340 = vsel %vm547, %v1299, 0
      %v1343 = vsel %vm547, %v1300, 0
      %v1346 = vsel %vm547, %v1301, 0
      %v1349 = vsel %vm547, %v1302, 0
      %v1352 = vsel %vm547, %v1303, 0
      %v1355 = vsel %vm547, %v1304, 0
      %v1358 = vsel %vm547, %v1305, 0
      %v1361 = vsel %vm547, %v1306, 0
      %v1364 = vsel %vm547, %v1307, 0
      %v1367 = vsel %vm547, %v1308, 0
      %v1370 = vsel %vm547, %v1309, 0
      %v1373 = vsel %vm547, %v1310, 0
      %v1376 = vsel %vm547, %v1311, 0
      %v1379 = vsel %vm547, %v1312, 0
      %v1382 = vsel %vm547, %v1313, 0
      %v1385 = vsel %vm547, %v1314, 0
      %v1388 = vsel %vm547, %v1315, 0
      %v1391 = vsel %vm547, %v1316, 0
      %v1394 = vsel %vm547, %v1317, 0
      %v1397 = vsel %vm547, %v1318, 0
      %v1400 = vsel %vm547, %v1319, 0
      %v1403 = vsel %vm547, %v1320, 0
      %v1406 = vsel %vm547, %v1321, 0
      %v1409 = vsel %vm547, %v1322, 0
      %v1412 = vsel %vm547, %v1323, 0
      %v1415 = vsel %vm547, %v1324, 0
      %v1418 = vsel %vm547, %v1325, 0
      %v1421 = vsel %vm547, %v1326, 0
      %v1424 = vsel %vm547, %v1327, 0
      %v1427 = vsel %vm743, %v1329, 0
      %1429 = vmatprep.subr.mxu0 0.0
      %1430 = vmatpush1.msra.mxu0 %v1427
      %1431 = vmatprep.subr.mxu0 0.0
      %1432 = vmatpush1.msra.mxu0 0.0
      %1433 = vmatprep.subr.mxu0 0.0
      %1434 = vmatpush1.msra.mxu0 0.0
      %1435 = vmatprep.subr.mxu0 0.0
      %1436 = vmatpush1.msra.mxu0 0.0
      %1437 = vmatprep.subr.mxu0 0.0
      %1438 = vmatpush1.msra.mxu0 0.0
      %1439 = vmatprep.subr.mxu0 0.0
      %1440 = vmatpush1.msra.mxu0 0.0
      %1441 = vmatprep.subr.mxu0 0.0
      %1442 = vmatpush1.msra.mxu0 0.0
      %1443 = vmatprep.subr.mxu0 0.0
      %1444 = vmatpush1.msra.mxu0 0.0
      %1445 = vmatprep.subr.mxu0 0.0
      %1446 = vmatpush1.msra.mxu0 0.0
      %1447 = vmatprep.subr.mxu0 0.0
      %1448 = vmatpush1.msra.mxu0 0.0
      %1449 = vmatprep.subr.mxu0 0.0
      %1450 = vmatpush1.msra.mxu0 0.0
      %1451 = vmatprep.subr.mxu0 0.0
      %1452 = vmatpush1.msra.mxu0 0.0
      %1453 = vmatprep.subr.mxu0 0.0
      %1454 = vmatpush1.msra.mxu0 0.0
      %1455 = vmatprep.subr.mxu0 0.0
      %1456 = vmatpush1.msra.mxu0 0.0
      %1457 = vmatprep.subr.mxu0 0.0
      %1458 = vmatpush1.msra.mxu0 0.0
      %1459 = vmatprep.subr.mxu0 0.0
      %1460 = vmatpush1.msra.mxu0 0.0
      %1461 = vmatprep.subr.mxu0 0.0
      %1462 = vmatpush1.msra.mxu0 0.0
      %1463 = vmatprep.subr.mxu0 0.0
      %1464 = vmatpush1.msra.mxu0 0.0
      %1465 = vmatprep.subr.mxu0 0.0
      %1466 = vmatpush1.msra.mxu0 0.0
      %1467 = vmatprep.subr.mxu0 0.0
      %1468 = vmatpush1.msra.mxu0 0.0
      %1469 = vmatprep.subr.mxu0 0.0
      %1470 = vmatpush1.msra.mxu0 0.0
      %1471 = vmatprep.subr.mxu0 0.0
      %1472 = vmatpush1.msra.mxu0 0.0
      %1473 = vmatprep.subr.mxu0 0.0
      %1474 = vmatpush1.msra.mxu0 0.0
      %1475 = vmatprep.subr.mxu0 0.0
      %1476 = vmatpush1.msra.mxu0 0.0
      %1477 = vmatprep.subr.mxu0 0.0
      %1478 = vmatpush1.msra.mxu0 0.0
      %1479 = vmatprep.subr.mxu0 0.0
      %1480 = vmatpush1.msra.mxu0 0.0
      %1481 = vmatprep.subr.mxu0 0.0
      %1482 = vmatpush1.msra.mxu0 0.0
      %1483 = vmatprep.subr.mxu0 0.0
      %1484 = vmatpush1.msra.mxu0 0.0
      %1485 = vmatprep.subr.mxu0 0.0
      %1486 = vmatpush1.msra.mxu0 0.0
      %1487 = vmatprep.subr.mxu0 0.0
      %1488 = vmatpush1.msra.mxu0 0.0
      %1489 = vmatprep.subr.mxu0 0.0
      %1490 = vmatpush1.msra.mxu0 0.0
      %1491 = vmatprep.subr.mxu0 0.0
      %1492 = vmatpush1.msra.mxu0 0.0
      %1493 = vmatprep.mubr.f32.mxu0 0.0
      %1494 = vmatmul.mubr.f32.gmra.mrb[0].mxu0 %v1331
      %v1495 = vpop.f32.mrb[0].mxu0
      %v1496 = vadd.f32 0.0, %v1495
      %v1497 = vpop.f32.mrb[0].mxu0
      %1498 = vmatprep.mubr.f32.mxu0 0.0
      %1499 = vmatmul.mubr.f32.gmra.mrb[0].mxu0 %v1334
      %v1500 = vpop.f32.mrb[0].mxu0
      %v1501 = vadd.f32 0.0, %v1500
      %v1502 = vpop.f32.mrb[0].mxu0
      %1503 = vmatprep.mubr.f32.mxu0 0.0
      %1504 = vmatmul.mubr.f32.gmra.mrb[0].mxu0 %v1337
      %v1505 = vpop.f32.mrb[0].mxu0
      %v1506 = vadd.f32 0.0, %v1505
      %v1507 = vpop.f32.mrb[0].mxu0
      %1508 = vmatprep.mubr.f32.mxu0 0.0
      %1509 = vmatmul.mubr.f32.gmra.mrb[0].mxu0 %v1340
      %v1510 = vpop.f32.mrb[0].mxu0
      %v1511 = vadd.f32 0.0, %v1510
      %v1512 = vpop.f32.mrb[0].mxu0
      %1513 = vmatprep.mubr.f32.mxu0 0.0
      %1514 = vmatmul.mubr.f32.gmra.mrb[0].mxu0 %v1343
      %v1515 = vpop.f32.mrb[0].mxu0
      %v1516 = vadd.f32 0.0, %v1515
      %v1517 = vpop.f32.mrb[0].mxu0
      %1518 = vmatprep.mubr.f32.mxu0 0.0
      %1519 = vmatmul.mubr.f32.gmra.mrb[0].mxu0 %v1346
      %v1520 = vpop.f32.mrb[0].mxu0
      %v1521 = vadd.f32 0.0, %v1520
      %v1522 = vpop.f32.mrb[0].mxu0
      %1523 = vmatprep.mubr.f32.mxu0 0.0
      %1524 = vmatmul.mubr.f32.gmra.mrb[0].mxu0 %v1349
      %v1525 = vpop.f32.mrb[0].mxu0
      %v1526 = vadd.f32 0.0, %v1525
      %v1527 = vpop.f32.mrb[0].mxu0
      %1528 = vmatprep.mubr.f32.mxu0 0.0
      %1529 = vmatmul.mubr.f32.gmra.mrb[0].mxu0 %v1352
      %v1530 = vpop.f32.mrb[0].mxu0
      %v1531 = vadd.f32 0.0, %v1530
      %v1532 = vpop.f32.mrb[0].mxu0
      %1533 = vmatprep.mubr.f32.mxu0 0.0
      %1534 = vmatmul.mubr.f32.gmra.mrb[0].mxu0 %v1355
      %v1535 = vpop.f32.mrb[0].mxu0
      %v1536 = vadd.f32 0.0, %v1535
      %v1537 = vpop.f32.mrb[0].mxu0
      %1538 = vmatprep.mubr.f32.mxu0 0.0
      %1539 = vmatmul.mubr.f32.gmra.mrb[0].mxu0 %v1358
      %v1540 = vpop.f32.mrb[0].mxu0
      %v1541 = vadd.f32 0.0, %v1540
      %v1542 = vpop.f32.mrb[0].mxu0
      %1543 = vmatprep.mubr.f32.mxu0 0.0
      %1544 = vmatmul.mubr.f32.gmra.mrb[0].mxu0 %v1361
      %v1545 = vpop.f32.mrb[0].mxu0
      %v1546 = vadd.f32 0.0, %v1545
      %v1547 = vpop.f32.mrb[0].mxu0
      %1548 = vmatprep.mubr.f32.mxu0 0.0
      %1549 = vmatmul.mubr.f32.gmra.mrb[0].mxu0 %v1364
      %v1550 = vpop.f32.mrb[0].mxu0
      %v1551 = vadd.f32 0.0, %v1550
      %v1552 = vpop.f32.mrb[0].mxu0
      %1553 = vmatprep.mubr.f32.mxu0 0.0
      %1554 = vmatmul.mubr.f32.gmra.mrb[0].mxu0 %v1367
      %v1555 = vpop.f32.mrb[0].mxu0
      %v1556 = vadd.f32 0.0, %v1555
      %v1557 = vpop.f32.mrb[0].mxu0
      %1558 = vmatprep.mubr.f32.mxu0 0.0
      %1559 = vmatmul.mubr.f32.gmra.mrb[0].mxu0 %v1370
      %v1560 = vpop.f32.mrb[0].mxu0
      %v1561 = vadd.f32 0.0, %v1560
      %v1562 = vpop.f32.mrb[0].mxu0
      %1563 = vmatprep.mubr.f32.mxu0 0.0
      %1564 = vmatmul.mubr.f32.gmra.mrb[0].mxu0 %v1373
      %v1565 = vpop.f32.mrb[0].mxu0
      %v1566 = vadd.f32 0.0, %v1565
      %v1567 = vpop.f32.mrb[0].mxu0
      %1568 = vmatprep.mubr.f32.mxu0 0.0
      %1569 = vmatmul.mubr.f32.gmra.mrb[0].mxu0 %v1376
      %v1570 = vpop.f32.mrb[0].mxu0
      %v1571 = vadd.f32 0.0, %v1570
      %v1572 = vpop.f32.mrb[0].mxu0
      %1573 = vmatprep.mubr.f32.mxu0 0.0
      %1574 = vmatmul.mubr.f32.gmra.mrb[0].mxu0 %v1379
      %v1575 = vpop.f32.mrb[0].mxu0
      %v1576 = vadd.f32 0.0, %v1575
      %v1577 = vpop.f32.mrb[0].mxu0
      %1578 = vmatprep.mubr.f32.mxu0 0.0
      %1579 = vmatmul.mubr.f32.gmra.mrb[0].mxu0 %v1382
      %v1580 = vpop.f32.mrb[0].mxu0
      %v1581 = vadd.f32 0.0, %v1580
      %v1582 = vpop.f32.mrb[0].mxu0
      %1583 = vmatprep.mubr.f32.mxu0 0.0
      %1584 = vmatmul.mubr.f32.gmra.mrb[0].mxu0 %v1385
      %v1585 = vpop.f32.mrb[0].mxu0
      %v1586 = vadd.f32 0.0, %v1585
      %v1587 = vpop.f32.mrb[0].mxu0
      %1588 = vmatprep.mubr.f32.mxu0 0.0
      %1589 = vmatmul.mubr.f32.gmra.mrb[0].mxu0 %v1388
      %v1590 = vpop.f32.mrb[0].mxu0
      %v1591 = vadd.f32 0.0, %v1590
      %v1592 = vpop.f32.mrb[0].mxu0
      %1593 = vmatprep.mubr.f32.mxu0 0.0
      %1594 = vmatmul.mubr.f32.gmra.mrb[0].mxu0 %v1391
      %v1595 = vpop.f32.mrb[0].mxu0
      %v1596 = vadd.f32 0.0, %v1595
      %v1597 = vpop.f32.mrb[0].mxu0
      %1598 = vmatprep.mubr.f32.mxu0 0.0
      %1599 = vmatmul.mubr.f32.gmra.mrb[0].mxu0 %v1394
      %v1600 = vpop.f32.mrb[0].mxu0
      %v1601 = vadd.f32 0.0, %v1600
      %v1602 = vpop.f32.mrb[0].mxu0
      %1603 = vmatprep.mubr.f32.mxu0 0.0
      %1604 = vmatmul.mubr.f32.gmra.mrb[0].mxu0 %v1397
      %v1605 = vpop.f32.mrb[0].mxu0
      %v1606 = vadd.f32 0.0, %v1605
      %v1607 = vpop.f32.mrb[0].mxu0
      %1608 = vmatprep.mubr.f32.mxu0 0.0
      %1609 = vmatmul.mubr.f32.gmra.mrb[0].mxu0 %v1400
      %v1610 = vpop.f32.mrb[0].mxu0
      %v1611 = vadd.f32 0.0, %v1610
      %v1612 = vpop.f32.mrb[0].mxu0
      %1613 = vmatprep.mubr.f32.mxu0 0.0
      %1614 = vmatmul.mubr.f32.gmra.mrb[0].mxu0 %v1403
      %v1615 = vpop.f32.mrb[0].mxu0
      %v1616 = vadd.f32 0.0, %v1615
      %v1617 = vpop.f32.mrb[0].mxu0
      %1618 = vmatprep.mubr.f32.mxu0 0.0
      %1619 = vmatmul.mubr.f32.gmra.mrb[0].mxu0 %v1406
      %v1620 = vpop.f32.mrb[0].mxu0
      %v1621 = vadd.f32 0.0, %v1620
      %v1622 = vpop.f32.mrb[0].mxu0
      %1623 = vmatprep.mubr.f32.mxu0 0.0
      %1624 = vmatmul.mubr.f32.gmra.mrb[0].mxu0 %v1409
      %v1625 = vpop.f32.mrb[0].mxu0
      %v1626 = vadd.f32 0.0, %v1625
      %v1627 = vpop.f32.mrb[0].mxu0
      %1628 = vmatprep.mubr.f32.mxu0 0.0
      %1629 = vmatmul.mubr.f32.gmra.mrb[0].mxu0 %v1412
      %v1630 = vpop.f32.mrb[0].mxu0
      %v1631 = vadd.f32 0.0, %v1630
      %v1632 = vpop.f32.mrb[0].mxu0
      %1633 = vmatprep.mubr.f32.mxu0 0.0
      %1634 = vmatmul.mubr.f32.gmra.mrb[0].mxu0 %v1415
      %v1635 = vpop.f32.mrb[0].mxu0
      %v1636 = vadd.f32 0.0, %v1635
      %v1637 = vpop.f32.mrb[0].mxu0
      %1638 = vmatprep.mubr.f32.mxu0 0.0
      %1639 = vmatmul.mubr.f32.gmra.mrb[0].mxu0 %v1418
      %v1640 = vpop.f32.mrb[0].mxu0
      %v1641 = vadd.f32 0.0, %v1640
      %v1642 = vpop.f32.mrb[0].mxu0
      %1643 = vmatprep.mubr.f32.mxu0 0.0
      %1644 = vmatmul.mubr.f32.gmra.mrb[0].mxu0 %v1421
      %v1645 = vpop.f32.mrb[0].mxu0
      %v1646 = vadd.f32 0.0, %v1645
      %v1647 = vpop.f32.mrb[0].mxu0
      %1648 = vmatprep.mubr.f32.mxu0 0.0
      %1649 = vmatmul.mubr.f32.gmra.mrb[0].mxu0 %v1424
      %v1650 = vpop.f32.mrb[0].mxu0
      %v1651 = vadd.f32 0.0, %v1650
      %v1652 = vpop.f32.mrb[0].mxu0
      %1653 = vdwg.mxu0
      %v1654 = vadd.f32 %v1138, %v1496
      %v1655 = vadd.f32 %v1143, %v1501
      %v1656 = vadd.f32 %v1148, %v1506
      %v1657 = vadd.f32 %v1153, %v1511
      %v1658 = vadd.f32 %v1158, %v1516
      %v1659 = vadd.f32 %v1163, %v1521
      %v1660 = vadd.f32 %v1168, %v1526
      %v1661 = vadd.f32 %v1173, %v1531
      %v1662 = vadd.f32 %v1178, %v1536
      %v1663 = vadd.f32 %v1183, %v1541
      %v1664 = vadd.f32 %v1188, %v1546
      %v1665 = vadd.f32 %v1193, %v1551
      %v1666 = vadd.f32 %v1198, %v1556
      %v1667 = vadd.f32 %v1203, %v1561
      %v1668 = vadd.f32 %v1208, %v1566
      %v1669 = vadd.f32 %v1213, %v1571
      %v1670 = vadd.f32 %v1218, %v1576
      %v1671 = vadd.f32 %v1223, %v1581
      %v1672 = vadd.f32 %v1228, %v1586
      %v1673 = vadd.f32 %v1233, %v1591
      %v1674 = vadd.f32 %v1238, %v1596
      %v1675 = vadd.f32 %v1243, %v1601
      %v1676 = vadd.f32 %v1248, %v1606
      %v1677 = vadd.f32 %v1253, %v1611
      %v1678 = vadd.f32 %v1258, %v1616
      %v1679 = vadd.f32 %v1263, %v1621
      %v1680 = vadd.f32 %v1268, %v1626
      %v1681 = vadd.f32 %v1273, %v1631
      %v1682 = vadd.f32 %v1278, %v1636
      %v1683 = vadd.f32 %v1283, %v1641
      %v1684 = vadd.f32 %v1288, %v1646
      %v1685 = vadd.f32 %v1293, %v1651
      %v1686 = vld [vmem:[%s546] sm:$0xff]
      %v1687 = vld [vmem:[%s546 + $0x8] sm:$0xff]
      %v1688 = vld [vmem:[%s546 + $0x18] sm:$0xff]
      %v1689 = vld [vmem:[%s546 + $0x20] sm:$0xff]
      %v1690 = vld [vmem:[%s546 + $0x30] sm:$0xff]
      %v1691 = vld [vmem:[%s546 + $0x38] sm:$0xff]
      %v1692 = vld [vmem:[%s546 + $0x48] sm:$0xff]
      %v1693 = vld [vmem:[%s546 + $0x50] sm:$0xff]
      %v1694 = vld [vmem:[%s546 + $0x60] sm:$0xff]
      %v1695 = vld [vmem:[%s546 + $0x68] sm:$0xff]
      %v1696 = vld [vmem:[%s546 + $0x78] sm:$0xff]
      %v1697 = vld [vmem:[%s546 + $0x80] sm:$0xff]
      %v1698 = vld [vmem:[%s546 + $0x90] sm:$0xff]
      %v1699 = vld [vmem:[%s546 + $0x98] sm:$0xff]
      %v1700 = vld [vmem:[%s546 + $0xa8] sm:$0xff]
      %v1701 = vld [vmem:[%s546 + $0xb0] sm:$0xff]
      %v1702 = vld [vmem:[%s546 + $0xc0] sm:$0xff]
      %v1703 = vld [vmem:[%s546 + $0xc8] sm:$0xff]
      %v1704 = vld [vmem:[%s546 + $0xd8] sm:$0xff]
      %v1705 = vld [vmem:[%s546 + $0xe0] sm:$0xff]
      %v1706 = vld [vmem:[%s546 + $0xf0] sm:$0xff]
      %v1707 = vld [vmem:[%s546 + $0xf8] sm:$0xff]
      %v1708 = vld [vmem:[%s546 + $0x108] sm:$0xff]
      %v1709 = vld [vmem:[%s546 + $0x110] sm:$0xff]
      %v1710 = vld [vmem:[%s546 + $0x120] sm:$0xff]
      %v1711 = vld [vmem:[%s546 + $0x128] sm:$0xff]
      %v1712 = vld [vmem:[%s546 + $0x138] sm:$0xff]
      %v1713 = vld [vmem:[%s546 + $0x140] sm:$0xff]
      %v1714 = vld [vmem:[%s546 + $0x150] sm:$0xff]
      %v1715 = vld [vmem:[%s546 + $0x158] sm:$0xff]
      %v1716 = vld [vmem:[%s546 + $0x168] sm:$0xff]
      %v1717 = vld [vmem:[%s546 + $0x170] sm:$0xff]
      %s1718 = scalar_lea.vmem %s4, 12
      %v1719 = vld [vmem:[%s1718] sm:$0xf]
      %v1721 = vsel %vm547, %v1686, 0
      %v1724 = vsel %vm547, %v1687, 0
      %v1727 = vsel %vm547, %v1688, 0
      %v1730 = vsel %vm547, %v1689, 0
      %v1733 = vsel %vm547, %v1690, 0
      %v1736 = vsel %vm547, %v1691, 0
      %v1739 = vsel %vm547, %v1692, 0
      %v1742 = vsel %vm547, %v1693, 0
      %v1745 = vsel %vm547, %v1694, 0
      %v1748 = vsel %vm547, %v1695, 0
      %v1751 = vsel %vm547, %v1696, 0
      %v1754 = vsel %vm547, %v1697, 0
      %v1757 = vsel %vm547, %v1698, 0
      %v1760 = vsel %vm547, %v1699, 0
      %v1763 = vsel %vm547, %v1700, 0
      %v1766 = vsel %vm547, %v1701, 0
      %v1769 = vsel %vm547, %v1702, 0
      %v1772 = vsel %vm547, %v1703, 0
      %v1775 = vsel %vm547, %v1704, 0
      %v1778 = vsel %vm547, %v1705, 0
      %v1781 = vsel %vm547, %v1706, 0
      %v1784 = vsel %vm547, %v1707, 0
      %v1787 = vsel %vm547, %v1708, 0
      %v1790 = vsel %vm547, %v1709, 0
      %v1793 = vsel %vm547, %v1710, 0
      %v1796 = vsel %vm547, %v1711, 0
      %v1799 = vsel %vm547, %v1712, 0
      %v1802 = vsel %vm547, %v1713, 0
      %v1805 = vsel %vm547, %v1714, 0
      %v1808 = vsel %vm547, %v1715, 0
      %v1811 = vsel %vm547, %v1716, 0
      %v1814 = vsel %vm547, %v1717, 0
      %v1817 = vsel %vm743, %v1719, 0
      %1819 = vmatprep.subr.mxu0 0.0
      %1820 = vmatpush1.msra.mxu0 %v1817
      %1821 = vmatprep.subr.mxu0 0.0
      %1822 = vmatpush1.msra.mxu0 0.0
      %1823 = vmatprep.subr.mxu0 0.0
      %1824 = vmatpush1.msra.mxu0 0.0
      %1825 = vmatprep.subr.mxu0 0.0
      %1826 = vmatpush1.msra.mxu0 0.0
      %1827 = vmatprep.subr.mxu0 0.0
      %1828 = vmatpush1.msra.mxu0 0.0
      %1829 = vmatprep.subr.mxu0 0.0
      %1830 = vmatpush1.msra.mxu0 0.0
      %1831 = vmatprep.subr.mxu0 0.0
      %1832 = vmatpush1.msra.mxu0 0.0
      %1833 = vmatprep.subr.mxu0 0.0
      %1834 = vmatpush1.msra.mxu0 0.0
      %1835 = vmatprep.subr.mxu0 0.0
      %1836 = vmatpush1.msra.mxu0 0.0
      %1837 = vmatprep.subr.mxu0 0.0
      %1838 = vmatpush1.msra.mxu0 0.0
      %1839 = vmatprep.subr.mxu0 0.0
      %1840 = vmatpush1.msra.mxu0 0.0
      %1841 = vmatprep.subr.mxu0 0.0
      %1842 = vmatpush1.msra.mxu0 0.0
      %1843 = vmatprep.subr.mxu0 0.0
      %1844 = vmatpush1.msra.mxu0 0.0
      %1845 = vmatprep.subr.mxu0 0.0
      %1846 = vmatpush1.msra.mxu0 0.0
      %1847 = vmatprep.subr.mxu0 0.0
      %1848 = vmatpush1.msra.mxu0 0.0
      %1849 = vmatprep.subr.mxu0 0.0
      %1850 = vmatpush1.msra.mxu0 0.0
      %1851 = vmatprep.subr.mxu0 0.0
      %1852 = vmatpush1.msra.mxu0 0.0
      %1853 = vmatprep.subr.mxu0 0.0
      %1854 = vmatpush1.msra.mxu0 0.0
      %1855 = vmatprep.subr.mxu0 0.0
      %1856 = vmatpush1.msra.mxu0 0.0
      %1857 = vmatprep.subr.mxu0 0.0
      %1858 = vmatpush1.msra.mxu0 0.0
      %1859 = vmatprep.subr.mxu0 0.0
      %1860 = vmatpush1.msra.mxu0 0.0
      %1861 = vmatprep.subr.mxu0 0.0
      %1862 = vmatpush1.msra.mxu0 0.0
      %1863 = vmatprep.subr.mxu0 0.0
      %1864 = vmatpush1.msra.mxu0 0.0
      %1865 = vmatprep.subr.mxu0 0.0
      %1866 = vmatpush1.msra.mxu0 0.0
      %1867 = vmatprep.subr.mxu0 0.0
      %1868 = vmatpush1.msra.mxu0 0.0
      %1869 = vmatprep.subr.mxu0 0.0
      %1870 = vmatpush1.msra.mxu0 0.0
      %1871 = vmatprep.subr.mxu0 0.0
      %1872 = vmatpush1.msra.mxu0 0.0
      %1873 = vmatprep.subr.mxu0 0.0
      %1874 = vmatpush1.msra.mxu0 0.0
      %1875 = vmatprep.subr.mxu0 0.0
      %1876 = vmatpush1.msra.mxu0 0.0
      %1877 = vmatprep.subr.mxu0 0.0
      %1878 = vmatpush1.msra.mxu0 0.0
      %1879 = vmatprep.subr.mxu0 0.0
      %1880 = vmatpush1.msra.mxu0 0.0
      %1881 = vmatprep.subr.mxu0 0.0
      %1882 = vmatpush1.msra.mxu0 0.0
      %1883 = vmatprep.mubr.f32.mxu0 0.0
      %1884 = vmatmul.mubr.f32.gmra.mrb[0].mxu0 %v1721
      %v1885 = vpop.f32.mrb[0].mxu0
      %v1886 = vadd.f32 0.0, %v1885
      %v1887 = vpop.f32.mrb[0].mxu0
      %1888 = vmatprep.mubr.f32.mxu0 0.0
      %1889 = vmatmul.mubr.f32.gmra.mrb[0].mxu0 %v1724
      %v1890 = vpop.f32.mrb[0].mxu0
      %v1891 = vadd.f32 0.0, %v1890
      %v1892 = vpop.f32.mrb[0].mxu0
      %1893 = vmatprep.mubr.f32.mxu0 0.0
      %1894 = vmatmul.mubr.f32.gmra.mrb[0].mxu0 %v1727
      %v1895 = vpop.f32.mrb[0].mxu0
      %v1896 = vadd.f32 0.0, %v1895
      %v1897 = vpop.f32.mrb[0].mxu0
      %1898 = vmatprep.mubr.f32.mxu0 0.0
      %1899 = vmatmul.mubr.f32.gmra.mrb[0].mxu0 %v1730
      %v1900 = vpop.f32.mrb[0].mxu0
      %v1901 = vadd.f32 0.0, %v1900
      %v1902 = vpop.f32.mrb[0].mxu0
      %1903 = vmatprep.mubr.f32.mxu0 0.0
      %1904 = vmatmul.mubr.f32.gmra.mrb[0].mxu0 %v1733
      %v1905 = vpop.f32.mrb[0].mxu0
      %v1906 = vadd.f32 0.0, %v1905
      %v1907 = vpop.f32.mrb[0].mxu0
      %1908 = vmatprep.mubr.f32.mxu0 0.0
      %1909 = vmatmul.mubr.f32.gmra.mrb[0].mxu0 %v1736
      %v1910 = vpop.f32.mrb[0].mxu0
      %v1911 = vadd.f32 0.0, %v1910
      %v1912 = vpop.f32.mrb[0].mxu0
      %1913 = vmatprep.mubr.f32.mxu0 0.0
      %1914 = vmatmul.mubr.f32.gmra.mrb[0].mxu0 %v1739
      %v1915 = vpop.f32.mrb[0].mxu0
      %v1916 = vadd.f32 0.0, %v1915
      %v1917 = vpop.f32.mrb[0].mxu0
      %1918 = vmatprep.mubr.f32.mxu0 0.0
      %1919 = vmatmul.mubr.f32.gmra.mrb[0].mxu0 %v1742
      %v1920 = vpop.f32.mrb[0].mxu0
      %v1921 = vadd.f32 0.0, %v1920
      %v1922 = vpop.f32.mrb[0].mxu0
      %1923 = vmatprep.mubr.f32.mxu0 0.0
      %1924 = vmatmul.mubr.f32.gmra.mrb[0].mxu0 %v1745
      %v1925 = vpop.f32.mrb[0].mxu0
      %v1926 = vadd.f32 0.0, %v1925
      %v1927 = vpop.f32.mrb[0].mxu0
      %1928 = vmatprep.mubr.f32.mxu0 0.0
      %1929 = vmatmul.mubr.f32.gmra.mrb[0].mxu0 %v1748
      %v1930 = vpop.f32.mrb[0].mxu0
      %v1931 = vadd.f32 0.0, %v1930
      %v1932 = vpop.f32.mrb[0].mxu0
      %1933 = vmatprep.mubr.f32.mxu0 0.0
      %1934 = vmatmul.mubr.f32.gmra.mrb[0].mxu0 %v1751
      %v1935 = vpop.f32.mrb[0].mxu0
      %v1936 = vadd.f32 0.0, %v1935
      %v1937 = vpop.f32.mrb[0].mxu0
      %1938 = vmatprep.mubr.f32.mxu0 0.0
      %1939 = vmatmul.mubr.f32.gmra.mrb[0].mxu0 %v1754
      %v1940 = vpop.f32.mrb[0].mxu0
      %v1941 = vadd.f32 0.0, %v1940
      %v1942 = vpop.f32.mrb[0].mxu0
      %1943 = vmatprep.mubr.f32.mxu0 0.0
      %1944 = vmatmul.mubr.f32.gmra.mrb[0].mxu0 %v1757
      %v1945 = vpop.f32.mrb[0].mxu0
      %v1946 = vadd.f32 0.0, %v1945
      %v1947 = vpop.f32.mrb[0].mxu0
      %1948 = vmatprep.mubr.f32.mxu0 0.0
      %1949 = vmatmul.mubr.f32.gmra.mrb[0].mxu0 %v1760
      %v1950 = vpop.f32.mrb[0].mxu0
      %v1951 = vadd.f32 0.0, %v1950
      %v1952 = vpop.f32.mrb[0].mxu0
      %1953 = vmatprep.mubr.f32.mxu0 0.0
      %1954 = vmatmul.mubr.f32.gmra.mrb[0].mxu0 %v1763
      %v1955 = vpop.f32.mrb[0].mxu0
      %v1956 = vadd.f32 0.0, %v1955
      %v1957 = vpop.f32.mrb[0].mxu0
      %1958 = vmatprep.mubr.f32.mxu0 0.0
      %1959 = vmatmul.mubr.f32.gmra.mrb[0].mxu0 %v1766
      %v1960 = vpop.f32.mrb[0].mxu0
      %v1961 = vadd.f32 0.0, %v1960
      %v1962 = vpop.f32.mrb[0].mxu0
      %1963 = vmatprep.mubr.f32.mxu0 0.0
      %1964 = vmatmul.mubr.f32.gmra.mrb[0].mxu0 %v1769
      %v1965 = vpop.f32.mrb[0].mxu0
      %v1966 = vadd.f32 0.0, %v1965
      %v1967 = vpop.f32.mrb[0].mxu0
      %1968 = vmatprep.mubr.f32.mxu0 0.0
      %1969 = vmatmul.mubr.f32.gmra.mrb[0].mxu0 %v1772
      %v1970 = vpop.f32.mrb[0].mxu0
      %v1971 = vadd.f32 0.0, %v1970
      %v1972 = vpop.f32.mrb[0].mxu0
      %1973 = vmatprep.mubr.f32.mxu0 0.0
      %1974 = vmatmul.mubr.f32.gmra.mrb[0].mxu0 %v1775
      %v1975 = vpop.f32.mrb[0].mxu0
      %v1976 = vadd.f32 0.0, %v1975
      %v1977 = vpop.f32.mrb[0].mxu0
      %1978 = vmatprep.mubr.f32.mxu0 0.0
      %1979 = vmatmul.mubr.f32.gmra.mrb[0].mxu0 %v1778
      %v1980 = vpop.f32.mrb[0].mxu0
      %v1981 = vadd.f32 0.0, %v1980
      %v1982 = vpop.f32.mrb[0].mxu0
      %1983 = vmatprep.mubr.f32.mxu0 0.0
      %1984 = vmatmul.mubr.f32.gmra.mrb[0].mxu0 %v1781
      %v1985 = vpop.f32.mrb[0].mxu0
      %v1986 = vadd.f32 0.0, %v1985
      %v1987 = vpop.f32.mrb[0].mxu0
      %1988 = vmatprep.mubr.f32.mxu0 0.0
      %1989 = vmatmul.mubr.f32.gmra.mrb[0].mxu0 %v1784
      %v1990 = vpop.f32.mrb[0].mxu0
      %v1991 = vadd.f32 0.0, %v1990
      %v1992 = vpop.f32.mrb[0].mxu0
      %1993 = vmatprep.mubr.f32.mxu0 0.0
      %1994 = vmatmul.mubr.f32.gmra.mrb[0].mxu0 %v1787
      %v1995 = vpop.f32.mrb[0].mxu0
      %v1996 = vadd.f32 0.0, %v1995
      %v1997 = vpop.f32.mrb[0].mxu0
      %1998 = vmatprep.mubr.f32.mxu0 0.0
      %1999 = vmatmul.mubr.f32.gmra.mrb[0].mxu0 %v1790
      %v2000 = vpop.f32.mrb[0].mxu0
      %v2001 = vadd.f32 0.0, %v2000
      %v2002 = vpop.f32.mrb[0].mxu0
      %2003 = vmatprep.mubr.f32.mxu0 0.0
      %2004 = vmatmul.mubr.f32.gmra.mrb[0].mxu0 %v1793
      %v2005 = vpop.f32.mrb[0].mxu0
      %v2006 = vadd.f32 0.0, %v2005
      %v2007 = vpop.f32.mrb[0].mxu0
      %2008 = vmatprep.mubr.f32.mxu0 0.0
      %2009 = vmatmul.mubr.f32.gmra.mrb[0].mxu0 %v1796
      %v2010 = vpop.f32.mrb[0].mxu0
      %v2011 = vadd.f32 0.0, %v2010
      %v2012 = vpop.f32.mrb[0].mxu0
      %2013 = vmatprep.mubr.f32.mxu0 0.0
      %2014 = vmatmul.mubr.f32.gmra.mrb[0].mxu0 %v1799
      %v2015 = vpop.f32.mrb[0].mxu0
      %v2016 = vadd.f32 0.0, %v2015
      %v2017 = vpop.f32.mrb[0].mxu0
      %2018 = vmatprep.mubr.f32.mxu0 0.0
      %2019 = vmatmul.mubr.f32.gmra.mrb[0].mxu0 %v1802
      %v2020 = vpop.f32.mrb[0].mxu0
      %v2021 = vadd.f32 0.0, %v2020
      %v2022 = vpop.f32.mrb[0].mxu0
      %2023 = vmatprep.mubr.f32.mxu0 0.0
      %2024 = vmatmul.mubr.f32.gmra.mrb[0].mxu0 %v1805
      %v2025 = vpop.f32.mrb[0].mxu0
      %v2026 = vadd.f32 0.0, %v2025
      %v2027 = vpop.f32.mrb[0].mxu0
      %2028 = vmatprep.mubr.f32.mxu0 0.0
      %2029 = vmatmul.mubr.f32.gmra.mrb[0].mxu0 %v1808
      %v2030 = vpop.f32.mrb[0].mxu0
      %v2031 = vadd.f32 0.0, %v2030
      %v2032 = vpop.f32.mrb[0].mxu0
      %2033 = vmatprep.mubr.f32.mxu0 0.0
      %2034 = vmatmul.mubr.f32.gmra.mrb[0].mxu0 %v1811
      %v2035 = vpop.f32.mrb[0].mxu0
      %v2036 = vadd.f32 0.0, %v2035
      %v2037 = vpop.f32.mrb[0].mxu0
      %2038 = vmatprep.mubr.f32.mxu0 0.0
      %2039 = vmatmul.mubr.f32.gmra.mrb[0].mxu0 %v1814
      %v2040 = vpop.f32.mrb[0].mxu0
      %v2041 = vadd.f32 0.0, %v2040
      %v2042 = vpop.f32.mrb[0].mxu0
      %2043 = vdwg.mxu0
      %v2044 = vadd.f32 %v1654, %v1886
      %v2045 = vadd.f32 %v1655, %v1891
      %v2046 = vadd.f32 %v1656, %v1896
      %v2047 = vadd.f32 %v1657, %v1901
      %v2048 = vadd.f32 %v1658, %v1906
      %v2049 = vadd.f32 %v1659, %v1911
      %v2050 = vadd.f32 %v1660, %v1916
      %v2051 = vadd.f32 %v1661, %v1921
      %v2052 = vadd.f32 %v1662, %v1926
      %v2053 = vadd.f32 %v1663, %v1931
      %v2054 = vadd.f32 %v1664, %v1936
      %v2055 = vadd.f32 %v1665, %v1941
      %v2056 = vadd.f32 %v1666, %v1946
      %v2057 = vadd.f32 %v1667, %v1951
      %v2058 = vadd.f32 %v1668, %v1956
      %v2059 = vadd.f32 %v1669, %v1961
      %v2060 = vadd.f32 %v1670, %v1966
      %v2061 = vadd.f32 %v1671, %v1971
      %v2062 = vadd.f32 %v1672, %v1976
      %v2063 = vadd.f32 %v1673, %v1981
      %v2064 = vadd.f32 %v1674, %v1986
      %v2065 = vadd.f32 %v1675, %v1991
      %v2066 = vadd.f32 %v1676, %v1996
      %v2067 = vadd.f32 %v1677, %v2001
      %v2068 = vadd.f32 %v1678, %v2006
      %v2069 = vadd.f32 %v1679, %v2011
      %v2070 = vadd.f32 %v1680, %v2016
      %v2071 = vadd.f32 %v1681, %v2021
      %v2072 = vadd.f32 %v1682, %v2026
      %v2073 = vadd.f32 %v1683, %v2031
      %v2074 = vadd.f32 %v1684, %v2036
      %v2075 = vadd.f32 %v1685, %v2041
      %v2076 = vld [vmem:[%s546 + $0x1] sm:$0xff]
      %v2077 = vld [vmem:[%s546 + $0x9] sm:$0xff]
      %v2078 = vld [vmem:[%s546 + $0x19] sm:$0xff]
      %v2079 = vld [vmem:[%s546 + $0x21] sm:$0xff]
      %v2080 = vld [vmem:[%s546 + $0x31] sm:$0xff]
      %v2081 = vld [vmem:[%s546 + $0x39] sm:$0xff]
      %v2082 = vld [vmem:[%s546 + $0x49] sm:$0xff]
      %v2083 = vld [vmem:[%s546 + $0x51] sm:$0xff]
      %v2084 = vld [vmem:[%s546 + $0x61] sm:$0xff]
      %v2085 = vld [vmem:[%s546 + $0x69] sm:$0xff]
      %v2086 = vld [vmem:[%s546 + $0x79] sm:$0xff]
      %v2087 = vld [vmem:[%s546 + $0x81] sm:$0xff]
      %v2088 = vld [vmem:[%s546 + $0x91] sm:$0xff]
      %v2089 = vld [vmem:[%s546 + $0x99] sm:$0xff]
      %v2090 = vld [vmem:[%s546 + $0xa9] sm:$0xff]
      %v2091 = vld [vmem:[%s546 + $0xb1] sm:$0xff]
      %v2092 = vld [vmem:[%s546 + $0xc1] sm:$0xff]
      %v2093 = vld [vmem:[%s546 + $0xc9] sm:$0xff]
      %v2094 = vld [vmem:[%s546 + $0xd9] sm:$0xff]
      %v2095 = vld [vmem:[%s546 + $0xe1] sm:$0xff]
      %v2096 = vld [vmem:[%s546 + $0xf1] sm:$0xff]
      %v2097 = vld [vmem:[%s546 + $0xf9] sm:$0xff]
      %v2098 = vld [vmem:[%s546 + $0x109] sm:$0xff]
      %v2099 = vld [vmem:[%s546 + $0x111] sm:$0xff]
      %v2100 = vld [vmem:[%s546 + $0x121] sm:$0xff]
      %v2101 = vld [vmem:[%s546 + $0x129] sm:$0xff]
      %v2102 = vld [vmem:[%s546 + $0x139] sm:$0xff]
      %v2103 = vld [vmem:[%s546 + $0x141] sm:$0xff]
      %v2104 = vld [vmem:[%s546 + $0x151] sm:$0xff]
      %v2105 = vld [vmem:[%s546 + $0x159] sm:$0xff]
      %v2106 = vld [vmem:[%s546 + $0x169] sm:$0xff]
      %v2107 = vld [vmem:[%s546 + $0x171] sm:$0xff]
      %s2108 = scalar_lea.vmem %s4, 16
      %v2109 = vld [vmem:[%s2108] sm:$0xf]
      %v2111 = vsel %vm547, %v2076, 0
      %v2114 = vsel %vm547, %v2077, 0
      %v2117 = vsel %vm547, %v2078, 0
      %v2120 = vsel %vm547, %v2079, 0
      %v2123 = vsel %vm547, %v2080, 0
      %v2126 = vsel %vm547, %v2081, 0
      %v2129 = vsel %vm547, %v2082, 0
      %v2132 = vsel %vm547, %v2083, 0
      %v2135 = vsel %vm547, %v2084, 0
      %v2138 = vsel %vm547, %v2085, 0
      %v2141 = vsel %vm547, %v2086, 0
      %v2144 = vsel %vm547, %v2087, 0
      %v2147 = vsel %vm547, %v2088, 0
      %v2150 = vsel %vm547, %v2089, 0
      %v2153 = vsel %vm547, %v2090, 0
      %v2156 = vsel %vm547, %v2091, 0
      %v2159 = vsel %vm547, %v2092, 0
      %v2162 = vsel %vm547, %v2093, 0
      %v2165 = vsel %vm547, %v2094, 0
      %v2168 = vsel %vm547, %v2095, 0
      %v2171 = vsel %vm547, %v2096, 0
      %v2174 = vsel %vm547, %v2097, 0
      %v2177 = vsel %vm547, %v2098, 0
      %v2180 = vsel %vm547, %v2099, 0
      %v2183 = vsel %vm547, %v2100, 0
      %v2186 = vsel %vm547, %v2101, 0
      %v2189 = vsel %vm547, %v2102, 0
      %v2192 = vsel %vm547, %v2103, 0
      %v2195 = vsel %vm547, %v2104, 0
      %v2198 = vsel %vm547, %v2105, 0
      %v2201 = vsel %vm547, %v2106, 0
      %v2204 = vsel %vm547, %v2107, 0
      %v2207 = vsel %vm743, %v2109, 0
      %2209 = vmatprep.subr.mxu0 0.0
      %2210 = vmatpush1.msra.mxu0 %v2207
      %2211 = vmatprep.subr.mxu0 0.0
      %2212 = vmatpush1.msra.mxu0 0.0
      %2213 = vmatprep.subr.mxu0 0.0
      %2214 = vmatpush1.msra.mxu0 0.0
      %2215 = vmatprep.subr.mxu0 0.0
      %2216 = vmatpush1.msra.mxu0 0.0
      %2217 = vmatprep.subr.mxu0 0.0
      %2218 = vmatpush1.msra.mxu0 0.0
      %2219 = vmatprep.subr.mxu0 0.0
      %2220 = vmatpush1.msra.mxu0 0.0
      %2221 = vmatprep.subr.mxu0 0.0
      %2222 = vmatpush1.msra.mxu0 0.0
      %2223 = vmatprep.subr.mxu0 0.0
      %2224 = vmatpush1.msra.mxu0 0.0
      %2225 = vmatprep.subr.mxu0 0.0
      %2226 = vmatpush1.msra.mxu0 0.0
      %2227 = vmatprep.subr.mxu0 0.0
      %2228 = vmatpush1.msra.mxu0 0.0
      %2229 = vmatprep.subr.mxu0 0.0
      %2230 = vmatpush1.msra.mxu0 0.0
      %2231 = vmatprep.subr.mxu0 0.0
      %2232 = vmatpush1.msra.mxu0 0.0
      %2233 = vmatprep.subr.mxu0 0.0
      %2234 = vmatpush1.msra.mxu0 0.0
      %2235 = vmatprep.subr.mxu0 0.0
      %2236 = vmatpush1.msra.mxu0 0.0
      %2237 = vmatprep.subr.mxu0 0.0
      %2238 = vmatpush1.msra.mxu0 0.0
      %2239 = vmatprep.subr.mxu0 0.0
      %2240 = vmatpush1.msra.mxu0 0.0
      %2241 = vmatprep.subr.mxu0 0.0
      %2242 = vmatpush1.msra.mxu0 0.0
      %2243 = vmatprep.subr.mxu0 0.0
      %2244 = vmatpush1.msra.mxu0 0.0
      %2245 = vmatprep.subr.mxu0 0.0
      %2246 = vmatpush1.msra.mxu0 0.0
      %2247 = vmatprep.subr.mxu0 0.0
      %2248 = vmatpush1.msra.mxu0 0.0
      %2249 = vmatprep.subr.mxu0 0.0
      %2250 = vmatpush1.msra.mxu0 0.0
      %2251 = vmatprep.subr.mxu0 0.0
      %2252 = vmatpush1.msra.mxu0 0.0
      %2253 = vmatprep.subr.mxu0 0.0
      %2254 = vmatpush1.msra.mxu0 0.0
      %2255 = vmatprep.subr.mxu0 0.0
      %2256 = vmatpush1.msra.mxu0 0.0
      %2257 = vmatprep.subr.mxu0 0.0
      %2258 = vmatpush1.msra.mxu0 0.0
      %2259 = vmatprep.subr.mxu0 0.0
      %2260 = vmatpush1.msra.mxu0 0.0
      %2261 = vmatprep.subr.mxu0 0.0
      %2262 = vmatpush1.msra.mxu0 0.0
      %2263 = vmatprep.subr.mxu0 0.0
      %2264 = vmatpush1.msra.mxu0 0.0
      %2265 = vmatprep.subr.mxu0 0.0
      %2266 = vmatpush1.msra.mxu0 0.0
      %2267 = vmatprep.subr.mxu0 0.0
      %2268 = vmatpush1.msra.mxu0 0.0
      %2269 = vmatprep.subr.mxu0 0.0
      %2270 = vmatpush1.msra.mxu0 0.0
      %2271 = vmatprep.subr.mxu0 0.0
      %2272 = vmatpush1.msra.mxu0 0.0
      %2273 = vmatprep.mubr.f32.mxu0 0.0
      %2274 = vmatmul.mubr.f32.gmra.mrb[0].mxu0 %v2111
      %v2275 = vpop.f32.mrb[0].mxu0
      %v2276 = vadd.f32 0.0, %v2275
      %v2277 = vpop.f32.mrb[0].mxu0
      %2278 = vmatprep.mubr.f32.mxu0 0.0
      %2279 = vmatmul.mubr.f32.gmra.mrb[0].mxu0 %v2114
      %v2280 = vpop.f32.mrb[0].mxu0
      %v2281 = vadd.f32 0.0, %v2280
      %v2282 = vpop.f32.mrb[0].mxu0
      %2283 = vmatprep.mubr.f32.mxu0 0.0
      %2284 = vmatmul.mubr.f32.gmra.mrb[0].mxu0 %v2117
      %v2285 = vpop.f32.mrb[0].mxu0
      %v2286 = vadd.f32 0.0, %v2285
      %v2287 = vpop.f32.mrb[0].mxu0
      %2288 = vmatprep.mubr.f32.mxu0 0.0
      %2289 = vmatmul.mubr.f32.gmra.mrb[0].mxu0 %v2120
      %v2290 = vpop.f32.mrb[0].mxu0
      %v2291 = vadd.f32 0.0, %v2290
      %v2292 = vpop.f32.mrb[0].mxu0
      %2293 = vmatprep.mubr.f32.mxu0 0.0
      %2294 = vmatmul.mubr.f32.gmra.mrb[0].mxu0 %v2123
      %v2295 = vpop.f32.mrb[0].mxu0
      %v2296 = vadd.f32 0.0, %v2295
      %v2297 = vpop.f32.mrb[0].mxu0
      %2298 = vmatprep.mubr.f32.mxu0 0.0
      %2299 = vmatmul.mubr.f32.gmra.mrb[0].mxu0 %v2126
      %v2300 = vpop.f32.mrb[0].mxu0
      %v2301 = vadd.f32 0.0, %v2300
      %v2302 = vpop.f32.mrb[0].mxu0
      %2303 = vmatprep.mubr.f32.mxu0 0.0
      %2304 = vmatmul.mubr.f32.gmra.mrb[0].mxu0 %v2129
      %v2305 = vpop.f32.mrb[0].mxu0
      %v2306 = vadd.f32 0.0, %v2305
      %v2307 = vpop.f32.mrb[0].mxu0
      %2308 = vmatprep.mubr.f32.mxu0 0.0
      %2309 = vmatmul.mubr.f32.gmra.mrb[0].mxu0 %v2132
      %v2310 = vpop.f32.mrb[0].mxu0
      %v2311 = vadd.f32 0.0, %v2310
      %v2312 = vpop.f32.mrb[0].mxu0
      %2313 = vmatprep.mubr.f32.mxu0 0.0
      %2314 = vmatmul.mubr.f32.gmra.mrb[0].mxu0 %v2135
      %v2315 = vpop.f32.mrb[0].mxu0
      %v2316 = vadd.f32 0.0, %v2315
      %v2317 = vpop.f32.mrb[0].mxu0
      %2318 = vmatprep.mubr.f32.mxu0 0.0
      %2319 = vmatmul.mubr.f32.gmra.mrb[0].mxu0 %v2138
      %v2320 = vpop.f32.mrb[0].mxu0
      %v2321 = vadd.f32 0.0, %v2320
      %v2322 = vpop.f32.mrb[0].mxu0
      %2323 = vmatprep.mubr.f32.mxu0 0.0
      %2324 = vmatmul.mubr.f32.gmra.mrb[0].mxu0 %v2141
      %v2325 = vpop.f32.mrb[0].mxu0
      %v2326 = vadd.f32 0.0, %v2325
      %v2327 = vpop.f32.mrb[0].mxu0
      %2328 = vmatprep.mubr.f32.mxu0 0.0
      %2329 = vmatmul.mubr.f32.gmra.mrb[0].mxu0 %v2144
      %v2330 = vpop.f32.mrb[0].mxu0
      %v2331 = vadd.f32 0.0, %v2330
      %v2332 = vpop.f32.mrb[0].mxu0
      %2333 = vmatprep.mubr.f32.mxu0 0.0
      %2334 = vmatmul.mubr.f32.gmra.mrb[0].mxu0 %v2147
      %v2335 = vpop.f32.mrb[0].mxu0
      %v2336 = vadd.f32 0.0, %v2335
      %v2337 = vpop.f32.mrb[0].mxu0
      %2338 = vmatprep.mubr.f32.mxu0 0.0
      %2339 = vmatmul.mubr.f32.gmra.mrb[0].mxu0 %v2150
      %v2340 = vpop.f32.mrb[0].mxu0
      %v2341 = vadd.f32 0.0, %v2340
      %v2342 = vpop.f32.mrb[0].mxu0
      %2343 = vmatprep.mubr.f32.mxu0 0.0
      %2344 = vmatmul.mubr.f32.gmra.mrb[0].mxu0 %v2153
      %v2345 = vpop.f32.mrb[0].mxu0
      %v2346 = vadd.f32 0.0, %v2345
      %v2347 = vpop.f32.mrb[0].mxu0
      %2348 = vmatprep.mubr.f32.mxu0 0.0
      %2349 = vmatmul.mubr.f32.gmra.mrb[0].mxu0 %v2156
      %v2350 = vpop.f32.mrb[0].mxu0
      %v2351 = vadd.f32 0.0, %v2350
      %v2352 = vpop.f32.mrb[0].mxu0
      %2353 = vmatprep.mubr.f32.mxu0 0.0
      %2354 = vmatmul.mubr.f32.gmra.mrb[0].mxu0 %v2159
      %v2355 = vpop.f32.mrb[0].mxu0
      %v2356 = vadd.f32 0.0, %v2355
      %v2357 = vpop.f32.mrb[0].mxu0
      %2358 = vmatprep.mubr.f32.mxu0 0.0
      %2359 = vmatmul.mubr.f32.gmra.mrb[0].mxu0 %v2162
      %v2360 = vpop.f32.mrb[0].mxu0
      %v2361 = vadd.f32 0.0, %v2360
      %v2362 = vpop.f32.mrb[0].mxu0
      %2363 = vmatprep.mubr.f32.mxu0 0.0
      %2364 = vmatmul.mubr.f32.gmra.mrb[0].mxu0 %v2165
      %v2365 = vpop.f32.mrb[0].mxu0
      %v2366 = vadd.f32 0.0, %v2365
      %v2367 = vpop.f32.mrb[0].mxu0
      %2368 = vmatprep.mubr.f32.mxu0 0.0
      %2369 = vmatmul.mubr.f32.gmra.mrb[0].mxu0 %v2168
      %v2370 = vpop.f32.mrb[0].mxu0
      %v2371 = vadd.f32 0.0, %v2370
      %v2372 = vpop.f32.mrb[0].mxu0
      %2373 = vmatprep.mubr.f32.mxu0 0.0
      %2374 = vmatmul.mubr.f32.gmra.mrb[0].mxu0 %v2171
      %v2375 = vpop.f32.mrb[0].mxu0
      %v2376 = vadd.f32 0.0, %v2375
      %v2377 = vpop.f32.mrb[0].mxu0
      %2378 = vmatprep.mubr.f32.mxu0 0.0
      %2379 = vmatmul.mubr.f32.gmra.mrb[0].mxu0 %v2174
      %v2380 = vpop.f32.mrb[0].mxu0
      %v2381 = vadd.f32 0.0, %v2380
      %v2382 = vpop.f32.mrb[0].mxu0
      %2383 = vmatprep.mubr.f32.mxu0 0.0
      %2384 = vmatmul.mubr.f32.gmra.mrb[0].mxu0 %v2177
      %v2385 = vpop.f32.mrb[0].mxu0
      %v2386 = vadd.f32 0.0, %v2385
      %v2387 = vpop.f32.mrb[0].mxu0
      %2388 = vmatprep.mubr.f32.mxu0 0.0
      %2389 = vmatmul.mubr.f32.gmra.mrb[0].mxu0 %v2180
      %v2390 = vpop.f32.mrb[0].mxu0
      %v2391 = vadd.f32 0.0, %v2390
      %v2392 = vpop.f32.mrb[0].mxu0
      %2393 = vmatprep.mubr.f32.mxu0 0.0
      %2394 = vmatmul.mubr.f32.gmra.mrb[0].mxu0 %v2183
      %v2395 = vpop.f32.mrb[0].mxu0
      %v2396 = vadd.f32 0.0, %v2395
      %v2397 = vpop.f32.mrb[0].mxu0
      %2398 = vmatprep.mubr.f32.mxu0 0.0
      %2399 = vmatmul.mubr.f32.gmra.mrb[0].mxu0 %v2186
      %v2400 = vpop.f32.mrb[0].mxu0
      %v2401 = vadd.f32 0.0, %v2400
      %v2402 = vpop.f32.mrb[0].mxu0
      %2403 = vmatprep.mubr.f32.mxu0 0.0
      %2404 = vmatmul.mubr.f32.gmra.mrb[0].mxu0 %v2189
      %v2405 = vpop.f32.mrb[0].mxu0
      %v2406 = vadd.f32 0.0, %v2405
      %v2407 = vpop.f32.mrb[0].mxu0
      %2408 = vmatprep.mubr.f32.mxu0 0.0
      %2409 = vmatmul.mubr.f32.gmra.mrb[0].mxu0 %v2192
      %v2410 = vpop.f32.mrb[0].mxu0
      %v2411 = vadd.f32 0.0, %v2410
      %v2412 = vpop.f32.mrb[0].mxu0
      %2413 = vmatprep.mubr.f32.mxu0 0.0
      %2414 = vmatmul.mubr.f32.gmra.mrb[0].mxu0 %v2195
      %v2415 = vpop.f32.mrb[0].mxu0
      %v2416 = vadd.f32 0.0, %v2415
      %v2417 = vpop.f32.mrb[0].mxu0
      %2418 = vmatprep.mubr.f32.mxu0 0.0
      %2419 = vmatmul.mubr.f32.gmra.mrb[0].mxu0 %v2198
      %v2420 = vpop.f32.mrb[0].mxu0
      %v2421 = vadd.f32 0.0, %v2420
      %v2422 = vpop.f32.mrb[0].mxu0
      %2423 = vmatprep.mubr.f32.mxu0 0.0
      %2424 = vmatmul.mubr.f32.gmra.mrb[0].mxu0 %v2201
      %v2425 = vpop.f32.mrb[0].mxu0
      %v2426 = vadd.f32 0.0, %v2425
      %v2427 = vpop.f32.mrb[0].mxu0
      %2428 = vmatprep.mubr.f32.mxu0 0.0
      %2429 = vmatmul.mubr.f32.gmra.mrb[0].mxu0 %v2204
      %v2430 = vpop.f32.mrb[0].mxu0
      %v2431 = vadd.f32 0.0, %v2430
      %v2432 = vpop.f32.mrb[0].mxu0
      %2433 = vdwg.mxu0
      %v2434 = vadd.f32 %v2044, %v2276
      %v2435 = vadd.f32 %v2045, %v2281
      %v2436 = vadd.f32 %v2046, %v2286
      %v2437 = vadd.f32 %v2047, %v2291
      %v2438 = vadd.f32 %v2048, %v2296
      %v2439 = vadd.f32 %v2049, %v2301
      %v2440 = vadd.f32 %v2050, %v2306
      %v2441 = vadd.f32 %v2051, %v2311
      %v2442 = vadd.f32 %v2052, %v2316
      %v2443 = vadd.f32 %v2053, %v2321
      %v2444 = vadd.f32 %v2054, %v2326
      %v2445 = vadd.f32 %v2055, %v2331
      %v2446 = vadd.f32 %v2056, %v2336
      %v2447 = vadd.f32 %v2057, %v2341
      %v2448 = vadd.f32 %v2058, %v2346
      %v2449 = vadd.f32 %v2059, %v2351
      %v2450 = vadd.f32 %v2060, %v2356
      %v2451 = vadd.f32 %v2061, %v2361
      %v2452 = vadd.f32 %v2062, %v2366
      %v2453 = vadd.f32 %v2063, %v2371
      %v2454 = vadd.f32 %v2064, %v2376
      %v2455 = vadd.f32 %v2065, %v2381
      %v2456 = vadd.f32 %v2066, %v2386
      %v2457 = vadd.f32 %v2067, %v2391
      %v2458 = vadd.f32 %v2068, %v2396
      %v2459 = vadd.f32 %v2069, %v2401
      %v2460 = vadd.f32 %v2070, %v2406
      %v2461 = vadd.f32 %v2071, %v2411
      %v2462 = vadd.f32 %v2072, %v2416
      %v2463 = vadd.f32 %v2073, %v2421
      %v2464 = vadd.f32 %v2074, %v2426
      %v2465 = vadd.f32 %v2075, %v2431
      %v2466 = vld [vmem:[%s546 + $0x2] sm:$0xff]
      %v2467 = vld [vmem:[%s546 + $0xa] sm:$0xff]
      %v2468 = vld [vmem:[%s546 + $0x1a] sm:$0xff]
      %v2469 = vld [vmem:[%s546 + $0x22] sm:$0xff]
      %v2470 = vld [vmem:[%s546 + $0x32] sm:$0xff]
      %v2471 = vld [vmem:[%s546 + $0x3a] sm:$0xff]
      %v2472 = vld [vmem:[%s546 + $0x4a] sm:$0xff]
      %v2473 = vld [vmem:[%s546 + $0x52] sm:$0xff]
      %v2474 = vld [vmem:[%s546 + $0x62] sm:$0xff]
      %v2475 = vld [vmem:[%s546 + $0x6a] sm:$0xff]
      %v2476 = vld [vmem:[%s546 + $0x7a] sm:$0xff]
      %v2477 = vld [vmem:[%s546 + $0x82] sm:$0xff]
      %v2478 = vld [vmem:[%s546 + $0x92] sm:$0xff]
      %v2479 = vld [vmem:[%s546 + $0x9a] sm:$0xff]
      %v2480 = vld [vmem:[%s546 + $0xaa] sm:$0xff]
      %v2481 = vld [vmem:[%s546 + $0xb2] sm:$0xff]
      %v2482 = vld [vmem:[%s546 + $0xc2] sm:$0xff]
      %v2483 = vld [vmem:[%s546 + $0xca] sm:$0xff]
      %v2484 = vld [vmem:[%s546 + $0xda] sm:$0xff]
      %v2485 = vld [vmem:[%s546 + $0xe2] sm:$0xff]
      %v2486 = vld [vmem:[%s546 + $0xf2] sm:$0xff]
      %v2487 = vld [vmem:[%s546 + $0xfa] sm:$0xff]
      %v2488 = vld [vmem:[%s546 + $0x10a] sm:$0xff]
      %v2489 = vld [vmem:[%s546 + $0x112] sm:$0xff]
      %v2490 = vld [vmem:[%s546 + $0x122] sm:$0xff]
      %v2491 = vld [vmem:[%s546 + $0x12a] sm:$0xff]
      %v2492 = vld [vmem:[%s546 + $0x13a] sm:$0xff]
      %v2493 = vld [vmem:[%s546 + $0x142] sm:$0xff]
      %v2494 = vld [vmem:[%s546 + $0x152] sm:$0xff]
      %v2495 = vld [vmem:[%s546 + $0x15a] sm:$0xff]
      %v2496 = vld [vmem:[%s546 + $0x16a] sm:$0xff]
      %v2497 = vld [vmem:[%s546 + $0x172] sm:$0xff]
      %s2498 = scalar_lea.vmem %s4, 20
      %v2499 = vld [vmem:[%s2498] sm:$0xf]
      %v2501 = vsel %vm547, %v2466, 0
      %v2504 = vsel %vm547, %v2467, 0
      %v2507 = vsel %vm547, %v2468, 0
      %v2510 = vsel %vm547, %v2469, 0
      %v2513 = vsel %vm547, %v2470, 0
      %v2516 = vsel %vm547, %v2471, 0
      %v2519 = vsel %vm547, %v2472, 0
      %v2522 = vsel %vm547, %v2473, 0
      %v2525 = vsel %vm547, %v2474, 0
      %v2528 = vsel %vm547, %v2475, 0
      %v2531 = vsel %vm547, %v2476, 0
      %v2534 = vsel %vm547, %v2477, 0
      %v2537 = vsel %vm547, %v2478, 0
      %v2540 = vsel %vm547, %v2479, 0
      %v2543 = vsel %vm547, %v2480, 0
      %v2546 = vsel %vm547, %v2481, 0
      %v2549 = vsel %vm547, %v2482, 0
      %v2552 = vsel %vm547, %v2483, 0
      %v2555 = vsel %vm547, %v2484, 0
      %v2558 = vsel %vm547, %v2485, 0
      %v2561 = vsel %vm547, %v2486, 0
      %v2564 = vsel %vm547, %v2487, 0
      %v2567 = vsel %vm547, %v2488, 0
      %v2570 = vsel %vm547, %v2489, 0
      %v2573 = vsel %vm547, %v2490, 0
      %v2576 = vsel %vm547, %v2491, 0
      %v2579 = vsel %vm547, %v2492, 0
      %v2582 = vsel %vm547, %v2493, 0
      %v2585 = vsel %vm547, %v2494, 0
      %v2588 = vsel %vm547, %v2495, 0
      %v2591 = vsel %vm547, %v2496, 0
      %v2594 = vsel %vm547, %v2497, 0
      %v2597 = vsel %vm743, %v2499, 0
      %2599 = vmatprep.subr.mxu0 0.0
      %2600 = vmatpush1.msra.mxu0 %v2597
      %2601 = vmatprep.subr.mxu0 0.0
      %2602 = vmatpush1.msra.mxu0 0.0
      %2603 = vmatprep.subr.mxu0 0.0
      %2604 = vmatpush1.msra.mxu0 0.0
      %2605 = vmatprep.subr.mxu0 0.0
      %2606 = vmatpush1.msra.mxu0 0.0
      %2607 = vmatprep.subr.mxu0 0.0
      %2608 = vmatpush1.msra.mxu0 0.0
      %2609 = vmatprep.subr.mxu0 0.0
      %2610 = vmatpush1.msra.mxu0 0.0
      %2611 = vmatprep.subr.mxu0 0.0
      %2612 = vmatpush1.msra.mxu0 0.0
      %2613 = vmatprep.subr.mxu0 0.0
      %2614 = vmatpush1.msra.mxu0 0.0
      %2615 = vmatprep.subr.mxu0 0.0
      %2616 = vmatpush1.msra.mxu0 0.0
      %2617 = vmatprep.subr.mxu0 0.0
      %2618 = vmatpush1.msra.mxu0 0.0
      %2619 = vmatprep.subr.mxu0 0.0
      %2620 = vmatpush1.msra.mxu0 0.0
      %2621 = vmatprep.subr.mxu0 0.0
      %2622 = vmatpush1.msra.mxu0 0.0
      %2623 = vmatprep.subr.mxu0 0.0
      %2624 = vmatpush1.msra.mxu0 0.0
      %2625 = vmatprep.subr.mxu0 0.0
      %2626 = vmatpush1.msra.mxu0 0.0
      %2627 = vmatprep.subr.mxu0 0.0
      %2628 = vmatpush1.msra.mxu0 0.0
      %2629 = vmatprep.subr.mxu0 0.0
      %2630 = vmatpush1.msra.mxu0 0.0
      %2631 = vmatprep.subr.mxu0 0.0
      %2632 = vmatpush1.msra.mxu0 0.0
      %2633 = vmatprep.subr.mxu0 0.0
      %2634 = vmatpush1.msra.mxu0 0.0
      %2635 = vmatprep.subr.mxu0 0.0
      %2636 = vmatpush1.msra.mxu0 0.0
      %2637 = vmatprep.subr.mxu0 0.0
      %2638 = vmatpush1.msra.mxu0 0.0
      %2639 = vmatprep.subr.mxu0 0.0
      %2640 = vmatpush1.msra.mxu0 0.0
      %2641 = vmatprep.subr.mxu0 0.0
      %2642 = vmatpush1.msra.mxu0 0.0
      %2643 = vmatprep.subr.mxu0 0.0
      %2644 = vmatpush1.msra.mxu0 0.0
      %2645 = vmatprep.subr.mxu0 0.0
      %2646 = vmatpush1.msra.mxu0 0.0
      %2647 = vmatprep.subr.mxu0 0.0
      %2648 = vmatpush1.msra.mxu0 0.0
      %2649 = vmatprep.subr.mxu0 0.0
      %2650 = vmatpush1.msra.mxu0 0.0
      %2651 = vmatprep.subr.mxu0 0.0
      %2652 = vmatpush1.msra.mxu0 0.0
      %2653 = vmatprep.subr.mxu0 0.0
      %2654 = vmatpush1.msra.mxu0 0.0
      %2655 = vmatprep.subr.mxu0 0.0
      %2656 = vmatpush1.msra.mxu0 0.0
      %2657 = vmatprep.subr.mxu0 0.0
      %2658 = vmatpush1.msra.mxu0 0.0
      %2659 = vmatprep.subr.mxu0 0.0
      %2660 = vmatpush1.msra.mxu0 0.0
      %2661 = vmatprep.subr.mxu0 0.0
      %2662 = vmatpush1.msra.mxu0 0.0
      %2663 = vmatprep.mubr.f32.mxu0 0.0
      %2664 = vmatmul.mubr.f32.gmra.mrb[0].mxu0 %v2501
      %v2665 = vpop.f32.mrb[0].mxu0
      %v2666 = vadd.f32 0.0, %v2665
      %v2667 = vpop.f32.mrb[0].mxu0
      %2668 = vmatprep.mubr.f32.mxu0 0.0
      %2669 = vmatmul.mubr.f32.gmra.mrb[0].mxu0 %v2504
      %v2670 = vpop.f32.mrb[0].mxu0
      %v2671 = vadd.f32 0.0, %v2670
      %v2672 = vpop.f32.mrb[0].mxu0
      %2673 = vmatprep.mubr.f32.mxu0 0.0
      %2674 = vmatmul.mubr.f32.gmra.mrb[0].mxu0 %v2507
      %v2675 = vpop.f32.mrb[0].mxu0
      %v2676 = vadd.f32 0.0, %v2675
      %v2677 = vpop.f32.mrb[0].mxu0
      %2678 = vmatprep.mubr.f32.mxu0 0.0
      %2679 = vmatmul.mubr.f32.gmra.mrb[0].mxu0 %v2510
      %v2680 = vpop.f32.mrb[0].mxu0
      %v2681 = vadd.f32 0.0, %v2680
      %v2682 = vpop.f32.mrb[0].mxu0
      %2683 = vmatprep.mubr.f32.mxu0 0.0
      %2684 = vmatmul.mubr.f32.gmra.mrb[0].mxu0 %v2513
      %v2685 = vpop.f32.mrb[0].mxu0
      %v2686 = vadd.f32 0.0, %v2685
      %v2687 = vpop.f32.mrb[0].mxu0
      %2688 = vmatprep.mubr.f32.mxu0 0.0
      %2689 = vmatmul.mubr.f32.gmra.mrb[0].mxu0 %v2516
      %v2690 = vpop.f32.mrb[0].mxu0
      %v2691 = vadd.f32 0.0, %v2690
      %v2692 = vpop.f32.mrb[0].mxu0
      %2693 = vmatprep.mubr.f32.mxu0 0.0
      %2694 = vmatmul.mubr.f32.gmra.mrb[0].mxu0 %v2519
      %v2695 = vpop.f32.mrb[0].mxu0
      %v2696 = vadd.f32 0.0, %v2695
      %v2697 = vpop.f32.mrb[0].mxu0
      %2698 = vmatprep.mubr.f32.mxu0 0.0
      %2699 = vmatmul.mubr.f32.gmra.mrb[0].mxu0 %v2522
      %v2700 = vpop.f32.mrb[0].mxu0
      %v2701 = vadd.f32 0.0, %v2700
      %v2702 = vpop.f32.mrb[0].mxu0
      %2703 = vmatprep.mubr.f32.mxu0 0.0
      %2704 = vmatmul.mubr.f32.gmra.mrb[0].mxu0 %v2525
      %v2705 = vpop.f32.mrb[0].mxu0
      %v2706 = vadd.f32 0.0, %v2705
      %v2707 = vpop.f32.mrb[0].mxu0
      %2708 = vmatprep.mubr.f32.mxu0 0.0
      %2709 = vmatmul.mubr.f32.gmra.mrb[0].mxu0 %v2528
      %v2710 = vpop.f32.mrb[0].mxu0
      %v2711 = vadd.f32 0.0, %v2710
      %v2712 = vpop.f32.mrb[0].mxu0
      %2713 = vmatprep.mubr.f32.mxu0 0.0
      %2714 = vmatmul.mubr.f32.gmra.mrb[0].mxu0 %v2531
      %v2715 = vpop.f32.mrb[0].mxu0
      %v2716 = vadd.f32 0.0, %v2715
      %v2717 = vpop.f32.mrb[0].mxu0
      %2718 = vmatprep.mubr.f32.mxu0 0.0
      %2719 = vmatmul.mubr.f32.gmra.mrb[0].mxu0 %v2534
      %v2720 = vpop.f32.mrb[0].mxu0
      %v2721 = vadd.f32 0.0, %v2720
      %v2722 = vpop.f32.mrb[0].mxu0
      %2723 = vmatprep.mubr.f32.mxu0 0.0
      %2724 = vmatmul.mubr.f32.gmra.mrb[0].mxu0 %v2537
      %v2725 = vpop.f32.mrb[0].mxu0
      %v2726 = vadd.f32 0.0, %v2725
      %v2727 = vpop.f32.mrb[0].mxu0
      %2728 = vmatprep.mubr.f32.mxu0 0.0
      %2729 = vmatmul.mubr.f32.gmra.mrb[0].mxu0 %v2540
      %v2730 = vpop.f32.mrb[0].mxu0
      %v2731 = vadd.f32 0.0, %v2730
      %v2732 = vpop.f32.mrb[0].mxu0
      %2733 = vmatprep.mubr.f32.mxu0 0.0
      %2734 = vmatmul.mubr.f32.gmra.mrb[0].mxu0 %v2543
      %v2735 = vpop.f32.mrb[0].mxu0
      %v2736 = vadd.f32 0.0, %v2735
      %v2737 = vpop.f32.mrb[0].mxu0
      %2738 = vmatprep.mubr.f32.mxu0 0.0
      %2739 = vmatmul.mubr.f32.gmra.mrb[0].mxu0 %v2546
      %v2740 = vpop.f32.mrb[0].mxu0
      %v2741 = vadd.f32 0.0, %v2740
      %v2742 = vpop.f32.mrb[0].mxu0
      %2743 = vmatprep.mubr.f32.mxu0 0.0
      %2744 = vmatmul.mubr.f32.gmra.mrb[0].mxu0 %v2549
      %v2745 = vpop.f32.mrb[0].mxu0
      %v2746 = vadd.f32 0.0, %v2745
      %v2747 = vpop.f32.mrb[0].mxu0
      %2748 = vmatprep.mubr.f32.mxu0 0.0
      %2749 = vmatmul.mubr.f32.gmra.mrb[0].mxu0 %v2552
      %v2750 = vpop.f32.mrb[0].mxu0
      %v2751 = vadd.f32 0.0, %v2750
      %v2752 = vpop.f32.mrb[0].mxu0
      %2753 = vmatprep.mubr.f32.mxu0 0.0
      %2754 = vmatmul.mubr.f32.gmra.mrb[0].mxu0 %v2555
      %v2755 = vpop.f32.mrb[0].mxu0
      %v2756 = vadd.f32 0.0, %v2755
      %v2757 = vpop.f32.mrb[0].mxu0
      %2758 = vmatprep.mubr.f32.mxu0 0.0
      %2759 = vmatmul.mubr.f32.gmra.mrb[0].mxu0 %v2558
      %v2760 = vpop.f32.mrb[0].mxu0
      %v2761 = vadd.f32 0.0, %v2760
      %v2762 = vpop.f32.mrb[0].mxu0
      %2763 = vmatprep.mubr.f32.mxu0 0.0
      %2764 = vmatmul.mubr.f32.gmra.mrb[0].mxu0 %v2561
      %v2765 = vpop.f32.mrb[0].mxu0
      %v2766 = vadd.f32 0.0, %v2765
      %v2767 = vpop.f32.mrb[0].mxu0
      %2768 = vmatprep.mubr.f32.mxu0 0.0
      %2769 = vmatmul.mubr.f32.gmra.mrb[0].mxu0 %v2564
      %v2770 = vpop.f32.mrb[0].mxu0
      %v2771 = vadd.f32 0.0, %v2770
      %v2772 = vpop.f32.mrb[0].mxu0
      %2773 = vmatprep.mubr.f32.mxu0 0.0
      %2774 = vmatmul.mubr.f32.gmra.mrb[0].mxu0 %v2567
      %v2775 = vpop.f32.mrb[0].mxu0
      %v2776 = vadd.f32 0.0, %v2775
      %v2777 = vpop.f32.mrb[0].mxu0
      %2778 = vmatprep.mubr.f32.mxu0 0.0
      %2779 = vmatmul.mubr.f32.gmra.mrb[0].mxu0 %v2570
      %v2780 = vpop.f32.mrb[0].mxu0
      %v2781 = vadd.f32 0.0, %v2780
      %v2782 = vpop.f32.mrb[0].mxu0
      %2783 = vmatprep.mubr.f32.mxu0 0.0
      %2784 = vmatmul.mubr.f32.gmra.mrb[0].mxu0 %v2573
      %v2785 = vpop.f32.mrb[0].mxu0
      %v2786 = vadd.f32 0.0, %v2785
      %v2787 = vpop.f32.mrb[0].mxu0
      %2788 = vmatprep.mubr.f32.mxu0 0.0
      %2789 = vmatmul.mubr.f32.gmra.mrb[0].mxu0 %v2576
      %v2790 = vpop.f32.mrb[0].mxu0
      %v2791 = vadd.f32 0.0, %v2790
      %v2792 = vpop.f32.mrb[0].mxu0
      %2793 = vmatprep.mubr.f32.mxu0 0.0
      %2794 = vmatmul.mubr.f32.gmra.mrb[0].mxu0 %v2579
      %v2795 = vpop.f32.mrb[0].mxu0
      %v2796 = vadd.f32 0.0, %v2795
      %v2797 = vpop.f32.mrb[0].mxu0
      %2798 = vmatprep.mubr.f32.mxu0 0.0
      %2799 = vmatmul.mubr.f32.gmra.mrb[0].mxu0 %v2582
      %v2800 = vpop.f32.mrb[0].mxu0
      %v2801 = vadd.f32 0.0, %v2800
      %v2802 = vpop.f32.mrb[0].mxu0
      %2803 = vmatprep.mubr.f32.mxu0 0.0
      %2804 = vmatmul.mubr.f32.gmra.mrb[0].mxu0 %v2585
      %v2805 = vpop.f32.mrb[0].mxu0
      %v2806 = vadd.f32 0.0, %v2805
      %v2807 = vpop.f32.mrb[0].mxu0
      %2808 = vmatprep.mubr.f32.mxu0 0.0
      %2809 = vmatmul.mubr.f32.gmra.mrb[0].mxu0 %v2588
      %v2810 = vpop.f32.mrb[0].mxu0
      %v2811 = vadd.f32 0.0, %v2810
      %v2812 = vpop.f32.mrb[0].mxu0
      %2813 = vmatprep.mubr.f32.mxu0 0.0
      %2814 = vmatmul.mubr.f32.gmra.mrb[0].mxu0 %v2591
      %v2815 = vpop.f32.mrb[0].mxu0
      %v2816 = vadd.f32 0.0, %v2815
      %v2817 = vpop.f32.mrb[0].mxu0
      %2818 = vmatprep.mubr.f32.mxu0 0.0
      %2819 = vmatmul.mubr.f32.gmra.mrb[0].mxu0 %v2594
      %v2820 = vpop.f32.mrb[0].mxu0
      %v2821 = vadd.f32 0.0, %v2820
      %v2822 = vpop.f32.mrb[0].mxu0
      %2823 = vdwg.mxu0
      %v2824 = vadd.f32 %v2434, %v2666
      %v2825 = vadd.f32 %v2435, %v2671
      %v2826 = vadd.f32 %v2436, %v2676
      %v2827 = vadd.f32 %v2437, %v2681
      %v2828 = vadd.f32 %v2438, %v2686
      %v2829 = vadd.f32 %v2439, %v2691
      %v2830 = vadd.f32 %v2440, %v2696
      %v2831 = vadd.f32 %v2441, %v2701
      %v2832 = vadd.f32 %v2442, %v2706
      %v2833 = vadd.f32 %v2443, %v2711
      %v2834 = vadd.f32 %v2444, %v2716
      %v2835 = vadd.f32 %v2445, %v2721
      %v2836 = vadd.f32 %v2446, %v2726
      %v2837 = vadd.f32 %v2447, %v2731
      %v2838 = vadd.f32 %v2448, %v2736
      %v2839 = vadd.f32 %v2449, %v2741
      %v2840 = vadd.f32 %v2450, %v2746
      %v2841 = vadd.f32 %v2451, %v2751
      %v2842 = vadd.f32 %v2452, %v2756
      %v2843 = vadd.f32 %v2453, %v2761
      %v2844 = vadd.f32 %v2454, %v2766
      %v2845 = vadd.f32 %v2455, %v2771
      %v2846 = vadd.f32 %v2456, %v2776
      %v2847 = vadd.f32 %v2457, %v2781
      %v2848 = vadd.f32 %v2458, %v2786
      %v2849 = vadd.f32 %v2459, %v2791
      %v2850 = vadd.f32 %v2460, %v2796
      %v2851 = vadd.f32 %v2461, %v2801
      %v2852 = vadd.f32 %v2462, %v2806
      %v2853 = vadd.f32 %v2463, %v2811
      %v2854 = vadd.f32 %v2464, %v2816
      %v2855 = vadd.f32 %v2465, %v2821
      %s2856 = scalar_lea.vmem [#allocation2], 48
      %v2857 = vld [vmem:[%s2856] sm:$0xff]
      %v2858 = vld [vmem:[%s2856 + $0x8] sm:$0xff]
      %v2859 = vld [vmem:[%s2856 + $0x18] sm:$0xff]
      %v2860 = vld [vmem:[%s2856 + $0x20] sm:$0xff]
      %v2861 = vld [vmem:[%s2856 + $0x30] sm:$0xff]
      %v2862 = vld [vmem:[%s2856 + $0x38] sm:$0xff]
      %v2863 = vld [vmem:[%s2856 + $0x48] sm:$0xff]
      %v2864 = vld [vmem:[%s2856 + $0x50] sm:$0xff]
      %v2865 = vld [vmem:[%s2856 + $0x60] sm:$0xff]
      %v2866 = vld [vmem:[%s2856 + $0x68] sm:$0xff]
      %v2867 = vld [vmem:[%s2856 + $0x78] sm:$0xff]
      %v2868 = vld [vmem:[%s2856 + $0x80] sm:$0xff]
      %v2869 = vld [vmem:[%s2856 + $0x90] sm:$0xff]
      %v2870 = vld [vmem:[%s2856 + $0x98] sm:$0xff]
      %v2871 = vld [vmem:[%s2856 + $0xa8] sm:$0xff]
      %v2872 = vld [vmem:[%s2856 + $0xb0] sm:$0xff]
      %v2873 = vld [vmem:[%s2856 + $0xc0] sm:$0xff]
      %v2874 = vld [vmem:[%s2856 + $0xc8] sm:$0xff]
      %v2875 = vld [vmem:[%s2856 + $0xd8] sm:$0xff]
      %v2876 = vld [vmem:[%s2856 + $0xe0] sm:$0xff]
      %v2877 = vld [vmem:[%s2856 + $0xf0] sm:$0xff]
      %v2878 = vld [vmem:[%s2856 + $0xf8] sm:$0xff]
      %v2879 = vld [vmem:[%s2856 + $0x108] sm:$0xff]
      %v2880 = vld [vmem:[%s2856 + $0x110] sm:$0xff]
      %v2881 = vld [vmem:[%s2856 + $0x120] sm:$0xff]
      %v2882 = vld [vmem:[%s2856 + $0x128] sm:$0xff]
      %v2883 = vld [vmem:[%s2856 + $0x138] sm:$0xff]
      %v2884 = vld [vmem:[%s2856 + $0x140] sm:$0xff]
      %v2885 = vld [vmem:[%s2856 + $0x150] sm:$0xff]
      %v2886 = vld [vmem:[%s2856 + $0x158] sm:$0xff]
      %v2887 = vld [vmem:[%s2856 + $0x168] sm:$0xff]
      %v2888 = vld [vmem:[%s2856 + $0x170] sm:$0xff]
      %s2889 = scalar_lea.vmem %s4, 24
      %v2890 = vld [vmem:[%s2889] sm:$0xf]
      %v2892 = vsel %vm547, %v2857, 0
      %v2895 = vsel %vm547, %v2858, 0
      %v2898 = vsel %vm547, %v2859, 0
      %v2901 = vsel %vm547, %v2860, 0
      %v2904 = vsel %vm547, %v2861, 0
      %v2907 = vsel %vm547, %v2862, 0
      %v2910 = vsel %vm547, %v2863, 0
      %v2913 = vsel %vm547, %v2864, 0
      %v2916 = vsel %vm547, %v2865, 0
      %v2919 = vsel %vm547, %v2866, 0
      %v2922 = vsel %vm547, %v2867, 0
      %v2925 = vsel %vm547, %v2868, 0
      %v2928 = vsel %vm547, %v2869, 0
      %v2931 = vsel %vm547, %v2870, 0
      %v2934 = vsel %vm547, %v2871, 0
      %v2937 = vsel %vm547, %v2872, 0
      %v2940 = vsel %vm547, %v2873, 0
      %v2943 = vsel %vm547, %v2874, 0
      %v2946 = vsel %vm547, %v2875, 0
      %v2949 = vsel %vm547, %v2876, 0
      %v2952 = vsel %vm547, %v2877, 0
      %v2955 = vsel %vm547, %v2878, 0
      %v2958 = vsel %vm547, %v2879, 0
      %v2961 = vsel %vm547, %v2880, 0
      %v2964 = vsel %vm547, %v2881, 0
      %v2967 = vsel %vm547, %v2882, 0
      %v2970 = vsel %vm547, %v2883, 0
      %v2973 = vsel %vm547, %v2884, 0
      %v2976 = vsel %vm547, %v2885, 0
      %v2979 = vsel %vm547, %v2886, 0
      %v2982 = vsel %vm547, %v2887, 0
      %v2985 = vsel %vm547, %v2888, 0
      %v2988 = vsel %vm743, %v2890, 0
      %2990 = vmatprep.subr.mxu0 0.0
      %2991 = vmatpush1.msra.mxu0 %v2988
      %2992 = vmatprep.subr.mxu0 0.0
      %2993 = vmatpush1.msra.mxu0 0.0
      %2994 = vmatprep.subr.mxu0 0.0
      %2995 = vmatpush1.msra.mxu0 0.0
      %2996 = vmatprep.subr.mxu0 0.0
      %2997 = vmatpush1.msra.mxu0 0.0
      %2998 = vmatprep.subr.mxu0 0.0
      %2999 = vmatpush1.msra.mxu0 0.0
      %3000 = vmatprep.subr.mxu0 0.0
      %3001 = vmatpush1.msra.mxu0 0.0
      %3002 = vmatprep.subr.mxu0 0.0
      %3003 = vmatpush1.msra.mxu0 0.0
      %3004 = vmatprep.subr.mxu0 0.0
      %3005 = vmatpush1.msra.mxu0 0.0
      %3006 = vmatprep.subr.mxu0 0.0
      %3007 = vmatpush1.msra.mxu0 0.0
      %3008 = vmatprep.subr.mxu0 0.0
      %3009 = vmatpush1.msra.mxu0 0.0
      %3010 = vmatprep.subr.mxu0 0.0
      %3011 = vmatpush1.msra.mxu0 0.0
      %3012 = vmatprep.subr.mxu0 0.0
      %3013 = vmatpush1.msra.mxu0 0.0
      %3014 = vmatprep.subr.mxu0 0.0
      %3015 = vmatpush1.msra.mxu0 0.0
      %3016 = vmatprep.subr.mxu0 0.0
      %3017 = vmatpush1.msra.mxu0 0.0
      %3018 = vmatprep.subr.mxu0 0.0
      %3019 = vmatpush1.msra.mxu0 0.0
      %3020 = vmatprep.subr.mxu0 0.0
      %3021 = vmatpush1.msra.mxu0 0.0
      %3022 = vmatprep.subr.mxu0 0.0
      %3023 = vmatpush1.msra.mxu0 0.0
      %3024 = vmatprep.subr.mxu0 0.0
      %3025 = vmatpush1.msra.mxu0 0.0
      %3026 = vmatprep.subr.mxu0 0.0
      %3027 = vmatpush1.msra.mxu0 0.0
      %3028 = vmatprep.subr.mxu0 0.0
      %3029 = vmatpush1.msra.mxu0 0.0
      %3030 = vmatprep.subr.mxu0 0.0
      %3031 = vmatpush1.msra.mxu0 0.0
      %3032 = vmatprep.subr.mxu0 0.0
      %3033 = vmatpush1.msra.mxu0 0.0
      %3034 = vmatprep.subr.mxu0 0.0
      %3035 = vmatpush1.msra.mxu0 0.0
      %3036 = vmatprep.subr.mxu0 0.0
      %3037 = vmatpush1.msra.mxu0 0.0
      %3038 = vmatprep.subr.mxu0 0.0
      %3039 = vmatpush1.msra.mxu0 0.0
      %3040 = vmatprep.subr.mxu0 0.0
      %3041 = vmatpush1.msra.mxu0 0.0
      %3042 = vmatprep.subr.mxu0 0.0
      %3043 = vmatpush1.msra.mxu0 0.0
      %3044 = vmatprep.subr.mxu0 0.0
      %3045 = vmatpush1.msra.mxu0 0.0
      %3046 = vmatprep.subr.mxu0 0.0
      %3047 = vmatpush1.msra.mxu0 0.0
      %3048 = vmatprep.subr.mxu0 0.0
      %3049 = vmatpush1.msra.mxu0 0.0
      %3050 = vmatprep.subr.mxu0 0.0
      %3051 = vmatpush1.msra.mxu0 0.0
      %3052 = vmatprep.subr.mxu0 0.0
      %3053 = vmatpush1.msra.mxu0 0.0
      %3054 = vmatprep.mubr.f32.mxu0 0.0
      %3055 = vmatmul.mubr.f32.gmra.mrb[0].mxu0 %v2892
      %v3056 = vpop.f32.mrb[0].mxu0
      %v3057 = vadd.f32 0.0, %v3056
      %v3058 = vpop.f32.mrb[0].mxu0
      %3059 = vmatprep.mubr.f32.mxu0 0.0
      %3060 = vmatmul.mubr.f32.gmra.mrb[0].mxu0 %v2895
      %v3061 = vpop.f32.mrb[0].mxu0
      %v3062 = vadd.f32 0.0, %v3061
      %v3063 = vpop.f32.mrb[0].mxu0
      %3064 = vmatprep.mubr.f32.mxu0 0.0
      %3065 = vmatmul.mubr.f32.gmra.mrb[0].mxu0 %v2898
      %v3066 = vpop.f32.mrb[0].mxu0
      %v3067 = vadd.f32 0.0, %v3066
      %v3068 = vpop.f32.mrb[0].mxu0
      %3069 = vmatprep.mubr.f32.mxu0 0.0
      %3070 = vmatmul.mubr.f32.gmra.mrb[0].mxu0 %v2901
      %v3071 = vpop.f32.mrb[0].mxu0
      %v3072 = vadd.f32 0.0, %v3071
      %v3073 = vpop.f32.mrb[0].mxu0
      %3074 = vmatprep.mubr.f32.mxu0 0.0
      %3075 = vmatmul.mubr.f32.gmra.mrb[0].mxu0 %v2904
      %v3076 = vpop.f32.mrb[0].mxu0
      %v3077 = vadd.f32 0.0, %v3076
      %v3078 = vpop.f32.mrb[0].mxu0
      %3079 = vmatprep.mubr.f32.mxu0 0.0
      %3080 = vmatmul.mubr.f32.gmra.mrb[0].mxu0 %v2907
      %v3081 = vpop.f32.mrb[0].mxu0
      %v3082 = vadd.f32 0.0, %v3081
      %v3083 = vpop.f32.mrb[0].mxu0
      %3084 = vmatprep.mubr.f32.mxu0 0.0
      %3085 = vmatmul.mubr.f32.gmra.mrb[0].mxu0 %v2910
      %v3086 = vpop.f32.mrb[0].mxu0
      %v3087 = vadd.f32 0.0, %v3086
      %v3088 = vpop.f32.mrb[0].mxu0
      %3089 = vmatprep.mubr.f32.mxu0 0.0
      %3090 = vmatmul.mubr.f32.gmra.mrb[0].mxu0 %v2913
      %v3091 = vpop.f32.mrb[0].mxu0
      %v3092 = vadd.f32 0.0, %v3091
      %v3093 = vpop.f32.mrb[0].mxu0
      %3094 = vmatprep.mubr.f32.mxu0 0.0
      %3095 = vmatmul.mubr.f32.gmra.mrb[0].mxu0 %v2916
      %v3096 = vpop.f32.mrb[0].mxu0
      %v3097 = vadd.f32 0.0, %v3096
      %v3098 = vpop.f32.mrb[0].mxu0
      %3099 = vmatprep.mubr.f32.mxu0 0.0
      %3100 = vmatmul.mubr.f32.gmra.mrb[0].mxu0 %v2919
      %v3101 = vpop.f32.mrb[0].mxu0
      %v3102 = vadd.f32 0.0, %v3101
      %v3103 = vpop.f32.mrb[0].mxu0
      %3104 = vmatprep.mubr.f32.mxu0 0.0
      %3105 = vmatmul.mubr.f32.gmra.mrb[0].mxu0 %v2922
      %v3106 = vpop.f32.mrb[0].mxu0
      %v3107 = vadd.f32 0.0, %v3106
      %v3108 = vpop.f32.mrb[0].mxu0
      %3109 = vmatprep.mubr.f32.mxu0 0.0
      %3110 = vmatmul.mubr.f32.gmra.mrb[0].mxu0 %v2925
      %v3111 = vpop.f32.mrb[0].mxu0
      %v3112 = vadd.f32 0.0, %v3111
      %v3113 = vpop.f32.mrb[0].mxu0
      %3114 = vmatprep.mubr.f32.mxu0 0.0
      %3115 = vmatmul.mubr.f32.gmra.mrb[0].mxu0 %v2928
      %v3116 = vpop.f32.mrb[0].mxu0
      %v3117 = vadd.f32 0.0, %v3116
      %v3118 = vpop.f32.mrb[0].mxu0
      %3119 = vmatprep.mubr.f32.mxu0 0.0
      %3120 = vmatmul.mubr.f32.gmra.mrb[0].mxu0 %v2931
      %v3121 = vpop.f32.mrb[0].mxu0
      %v3122 = vadd.f32 0.0, %v3121
      %v3123 = vpop.f32.mrb[0].mxu0
      %3124 = vmatprep.mubr.f32.mxu0 0.0
      %3125 = vmatmul.mubr.f32.gmra.mrb[0].mxu0 %v2934
      %v3126 = vpop.f32.mrb[0].mxu0
      %v3127 = vadd.f32 0.0, %v3126
      %v3128 = vpop.f32.mrb[0].mxu0
      %3129 = vmatprep.mubr.f32.mxu0 0.0
      %3130 = vmatmul.mubr.f32.gmra.mrb[0].mxu0 %v2937
      %v3131 = vpop.f32.mrb[0].mxu0
      %v3132 = vadd.f32 0.0, %v3131
      %v3133 = vpop.f32.mrb[0].mxu0
      %3134 = vmatprep.mubr.f32.mxu0 0.0
      %3135 = vmatmul.mubr.f32.gmra.mrb[0].mxu0 %v2940
      %v3136 = vpop.f32.mrb[0].mxu0
      %v3137 = vadd.f32 0.0, %v3136
      %v3138 = vpop.f32.mrb[0].mxu0
      %3139 = vmatprep.mubr.f32.mxu0 0.0
      %3140 = vmatmul.mubr.f32.gmra.mrb[0].mxu0 %v2943
      %v3141 = vpop.f32.mrb[0].mxu0
      %v3142 = vadd.f32 0.0, %v3141
      %v3143 = vpop.f32.mrb[0].mxu0
      %3144 = vmatprep.mubr.f32.mxu0 0.0
      %3145 = vmatmul.mubr.f32.gmra.mrb[0].mxu0 %v2946
      %v3146 = vpop.f32.mrb[0].mxu0
      %v3147 = vadd.f32 0.0, %v3146
      %v3148 = vpop.f32.mrb[0].mxu0
      %3149 = vmatprep.mubr.f32.mxu0 0.0
      %3150 = vmatmul.mubr.f32.gmra.mrb[0].mxu0 %v2949
      %v3151 = vpop.f32.mrb[0].mxu0
      %v3152 = vadd.f32 0.0, %v3151
      %v3153 = vpop.f32.mrb[0].mxu0
      %3154 = vmatprep.mubr.f32.mxu0 0.0
      %3155 = vmatmul.mubr.f32.gmra.mrb[0].mxu0 %v2952
      %v3156 = vpop.f32.mrb[0].mxu0
      %v3157 = vadd.f32 0.0, %v3156
      %v3158 = vpop.f32.mrb[0].mxu0
      %3159 = vmatprep.mubr.f32.mxu0 0.0
      %3160 = vmatmul.mubr.f32.gmra.mrb[0].mxu0 %v2955
      %v3161 = vpop.f32.mrb[0].mxu0
      %v3162 = vadd.f32 0.0, %v3161
      %v3163 = vpop.f32.mrb[0].mxu0
      %3164 = vmatprep.mubr.f32.mxu0 0.0
      %3165 = vmatmul.mubr.f32.gmra.mrb[0].mxu0 %v2958
      %v3166 = vpop.f32.mrb[0].mxu0
      %v3167 = vadd.f32 0.0, %v3166
      %v3168 = vpop.f32.mrb[0].mxu0
      %3169 = vmatprep.mubr.f32.mxu0 0.0
      %3170 = vmatmul.mubr.f32.gmra.mrb[0].mxu0 %v2961
      %v3171 = vpop.f32.mrb[0].mxu0
      %v3172 = vadd.f32 0.0, %v3171
      %v3173 = vpop.f32.mrb[0].mxu0
      %3174 = vmatprep.mubr.f32.mxu0 0.0
      %3175 = vmatmul.mubr.f32.gmra.mrb[0].mxu0 %v2964
      %v3176 = vpop.f32.mrb[0].mxu0
      %v3177 = vadd.f32 0.0, %v3176
      %v3178 = vpop.f32.mrb[0].mxu0
      %3179 = vmatprep.mubr.f32.mxu0 0.0
      %3180 = vmatmul.mubr.f32.gmra.mrb[0].mxu0 %v2967
      %v3181 = vpop.f32.mrb[0].mxu0
      %v3182 = vadd.f32 0.0, %v3181
      %v3183 = vpop.f32.mrb[0].mxu0
      %3184 = vmatprep.mubr.f32.mxu0 0.0
      %3185 = vmatmul.mubr.f32.gmra.mrb[0].mxu0 %v2970
      %v3186 = vpop.f32.mrb[0].mxu0
      %v3187 = vadd.f32 0.0, %v3186
      %v3188 = vpop.f32.mrb[0].mxu0
      %3189 = vmatprep.mubr.f32.mxu0 0.0
      %3190 = vmatmul.mubr.f32.gmra.mrb[0].mxu0 %v2973
      %v3191 = vpop.f32.mrb[0].mxu0
      %v3192 = vadd.f32 0.0, %v3191
      %v3193 = vpop.f32.mrb[0].mxu0
      %3194 = vmatprep.mubr.f32.mxu0 0.0
      %3195 = vmatmul.mubr.f32.gmra.mrb[0].mxu0 %v2976
      %v3196 = vpop.f32.mrb[0].mxu0
      %v3197 = vadd.f32 0.0, %v3196
      %v3198 = vpop.f32.mrb[0].mxu0
      %3199 = vmatprep.mubr.f32.mxu0 0.0
      %3200 = vmatmul.mubr.f32.gmra.mrb[0].mxu0 %v2979
      %v3201 = vpop.f32.mrb[0].mxu0
      %v3202 = vadd.f32 0.0, %v3201
      %v3203 = vpop.f32.mrb[0].mxu0
      %3204 = vmatprep.mubr.f32.mxu0 0.0
      %3205 = vmatmul.mubr.f32.gmra.mrb[0].mxu0 %v2982
      %v3206 = vpop.f32.mrb[0].mxu0
      %v3207 = vadd.f32 0.0, %v3206
      %v3208 = vpop.f32.mrb[0].mxu0
      %3209 = vmatprep.mubr.f32.mxu0 0.0
      %3210 = vmatmul.mubr.f32.gmra.mrb[0].mxu0 %v2985
      %v3211 = vpop.f32.mrb[0].mxu0
      %v3212 = vadd.f32 0.0, %v3211
      %v3213 = vpop.f32.mrb[0].mxu0
      %3214 = vdwg.mxu0
      %v3215 = vadd.f32 %v2824, %v3057
      %v3216 = vadd.f32 %v2825, %v3062
      %v3217 = vadd.f32 %v2826, %v3067
      %v3218 = vadd.f32 %v2827, %v3072
      %v3219 = vadd.f32 %v2828, %v3077
      %v3220 = vadd.f32 %v2829, %v3082
      %v3221 = vadd.f32 %v2830, %v3087
      %v3222 = vadd.f32 %v2831, %v3092
      %v3223 = vadd.f32 %v2832, %v3097
      %v3224 = vadd.f32 %v2833, %v3102
      %v3225 = vadd.f32 %v2834, %v3107
      %v3226 = vadd.f32 %v2835, %v3112
      %v3227 = vadd.f32 %v2836, %v3117
      %v3228 = vadd.f32 %v2837, %v3122
      %v3229 = vadd.f32 %v2838, %v3127
      %v3230 = vadd.f32 %v2839, %v3132
      %v3231 = vadd.f32 %v2840, %v3137
      %v3232 = vadd.f32 %v2841, %v3142
      %v3233 = vadd.f32 %v2842, %v3147
      %v3234 = vadd.f32 %v2843, %v3152
      %v3235 = vadd.f32 %v2844, %v3157
      %v3236 = vadd.f32 %v2845, %v3162
      %v3237 = vadd.f32 %v2846, %v3167
      %v3238 = vadd.f32 %v2847, %v3172
      %v3239 = vadd.f32 %v2848, %v3177
      %v3240 = vadd.f32 %v2849, %v3182
      %v3241 = vadd.f32 %v2850, %v3187
      %v3242 = vadd.f32 %v2851, %v3192
      %v3243 = vadd.f32 %v2852, %v3197
      %v3244 = vadd.f32 %v2853, %v3202
      %v3245 = vadd.f32 %v2854, %v3207
      %v3246 = vadd.f32 %v2855, %v3212
      %v3247 = vld [vmem:[%s2856 + $0x1] sm:$0xff]
      %v3248 = vld [vmem:[%s2856 + $0x9] sm:$0xff]
      %v3249 = vld [vmem:[%s2856 + $0x19] sm:$0xff]
      %v3250 = vld [vmem:[%s2856 + $0x21] sm:$0xff]
      %v3251 = vld [vmem:[%s2856 + $0x31] sm:$0xff]
      %v3252 = vld [vmem:[%s2856 + $0x39] sm:$0xff]
      %v3253 = vld [vmem:[%s2856 + $0x49] sm:$0xff]
      %v3254 = vld [vmem:[%s2856 + $0x51] sm:$0xff]
      %v3255 = vld [vmem:[%s2856 + $0x61] sm:$0xff]
      %v3256 = vld [vmem:[%s2856 + $0x69] sm:$0xff]
      %v3257 = vld [vmem:[%s2856 + $0x79] sm:$0xff]
      %v3258 = vld [vmem:[%s2856 + $0x81] sm:$0xff]
      %v3259 = vld [vmem:[%s2856 + $0x91] sm:$0xff]
      %v3260 = vld [vmem:[%s2856 + $0x99] sm:$0xff]
      %v3261 = vld [vmem:[%s2856 + $0xa9] sm:$0xff]
      %v3262 = vld [vmem:[%s2856 + $0xb1] sm:$0xff]
      %v3263 = vld [vmem:[%s2856 + $0xc1] sm:$0xff]
      %v3264 = vld [vmem:[%s2856 + $0xc9] sm:$0xff]
      %v3265 = vld [vmem:[%s2856 + $0xd9] sm:$0xff]
      %v3266 = vld [vmem:[%s2856 + $0xe1] sm:$0xff]
      %v3267 = vld [vmem:[%s2856 + $0xf1] sm:$0xff]
      %v3268 = vld [vmem:[%s2856 + $0xf9] sm:$0xff]
      %v3269 = vld [vmem:[%s2856 + $0x109] sm:$0xff]
      %v3270 = vld [vmem:[%s2856 + $0x111] sm:$0xff]
      %v3271 = vld [vmem:[%s2856 + $0x121] sm:$0xff]
      %v3272 = vld [vmem:[%s2856 + $0x129] sm:$0xff]
      %v3273 = vld [vmem:[%s2856 + $0x139] sm:$0xff]
      %v3274 = vld [vmem:[%s2856 + $0x141] sm:$0xff]
      %v3275 = vld [vmem:[%s2856 + $0x151] sm:$0xff]
      %v3276 = vld [vmem:[%s2856 + $0x159] sm:$0xff]
      %v3277 = vld [vmem:[%s2856 + $0x169] sm:$0xff]
      %v3278 = vld [vmem:[%s2856 + $0x171] sm:$0xff]
      %s3279 = scalar_lea.vmem %s4, 28
      %v3280 = vld [vmem:[%s3279] sm:$0xf]
      %v3282 = vsel %vm547, %v3247, 0
      %v3285 = vsel %vm547, %v3248, 0
      %v3288 = vsel %vm547, %v3249, 0
      %v3291 = vsel %vm547, %v3250, 0
      %v3294 = vsel %vm547, %v3251, 0
      %v3297 = vsel %vm547, %v3252, 0
      %v3300 = vsel %vm547, %v3253, 0
      %v3303 = vsel %vm547, %v3254, 0
      %v3306 = vsel %vm547, %v3255, 0
      %v3309 = vsel %vm547, %v3256, 0
      %v3312 = vsel %vm547, %v3257, 0
      %v3315 = vsel %vm547, %v3258, 0
      %v3318 = vsel %vm547, %v3259, 0
      %v3321 = vsel %vm547, %v3260, 0
      %v3324 = vsel %vm547, %v3261, 0
      %v3327 = vsel %vm547, %v3262, 0
      %v3330 = vsel %vm547, %v3263, 0
      %v3333 = vsel %vm547, %v3264, 0
      %v3336 = vsel %vm547, %v3265, 0
      %v3339 = vsel %vm547, %v3266, 0
      %v3342 = vsel %vm547, %v3267, 0
      %v3345 = vsel %vm547, %v3268, 0
      %v3348 = vsel %vm547, %v3269, 0
      %v3351 = vsel %vm547, %v3270, 0
      %v3354 = vsel %vm547, %v3271, 0
      %v3357 = vsel %vm547, %v3272, 0
      %v3360 = vsel %vm547, %v3273, 0
      %v3363 = vsel %vm547, %v3274, 0
      %v3366 = vsel %vm547, %v3275, 0
      %v3369 = vsel %vm547, %v3276, 0
      %v3372 = vsel %vm547, %v3277, 0
      %v3375 = vsel %vm547, %v3278, 0
      %v3378 = vsel %vm743, %v3280, 0
      %3380 = vmatprep.subr.mxu0 0.0
      %3381 = vmatpush1.msra.mxu0 %v3378
      %3382 = vmatprep.subr.mxu0 0.0
      %3383 = vmatpush1.msra.mxu0 0.0
      %3384 = vmatprep.subr.mxu0 0.0
      %3385 = vmatpush1.msra.mxu0 0.0
      %3386 = vmatprep.subr.mxu0 0.0
      %3387 = vmatpush1.msra.mxu0 0.0
      %3388 = vmatprep.subr.mxu0 0.0
      %3389 = vmatpush1.msra.mxu0 0.0
      %3390 = vmatprep.subr.mxu0 0.0
      %3391 = vmatpush1.msra.mxu0 0.0
      %3392 = vmatprep.subr.mxu0 0.0
      %3393 = vmatpush1.msra.mxu0 0.0
      %3394 = vmatprep.subr.mxu0 0.0
      %3395 = vmatpush1.msra.mxu0 0.0
      %3396 = vmatprep.subr.mxu0 0.0
      %3397 = vmatpush1.msra.mxu0 0.0
      %3398 = vmatprep.subr.mxu0 0.0
      %3399 = vmatpush1.msra.mxu0 0.0
      %3400 = vmatprep.subr.mxu0 0.0
      %3401 = vmatpush1.msra.mxu0 0.0
      %3402 = vmatprep.subr.mxu0 0.0
      %3403 = vmatpush1.msra.mxu0 0.0
      %3404 = vmatprep.subr.mxu0 0.0
      %3405 = vmatpush1.msra.mxu0 0.0
      %3406 = vmatprep.subr.mxu0 0.0
      %3407 = vmatpush1.msra.mxu0 0.0
      %3408 = vmatprep.subr.mxu0 0.0
      %3409 = vmatpush1.msra.mxu0 0.0
      %3410 = vmatprep.subr.mxu0 0.0
      %3411 = vmatpush1.msra.mxu0 0.0
      %3412 = vmatprep.subr.mxu0 0.0
      %3413 = vmatpush1.msra.mxu0 0.0
      %3414 = vmatprep.subr.mxu0 0.0
      %3415 = vmatpush1.msra.mxu0 0.0
      %3416 = vmatprep.subr.mxu0 0.0
      %3417 = vmatpush1.msra.mxu0 0.0
      %3418 = vmatprep.subr.mxu0 0.0
      %3419 = vmatpush1.msra.mxu0 0.0
      %3420 = vmatprep.subr.mxu0 0.0
      %3421 = vmatpush1.msra.mxu0 0.0
      %3422 = vmatprep.subr.mxu0 0.0
      %3423 = vmatpush1.msra.mxu0 0.0
      %3424 = vmatprep.subr.mxu0 0.0
      %3425 = vmatpush1.msra.mxu0 0.0
      %3426 = vmatprep.subr.mxu0 0.0
      %3427 = vmatpush1.msra.mxu0 0.0
      %3428 = vmatprep.subr.mxu0 0.0
      %3429 = vmatpush1.msra.mxu0 0.0
      %3430 = vmatprep.subr.mxu0 0.0
      %3431 = vmatpush1.msra.mxu0 0.0
      %3432 = vmatprep.subr.mxu0 0.0
      %3433 = vmatpush1.msra.mxu0 0.0
      %3434 = vmatprep.subr.mxu0 0.0
      %3435 = vmatpush1.msra.mxu0 0.0
      %3436 = vmatprep.subr.mxu0 0.0
      %3437 = vmatpush1.msra.mxu0 0.0
      %3438 = vmatprep.subr.mxu0 0.0
      %3439 = vmatpush1.msra.mxu0 0.0
      %3440 = vmatprep.subr.mxu0 0.0
      %3441 = vmatpush1.msra.mxu0 0.0
      %3442 = vmatprep.subr.mxu0 0.0
      %3443 = vmatpush1.msra.mxu0 0.0
      %3444 = vmatprep.mubr.f32.mxu0 0.0
      %3445 = vmatmul.mubr.f32.gmra.mrb[0].mxu0 %v3282
      %v3446 = vpop.f32.mrb[0].mxu0
      %v3447 = vadd.f32 0.0, %v3446
      %v3448 = vpop.f32.mrb[0].mxu0
      %3449 = vmatprep.mubr.f32.mxu0 0.0
      %3450 = vmatmul.mubr.f32.gmra.mrb[0].mxu0 %v3285
      %v3451 = vpop.f32.mrb[0].mxu0
      %v3452 = vadd.f32 0.0, %v3451
      %v3453 = vpop.f32.mrb[0].mxu0
      %3454 = vmatprep.mubr.f32.mxu0 0.0
      %3455 = vmatmul.mubr.f32.gmra.mrb[0].mxu0 %v3288
      %v3456 = vpop.f32.mrb[0].mxu0
      %v3457 = vadd.f32 0.0, %v3456
      %v3458 = vpop.f32.mrb[0].mxu0
      %3459 = vmatprep.mubr.f32.mxu0 0.0
      %3460 = vmatmul.mubr.f32.gmra.mrb[0].mxu0 %v3291
      %v3461 = vpop.f32.mrb[0].mxu0
      %v3462 = vadd.f32 0.0, %v3461
      %v3463 = vpop.f32.mrb[0].mxu0
      %3464 = vmatprep.mubr.f32.mxu0 0.0
      %3465 = vmatmul.mubr.f32.gmra.mrb[0].mxu0 %v3294
      %v3466 = vpop.f32.mrb[0].mxu0
      %v3467 = vadd.f32 0.0, %v3466
      %v3468 = vpop.f32.mrb[0].mxu0
      %3469 = vmatprep.mubr.f32.mxu0 0.0
      %3470 = vmatmul.mubr.f32.gmra.mrb[0].mxu0 %v3297
      %v3471 = vpop.f32.mrb[0].mxu0
      %v3472 = vadd.f32 0.0, %v3471
      %v3473 = vpop.f32.mrb[0].mxu0
      %3474 = vmatprep.mubr.f32.mxu0 0.0
      %3475 = vmatmul.mubr.f32.gmra.mrb[0].mxu0 %v3300
      %v3476 = vpop.f32.mrb[0].mxu0
      %v3477 = vadd.f32 0.0, %v3476
      %v3478 = vpop.f32.mrb[0].mxu0
      %3479 = vmatprep.mubr.f32.mxu0 0.0
      %3480 = vmatmul.mubr.f32.gmra.mrb[0].mxu0 %v3303
      %v3481 = vpop.f32.mrb[0].mxu0
      %v3482 = vadd.f32 0.0, %v3481
      %v3483 = vpop.f32.mrb[0].mxu0
      %3484 = vmatprep.mubr.f32.mxu0 0.0
      %3485 = vmatmul.mubr.f32.gmra.mrb[0].mxu0 %v3306
      %v3486 = vpop.f32.mrb[0].mxu0
      %v3487 = vadd.f32 0.0, %v3486
      %v3488 = vpop.f32.mrb[0].mxu0
      %3489 = vmatprep.mubr.f32.mxu0 0.0
      %3490 = vmatmul.mubr.f32.gmra.mrb[0].mxu0 %v3309
      %v3491 = vpop.f32.mrb[0].mxu0
      %v3492 = vadd.f32 0.0, %v3491
      %v3493 = vpop.f32.mrb[0].mxu0
      %3494 = vmatprep.mubr.f32.mxu0 0.0
      %3495 = vmatmul.mubr.f32.gmra.mrb[0].mxu0 %v3312
      %v3496 = vpop.f32.mrb[0].mxu0
      %v3497 = vadd.f32 0.0, %v3496
      %v3498 = vpop.f32.mrb[0].mxu0
      %3499 = vmatprep.mubr.f32.mxu0 0.0
      %3500 = vmatmul.mubr.f32.gmra.mrb[0].mxu0 %v3315
      %v3501 = vpop.f32.mrb[0].mxu0
      %v3502 = vadd.f32 0.0, %v3501
      %v3503 = vpop.f32.mrb[0].mxu0
      %3504 = vmatprep.mubr.f32.mxu0 0.0
      %3505 = vmatmul.mubr.f32.gmra.mrb[0].mxu0 %v3318
      %v3506 = vpop.f32.mrb[0].mxu0
      %v3507 = vadd.f32 0.0, %v3506
      %v3508 = vpop.f32.mrb[0].mxu0
      %3509 = vmatprep.mubr.f32.mxu0 0.0
      %3510 = vmatmul.mubr.f32.gmra.mrb[0].mxu0 %v3321
      %v3511 = vpop.f32.mrb[0].mxu0
      %v3512 = vadd.f32 0.0, %v3511
      %v3513 = vpop.f32.mrb[0].mxu0
      %3514 = vmatprep.mubr.f32.mxu0 0.0
      %3515 = vmatmul.mubr.f32.gmra.mrb[0].mxu0 %v3324
      %v3516 = vpop.f32.mrb[0].mxu0
      %v3517 = vadd.f32 0.0, %v3516
      %v3518 = vpop.f32.mrb[0].mxu0
      %3519 = vmatprep.mubr.f32.mxu0 0.0
      %3520 = vmatmul.mubr.f32.gmra.mrb[0].mxu0 %v3327
      %v3521 = vpop.f32.mrb[0].mxu0
      %v3522 = vadd.f32 0.0, %v3521
      %v3523 = vpop.f32.mrb[0].mxu0
      %3524 = vmatprep.mubr.f32.mxu0 0.0
      %3525 = vmatmul.mubr.f32.gmra.mrb[0].mxu0 %v3330
      %v3526 = vpop.f32.mrb[0].mxu0
      %v3527 = vadd.f32 0.0, %v3526
      %v3528 = vpop.f32.mrb[0].mxu0
      %3529 = vmatprep.mubr.f32.mxu0 0.0
      %3530 = vmatmul.mubr.f32.gmra.mrb[0].mxu0 %v3333
      %v3531 = vpop.f32.mrb[0].mxu0
      %v3532 = vadd.f32 0.0, %v3531
      %v3533 = vpop.f32.mrb[0].mxu0
      %3534 = vmatprep.mubr.f32.mxu0 0.0
      %3535 = vmatmul.mubr.f32.gmra.mrb[0].mxu0 %v3336
      %v3536 = vpop.f32.mrb[0].mxu0
      %v3537 = vadd.f32 0.0, %v3536
      %v3538 = vpop.f32.mrb[0].mxu0
      %3539 = vmatprep.mubr.f32.mxu0 0.0
      %3540 = vmatmul.mubr.f32.gmra.mrb[0].mxu0 %v3339
      %v3541 = vpop.f32.mrb[0].mxu0
      %v3542 = vadd.f32 0.0, %v3541
      %v3543 = vpop.f32.mrb[0].mxu0
      %3544 = vmatprep.mubr.f32.mxu0 0.0
      %3545 = vmatmul.mubr.f32.gmra.mrb[0].mxu0 %v3342
      %v3546 = vpop.f32.mrb[0].mxu0
      %v3547 = vadd.f32 0.0, %v3546
      %v3548 = vpop.f32.mrb[0].mxu0
      %3549 = vmatprep.mubr.f32.mxu0 0.0
      %3550 = vmatmul.mubr.f32.gmra.mrb[0].mxu0 %v3345
      %v3551 = vpop.f32.mrb[0].mxu0
      %v3552 = vadd.f32 0.0, %v3551
      %v3553 = vpop.f32.mrb[0].mxu0
      %3554 = vmatprep.mubr.f32.mxu0 0.0
      %3555 = vmatmul.mubr.f32.gmra.mrb[0].mxu0 %v3348
      %v3556 = vpop.f32.mrb[0].mxu0
      %v3557 = vadd.f32 0.0, %v3556
      %v3558 = vpop.f32.mrb[0].mxu0
      %3559 = vmatprep.mubr.f32.mxu0 0.0
      %3560 = vmatmul.mubr.f32.gmra.mrb[0].mxu0 %v3351
      %v3561 = vpop.f32.mrb[0].mxu0
      %v3562 = vadd.f32 0.0, %v3561
      %v3563 = vpop.f32.mrb[0].mxu0
      %3564 = vmatprep.mubr.f32.mxu0 0.0
      %3565 = vmatmul.mubr.f32.gmra.mrb[0].mxu0 %v3354
      %v3566 = vpop.f32.mrb[0].mxu0
      %v3567 = vadd.f32 0.0, %v3566
      %v3568 = vpop.f32.mrb[0].mxu0
      %3569 = vmatprep.mubr.f32.mxu0 0.0
      %3570 = vmatmul.mubr.f32.gmra.mrb[0].mxu0 %v3357
      %v3571 = vpop.f32.mrb[0].mxu0
      %v3572 = vadd.f32 0.0, %v3571
      %v3573 = vpop.f32.mrb[0].mxu0
      %3574 = vmatprep.mubr.f32.mxu0 0.0
      %3575 = vmatmul.mubr.f32.gmra.mrb[0].mxu0 %v3360
      %v3576 = vpop.f32.mrb[0].mxu0
      %v3577 = vadd.f32 0.0, %v3576
      %v3578 = vpop.f32.mrb[0].mxu0
      %3579 = vmatprep.mubr.f32.mxu0 0.0
      %3580 = vmatmul.mubr.f32.gmra.mrb[0].mxu0 %v3363
      %v3581 = vpop.f32.mrb[0].mxu0
      %v3582 = vadd.f32 0.0, %v3581
      %v3583 = vpop.f32.mrb[0].mxu0
      %3584 = vmatprep.mubr.f32.mxu0 0.0
      %3585 = vmatmul.mubr.f32.gmra.mrb[0].mxu0 %v3366
      %v3586 = vpop.f32.mrb[0].mxu0
      %v3587 = vadd.f32 0.0, %v3586
      %v3588 = vpop.f32.mrb[0].mxu0
      %3589 = vmatprep.mubr.f32.mxu0 0.0
      %3590 = vmatmul.mubr.f32.gmra.mrb[0].mxu0 %v3369
      %v3591 = vpop.f32.mrb[0].mxu0
      %v3592 = vadd.f32 0.0, %v3591
      %v3593 = vpop.f32.mrb[0].mxu0
      %3594 = vmatprep.mubr.f32.mxu0 0.0
      %3595 = vmatmul.mubr.f32.gmra.mrb[0].mxu0 %v3372
      %v3596 = vpop.f32.mrb[0].mxu0
      %v3597 = vadd.f32 0.0, %v3596
      %v3598 = vpop.f32.mrb[0].mxu0
      %3599 = vmatprep.mubr.f32.mxu0 0.0
      %3600 = vmatmul.mubr.f32.gmra.mrb[0].mxu0 %v3375
      %v3601 = vpop.f32.mrb[0].mxu0
      %v3602 = vadd.f32 0.0, %v3601
      %v3603 = vpop.f32.mrb[0].mxu0
      %3604 = vdwg.mxu0
      %v3605 = vadd.f32 %v3215, %v3447
      %v3606 = vadd.f32 %v3216, %v3452
      %v3607 = vadd.f32 %v3217, %v3457
      %v3608 = vadd.f32 %v3218, %v3462
      %v3609 = vadd.f32 %v3219, %v3467
      %v3610 = vadd.f32 %v3220, %v3472
      %v3611 = vadd.f32 %v3221, %v3477
      %v3612 = vadd.f32 %v3222, %v3482
      %v3613 = vadd.f32 %v3223, %v3487
      %v3614 = vadd.f32 %v3224, %v3492
      %v3615 = vadd.f32 %v3225, %v3497
      %v3616 = vadd.f32 %v3226, %v3502
      %v3617 = vadd.f32 %v3227, %v3507
      %v3618 = vadd.f32 %v3228, %v3512
      %v3619 = vadd.f32 %v3229, %v3517
      %v3620 = vadd.f32 %v3230, %v3522
      %v3621 = vadd.f32 %v3231, %v3527
      %v3622 = vadd.f32 %v3232, %v3532
      %v3623 = vadd.f32 %v3233, %v3537
      %v3624 = vadd.f32 %v3234, %v3542
      %v3625 = vadd.f32 %v3235, %v3547
      %v3626 = vadd.f32 %v3236, %v3552
      %v3627 = vadd.f32 %v3237, %v3557
      %v3628 = vadd.f32 %v3238, %v3562
      %v3629 = vadd.f32 %v3239, %v3567
      %v3630 = vadd.f32 %v3240, %v3572
      %v3631 = vadd.f32 %v3241, %v3577
      %v3632 = vadd.f32 %v3242, %v3582
      %v3633 = vadd.f32 %v3243, %v3587
      %v3634 = vadd.f32 %v3244, %v3592
      %v3635 = vadd.f32 %v3245, %v3597
      %v3636 = vadd.f32 %v3246, %v3602
      %v3637 = vld [vmem:[%s2856 + $0x2] sm:$0xff]
      %v3638 = vld [vmem:[%s2856 + $0xa] sm:$0xff]
      %v3639 = vld [vmem:[%s2856 + $0x1a] sm:$0xff]
      %v3640 = vld [vmem:[%s2856 + $0x22] sm:$0xff]
      %v3641 = vld [vmem:[%s2856 + $0x32] sm:$0xff]
      %v3642 = vld [vmem:[%s2856 + $0x3a] sm:$0xff]
      %v3643 = vld [vmem:[%s2856 + $0x4a] sm:$0xff]
      %v3644 = vld [vmem:[%s2856 + $0x52] sm:$0xff]
      %v3645 = vld [vmem:[%s2856 + $0x62] sm:$0xff]
      %v3646 = vld [vmem:[%s2856 + $0x6a] sm:$0xff]
      %v3647 = vld [vmem:[%s2856 + $0x7a] sm:$0xff]
      %v3648 = vld [vmem:[%s2856 + $0x82] sm:$0xff]
      %v3649 = vld [vmem:[%s2856 + $0x92] sm:$0xff]
      %v3650 = vld [vmem:[%s2856 + $0x9a] sm:$0xff]
      %v3651 = vld [vmem:[%s2856 + $0xaa] sm:$0xff]
      %v3652 = vld [vmem:[%s2856 + $0xb2] sm:$0xff]
      %v3653 = vld [vmem:[%s2856 + $0xc2] sm:$0xff]
      %v3654 = vld [vmem:[%s2856 + $0xca] sm:$0xff]
      %v3655 = vld [vmem:[%s2856 + $0xda] sm:$0xff]
      %v3656 = vld [vmem:[%s2856 + $0xe2] sm:$0xff]
      %v3657 = vld [vmem:[%s2856 + $0xf2] sm:$0xff]
      %v3658 = vld [vmem:[%s2856 + $0xfa] sm:$0xff]
      %v3659 = vld [vmem:[%s2856 + $0x10a] sm:$0xff]
      %v3660 = vld [vmem:[%s2856 + $0x112] sm:$0xff]
      %v3661 = vld [vmem:[%s2856 + $0x122] sm:$0xff]
      %v3662 = vld [vmem:[%s2856 + $0x12a] sm:$0xff]
      %v3663 = vld [vmem:[%s2856 + $0x13a] sm:$0xff]
      %v3664 = vld [vmem:[%s2856 + $0x142] sm:$0xff]
      %v3665 = vld [vmem:[%s2856 + $0x152] sm:$0xff]
      %v3666 = vld [vmem:[%s2856 + $0x15a] sm:$0xff]
      %v3667 = vld [vmem:[%s2856 + $0x16a] sm:$0xff]
      %v3668 = vld [vmem:[%s2856 + $0x172] sm:$0xff]
      %s3669 = scalar_lea.vmem %s4, 32
      %v3670 = vld [vmem:[%s3669] sm:$0xf]
      %v3672 = vsel %vm547, %v3637, 0
      %v3675 = vsel %vm547, %v3638, 0
      %v3678 = vsel %vm547, %v3639, 0
      %v3681 = vsel %vm547, %v3640, 0
      %v3684 = vsel %vm547, %v3641, 0
      %v3687 = vsel %vm547, %v3642, 0
      %v3690 = vsel %vm547, %v3643, 0
      %v3693 = vsel %vm547, %v3644, 0
      %v3696 = vsel %vm547, %v3645, 0
      %v3699 = vsel %vm547, %v3646, 0
      %v3702 = vsel %vm547, %v3647, 0
      %v3705 = vsel %vm547, %v3648, 0
      %v3708 = vsel %vm547, %v3649, 0
      %v3711 = vsel %vm547, %v3650, 0
      %v3714 = vsel %vm547, %v3651, 0
      %v3717 = vsel %vm547, %v3652, 0
      %v3720 = vsel %vm547, %v3653, 0
      %v3723 = vsel %vm547, %v3654, 0
      %v3726 = vsel %vm547, %v3655, 0
      %v3729 = vsel %vm547, %v3656, 0
      %v3732 = vsel %vm547, %v3657, 0
      %v3735 = vsel %vm547, %v3658, 0
      %v3738 = vsel %vm547, %v3659, 0
      %v3741 = vsel %vm547, %v3660, 0
      %v3744 = vsel %vm547, %v3661, 0
      %v3747 = vsel %vm547, %v3662, 0
      %v3750 = vsel %vm547, %v3663, 0
      %v3753 = vsel %vm547, %v3664, 0
      %v3756 = vsel %vm547, %v3665, 0
      %v3759 = vsel %vm547, %v3666, 0
      %v3762 = vsel %vm547, %v3667, 0
      %v3765 = vsel %vm547, %v3668, 0
      %v3768 = vsel %vm743, %v3670, 0
      %3770 = vmatprep.subr.mxu0 0.0
      %3771 = vmatpush1.msra.mxu0 %v3768
      %3772 = vmatprep.subr.mxu0 0.0
      %3773 = vmatpush1.msra.mxu0 0.0
      %3774 = vmatprep.subr.mxu0 0.0
      %3775 = vmatpush1.msra.mxu0 0.0
      %3776 = vmatprep.subr.mxu0 0.0
      %3777 = vmatpush1.msra.mxu0 0.0
      %3778 = vmatprep.subr.mxu0 0.0
      %3779 = vmatpush1.msra.mxu0 0.0
      %3780 = vmatprep.subr.mxu0 0.0
      %3781 = vmatpush1.msra.mxu0 0.0
      %3782 = vmatprep.subr.mxu0 0.0
      %3783 = vmatpush1.msra.mxu0 0.0
      %3784 = vmatprep.subr.mxu0 0.0
      %3785 = vmatpush1.msra.mxu0 0.0
      %3786 = vmatprep.subr.mxu0 0.0
      %3787 = vmatpush1.msra.mxu0 0.0
      %3788 = vmatprep.subr.mxu0 0.0
      %3789 = vmatpush1.msra.mxu0 0.0
      %3790 = vmatprep.subr.mxu0 0.0
      %3791 = vmatpush1.msra.mxu0 0.0
      %3792 = vmatprep.subr.mxu0 0.0
      %3793 = vmatpush1.msra.mxu0 0.0
      %3794 = vmatprep.subr.mxu0 0.0
      %3795 = vmatpush1.msra.mxu0 0.0
      %3796 = vmatprep.subr.mxu0 0.0
      %3797 = vmatpush1.msra.mxu0 0.0
      %3798 = vmatprep.subr.mxu0 0.0
      %3799 = vmatpush1.msra.mxu0 0.0
      %3800 = vmatprep.subr.mxu0 0.0
      %3801 = vmatpush1.msra.mxu0 0.0
      %3802 = vmatprep.subr.mxu0 0.0
      %3803 = vmatpush1.msra.mxu0 0.0
      %3804 = vmatprep.subr.mxu0 0.0
      %3805 = vmatpush1.msra.mxu0 0.0
      %3806 = vmatprep.subr.mxu0 0.0
      %3807 = vmatpush1.msra.mxu0 0.0
      %3808 = vmatprep.subr.mxu0 0.0
      %3809 = vmatpush1.msra.mxu0 0.0
      %3810 = vmatprep.subr.mxu0 0.0
      %3811 = vmatpush1.msra.mxu0 0.0
      %3812 = vmatprep.subr.mxu0 0.0
      %3813 = vmatpush1.msra.mxu0 0.0
      %3814 = vmatprep.subr.mxu0 0.0
      %3815 = vmatpush1.msra.mxu0 0.0
      %3816 = vmatprep.subr.mxu0 0.0
      %3817 = vmatpush1.msra.mxu0 0.0
      %3818 = vmatprep.subr.mxu0 0.0
      %3819 = vmatpush1.msra.mxu0 0.0
      %3820 = vmatprep.subr.mxu0 0.0
      %3821 = vmatpush1.msra.mxu0 0.0
      %3822 = vmatprep.subr.mxu0 0.0
      %3823 = vmatpush1.msra.mxu0 0.0
      %3824 = vmatprep.subr.mxu0 0.0
      %3825 = vmatpush1.msra.mxu0 0.0
      %3826 = vmatprep.subr.mxu0 0.0
      %3827 = vmatpush1.msra.mxu0 0.0
      %3828 = vmatprep.subr.mxu0 0.0
      %3829 = vmatpush1.msra.mxu0 0.0
      %3830 = vmatprep.subr.mxu0 0.0
      %3831 = vmatpush1.msra.mxu0 0.0
      %3832 = vmatprep.subr.mxu0 0.0
      %3833 = vmatpush1.msra.mxu0 0.0
      %3834 = vmatprep.mubr.f32.mxu0 0.0
      %3835 = vmatmul.mubr.f32.gmra.mrb[0].mxu0 %v3672
      %v3836 = vpop.f32.mrb[0].mxu0
      %v3837 = vadd.f32 0.0, %v3836
      %v3838 = vpop.f32.mrb[0].mxu0
      %3839 = vmatprep.mubr.f32.mxu0 0.0
      %3840 = vmatmul.mubr.f32.gmra.mrb[0].mxu0 %v3675
      %v3841 = vpop.f32.mrb[0].mxu0
      %v3842 = vadd.f32 0.0, %v3841
      %v3843 = vpop.f32.mrb[0].mxu0
      %3844 = vmatprep.mubr.f32.mxu0 0.0
      %3845 = vmatmul.mubr.f32.gmra.mrb[0].mxu0 %v3678
      %v3846 = vpop.f32.mrb[0].mxu0
      %v3847 = vadd.f32 0.0, %v3846
      %v3848 = vpop.f32.mrb[0].mxu0
      %3849 = vmatprep.mubr.f32.mxu0 0.0
      %3850 = vmatmul.mubr.f32.gmra.mrb[0].mxu0 %v3681
      %v3851 = vpop.f32.mrb[0].mxu0
      %v3852 = vadd.f32 0.0, %v3851
      %v3853 = vpop.f32.mrb[0].mxu0
      %3854 = vmatprep.mubr.f32.mxu0 0.0
      %3855 = vmatmul.mubr.f32.gmra.mrb[0].mxu0 %v3684
      %v3856 = vpop.f32.mrb[0].mxu0
      %v3857 = vadd.f32 0.0, %v3856
      %v3858 = vpop.f32.mrb[0].mxu0
      %3859 = vmatprep.mubr.f32.mxu0 0.0
      %3860 = vmatmul.mubr.f32.gmra.mrb[0].mxu0 %v3687
      %v3861 = vpop.f32.mrb[0].mxu0
      %v3862 = vadd.f32 0.0, %v3861
      %v3863 = vpop.f32.mrb[0].mxu0
      %3864 = vmatprep.mubr.f32.mxu0 0.0
      %3865 = vmatmul.mubr.f32.gmra.mrb[0].mxu0 %v3690
      %v3866 = vpop.f32.mrb[0].mxu0
      %v3867 = vadd.f32 0.0, %v3866
      %v3868 = vpop.f32.mrb[0].mxu0
      %3869 = vmatprep.mubr.f32.mxu0 0.0
      %3870 = vmatmul.mubr.f32.gmra.mrb[0].mxu0 %v3693
      %v3871 = vpop.f32.mrb[0].mxu0
      %v3872 = vadd.f32 0.0, %v3871
      %v3873 = vpop.f32.mrb[0].mxu0
      %3874 = vmatprep.mubr.f32.mxu0 0.0
      %3875 = vmatmul.mubr.f32.gmra.mrb[0].mxu0 %v3696
      %v3876 = vpop.f32.mrb[0].mxu0
      %v3877 = vadd.f32 0.0, %v3876
      %v3878 = vpop.f32.mrb[0].mxu0
      %3879 = vmatprep.mubr.f32.mxu0 0.0
      %3880 = vmatmul.mubr.f32.gmra.mrb[0].mxu0 %v3699
      %v3881 = vpop.f32.mrb[0].mxu0
      %v3882 = vadd.f32 0.0, %v3881
      %v3883 = vpop.f32.mrb[0].mxu0
      %3884 = vmatprep.mubr.f32.mxu0 0.0
      %3885 = vmatmul.mubr.f32.gmra.mrb[0].mxu0 %v3702
      %v3886 = vpop.f32.mrb[0].mxu0
      %v3887 = vadd.f32 0.0, %v3886
      %v3888 = vpop.f32.mrb[0].mxu0
      %3889 = vmatprep.mubr.f32.mxu0 0.0
      %3890 = vmatmul.mubr.f32.gmra.mrb[0].mxu0 %v3705
      %v3891 = vpop.f32.mrb[0].mxu0
      %v3892 = vadd.f32 0.0, %v3891
      %v3893 = vpop.f32.mrb[0].mxu0
      %3894 = vmatprep.mubr.f32.mxu0 0.0
      %3895 = vmatmul.mubr.f32.gmra.mrb[0].mxu0 %v3708
      %v3896 = vpop.f32.mrb[0].mxu0
      %v3897 = vadd.f32 0.0, %v3896
      %v3898 = vpop.f32.mrb[0].mxu0
      %3899 = vmatprep.mubr.f32.mxu0 0.0
      %3900 = vmatmul.mubr.f32.gmra.mrb[0].mxu0 %v3711
      %v3901 = vpop.f32.mrb[0].mxu0
      %v3902 = vadd.f32 0.0, %v3901
      %v3903 = vpop.f32.mrb[0].mxu0
      %3904 = vmatprep.mubr.f32.mxu0 0.0
      %3905 = vmatmul.mubr.f32.gmra.mrb[0].mxu0 %v3714
      %v3906 = vpop.f32.mrb[0].mxu0
      %v3907 = vadd.f32 0.0, %v3906
      %v3908 = vpop.f32.mrb[0].mxu0
      %3909 = vmatprep.mubr.f32.mxu0 0.0
      %3910 = vmatmul.mubr.f32.gmra.mrb[0].mxu0 %v3717
      %v3911 = vpop.f32.mrb[0].mxu0
      %v3912 = vadd.f32 0.0, %v3911
      %v3913 = vpop.f32.mrb[0].mxu0
      %3914 = vmatprep.mubr.f32.mxu0 0.0
      %3915 = vmatmul.mubr.f32.gmra.mrb[0].mxu0 %v3720
      %v3916 = vpop.f32.mrb[0].mxu0
      %v3917 = vadd.f32 0.0, %v3916
      %v3918 = vpop.f32.mrb[0].mxu0
      %3919 = vmatprep.mubr.f32.mxu0 0.0
      %3920 = vmatmul.mubr.f32.gmra.mrb[0].mxu0 %v3723
      %v3921 = vpop.f32.mrb[0].mxu0
      %v3922 = vadd.f32 0.0, %v3921
      %v3923 = vpop.f32.mrb[0].mxu0
      %3924 = vmatprep.mubr.f32.mxu0 0.0
      %3925 = vmatmul.mubr.f32.gmra.mrb[0].mxu0 %v3726
      %v3926 = vpop.f32.mrb[0].mxu0
      %v3927 = vadd.f32 0.0, %v3926
      %v3928 = vpop.f32.mrb[0].mxu0
      %3929 = vmatprep.mubr.f32.mxu0 0.0
      %3930 = vmatmul.mubr.f32.gmra.mrb[0].mxu0 %v3729
      %v3931 = vpop.f32.mrb[0].mxu0
      %v3932 = vadd.f32 0.0, %v3931
      %v3933 = vpop.f32.mrb[0].mxu0
      %3934 = vmatprep.mubr.f32.mxu0 0.0
      %3935 = vmatmul.mubr.f32.gmra.mrb[0].mxu0 %v3732
      %v3936 = vpop.f32.mrb[0].mxu0
      %v3937 = vadd.f32 0.0, %v3936
      %v3938 = vpop.f32.mrb[0].mxu0
      %3939 = vmatprep.mubr.f32.mxu0 0.0
      %3940 = vmatmul.mubr.f32.gmra.mrb[0].mxu0 %v3735
      %v3941 = vpop.f32.mrb[0].mxu0
      %v3942 = vadd.f32 0.0, %v3941
      %v3943 = vpop.f32.mrb[0].mxu0
      %3944 = vmatprep.mubr.f32.mxu0 0.0
      %3945 = vmatmul.mubr.f32.gmra.mrb[0].mxu0 %v3738
      %v3946 = vpop.f32.mrb[0].mxu0
      %v3947 = vadd.f32 0.0, %v3946
      %v3948 = vpop.f32.mrb[0].mxu0
      %3949 = vmatprep.mubr.f32.mxu0 0.0
      %3950 = vmatmul.mubr.f32.gmra.mrb[0].mxu0 %v3741
      %v3951 = vpop.f32.mrb[0].mxu0
      %v3952 = vadd.f32 0.0, %v3951
      %v3953 = vpop.f32.mrb[0].mxu0
      %3954 = vmatprep.mubr.f32.mxu0 0.0
      %3955 = vmatmul.mubr.f32.gmra.mrb[0].mxu0 %v3744
      %v3956 = vpop.f32.mrb[0].mxu0
      %v3957 = vadd.f32 0.0, %v3956
      %v3958 = vpop.f32.mrb[0].mxu0
      %3959 = vmatprep.mubr.f32.mxu0 0.0
      %3960 = vmatmul.mubr.f32.gmra.mrb[0].mxu0 %v3747
      %v3961 = vpop.f32.mrb[0].mxu0
      %v3962 = vadd.f32 0.0, %v3961
      %v3963 = vpop.f32.mrb[0].mxu0
      %3964 = vmatprep.mubr.f32.mxu0 0.0
      %3965 = vmatmul.mubr.f32.gmra.mrb[0].mxu0 %v3750
      %v3966 = vpop.f32.mrb[0].mxu0
      %v3967 = vadd.f32 0.0, %v3966
      %v3968 = vpop.f32.mrb[0].mxu0
      %3969 = vmatprep.mubr.f32.mxu0 0.0
      %3970 = vmatmul.mubr.f32.gmra.mrb[0].mxu0 %v3753
      %v3971 = vpop.f32.mrb[0].mxu0
      %v3972 = vadd.f32 0.0, %v3971
      %v3973 = vpop.f32.mrb[0].mxu0
      %3974 = vmatprep.mubr.f32.mxu0 0.0
      %3975 = vmatmul.mubr.f32.gmra.mrb[0].mxu0 %v3756
      %v3976 = vpop.f32.mrb[0].mxu0
      %v3977 = vadd.f32 0.0, %v3976
      %v3978 = vpop.f32.mrb[0].mxu0
      %3979 = vmatprep.mubr.f32.mxu0 0.0
      %3980 = vmatmul.mubr.f32.gmra.mrb[0].mxu0 %v3759
      %v3981 = vpop.f32.mrb[0].mxu0
      %v3982 = vadd.f32 0.0, %v3981
      %v3983 = vpop.f32.mrb[0].mxu0
      %3984 = vmatprep.mubr.f32.mxu0 0.0
      %3985 = vmatmul.mubr.f32.gmra.mrb[0].mxu0 %v3762
      %v3986 = vpop.f32.mrb[0].mxu0
      %v3987 = vadd.f32 0.0, %v3986
      %v3988 = vpop.f32.mrb[0].mxu0
      %3989 = vmatprep.mubr.f32.mxu0 0.0
      %3990 = vmatmul.mubr.f32.gmra.mrb[0].mxu0 %v3765
      %v3991 = vpop.f32.mrb[0].mxu0
      %v3992 = vadd.f32 0.0, %v3991
      %v3993 = vpop.f32.mrb[0].mxu0
      %3994 = vdwg.mxu0
      %v3995 = vadd.f32 %v3605, %v3837
      %v3996 = vadd.f32 %v3606, %v3842
      %v3997 = vadd.f32 %v3607, %v3847
      %v3998 = vadd.f32 %v3608, %v3852
      %v3999 = vadd.f32 %v3609, %v3857
      %v4000 = vadd.f32 %v3610, %v3862
      %v4001 = vadd.f32 %v3611, %v3867
      %v4002 = vadd.f32 %v3612, %v3872
      %v4003 = vadd.f32 %v3613, %v3877
      %v4004 = vadd.f32 %v3614, %v3882
      %v4005 = vadd.f32 %v3615, %v3887
      %v4006 = vadd.f32 %v3616, %v3892
      %v4007 = vadd.f32 %v3617, %v3897
      %v4008 = vadd.f32 %v3618, %v3902
      %v4009 = vadd.f32 %v3619, %v3907
      %v4010 = vadd.f32 %v3620, %v3912
      %v4011 = vadd.f32 %v3621, %v3917
      %v4012 = vadd.f32 %v3622, %v3922
      %v4013 = vadd.f32 %v3623, %v3927
      %v4014 = vadd.f32 %v3624, %v3932
      %v4015 = vadd.f32 %v3625, %v3937
      %v4016 = vadd.f32 %v3626, %v3942
      %v4017 = vadd.f32 %v3627, %v3947
      %v4018 = vadd.f32 %v3628, %v3952
      %v4019 = vadd.f32 %v3629, %v3957
      %v4020 = vadd.f32 %v3630, %v3962
      %v4021 = vadd.f32 %v3631, %v3967
      %v4022 = vadd.f32 %v3632, %v3972
      %v4023 = vadd.f32 %v3633, %v3977
      %v4024 = vadd.f32 %v3634, %v3982
      %v4025 = vadd.f32 %v3635, %v3987
      %v4026 = vadd.f32 %v3636, %v3992
      %4027 = vst.msk [vmem:[%s274] sm:$0xff] %vm547, %v3995
      %4028 = vst.msk [vmem:[%s274 + $0x8] sm:$0xff] %vm547, %v3996
      %4029 = vst.msk [vmem:[%s274 + $0x10] sm:$0xff] %vm547, %v3997
      %4030 = vst.msk [vmem:[%s274 + $0x18] sm:$0xff] %vm547, %v3998
      %4031 = vst.msk [vmem:[%s274 + $0x20] sm:$0xff] %vm547, %v3999
      %4032 = vst.msk [vmem:[%s274 + $0x28] sm:$0xff] %vm547, %v4000
      %4033 = vst.msk [vmem:[%s274 + $0x30] sm:$0xff] %vm547, %v4001
      %4034 = vst.msk [vmem:[%s274 + $0x38] sm:$0xff] %vm547, %v4002
      %4035 = vst.msk [vmem:[%s274 + $0x40] sm:$0xff] %vm547, %v4003
      %4036 = vst.msk [vmem:[%s274 + $0x48] sm:$0xff] %vm547, %v4004
      %4037 = vst.msk [vmem:[%s274 + $0x50] sm:$0xff] %vm547, %v4005
      %4038 = vst.msk [vmem:[%s274 + $0x58] sm:$0xff] %vm547, %v4006
      %4039 = vst.msk [vmem:[%s274 + $0x60] sm:$0xff] %vm547, %v4007
      %4040 = vst.msk [vmem:[%s274 + $0x68] sm:$0xff] %vm547, %v4008
      %4041 = vst.msk [vmem:[%s274 + $0x70] sm:$0xff] %vm547, %v4009
      %4042 = vst.msk [vmem:[%s274 + $0x78] sm:$0xff] %vm547, %v4010
      %4043 = vst.msk [vmem:[%s274 + $0x80] sm:$0xff] %vm547, %v4011
      %4044 = vst.msk [vmem:[%s274 + $0x88] sm:$0xff] %vm547, %v4012
      %4045 = vst.msk [vmem:[%s274 + $0x90] sm:$0xff] %vm547, %v4013
      %4046 = vst.msk [vmem:[%s274 + $0x98] sm:$0xff] %vm547, %v4014
      %4047 = vst.msk [vmem:[%s274 + $0xa0] sm:$0xff] %vm547, %v4015
      %4048 = vst.msk [vmem:[%s274 + $0xa8] sm:$0xff] %vm547, %v4016
      %4049 = vst.msk [vmem:[%s274 + $0xb0] sm:$0xff] %vm547, %v4017
      %4050 = vst.msk [vmem:[%s274 + $0xb8] sm:$0xff] %vm547, %v4018
      %4051 = vst.msk [vmem:[%s274 + $0xc0] sm:$0xff] %vm547, %v4019
      %4052 = vst.msk [vmem:[%s274 + $0xc8] sm:$0xff] %vm547, %v4020
      %4053 = vst.msk [vmem:[%s274 + $0xd0] sm:$0xff] %vm547, %v4021
      %4054 = vst.msk [vmem:[%s274 + $0xd8] sm:$0xff] %vm547, %v4022
      %4055 = vst.msk [vmem:[%s274 + $0xe0] sm:$0xff] %vm547, %v4023
      %4056 = vst.msk [vmem:[%s274 + $0xe8] sm:$0xff] %vm547, %v4024
      %4057 = vst.msk [vmem:[%s274 + $0xf0] sm:$0xff] %vm547, %v4025
      %4058 = vst.msk [vmem:[%s274 + $0xf8] sm:$0xff] %vm547, %v4026
      %v4059 = vld [vmem:[%s6] sm:$0x1]
      %v4060 = vsel %vm547, %v3995, 0.0
      %v4061 = vsel %vm547, %v3996, 0.0
      %v4062 = vadd.f32 %v4060, %v4061
      %v4063 = vsel %vm547, %v3997, 0.0
      %v4064 = vadd.f32 %v4062, %v4063
      %v4065 = vsel %vm547, %v3998, 0.0
      %v4066 = vadd.f32 %v4064, %v4065
      %v4067 = vsel %vm547, %v3999, 0.0
      %v4068 = vadd.f32 %v4066, %v4067
      %v4069 = vsel %vm547, %v4000, 0.0
      %v4070 = vadd.f32 %v4068, %v4069
      %v4071 = vsel %vm547, %v4001, 0.0
      %v4072 = vadd.f32 %v4070, %v4071
      %v4073 = vsel %vm547, %v4002, 0.0
      %v4074 = vadd.f32 %v4072, %v4073
      %v4075 = vsel %vm547, %v4003, 0.0
      %v4076 = vadd.f32 %v4074, %v4075
      %v4077 = vsel %vm547, %v4004, 0.0
      %v4078 = vadd.f32 %v4076, %v4077
      %v4079 = vsel %vm547, %v4005, 0.0
      %v4080 = vadd.f32 %v4078, %v4079
      %v4081 = vsel %vm547, %v4006, 0.0
      %v4082 = vadd.f32 %v4080, %v4081
      %v4083 = vsel %vm547, %v4007, 0.0
      %v4084 = vadd.f32 %v4082, %v4083
      %v4085 = vsel %vm547, %v4008, 0.0
      %v4086 = vadd.f32 %v4084, %v4085
      %v4087 = vsel %vm547, %v4009, 0.0
      %v4088 = vadd.f32 %v4086, %v4087
      %v4089 = vsel %vm547, %v4010, 0.0
      %v4090 = vadd.f32 %v4088, %v4089
      %v4091 = vsel %vm547, %v4011, 0.0
      %v4092 = vadd.f32 %v4090, %v4091
      %v4093 = vsel %vm547, %v4012, 0.0
      %v4094 = vadd.f32 %v4092, %v4093
      %v4095 = vsel %vm547, %v4013, 0.0
      %v4096 = vadd.f32 %v4094, %v4095
      %v4097 = vsel %vm547, %v4014, 0.0
      %v4098 = vadd.f32 %v4096, %v4097
      %v4099 = vsel %vm547, %v4015, 0.0
      %v4100 = vadd.f32 %v4098, %v4099
      %v4101 = vsel %vm547, %v4016, 0.0
      %v4102 = vadd.f32 %v4100, %v4101
      %v4103 = vsel %vm547, %v4017, 0.0
      %v4104 = vadd.f32 %v4102, %v4103
      %v4105 = vsel %vm547, %v4018, 0.0
      %v4106 = vadd.f32 %v4104, %v4105
      %v4107 = vsel %vm547, %v4019, 0.0
      %v4108 = vadd.f32 %v4106, %v4107
      %v4109 = vsel %vm547, %v4020, 0.0
      %v4110 = vadd.f32 %v4108, %v4109
      %v4111 = vsel %vm547, %v4021, 0.0
      %v4112 = vadd.f32 %v4110, %v4111
      %v4113 = vsel %vm547, %v4022, 0.0
      %v4114 = vadd.f32 %v4112, %v4113
      %v4115 = vsel %vm547, %v4023, 0.0
      %v4116 = vadd.f32 %v4114, %v4115
      %v4117 = vsel %vm547, %v4024, 0.0
      %v4118 = vadd.f32 %v4116, %v4117
      %v4119 = vsel %vm547, %v4025, 0.0
      %v4120 = vadd.f32 %v4118, %v4119
      %v4121 = vsel %vm547, %v4026, 0.0
      %v4122 = vadd.f32 %v4120, %v4121
      %v4123 = vrot.slane %v4122, 4
      %v4124 = vadd.f32 %v4122, %v4123
      %v4125 = vrot.slane %v4124, 2
      %v4126 = vadd.f32 %v4124, %v4125
      %v4127 = vrot.slane %v4126, 1
      %v4128 = vadd.f32 %v4126, %v4127
      %v4129 = vadd.f32 %v4059, %v4128
      %vm4130 = vcmask 24576
      %4131 = vst.msk [vmem:[%s6] sm:$0x1] %vm4130, %v4129
      %v4132 = vld [vmem:[%s7] sm:$0x1]
      %v4133 = vmul.f32 %v3995, %v3995
      %v4134 = vmul.f32 %v3996, %v3996
      %v4135 = vmul.f32 %v3997, %v3997
      %v4136 = vmul.f32 %v3998, %v3998
      %v4137 = vmul.f32 %v3999, %v3999
      %v4138 = vmul.f32 %v4000, %v4000
      %v4139 = vmul.f32 %v4001, %v4001
      %v4140 = vmul.f32 %v4002, %v4002
      %v4141 = vmul.f32 %v4003, %v4003
      %v4142 = vmul.f32 %v4004, %v4004
      %v4143 = vmul.f32 %v4005, %v4005
      %v4144 = vmul.f32 %v4006, %v4006
      %v4145 = vmul.f32 %v4007, %v4007
      %v4146 = vmul.f32 %v4008, %v4008
      %v4147 = vmul.f32 %v4009, %v4009
      %v4148 = vmul.f32 %v4010, %v4010
      %v4149 = vmul.f32 %v4011, %v4011
      %v4150 = vmul.f32 %v4012, %v4012
      %v4151 = vmul.f32 %v4013, %v4013
      %v4152 = vmul.f32 %v4014, %v4014
      %v4153 = vmul.f32 %v4015, %v4015
      %v4154 = vmul.f32 %v4016, %v4016
      %v4155 = vmul.f32 %v4017, %v4017
      %v4156 = vmul.f32 %v4018, %v4018
      %v4157 = vmul.f32 %v4019, %v4019
      %v4158 = vmul.f32 %v4020, %v4020
      %v4159 = vmul.f32 %v4021, %v4021
      %v4160 = vmul.f32 %v4022, %v4022
      %v4161 = vmul.f32 %v4023, %v4023
      %v4162 = vmul.f32 %v4024, %v4024
      %v4163 = vmul.f32 %v4025, %v4025
      %v4164 = vmul.f32 %v4026, %v4026
      %v4165 = vsel %vm547, %v4133, 0.0
      %v4166 = vsel %vm547, %v4134, 0.0
      %v4167 = vadd.f32 %v4165, %v4166
      %v4168 = vsel %vm547, %v4135, 0.0
      %v4169 = vadd.f32 %v4167, %v4168
      %v4170 = vsel %vm547, %v4136, 0.0
      %v4171 = vadd.f32 %v4169, %v4170
      %v4172 = vsel %vm547, %v4137, 0.0
      %v4173 = vadd.f32 %v4171, %v4172
      %v4174 = vsel %vm547, %v4138, 0.0
      %v4175 = vadd.f32 %v4173, %v4174
      %v4176 = vsel %vm547, %v4139, 0.0
      %v4177 = vadd.f32 %v4175, %v4176
      %v4178 = vsel %vm547, %v4140, 0.0
      %v4179 = vadd.f32 %v4177, %v4178
      %v4180 = vsel %vm547, %v4141, 0.0
      %v4181 = vadd.f32 %v4179, %v4180
      %v4182 = vsel %vm547, %v4142, 0.0
      %v4183 = vadd.f32 %v4181, %v4182
      %v4184 = vsel %vm547, %v4143, 0.0
      %v4185 = vadd.f32 %v4183, %v4184
      %v4186 = vsel %vm547, %v4144, 0.0
      %v4187 = vadd.f32 %v4185, %v4186
      %v4188 = vsel %vm547, %v4145, 0.0
      %v4189 = vadd.f32 %v4187, %v4188
      %v4190 = vsel %vm547, %v4146, 0.0
      %v4191 = vadd.f32 %v4189, %v4190
      %v4192 = vsel %vm547, %v4147, 0.0
      %v4193 = vadd.f32 %v4191, %v4192
      %v4194 = vsel %vm547, %v4148, 0.0
      %v4195 = vadd.f32 %v4193, %v4194
      %v4196 = vsel %vm547, %v4149, 0.0
      %v4197 = vadd.f32 %v4195, %v4196
      %v4198 = vsel %vm547, %v4150, 0.0
      %v4199 = vadd.f32 %v4197, %v4198
      %v4200 = vsel %vm547, %v4151, 0.0
      %v4201 = vadd.f32 %v4199, %v4200
      %v4202 = vsel %vm547, %v4152, 0.0
      %v4203 = vadd.f32 %v4201, %v4202
      %v4204 = vsel %vm547, %v4153, 0.0
      %v4205 = vadd.f32 %v4203, %v4204
      %v4206 = vsel %vm547, %v4154, 0.0
      %v4207 = vadd.f32 %v4205, %v4206
      %v4208 = vsel %vm547, %v4155, 0.0
      %v4209 = vadd.f32 %v4207, %v4208
      %v4210 = vsel %vm547, %v4156, 0.0
      %v4211 = vadd.f32 %v4209, %v4210
      %v4212 = vsel %vm547, %v4157, 0.0
      %v4213 = vadd.f32 %v4211, %v4212
      %v4214 = vsel %vm547, %v4158, 0.0
      %v4215 = vadd.f32 %v4213, %v4214
      %v4216 = vsel %vm547, %v4159, 0.0
      %v4217 = vadd.f32 %v4215, %v4216
      %v4218 = vsel %vm547, %v4160, 0.0
      %v4219 = vadd.f32 %v4217, %v4218
      %v4220 = vsel %vm547, %v4161, 0.0
      %v4221 = vadd.f32 %v4219, %v4220
      %v4222 = vsel %vm547, %v4162, 0.0
      %v4223 = vadd.f32 %v4221, %v4222
      %v4224 = vsel %vm547, %v4163, 0.0
      %v4225 = vadd.f32 %v4223, %v4224
      %v4226 = vsel %vm547, %v4164, 0.0
      %v4227 = vadd.f32 %v4225, %v4226
      %v4228 = vrot.slane %v4227, 4
      %v4229 = vadd.f32 %v4227, %v4228
      %v4230 = vrot.slane %v4229, 2
      %v4231 = vadd.f32 %v4229, %v4230
      %v4232 = vrot.slane %v4231, 1
      %v4233 = vadd.f32 %v4231, %v4232
      %v4234 = vadd.f32 %v4132, %v4233
      %4235 = vst.msk [vmem:[%s7] sm:$0x1] %vm4130, %v4234
      %p4236 = scmp.lt.s32.totalorder %s20, 1
      %s4237 = scalar_select %p4236, %s20, 1
      %s4238 = smul.addr %s4237, 32
      %s4239 = smul.addr %s4238, 8
      %s4240 = scalar_lea.vmem %s5, %s4239
      // Predicated region
      $region45: #{residual_block_pallas.4} parent=39 // pred_check
        %p4241 = pneg %p148
      $region46: #{residual_block_pallas.4} parent=39 // pred_check_branch
        %4243 = sbr.rel (%p4241) target = $region48
      $region47: #{residual_block_pallas.4} parent=39 // pred_region
        _
      $region48: #{residual_block_pallas.4} parent=39 // pred_fallthru
        _
      // Predicated region
      $region49: #{residual_block_pallas.4} parent=39 // pred_check
        %p4244 = pneg %p169
      $region50: #{residual_block_pallas.4} parent=39 // pred_check_branch
        %4246 = sbr.rel (%p4244) target = $region52
      $region51: #{residual_block_pallas.4} parent=39 // pred_region
        _
      $region52: #{residual_block_pallas.4} parent=39 // pred_fallthru
        _
      // Predicated region
      $region53: #{residual_block_pallas.4} parent=39 // pred_check
        %p4247 = pneg %p190
      $region54: #{residual_block_pallas.4} parent=39 // pred_check_branch
        %4249 = sbr.rel (%p4247) target = $region56
      $region55: #{residual_block_pallas.4} parent=39 // pred_region
        _
      $region56: #{residual_block_pallas.4} parent=39 // pred_fallthru
        _
      // Predicated region
      $region57: #{residual_block_pallas.4} parent=39 // pred_check
        %p4250 = pneg %p169
      $region58: #{residual_block_pallas.4} parent=39 // pred_check_branch
        %4252 = sbr.rel (%p4250) target = $region60
      $region59: #{residual_block_pallas.4} parent=39 // pred_region
        _
      $region60: #{residual_block_pallas.4} parent=39 // pred_fallthru
        _
      // Predicated region
      $region61: #{residual_block_pallas.4} parent=39 // pred_check
        %p4253 = pneg %p190
      $region62: #{residual_block_pallas.4} parent=39 // pred_check_branch
        %4255 = sbr.rel (%p4253) target = $region64
      $region63: #{residual_block_pallas.4} parent=39 // pred_region
        _
      $region64: #{residual_block_pallas.4} parent=39 // pred_fallthru
        _
    $region40: #{residual_block_pallas.4} parent=5 // pred_fallthru
      _
    %p4256 = scmp.le.s32.totalorder 2, %s15
    // Predicated region
    $region65: #{residual_block_pallas.4} parent=5 // pred_check
      %p4257 = pneg %p4256
    $region66: #{residual_block_pallas.4} parent=5 // pred_check_branch
      %4259 = sbr.rel (%p4257) target = $region68
    $region67: #{residual_block_pallas.4} parent=5 // pred_region
      %s4260 = ssub.s32 %s15, 2
      // Predicated region
      $region69: #{residual_block_pallas.4} parent=67 // pred_check
        %p4261 = pneg %p154
      $region70: #{residual_block_pallas.4} parent=67 // pred_check_branch
        %4263 = sbr.rel (%p4261) target = $region72
      $region71: #{residual_block_pallas.4} parent=67 // pred_region
        %p4264 = scmp.lt.s32.totalorder %s21, 1
        %s4265 = scalar_select %p4264, %s21, 1
        %s4266 = smul.addr %s4265, 32
        %s4267 = smul.addr %s4266, 8
        %s4268 = scalar_lea.vmem %s5, %s4267
      $region72: #{residual_block_pallas.4} parent=67 // pred_fallthru
        _
    $region68: #{residual_block_pallas.4} parent=5 // pred_fallthru
      _
  $region6: #{residual_block_pallas.4} parent=0 // loop_footer
    %s19 = sadd.s32 1, %s15
  $region7: #{residual_block_pallas.4} parent=0 // loop_footer_branch
    %14 = sbr.rel target = $region3
  $region8: #{residual_block_pallas.4} parent=0 // loop_exit
    _

</llo_original>
